<compile_context>
chip_gen: v7x
topology: tpu7x:2x2x1
jax: 0.10.0
libtpu: 0.0.40
codegen_flags: <defaults>
</compile_context>

<pallas_src>
import jax
import jax.numpy as jnp
from jax import lax
from jax.experimental import pallas as pl
from jax.experimental.pallas import tpu as pltpu

NODES = 128                      # nodes per graph (sublane/lane aligned)
FP = 128                         # padded feature width (lane width)
F_IN, H1, H2, F_OUT = 2, 16, 32, 1
F_IN_PAD = 16                    # input features padded to one bf16 sublane tile
GRAPHS_PER_STEP = 4              # G graphs per grid step


def _gcn_kernel(e_ref, x_ref, w_ref, b_ref, o_ref):
    """Processes GRAPHS_PER_STEP graphs per grid step.

    e_ref: [G, 2, E]     int32    edge_index (row 0 = src, row 1 = dst)
    x_ref: [G, N, 16]    bfloat16 node features (only first 2 lanes meaningful)
    w_ref: [3, 128, 128] bfloat16 zero-padded weights (VMEM-resident across grid)
    b_ref: [8, 128]      float32  zero-padded biases   (VMEM-resident across grid)
    o_ref: [G, N, 1]     float32  output
    """
    g_per_step, n, _ = x_ref.shape
    num_e = e_ref.shape[2]

    w1 = w_ref[0, :F_IN_PAD, :]                 # (16, 128) - one aligned bf16 tile
    w2 = w_ref[1]                               # (128, 128)
    w3 = w_ref[2]
    b1, b2, b3 = b_ref[0:1, :], b_ref[1:2, :], b_ref[2:3, :]

    for g in range(g_per_step):                 # static unroll, G is small
        # ---- build normalized adjacency on the MXU (no HBM round trip) ----
        edges = e_ref[g]                                        # (2, E) int32
        src = edges[0:1, :]                                     # (1, E)
        dst = edges[1:2, :]                                     # (1, E)
        node_iota = lax.broadcasted_iota(jnp.int32, (n, num_e), 0)
        # one-hots in (node, edge) orientation -> NT matmul contracts the edge axis
        oh_dst = jnp.where(node_iota == dst, 1.0, 0.0).astype(jnp.bfloat16)  # [i,e]=dst[e]==i
        oh_src = jnp.where(node_iota == src, 1.0, 0.0).astype(jnp.bfloat16)  # [j,e]=src[e]==j
        a = lax.dot_general(oh_dst, oh_src, (((1,), (1,)), ((), ())),
                            preferred_element_type=jnp.float32)              # A[i,j]=#edges j->i
        eye = jnp.where(lax.broadcasted_iota(jnp.int32, (n, n), 0)
                        == lax.broadcasted_iota(jnp.int32, (n, n), 1), 1.0, 0.0)
        a = a + eye                                             # add self loops
        deg = jnp.sum(a, axis=1, keepdims=True)                 # (N,1), >= 1
        dis = lax.rsqrt(deg)                                    # D^-1/2  (f32)
        m = (dis * a).astype(jnp.bfloat16)                      # row-scaled D^-1/2 (A+I)

        # ---- 3-layer GCN; column scale folded into features: M @ (d * (h W)) ----
        h = jnp.dot(x_ref[g], w1, preferred_element_type=jnp.float32)        # (N, 128) f32
        h = jnp.dot(m, (dis * h).astype(jnp.bfloat16),
                    preferred_element_type=jnp.float32) + b1
        h = jnp.maximum(h, 0.0)

        h = jnp.dot(h.astype(jnp.bfloat16), w2, preferred_element_type=jnp.float32)
        h = jnp.dot(m, (dis * h).astype(jnp.bfloat16),
                    preferred_element_type=jnp.float32) + b2
        h = jnp.maximum(h, 0.0)

        h = jnp.dot(h.astype(jnp.bfloat16), w3, preferred_element_type=jnp.float32)
        h = jnp.dot(m, (dis * h).astype(jnp.bfloat16),
                    preferred_element_type=jnp.float32) + b3

        o_ref[g] = h[:, :F_OUT]                                 # (N,1) f32 - tiny writeback


def prepare_padded_params(params):
    """Pad weights/biases into lane-dense resident slabs ONCE (cache as model state)."""
    w1, b1, w2, b2, w3, b3 = params
    wp = jnp.zeros((3, FP, FP), jnp.float32)
    wp = wp.at[0, :F_IN, :H1].set(w1.astype(jnp.float32))
    wp = wp.at[1, :H1, :H2].set(w2.astype(jnp.float32))
    wp = wp.at[2, :H2, :F_OUT].set(w3.astype(jnp.float32))
    bp = jnp.zeros((8, FP), jnp.float32)
    bp = bp.at[0, :H1].set(b1.astype(jnp.float32))
    bp = bp.at[1, :H2].set(b2.astype(jnp.float32))
    bp = bp.at[2, :F_OUT].set(b3.astype(jnp.float32))
    return wp.astype(jnp.bfloat16), bp


@jax.jit
def cavity_gnn_forward(x, edge_index, padded_params):
    """x: [B, NODES, 2], edge_index: [B, 2, E] -> [B, NODES, 1] float32."""
    wp, bp = padded_params
    batch, num_nodes, f_in = x.shape
    num_edges = edge_index.shape[-1]
    assert num_nodes == NODES and f_in <= F_IN_PAD
    g = GRAPHS_PER_STEP
    assert batch % g == 0, "batch must be a multiple of GRAPHS_PER_STEP"

    # Tiny bf16 feature slab (16 lanes, not 128) - no big zero-pad stream through HBM.
    xp = jnp.zeros((batch, num_nodes, F_IN_PAD), jnp.bfloat16)
    xp = xp.at[:, :, :f_in].set(x.astype(jnp.bfloat16))
    ei = edge_index.astype(jnp.int32)

    cost = pl.CostEstimate(
        flops=int(batch * (2 * num_nodes * num_edges * num_nodes          # adjacency build
                           + 6 * 2 * num_nodes * num_nodes * FP)),        # 3x (HW + AH)
        transcendentals=int(batch * num_nodes),                           # rsqrt per node
        bytes_accessed=int(batch * (2 * num_edges * 4                     # edge_index
                                    + num_nodes * F_IN_PAD * 2            # X (bf16)
                                    + num_nodes * F_OUT * 4)              # output
                           + 3 * FP * FP * 2 + 8 * FP * 4),               # resident params
    )

    return pl.pallas_call(
        _gcn_kernel,
        out_shape=jax.ShapeDtypeStruct((batch, num_nodes, F_OUT), jnp.float32),
        grid=(batch // g,),
        in_specs=[
            pl.BlockSpec((g, 2, num_edges), lambda i: (i, 0, 0)),          # edges  (per step)
            pl.BlockSpec((g, num_nodes, F_IN_PAD), lambda i: (i, 0, 0)),   # X      (per step)
            pl.BlockSpec((3, FP, FP), lambda i: (0, 0, 0)),                # W slab (resident)
            pl.BlockSpec((8, FP), lambda i: (0, 0)),                       # b slab (resident)
        ],
        out_specs=pl.BlockSpec((g, num_nodes, F_OUT), lambda i: (i, 0, 0)),
        compiler_params=pltpu.CompilerParams(dimension_semantics=("parallel",)),
        cost_estimate=cost,
    )(ei, xp, wp, bp)


# ------------------------- pure-JAX f32 reference (test only) -------------------------

def dense_gcn_adjacency(edge_index, num_nodes):
    """Dense A_hat = D^-1/2 (A + I) D^-1/2 (PyG GCNConv semantics, duplicates summed)."""
    src, dst = edge_index[0], edge_index[1]
    loop = jnp.arange(num_nodes, dtype=src.dtype)
    src = jnp.concatenate([src, loop])
    dst = jnp.concatenate([dst, loop])
    oh_dst = jax.nn.one_hot(dst, num_nodes, dtype=jnp.float32)      # [E+N, N]
    oh_src = jax.nn.one_hot(src, num_nodes, dtype=jnp.float32)      # [E+N, N]
    a = jnp.dot(oh_dst.T, oh_src)                                   # A[i,j] = #edges j->i
    deg = a.sum(axis=1)
    dis = jnp.where(deg > 0, 1.0 / jnp.sqrt(deg), 0.0)
    return dis[:, None] * a * dis[None, :]


def _reference_forward(x, edge_index, params, num_nodes=NODES):
    """Dense f32 reference of the GCNConv stack (single graph)."""
    w1, b1, w2, b2, w3, b3 = params
    a_hat = dense_gcn_adjacency(edge_index, num_nodes)
    h = jnp.maximum(a_hat @ (x @ w1) + b1, 0.0)
    h = jnp.maximum(a_hat @ (h @ w2) + b2, 0.0)
    return a_hat @ (h @ w3) + b3


def _init_params(key):
    """Deterministic glorot-uniform weights, zero biases (GCNConv(2,16)/(16,32)/(32,1))."""
    def glorot(k, shape):
        fan_in, fan_out = shape
        lim = jnp.sqrt(6.0 / (fan_in + fan_out))
        return jax.random.uniform(k, shape, jnp.float32, -lim, lim)

    k1, k2, k3 = jax.random.split(key, 3)
    w1 = glorot(k1, (F_IN, H1)); b1 = jnp.zeros((H1,), jnp.float32)
    w2 = glorot(k2, (H1, H2));   b2 = jnp.zeros((H2,), jnp.float32)
    w3 = glorot(k3, (H2, F_OUT)); b3 = jnp.zeros((F_OUT,), jnp.float32)
    return (w1, b1, w2, b2, w3, b3)


if __name__ == "__main__":
    key = jax.random.PRNGKey(0)
    k_x, k_e, k_p = jax.random.split(key, 3)

    B = 8                    # batch of graphs: B % GRAPHS_PER_STEP == 0, grid length even (v7x)
    num_edges = 512
    x = jax.random.normal(k_x, (B, NODES, F_IN), jnp.float32)                     # (u, v) features
    edge_index = jax.random.randint(k_e, (B, 2, num_edges), 0, NODES, jnp.int32)  # random graphs
    params = _init_params(k_p)
    padded_params = prepare_padded_params(params)                                 # pad once

    out = cavity_gnn_forward(x, edge_index, padded_params)
    out = jax.block_until_ready(out)

    ref = jax.vmap(lambda xb, eb: _reference_forward(xb, eb, params))(x, edge_index)
    assert out.shape == (B, NODES, 1), out.shape
    max_err = float(jnp.max(jnp.abs(out - ref)))
    # bf16 MXU operands with f32 accumulation vs. f32 reference -> loosened tolerance.
    assert jnp.allclose(out, ref, atol=5e-2, rtol=5e-2), max_err

    print("KERNEL_OK")
</pallas_src>

<mosaic_0001>
module attributes {stable_mosaic.version = 11 : i64} {
  func.func @_gcn_kernel(%arg0: i32, %arg1: memref<4x2x512xi32, #tpu.memory_space<vmem>>, %arg2: memref<4x128x16xbf16, #tpu.memory_space<vmem>>, %arg3: memref<3x128x128xbf16, #tpu.memory_space<vmem>>, %arg4: memref<8x128xf32, #tpu.memory_space<vmem>>, %arg5: memref<4x128x1xf32, #tpu.memory_space<vmem>>) attributes {dimension_semantics = [#tpu.dimension_semantics<parallel>], iteration_bounds = array<i64: 2>, scalar_prefetch = 0 : i64, scratch_operands = 0 : i64, tpu.core_type = #tpu.core_type<tc>, window_params = [{transform_indices = @transform_0, window_bounds = array<i64: 4, 2, 512>}, {transform_indices = @transform_1, window_bounds = array<i64: 4, 128, 16>}, {pipeline_mode = #tpu.pipeline_mode<synchronous>, transform_indices = @transform_2, window_bounds = array<i64: 3, 128, 128>}, {pipeline_mode = #tpu.pipeline_mode<synchronous>, transform_indices = @transform_3, window_bounds = array<i64: 8, 128>}, {transform_indices = @transform_4, window_bounds = array<i64: 4, 128, 1>}]} {
    %c0 = arith.constant 0 : index
    %c0_0 = arith.constant 0 : index
    %c0_1 = arith.constant 0 : index
    %0 = vector.load %arg3[%c0, %c0_0, %c0_1] : memref<3x128x128xbf16, #tpu.memory_space<vmem>>, vector<1x16x128xbf16>
    %1 = vector.shape_cast %0 : vector<1x16x128xbf16> to vector<16x128xbf16>
    %c1 = arith.constant 1 : index
    %c0_2 = arith.constant 0 : index
    %c0_3 = arith.constant 0 : index
    %2 = vector.load %arg3[%c1, %c0_2, %c0_3] : memref<3x128x128xbf16, #tpu.memory_space<vmem>>, vector<1x128x128xbf16>
    %3 = vector.shape_cast %2 : vector<1x128x128xbf16> to vector<128x128xbf16>
    %c2 = arith.constant 2 : index
    %c0_4 = arith.constant 0 : index
    %c0_5 = arith.constant 0 : index
    %4 = vector.load %arg3[%c2, %c0_4, %c0_5] : memref<3x128x128xbf16, #tpu.memory_space<vmem>>, vector<1x128x128xbf16>
    %5 = vector.shape_cast %4 : vector<1x128x128xbf16> to vector<128x128xbf16>
    %c0_6 = arith.constant 0 : index
    %c0_7 = arith.constant 0 : index
    %6 = vector.load %arg4[%c0_6, %c0_7] : memref<8x128xf32, #tpu.memory_space<vmem>>, vector<1x128xf32>
    %c1_8 = arith.constant 1 : index
    %c0_9 = arith.constant 0 : index
    %7 = vector.load %arg4[%c1_8, %c0_9] : memref<8x128xf32, #tpu.memory_space<vmem>>, vector<1x128xf32>
    %c2_10 = arith.constant 2 : index
    %c0_11 = arith.constant 0 : index
    %8 = vector.load %arg4[%c2_10, %c0_11] : memref<8x128xf32, #tpu.memory_space<vmem>>, vector<1x128xf32>
    %c0_12 = arith.constant 0 : index
    %c0_13 = arith.constant 0 : index
    %c0_14 = arith.constant 0 : index
    %9 = vector.load %arg1[%c0_12, %c0_13, %c0_14] : memref<4x2x512xi32, #tpu.memory_space<vmem>>, vector<1x2x512xi32>
    %10 = vector.shape_cast %9 : vector<1x2x512xi32> to vector<2x512xi32>
    %11 = vector.extract_strided_slice %10 {offsets = [0, 0], sizes = [1, 512], strides = [1, 1]} : vector<2x512xi32> to vector<1x512xi32>
    %12 = vector.extract_strided_slice %10 {offsets = [1, 0], sizes = [1, 512], strides = [1, 1]} : vector<2x512xi32> to vector<1x512xi32>
    %13 = tpu.iota {dimensions = array<i32: 0>} : vector<128x512xi32>
    %14 = vector.broadcast %12 : vector<1x512xi32> to vector<128x512xi32>
    %15 = arith.cmpi eq, %13, %14 : vector<128x512xi32>
    %cst = arith.constant 1.000000e+00 : f32
    %cst_15 = arith.constant 0.000000e+00 : f32
    %16 = vector.broadcast %cst : f32 to vector<128x512xf32>
    %17 = vector.broadcast %cst_15 : f32 to vector<128x512xf32>
    %18 = arith.select %15, %16, %17 : vector<128x512xi1>, vector<128x512xf32>
    %19 = arith.truncf %18 : vector<128x512xf32> to vector<128x512xbf16>
    %20 = vector.broadcast %11 : vector<1x512xi32> to vector<128x512xi32>
    %21 = arith.cmpi eq, %13, %20 : vector<128x512xi32>
    %cst_16 = arith.constant 1.000000e+00 : f32
    %cst_17 = arith.constant 0.000000e+00 : f32
    %22 = vector.broadcast %cst_16 : f32 to vector<128x512xf32>
    %23 = vector.broadcast %cst_17 : f32 to vector<128x512xf32>
    %24 = arith.select %21, %22, %23 : vector<128x512xi1>, vector<128x512xf32>
    %25 = arith.truncf %24 : vector<128x512xf32> to vector<128x512xbf16>
    %cst_18 = arith.constant dense<0.000000e+00> : vector<128x128xf32>
    %26 = tpu.matmul %19, %25, %cst_18 {dimension_numbers = #tpu.dot_dimension_numbers<[1], [1], [0], [0], [0, 0, 1, 0], [], []>} : vector<128x512xbf16>, vector<128x512xbf16>, vector<128x128xf32> -> vector<128x128xf32>
    %27 = tpu.iota {dimensions = array<i32: 0>} : vector<128x128xi32>
    %28 = tpu.iota {dimensions = array<i32: 1>} : vector<128x128xi32>
    %29 = arith.cmpi eq, %27, %28 : vector<128x128xi32>
    %cst_19 = arith.constant 1.000000e+00 : f32
    %cst_20 = arith.constant 0.000000e+00 : f32
    %30 = vector.broadcast %cst_19 : f32 to vector<128x128xf32>
    %31 = vector.broadcast %cst_20 : f32 to vector<128x128xf32>
    %32 = arith.select %29, %30, %31 : vector<128x128xi1>, vector<128x128xf32>
    %33 = arith.addf %26, %32 : vector<128x128xf32>
    %cst_21 = arith.constant dense<0.000000e+00> : vector<128xf32>
    %34 = vector.multi_reduction <add>, %33, %cst_21 [1] : vector<128x128xf32> to vector<128xf32>
    %35 = vector.shape_cast %34 : vector<128xf32> to vector<128x1xf32>
    %36 = math.rsqrt %35 : vector<128x1xf32>
    %37 = vector.broadcast %36 : vector<128x1xf32> to vector<128x128xf32>
    %38 = arith.mulf %37, %33 : vector<128x128xf32>
    %39 = arith.truncf %38 : vector<128x128xf32> to vector<128x128xbf16>
    %c0_22 = arith.constant 0 : index
    %c0_23 = arith.constant 0 : index
    %c0_24 = arith.constant 0 : index
    %40 = vector.load %arg2[%c0_22, %c0_23, %c0_24] : memref<4x128x16xbf16, #tpu.memory_space<vmem>>, vector<1x128x16xbf16>
    %41 = vector.shape_cast %40 : vector<1x128x16xbf16> to vector<128x16xbf16>
    %cst_25 = arith.constant dense<0.000000e+00> : vector<128x128xf32>
    %42 = tpu.matmul %41, %1, %cst_25 {dimension_numbers = #tpu.dot_dimension_numbers<[1], [0], [0], [1], [0, 0, 1, 1], [], []>} : vector<128x16xbf16>, vector<16x128xbf16>, vector<128x128xf32> -> vector<128x128xf32>
    %43 = vector.broadcast %36 : vector<128x1xf32> to vector<128x128xf32>
    %44 = arith.mulf %43, %42 : vector<128x128xf32>
    %45 = arith.truncf %44 : vector<128x128xf32> to vector<128x128xbf16>
    %cst_26 = arith.constant dense<0.000000e+00> : vector<128x128xf32>
    %46 = tpu.matmul %39, %45, %cst_26 {dimension_numbers = #tpu.dot_dimension_numbers<[1], [0], [0], [1], [0, 0, 1, 1], [], []>} : vector<128x128xbf16>, vector<128x128xbf16>, vector<128x128xf32> -> vector<128x128xf32>
    %47 = vector.broadcast %6 : vector<1x128xf32> to vector<128x128xf32>
    %48 = arith.addf %46, %47 : vector<128x128xf32>
    %cst_27 = arith.constant 0.000000e+00 : f32
    %49 = vector.broadcast %cst_27 : f32 to vector<128x128xf32>
    %50 = arith.maximumf %48, %49 : vector<128x128xf32>
    %51 = arith.truncf %50 : vector<128x128xf32> to vector<128x128xbf16>
    %cst_28 = arith.constant dense<0.000000e+00> : vector<128x128xf32>
    %52 = tpu.matmul %51, %3, %cst_28 {dimension_numbers = #tpu.dot_dimension_numbers<[1], [0], [0], [1], [0, 0, 1, 1], [], []>} : vector<128x128xbf16>, vector<128x128xbf16>, vector<128x128xf32> -> vector<128x128xf32>
    %53 = vector.broadcast %36 : vector<128x1xf32> to vector<128x128xf32>
    %54 = arith.mulf %53, %52 : vector<128x128xf32>
    %55 = arith.truncf %54 : vector<128x128xf32> to vector<128x128xbf16>
    %cst_29 = arith.constant dense<0.000000e+00> : vector<128x128xf32>
    %56 = tpu.matmul %39, %55, %cst_29 {dimension_numbers = #tpu.dot_dimension_numbers<[1], [0], [0], [1], [0, 0, 1, 1], [], []>} : vector<128x128xbf16>, vector<128x128xbf16>, vector<128x128xf32> -> vector<128x128xf32>
    %57 = vector.broadcast %7 : vector<1x128xf32> to vector<128x128xf32>
    %58 = arith.addf %56, %57 : vector<128x128xf32>
    %cst_30 = arith.constant 0.000000e+00 : f32
    %59 = vector.broadcast %cst_30 : f32 to vector<128x128xf32>
    %60 = arith.maximumf %58, %59 : vector<128x128xf32>
    %61 = arith.truncf %60 : vector<128x128xf32> to vector<128x128xbf16>
    %cst_31 = arith.constant dense<0.000000e+00> : vector<128x128xf32>
    %62 = tpu.matmul %61, %5, %cst_31 {dimension_numbers = #tpu.dot_dimension_numbers<[1], [0], [0], [1], [0, 0, 1, 1], [], []>} : vector<128x128xbf16>, vector<128x128xbf16>, vector<128x128xf32> -> vector<128x128xf32>
    %63 = vector.broadcast %36 : vector<128x1xf32> to vector<128x128xf32>
    %64 = arith.mulf %63, %62 : vector<128x128xf32>
    %65 = arith.truncf %64 : vector<128x128xf32> to vector<128x128xbf16>
    %cst_32 = arith.constant dense<0.000000e+00> : vector<128x128xf32>
    %66 = tpu.matmul %39, %65, %cst_32 {dimension_numbers = #tpu.dot_dimension_numbers<[1], [0], [0], [1], [0, 0, 1, 1], [], []>} : vector<128x128xbf16>, vector<128x128xbf16>, vector<128x128xf32> -> vector<128x128xf32>
    %67 = vector.broadcast %8 : vector<1x128xf32> to vector<128x128xf32>
    %68 = arith.addf %66, %67 : vector<128x128xf32>
    %69 = vector.extract_strided_slice %68 {offsets = [0, 0], sizes = [128, 1], strides = [1, 1]} : vector<128x128xf32> to vector<128x1xf32>
    %c0_33 = arith.constant 0 : index
    %c0_34 = arith.constant 0 : index
    %c0_35 = arith.constant 0 : index
    %70 = vector.load %arg5[%c0_33, %c0_34, %c0_35] : memref<4x128x1xf32, #tpu.memory_space<vmem>>, vector<1x128x1xf32>
    %71 = vector.shape_cast %70 : vector<1x128x1xf32> to vector<128x1xf32>
    %72 = vector.shape_cast %69 : vector<128x1xf32> to vector<1x128x1xf32>
    tpu.vector_store %arg5[%c0_33, %c0_34, %c0_35], %72 {strides = array<i32>} : memref<4x128x1xf32, #tpu.memory_space<vmem>>, vector<1x128x1xf32>,
    %c1_36 = arith.constant 1 : index
    %c0_37 = arith.constant 0 : index
    %c0_38 = arith.constant 0 : index
    %73 = vector.load %arg1[%c1_36, %c0_37, %c0_38] : memref<4x2x512xi32, #tpu.memory_space<vmem>>, vector<1x2x512xi32>
    %74 = vector.shape_cast %73 : vector<1x2x512xi32> to vector<2x512xi32>
    %75 = vector.extract_strided_slice %74 {offsets = [0, 0], sizes = [1, 512], strides = [1, 1]} : vector<2x512xi32> to vector<1x512xi32>
    %76 = vector.extract_strided_slice %74 {offsets = [1, 0], sizes = [1, 512], strides = [1, 1]} : vector<2x512xi32> to vector<1x512xi32>
    %77 = tpu.iota {dimensions = array<i32: 0>} : vector<128x512xi32>
    %78 = vector.broadcast %76 : vector<1x512xi32> to vector<128x512xi32>
    %79 = arith.cmpi eq, %77, %78 : vector<128x512xi32>
    %cst_39 = arith.constant 1.000000e+00 : f32
    %cst_40 = arith.constant 0.000000e+00 : f32
    %80 = vector.broadcast %cst_39 : f32 to vector<128x512xf32>
    %81 = vector.broadcast %cst_40 : f32 to vector<128x512xf32>
    %82 = arith.select %79, %80, %81 : vector<128x512xi1>, vector<128x512xf32>
    %83 = arith.truncf %82 : vector<128x512xf32> to vector<128x512xbf16>
    %84 = vector.broadcast %75 : vector<1x512xi32> to vector<128x512xi32>
    %85 = arith.cmpi eq, %77, %84 : vector<128x512xi32>
    %cst_41 = arith.constant 1.000000e+00 : f32
    %cst_42 = arith.constant 0.000000e+00 : f32
    %86 = vector.broadcast %cst_41 : f32 to vector<128x512xf32>
    %87 = vector.broadcast %cst_42 : f32 to vector<128x512xf32>
    %88 = arith.select %85, %86, %87 : vector<128x512xi1>, vector<128x512xf32>
    %89 = arith.truncf %88 : vector<128x512xf32> to vector<128x512xbf16>
    %cst_43 = arith.constant dense<0.000000e+00> : vector<128x128xf32>
    %90 = tpu.matmul %83, %89, %cst_43 {dimension_numbers = #tpu.dot_dimension_numbers<[1], [1], [0], [0], [0, 0, 1, 0], [], []>} : vector<128x512xbf16>, vector<128x512xbf16>, vector<128x128xf32> -> vector<128x128xf32>
    %91 = tpu.iota {dimensions = array<i32: 0>} : vector<128x128xi32>
    %92 = tpu.iota {dimensions = array<i32: 1>} : vector<128x128xi32>
    %93 = arith.cmpi eq, %91, %92 : vector<128x128xi32>
    %cst_44 = arith.constant 1.000000e+00 : f32
    %cst_45 = arith.constant 0.000000e+00 : f32
    %94 = vector.broadcast %cst_44 : f32 to vector<128x128xf32>
    %95 = vector.broadcast %cst_45 : f32 to vector<128x128xf32>
    %96 = arith.select %93, %94, %95 : vector<128x128xi1>, vector<128x128xf32>
    %97 = arith.addf %90, %96 : vector<128x128xf32>
    %cst_46 = arith.constant dense<0.000000e+00> : vector<128xf32>
    %98 = vector.multi_reduction <add>, %97, %cst_46 [1] : vector<128x128xf32> to vector<128xf32>
    %99 = vector.shape_cast %98 : vector<128xf32> to vector<128x1xf32>
    %100 = math.rsqrt %99 : vector<128x1xf32>
    %101 = vector.broadcast %100 : vector<128x1xf32> to vector<128x128xf32>
    %102 = arith.mulf %101, %97 : vector<128x128xf32>
    %103 = arith.truncf %102 : vector<128x128xf32> to vector<128x128xbf16>
    %c1_47 = arith.constant 1 : index
    %c0_48 = arith.constant 0 : index
    %c0_49 = arith.constant 0 : index
    %104 = vector.load %arg2[%c1_47, %c0_48, %c0_49] : memref<4x128x16xbf16, #tpu.memory_space<vmem>>, vector<1x128x16xbf16>
    %105 = vector.shape_cast %104 : vector<1x128x16xbf16> to vector<128x16xbf16>
    %cst_50 = arith.constant dense<0.000000e+00> : vector<128x128xf32>
    %106 = tpu.matmul %105, %1, %cst_50 {dimension_numbers = #tpu.dot_dimension_numbers<[1], [0], [0], [1], [0, 0, 1, 1], [], []>} : vector<128x16xbf16>, vector<16x128xbf16>, vector<128x128xf32> -> vector<128x128xf32>
    %107 = vector.broadcast %100 : vector<128x1xf32> to vector<128x128xf32>
    %108 = arith.mulf %107, %106 : vector<128x128xf32>
    %109 = arith.truncf %108 : vector<128x128xf32> to vector<128x128xbf16>
    %cst_51 = arith.constant dense<0.000000e+00> : vector<128x128xf32>
    %110 = tpu.matmul %103, %109, %cst_51 {dimension_numbers = #tpu.dot_dimension_numbers<[1], [0], [0], [1], [0, 0, 1, 1], [], []>} : vector<128x128xbf16>, vector<128x128xbf16>, vector<128x128xf32> -> vector<128x128xf32>
    %111 = vector.broadcast %6 : vector<1x128xf32> to vector<128x128xf32>
    %112 = arith.addf %110, %111 : vector<128x128xf32>
    %cst_52 = arith.constant 0.000000e+00 : f32
    %113 = vector.broadcast %cst_52 : f32 to vector<128x128xf32>
    %114 = arith.maximumf %112, %113 : vector<128x128xf32>
    %115 = arith.truncf %114 : vector<128x128xf32> to vector<128x128xbf16>
    %cst_53 = arith.constant dense<0.000000e+00> : vector<128x128xf32>
    %116 = tpu.matmul %115, %3, %cst_53 {dimension_numbers = #tpu.dot_dimension_numbers<[1], [0], [0], [1], [0, 0, 1, 1], [], []>} : vector<128x128xbf16>, vector<128x128xbf16>, vector<128x128xf32> -> vector<128x128xf32>
    %117 = vector.broadcast %100 : vector<128x1xf32> to vector<128x128xf32>
    %118 = arith.mulf %117, %116 : vector<128x128xf32>
    %119 = arith.truncf %118 : vector<128x128xf32> to vector<128x128xbf16>
    %cst_54 = arith.constant dense<0.000000e+00> : vector<128x128xf32>
    %120 = tpu.matmul %103, %119, %cst_54 {dimension_numbers = #tpu.dot_dimension_numbers<[1], [0], [0], [1], [0, 0, 1, 1], [], []>} : vector<128x128xbf16>, vector<128x128xbf16>, vector<128x128xf32> -> vector<128x128xf32>
    %121 = vector.broadcast %7 : vector<1x128xf32> to vector<128x128xf32>
    %122 = arith.addf %120, %121 : vector<128x128xf32>
    %cst_55 = arith.constant 0.000000e+00 : f32
    %123 = vector.broadcast %cst_55 : f32 to vector<128x128xf32>
    %124 = arith.maximumf %122, %123 : vector<128x128xf32>
    %125 = arith.truncf %124 : vector<128x128xf32> to vector<128x128xbf16>
    %cst_56 = arith.constant dense<0.000000e+00> : vector<128x128xf32>
    %126 = tpu.matmul %125, %5, %cst_56 {dimension_numbers = #tpu.dot_dimension_numbers<[1], [0], [0], [1], [0, 0, 1, 1], [], []>} : vector<128x128xbf16>, vector<128x128xbf16>, vector<128x128xf32> -> vector<128x128xf32>
    %127 = vector.broadcast %100 : vector<128x1xf32> to vector<128x128xf32>
    %128 = arith.mulf %127, %126 : vector<128x128xf32>
    %129 = arith.truncf %128 : vector<128x128xf32> to vector<128x128xbf16>
    %cst_57 = arith.constant dense<0.000000e+00> : vector<128x128xf32>
    %130 = tpu.matmul %103, %129, %cst_57 {dimension_numbers = #tpu.dot_dimension_numbers<[1], [0], [0], [1], [0, 0, 1, 1], [], []>} : vector<128x128xbf16>, vector<128x128xbf16>, vector<128x128xf32> -> vector<128x128xf32>
    %131 = vector.broadcast %8 : vector<1x128xf32> to vector<128x128xf32>
    %132 = arith.addf %130, %131 : vector<128x128xf32>
    %133 = vector.extract_strided_slice %132 {offsets = [0, 0], sizes = [128, 1], strides = [1, 1]} : vector<128x128xf32> to vector<128x1xf32>
    %c1_58 = arith.constant 1 : index
    %c0_59 = arith.constant 0 : index
    %c0_60 = arith.constant 0 : index
    %134 = vector.load %arg5[%c1_58, %c0_59, %c0_60] : memref<4x128x1xf32, #tpu.memory_space<vmem>>, vector<1x128x1xf32>
    %135 = vector.shape_cast %134 : vector<1x128x1xf32> to vector<128x1xf32>
    %136 = vector.shape_cast %133 : vector<128x1xf32> to vector<1x128x1xf32>
    tpu.vector_store %arg5[%c1_58, %c0_59, %c0_60], %136 {strides = array<i32>} : memref<4x128x1xf32, #tpu.memory_space<vmem>>, vector<1x128x1xf32>,
    %c2_61 = arith.constant 2 : index
    %c0_62 = arith.constant 0 : index
    %c0_63 = arith.constant 0 : index
    %137 = vector.load %arg1[%c2_61, %c0_62, %c0_63] : memref<4x2x512xi32, #tpu.memory_space<vmem>>, vector<1x2x512xi32>
    %138 = vector.shape_cast %137 : vector<1x2x512xi32> to vector<2x512xi32>
    %139 = vector.extract_strided_slice %138 {offsets = [0, 0], sizes = [1, 512], strides = [1, 1]} : vector<2x512xi32> to vector<1x512xi32>
    %140 = vector.extract_strided_slice %138 {offsets = [1, 0], sizes = [1, 512], strides = [1, 1]} : vector<2x512xi32> to vector<1x512xi32>
    %141 = tpu.iota {dimensions = array<i32: 0>} : vector<128x512xi32>
    %142 = vector.broadcast %140 : vector<1x512xi32> to vector<128x512xi32>
    %143 = arith.cmpi eq, %141, %142 : vector<128x512xi32>
    %cst_64 = arith.constant 1.000000e+00 : f32
    %cst_65 = arith.constant 0.000000e+00 : f32
    %144 = vector.broadcast %cst_64 : f32 to vector<128x512xf32>
    %145 = vector.broadcast %cst_65 : f32 to vector<128x512xf32>
    %146 = arith.select %143, %144, %145 : vector<128x512xi1>, vector<128x512xf32>
    %147 = arith.truncf %146 : vector<128x512xf32> to vector<128x512xbf16>
    %148 = vector.broadcast %139 : vector<1x512xi32> to vector<128x512xi32>
    %149 = arith.cmpi eq, %141, %148 : vector<128x512xi32>
    %cst_66 = arith.constant 1.000000e+00 : f32
    %cst_67 = arith.constant 0.000000e+00 : f32
    %150 = vector.broadcast %cst_66 : f32 to vector<128x512xf32>
    %151 = vector.broadcast %cst_67 : f32 to vector<128x512xf32>
    %152 = arith.select %149, %150, %151 : vector<128x512xi1>, vector<128x512xf32>
    %153 = arith.truncf %152 : vector<128x512xf32> to vector<128x512xbf16>
    %cst_68 = arith.constant dense<0.000000e+00> : vector<128x128xf32>
    %154 = tpu.matmul %147, %153, %cst_68 {dimension_numbers = #tpu.dot_dimension_numbers<[1], [1], [0], [0], [0, 0, 1, 0], [], []>} : vector<128x512xbf16>, vector<128x512xbf16>, vector<128x128xf32> -> vector<128x128xf32>
    %155 = tpu.iota {dimensions = array<i32: 0>} : vector<128x128xi32>
    %156 = tpu.iota {dimensions = array<i32: 1>} : vector<128x128xi32>
    %157 = arith.cmpi eq, %155, %156 : vector<128x128xi32>
    %cst_69 = arith.constant 1.000000e+00 : f32
    %cst_70 = arith.constant 0.000000e+00 : f32
    %158 = vector.broadcast %cst_69 : f32 to vector<128x128xf32>
    %159 = vector.broadcast %cst_70 : f32 to vector<128x128xf32>
    %160 = arith.select %157, %158, %159 : vector<128x128xi1>, vector<128x128xf32>
    %161 = arith.addf %154, %160 : vector<128x128xf32>
    %cst_71 = arith.constant dense<0.000000e+00> : vector<128xf32>
    %162 = vector.multi_reduction <add>, %161, %cst_71 [1] : vector<128x128xf32> to vector<128xf32>
    %163 = vector.shape_cast %162 : vector<128xf32> to vector<128x1xf32>
    %164 = math.rsqrt %163 : vector<128x1xf32>
    %165 = vector.broadcast %164 : vector<128x1xf32> to vector<128x128xf32>
    %166 = arith.mulf %165, %161 : vector<128x128xf32>
    %167 = arith.truncf %166 : vector<128x128xf32> to vector<128x128xbf16>
    %c2_72 = arith.constant 2 : index
    %c0_73 = arith.constant 0 : index
    %c0_74 = arith.constant 0 : index
    %168 = vector.load %arg2[%c2_72, %c0_73, %c0_74] : memref<4x128x16xbf16, #tpu.memory_space<vmem>>, vector<1x128x16xbf16>
    %169 = vector.shape_cast %168 : vector<1x128x16xbf16> to vector<128x16xbf16>
    %cst_75 = arith.constant dense<0.000000e+00> : vector<128x128xf32>
    %170 = tpu.matmul %169, %1, %cst_75 {dimension_numbers = #tpu.dot_dimension_numbers<[1], [0], [0], [1], [0, 0, 1, 1], [], []>} : vector<128x16xbf16>, vector<16x128xbf16>, vector<128x128xf32> -> vector<128x128xf32>
    %171 = vector.broadcast %164 : vector<128x1xf32> to vector<128x128xf32>
    %172 = arith.mulf %171, %170 : vector<128x128xf32>
    %173 = arith.truncf %172 : vector<128x128xf32> to vector<128x128xbf16>
    %cst_76 = arith.constant dense<0.000000e+00> : vector<128x128xf32>
    %174 = tpu.matmul %167, %173, %cst_76 {dimension_numbers = #tpu.dot_dimension_numbers<[1], [0], [0], [1], [0, 0, 1, 1], [], []>} : vector<128x128xbf16>, vector<128x128xbf16>, vector<128x128xf32> -> vector<128x128xf32>
    %175 = vector.broadcast %6 : vector<1x128xf32> to vector<128x128xf32>
    %176 = arith.addf %174, %175 : vector<128x128xf32>
    %cst_77 = arith.constant 0.000000e+00 : f32
    %177 = vector.broadcast %cst_77 : f32 to vector<128x128xf32>
    %178 = arith.maximumf %176, %177 : vector<128x128xf32>
    %179 = arith.truncf %178 : vector<128x128xf32> to vector<128x128xbf16>
    %cst_78 = arith.constant dense<0.000000e+00> : vector<128x128xf32>
    %180 = tpu.matmul %179, %3, %cst_78 {dimension_numbers = #tpu.dot_dimension_numbers<[1], [0], [0], [1], [0, 0, 1, 1], [], []>} : vector<128x128xbf16>, vector<128x128xbf16>, vector<128x128xf32> -> vector<128x128xf32>
    %181 = vector.broadcast %164 : vector<128x1xf32> to vector<128x128xf32>
    %182 = arith.mulf %181, %180 : vector<128x128xf32>
    %183 = arith.truncf %182 : vector<128x128xf32> to vector<128x128xbf16>
    %cst_79 = arith.constant dense<0.000000e+00> : vector<128x128xf32>
    %184 = tpu.matmul %167, %183, %cst_79 {dimension_numbers = #tpu.dot_dimension_numbers<[1], [0], [0], [1], [0, 0, 1, 1], [], []>} : vector<128x128xbf16>, vector<128x128xbf16>, vector<128x128xf32> -> vector<128x128xf32>
    %185 = vector.broadcast %7 : vector<1x128xf32> to vector<128x128xf32>
    %186 = arith.addf %184, %185 : vector<128x128xf32>
    %cst_80 = arith.constant 0.000000e+00 : f32
    %187 = vector.broadcast %cst_80 : f32 to vector<128x128xf32>
    %188 = arith.maximumf %186, %187 : vector<128x128xf32>
    %189 = arith.truncf %188 : vector<128x128xf32> to vector<128x128xbf16>
    %cst_81 = arith.constant dense<0.000000e+00> : vector<128x128xf32>
    %190 = tpu.matmul %189, %5, %cst_81 {dimension_numbers = #tpu.dot_dimension_numbers<[1], [0], [0], [1], [0, 0, 1, 1], [], []>} : vector<128x128xbf16>, vector<128x128xbf16>, vector<128x128xf32> -> vector<128x128xf32>
    %191 = vector.broadcast %164 : vector<128x1xf32> to vector<128x128xf32>
    %192 = arith.mulf %191, %190 : vector<128x128xf32>
    %193 = arith.truncf %192 : vector<128x128xf32> to vector<128x128xbf16>
    %cst_82 = arith.constant dense<0.000000e+00> : vector<128x128xf32>
    %194 = tpu.matmul %167, %193, %cst_82 {dimension_numbers = #tpu.dot_dimension_numbers<[1], [0], [0], [1], [0, 0, 1, 1], [], []>} : vector<128x128xbf16>, vector<128x128xbf16>, vector<128x128xf32> -> vector<128x128xf32>
    %195 = vector.broadcast %8 : vector<1x128xf32> to vector<128x128xf32>
    %196 = arith.addf %194, %195 : vector<128x128xf32>
    %197 = vector.extract_strided_slice %196 {offsets = [0, 0], sizes = [128, 1], strides = [1, 1]} : vector<128x128xf32> to vector<128x1xf32>
    %c2_83 = arith.constant 2 : index
    %c0_84 = arith.constant 0 : index
    %c0_85 = arith.constant 0 : index
    %198 = vector.load %arg5[%c2_83, %c0_84, %c0_85] : memref<4x128x1xf32, #tpu.memory_space<vmem>>, vector<1x128x1xf32>
    %199 = vector.shape_cast %198 : vector<1x128x1xf32> to vector<128x1xf32>
    %200 = vector.shape_cast %197 : vector<128x1xf32> to vector<1x128x1xf32>
    tpu.vector_store %arg5[%c2_83, %c0_84, %c0_85], %200 {strides = array<i32>} : memref<4x128x1xf32, #tpu.memory_space<vmem>>, vector<1x128x1xf32>,
    %c3 = arith.constant 3 : index
    %c0_86 = arith.constant 0 : index
    %c0_87 = arith.constant 0 : index
    %201 = vector.load %arg1[%c3, %c0_86, %c0_87] : memref<4x2x512xi32, #tpu.memory_space<vmem>>, vector<1x2x512xi32>
    %202 = vector.shape_cast %201 : vector<1x2x512xi32> to vector<2x512xi32>
    %203 = vector.extract_strided_slice %202 {offsets = [0, 0], sizes = [1, 512], strides = [1, 1]} : vector<2x512xi32> to vector<1x512xi32>
    %204 = vector.extract_strided_slice %202 {offsets = [1, 0], sizes = [1, 512], strides = [1, 1]} : vector<2x512xi32> to vector<1x512xi32>
    %205 = tpu.iota {dimensions = array<i32: 0>} : vector<128x512xi32>
    %206 = vector.broadcast %204 : vector<1x512xi32> to vector<128x512xi32>
    %207 = arith.cmpi eq, %205, %206 : vector<128x512xi32>
    %cst_88 = arith.constant 1.000000e+00 : f32
    %cst_89 = arith.constant 0.000000e+00 : f32
    %208 = vector.broadcast %cst_88 : f32 to vector<128x512xf32>
    %209 = vector.broadcast %cst_89 : f32 to vector<128x512xf32>
    %210 = arith.select %207, %208, %209 : vector<128x512xi1>, vector<128x512xf32>
    %211 = arith.truncf %210 : vector<128x512xf32> to vector<128x512xbf16>
    %212 = vector.broadcast %203 : vector<1x512xi32> to vector<128x512xi32>
    %213 = arith.cmpi eq, %205, %212 : vector<128x512xi32>
    %cst_90 = arith.constant 1.000000e+00 : f32
    %cst_91 = arith.constant 0.000000e+00 : f32
    %214 = vector.broadcast %cst_90 : f32 to vector<128x512xf32>
    %215 = vector.broadcast %cst_91 : f32 to vector<128x512xf32>
    %216 = arith.select %213, %214, %215 : vector<128x512xi1>, vector<128x512xf32>
    %217 = arith.truncf %216 : vector<128x512xf32> to vector<128x512xbf16>
    %cst_92 = arith.constant dense<0.000000e+00> : vector<128x128xf32>
    %218 = tpu.matmul %211, %217, %cst_92 {dimension_numbers = #tpu.dot_dimension_numbers<[1], [1], [0], [0], [0, 0, 1, 0], [], []>} : vector<128x512xbf16>, vector<128x512xbf16>, vector<128x128xf32> -> vector<128x128xf32>
    %219 = tpu.iota {dimensions = array<i32: 0>} : vector<128x128xi32>
    %220 = tpu.iota {dimensions = array<i32: 1>} : vector<128x128xi32>
    %221 = arith.cmpi eq, %219, %220 : vector<128x128xi32>
    %cst_93 = arith.constant 1.000000e+00 : f32
    %cst_94 = arith.constant 0.000000e+00 : f32
    %222 = vector.broadcast %cst_93 : f32 to vector<128x128xf32>
    %223 = vector.broadcast %cst_94 : f32 to vector<128x128xf32>
    %224 = arith.select %221, %222, %223 : vector<128x128xi1>, vector<128x128xf32>
    %225 = arith.addf %218, %224 : vector<128x128xf32>
    %cst_95 = arith.constant dense<0.000000e+00> : vector<128xf32>
    %226 = vector.multi_reduction <add>, %225, %cst_95 [1] : vector<128x128xf32> to vector<128xf32>
    %227 = vector.shape_cast %226 : vector<128xf32> to vector<128x1xf32>
    %228 = math.rsqrt %227 : vector<128x1xf32>
    %229 = vector.broadcast %228 : vector<128x1xf32> to vector<128x128xf32>
    %230 = arith.mulf %229, %225 : vector<128x128xf32>
    %231 = arith.truncf %230 : vector<128x128xf32> to vector<128x128xbf16>
    %c3_96 = arith.constant 3 : index
    %c0_97 = arith.constant 0 : index
    %c0_98 = arith.constant 0 : index
    %232 = vector.load %arg2[%c3_96, %c0_97, %c0_98] : memref<4x128x16xbf16, #tpu.memory_space<vmem>>, vector<1x128x16xbf16>
    %233 = vector.shape_cast %232 : vector<1x128x16xbf16> to vector<128x16xbf16>
    %cst_99 = arith.constant dense<0.000000e+00> : vector<128x128xf32>
    %234 = tpu.matmul %233, %1, %cst_99 {dimension_numbers = #tpu.dot_dimension_numbers<[1], [0], [0], [1], [0, 0, 1, 1], [], []>} : vector<128x16xbf16>, vector<16x128xbf16>, vector<128x128xf32> -> vector<128x128xf32>
    %235 = vector.broadcast %228 : vector<128x1xf32> to vector<128x128xf32>
    %236 = arith.mulf %235, %234 : vector<128x128xf32>
    %237 = arith.truncf %236 : vector<128x128xf32> to vector<128x128xbf16>
    %cst_100 = arith.constant dense<0.000000e+00> : vector<128x128xf32>
    %238 = tpu.matmul %231, %237, %cst_100 {dimension_numbers = #tpu.dot_dimension_numbers<[1], [0], [0], [1], [0, 0, 1, 1], [], []>} : vector<128x128xbf16>, vector<128x128xbf16>, vector<128x128xf32> -> vector<128x128xf32>
    %239 = vector.broadcast %6 : vector<1x128xf32> to vector<128x128xf32>
    %240 = arith.addf %238, %239 : vector<128x128xf32>
    %cst_101 = arith.constant 0.000000e+00 : f32
    %241 = vector.broadcast %cst_101 : f32 to vector<128x128xf32>
    %242 = arith.maximumf %240, %241 : vector<128x128xf32>
    %243 = arith.truncf %242 : vector<128x128xf32> to vector<128x128xbf16>
    %cst_102 = arith.constant dense<0.000000e+00> : vector<128x128xf32>
    %244 = tpu.matmul %243, %3, %cst_102 {dimension_numbers = #tpu.dot_dimension_numbers<[1], [0], [0], [1], [0, 0, 1, 1], [], []>} : vector<128x128xbf16>, vector<128x128xbf16>, vector<128x128xf32> -> vector<128x128xf32>
    %245 = vector.broadcast %228 : vector<128x1xf32> to vector<128x128xf32>
    %246 = arith.mulf %245, %244 : vector<128x128xf32>
    %247 = arith.truncf %246 : vector<128x128xf32> to vector<128x128xbf16>
    %cst_103 = arith.constant dense<0.000000e+00> : vector<128x128xf32>
    %248 = tpu.matmul %231, %247, %cst_103 {dimension_numbers = #tpu.dot_dimension_numbers<[1], [0], [0], [1], [0, 0, 1, 1], [], []>} : vector<128x128xbf16>, vector<128x128xbf16>, vector<128x128xf32> -> vector<128x128xf32>
    %249 = vector.broadcast %7 : vector<1x128xf32> to vector<128x128xf32>
    %250 = arith.addf %248, %249 : vector<128x128xf32>
    %cst_104 = arith.constant 0.000000e+00 : f32
    %251 = vector.broadcast %cst_104 : f32 to vector<128x128xf32>
    %252 = arith.maximumf %250, %251 : vector<128x128xf32>
    %253 = arith.truncf %252 : vector<128x128xf32> to vector<128x128xbf16>
    %cst_105 = arith.constant dense<0.000000e+00> : vector<128x128xf32>
    %254 = tpu.matmul %253, %5, %cst_105 {dimension_numbers = #tpu.dot_dimension_numbers<[1], [0], [0], [1], [0, 0, 1, 1], [], []>} : vector<128x128xbf16>, vector<128x128xbf16>, vector<128x128xf32> -> vector<128x128xf32>
    %255 = vector.broadcast %228 : vector<128x1xf32> to vector<128x128xf32>
    %256 = arith.mulf %255, %254 : vector<128x128xf32>
    %257 = arith.truncf %256 : vector<128x128xf32> to vector<128x128xbf16>
    %cst_106 = arith.constant dense<0.000000e+00> : vector<128x128xf32>
    %258 = tpu.matmul %231, %257, %cst_106 {dimension_numbers = #tpu.dot_dimension_numbers<[1], [0], [0], [1], [0, 0, 1, 1], [], []>} : vector<128x128xbf16>, vector<128x128xbf16>, vector<128x128xf32> -> vector<128x128xf32>
    %259 = vector.broadcast %8 : vector<1x128xf32> to vector<128x128xf32>
    %260 = arith.addf %258, %259 : vector<128x128xf32>
    %261 = vector.extract_strided_slice %260 {offsets = [0, 0], sizes = [128, 1], strides = [1, 1]} : vector<128x128xf32> to vector<128x1xf32>
    %c3_107 = arith.constant 3 : index
    %c0_108 = arith.constant 0 : index
    %c0_109 = arith.constant 0 : index
    %262 = vector.load %arg5[%c3_107, %c0_108, %c0_109] : memref<4x128x1xf32, #tpu.memory_space<vmem>>, vector<1x128x1xf32>
    %263 = vector.shape_cast %262 : vector<1x128x1xf32> to vector<128x1xf32>
    %264 = vector.shape_cast %261 : vector<128x1xf32> to vector<1x128x1xf32>
    tpu.vector_store %arg5[%c3_107, %c0_108, %c0_109], %264 {strides = array<i32>} : memref<4x128x1xf32, #tpu.memory_space<vmem>>, vector<1x128x1xf32>,
    return
  }
  func.func @transform_0(%arg0: i32) -> (i32, i32, i32) {
    %c0_i32 = arith.constant 0 : i32
    %c0_i32_0 = arith.constant 0 : i32
    %c0_i32_1 = arith.constant 0 : i32
    return %arg0, %c0_i32, %c0_i32_0 : i32, i32, i32
  }
  func.func @transform_1(%arg0: i32) -> (i32, i32, i32) {
    %c0_i32 = arith.constant 0 : i32
    %c0_i32_0 = arith.constant 0 : i32
    %c0_i32_1 = arith.constant 0 : i32
    return %arg0, %c0_i32, %c0_i32_0 : i32, i32, i32
  }
  func.func @transform_2(%arg0: i32) -> (i32, i32, i32) {
    %c0_i32 = arith.constant 0 : i32
    %c0_i32_0 = arith.constant 0 : i32
    %c0_i32_1 = arith.constant 0 : i32
    %c0_i32_2 = arith.constant 0 : i32
    return %c0_i32, %c0_i32_0, %c0_i32_1 : i32, i32, i32
  }
  func.func @transform_3(%arg0: i32) -> (i32, i32) {
    %c0_i32 = arith.constant 0 : i32
    %c0_i32_0 = arith.constant 0 : i32
    %c0_i32_1 = arith.constant 0 : i32
    return %c0_i32, %c0_i32_0 : i32, i32
  }
  func.func @transform_4(%arg0: i32) -> (i32, i32, i32) {
    %c0_i32 = arith.constant 0 : i32
    %c0_i32_0 = arith.constant 0 : i32
    %c0_i32_1 = arith.constant 0 : i32
    return %arg0, %c0_i32, %c0_i32_0 : i32, i32, i32
  }
}

</mosaic_0001>

<llo_original>
// kernel: cavity_gnn_forward.1
$region0: #{cavity_gnn_forward.1}
  #allocation0 [shape = 'u32[]', space=smem, size = 0x4, offset = 0x4, fixed_abs, tag = 'smem constant byte address 0x4 - core index']
  #allocation1 [shape = 'u32[144,128]{1,0:T(1,128)}', space=vmem, size = 0x12000, scoped, tag = 'internal scratch']
  %s0 = inlined_call_operand.vmem [shape: s32[8,2,512], index: 0, kind: input, shape index: {}]
  %s1 = inlined_call_operand.vmem [shape: bf16[8,128,16], index: 1, kind: input, shape index: {}]
  %s2 = inlined_call_operand.vmem [shape: bf16[3,128,128], index: 2, kind: input, shape index: {}]
  %s3 = inlined_call_operand.vmem [shape: f32[8,128], index: 3, kind: input, shape index: {}]
  %s4 = inlined_call_operand.vmem [shape: f32[8,128,1], index: 4, kind: output, shape index: {}]
  %s5 = sld [smem:[#allocation0]]
  $region49: #{cavity_gnn_forward.1} parent=0
    _
  %s7 = ssub.s32 1, %s5
  %s8 = scalar_select 0, %s7, %s5
  loop: start=0, step=1, limit=4
  $region2: #{cavity_gnn_forward.1} parent=0 // loop_pre_header
    _
  $region3: #{cavity_gnn_forward.1} parent=0 // loop_header
    %s10 = sphi 0, %s14
    %p11 = scmp.ge.s32.totalorder %s10, 4
    %s20 = sphi 0, %s22
    %s23 = sphi 0, %s20
    %s24 = sphi 0, %s23
    %s40 = sphi 0, %s24
    %s46 = sphi 0, %s48
    %s49 = sphi 0, %s46
    %s50 = sphi 0, %s49
    %s66 = sphi 0, %s50
    %s70 = sphi 0, %s70
    %s72 = sphi 0, %s70
    %s73 = sphi 0, %s72
    %s87 = sphi 0, %s73
    %s91 = sphi 0, %s91
    %s93 = sphi 0, %s91
    %s94 = sphi 0, %s93
    %s108 = sphi 0, %s94
    %s114 = sphi 0, %s116
    %s117 = sphi 0, %s114
    %s118 = sphi 0, %s117
    %s134 = sphi 0, %s118
  $region4: #{cavity_gnn_forward.1} parent=0 // loop_header_branch
    %13 = sbr.rel (%p11) target = $region8
  $region5: #{cavity_gnn_forward.1} parent=0 // loop_body
    %s15 = ssub.s32 %s10, 1
    %s16 = ssub.s32 %s10, 2
    %s17 = sadd.s32 %s10, 1
    %s18 = ssub.s32 %s10, %s17
    %p19 = scmp.eq.s32.totalorder %s18, 0
    %s21 = sadd.s32 %s20, 1
    %s22 = scalar_select %p19, %s20, %s21
    %p25 = pneg %p19
    %p26 = scmp.eq.s32.totalorder %s10, 1
    %p27 = por %p25, %p26
    %p28 = scmp.ne.s32.totalorder %s20, %s23
    %p29 = scmp.eq.s32.totalorder %s10, 0
    %p30 = por %p28, %p29
    %p31 = scmp.ne.s32.totalorder %s20, %s23
    %p32 = scmp.eq.s32.totalorder %s15, 1
    %p33 = por %p31, %p32
    %p34 = scmp.ne.s32.totalorder %s23, %s24
    %p35 = scmp.eq.s32.totalorder %s15, 0
    %p36 = por %p34, %p35
    %p37 = scmp.ne.s32.totalorder %s23, %s24
    %p38 = scmp.eq.s32.totalorder %s16, 1
    %p39 = por %p37, %p38
    %p41 = scmp.ne.s32.totalorder %s24, %s40
    %p42 = scmp.eq.s32.totalorder %s16, 0
    %p43 = por %p41, %p42
    %s44 = ssub.s32 %s10, %s17
    %p45 = scmp.eq.s32.totalorder %s44, 0
    %s47 = sadd.s32 %s46, 1
    %s48 = scalar_select %p45, %s46, %s47
    %p51 = pneg %p45
    %p52 = scmp.eq.s32.totalorder %s10, 1
    %p53 = por %p51, %p52
    %p54 = scmp.ne.s32.totalorder %s46, %s49
    %p55 = scmp.eq.s32.totalorder %s10, 0
    %p56 = por %p54, %p55
    %p57 = scmp.ne.s32.totalorder %s46, %s49
    %p58 = scmp.eq.s32.totalorder %s15, 1
    %p59 = por %p57, %p58
    %p60 = scmp.ne.s32.totalorder %s49, %s50
    %p61 = scmp.eq.s32.totalorder %s15, 0
    %p62 = por %p60, %p61
    %p63 = scmp.ne.s32.totalorder %s49, %s50
    %p64 = scmp.eq.s32.totalorder %s16, 1
    %p65 = por %p63, %p64
    %p67 = scmp.ne.s32.totalorder %s50, %s66
    %p68 = scmp.eq.s32.totalorder %s16, 0
    %p69 = por %p67, %p68
    %s71 = sadd.s32 %s70, 1
    %p74 = scmp.eq.s32.totalorder %s10, 1
    %p75 = scmp.ne.s32.totalorder %s70, %s72
    %p76 = scmp.eq.s32.totalorder %s10, 0
    %p77 = por %p75, %p76
    %p78 = scmp.ne.s32.totalorder %s70, %s72
    %p79 = scmp.eq.s32.totalorder %s15, 1
    %p80 = por %p78, %p79
    %p81 = scmp.ne.s32.totalorder %s72, %s73
    %p82 = scmp.eq.s32.totalorder %s15, 0
    %p83 = por %p81, %p82
    %p84 = scmp.ne.s32.totalorder %s72, %s73
    %p85 = scmp.eq.s32.totalorder %s16, 1
    %p86 = por %p84, %p85
    %p88 = scmp.ne.s32.totalorder %s73, %s87
    %p89 = scmp.eq.s32.totalorder %s16, 0
    %p90 = por %p88, %p89
    %s92 = sadd.s32 %s91, 1
    %p95 = scmp.eq.s32.totalorder %s10, 1
    %p96 = scmp.ne.s32.totalorder %s91, %s93
    %p97 = scmp.eq.s32.totalorder %s10, 0
    %p98 = por %p96, %p97
    %p99 = scmp.ne.s32.totalorder %s91, %s93
    %p100 = scmp.eq.s32.totalorder %s15, 1
    %p101 = por %p99, %p100
    %p102 = scmp.ne.s32.totalorder %s93, %s94
    %p103 = scmp.eq.s32.totalorder %s15, 0
    %p104 = por %p102, %p103
    %p105 = scmp.ne.s32.totalorder %s93, %s94
    %p106 = scmp.eq.s32.totalorder %s16, 1
    %p107 = por %p105, %p106
    %p109 = scmp.ne.s32.totalorder %s94, %s108
    %p110 = scmp.eq.s32.totalorder %s16, 0
    %p111 = por %p109, %p110
    %s112 = ssub.s32 %s10, %s17
    %p113 = scmp.eq.s32.totalorder %s112, 0
    %s115 = sadd.s32 %s114, 1
    %s116 = scalar_select %p113, %s114, %s115
    %p119 = pneg %p113
    %p120 = scmp.eq.s32.totalorder %s10, 1
    %p121 = por %p119, %p120
    %p122 = scmp.ne.s32.totalorder %s114, %s117
    %p123 = scmp.eq.s32.totalorder %s10, 0
    %p124 = por %p122, %p123
    %p125 = scmp.ne.s32.totalorder %s114, %s117
    %p126 = scmp.eq.s32.totalorder %s15, 1
    %p127 = por %p125, %p126
    %p128 = scmp.ne.s32.totalorder %s117, %s118
    %p129 = scmp.eq.s32.totalorder %s15, 0
    %p130 = por %p128, %p129
    %p131 = scmp.ne.s32.totalorder %s117, %s118
    %p132 = scmp.eq.s32.totalorder %s16, 1
    %p133 = por %p131, %p132
    %p135 = scmp.ne.s32.totalorder %s118, %s134
    %p136 = scmp.eq.s32.totalorder %s16, 0
    %p137 = por %p135, %p136
    %p138 = scmp.le.s32.totalorder 1, %s10
    %p139 = scmp.lt.s32.totalorder %s10, 3
    %p140 = pnand %p138, %p139
    %p141 = pneg %p140
    // Predicated region
    $region9: #{cavity_gnn_forward.1} parent=5 // pred_check
      _
    $region10: #{cavity_gnn_forward.1} parent=5 // pred_check_branch
      %143 = sbr.rel (%p140) target = $region12
    $region11: #{cavity_gnn_forward.1} parent=5 // pred_region
      %s144 = ssub.s32 %s10, 1
      // Predicated region
      $region13: #{cavity_gnn_forward.1} parent=11 // pred_check
        %p145 = pneg %p83
      $region14: #{cavity_gnn_forward.1} parent=11 // pred_check_branch
        %147 = sbr.rel (%p145) target = $region16
      $region15: #{cavity_gnn_forward.1} parent=11 // pred_region
        _
      $region16: #{cavity_gnn_forward.1} parent=11 // pred_fallthru
        _
      // Predicated region
      $region17: #{cavity_gnn_forward.1} parent=11 // pred_check
        %p148 = pneg %p104
      $region18: #{cavity_gnn_forward.1} parent=11 // pred_check_branch
        %150 = sbr.rel (%p148) target = $region20
      $region19: #{cavity_gnn_forward.1} parent=11 // pred_region
        _
      $region20: #{cavity_gnn_forward.1} parent=11 // pred_fallthru
        _
    $region12: #{cavity_gnn_forward.1} parent=5 // pred_fallthru
      _
    %p151 = scmp.lt.s32.totalorder %s10, 2
    // Predicated region
    $region21: #{cavity_gnn_forward.1} parent=5 // pred_check
      %p152 = pneg %p151
    $region22: #{cavity_gnn_forward.1} parent=5 // pred_check_branch
      %154 = sbr.rel (%p152) target = $region24
    $region23: #{cavity_gnn_forward.1} parent=5 // pred_region
      // Predicated region
      $region25: #{cavity_gnn_forward.1} parent=23 // pred_check
        %p155 = pneg %p30
      $region26: #{cavity_gnn_forward.1} parent=23 // pred_check_branch
        %157 = sbr.rel (%p155) target = $region28
      $region27: #{cavity_gnn_forward.1} parent=23 // pred_region
        %s158 = smul.u32 4, %s10
        %p159 = scmp.lt.s32.totalorder %s158, 7
        %s160 = scalar_select %p159, %s158, 7
        %s161 = smul.addr %s160, 4
        %s162 = smul.addr %s161, 2
        %s163 = scalar_lea.vmem %s0, %s162
        %s164 = smul.u32 4, %s10
      $region28: #{cavity_gnn_forward.1} parent=23 // pred_fallthru
        _
      // Predicated region
      $region29: #{cavity_gnn_forward.1} parent=23 // pred_check
        %p165 = pneg %p56
      $region30: #{cavity_gnn_forward.1} parent=23 // pred_check_branch
        %167 = sbr.rel (%p165) target = $region32
      $region31: #{cavity_gnn_forward.1} parent=23 // pred_region
        %s168 = smul.u32 4, %s10
        %p169 = scmp.lt.s32.totalorder %s168, 7
        %s170 = scalar_select %p169, %s168, 7
        %s171 = smul.addr %s170, 16
        %s172 = smul.addr %s171, 4
        %s173 = scalar_lea.vmem %s1, %s172
        %s174 = smul.u32 4, %s10
      $region32: #{cavity_gnn_forward.1} parent=23 // pred_fallthru
        _
    $region24: #{cavity_gnn_forward.1} parent=5 // pred_fallthru
      _
    %p175 = scmp.le.s32.totalorder 1, %s10
    %p176 = scmp.lt.s32.totalorder %s10, 3
    %p177 = pnand %p175, %p176
    %p178 = pneg %p177
    // Predicated region
    $region33: #{cavity_gnn_forward.1} parent=5 // pred_check
      _
    $region34: #{cavity_gnn_forward.1} parent=5 // pred_check_branch
      %180 = sbr.rel (%p177) target = $region36
    $region35: #{cavity_gnn_forward.1} parent=5 // pred_region
      %s181 = ssub.s32 %s10, 1
      %s182 = smul.u32 4, %s15
      %p183 = scmp.lt.s32.totalorder %s182, 7
      %s184 = scalar_select %p183, %s182, 7
      %s185 = smul.addr %s184, 4
      %s186 = smul.addr %s185, 2
      %s187 = scalar_lea.vmem %s0, %s186
      %p188 = pneg %p36
      %p189 = pneg %p33
      %s190 = smul.u32 4, %s15
      %p191 = scmp.lt.s32.totalorder %s190, 7
      %s192 = scalar_select %p191, %s190, 7
      %s193 = smul.addr %s192, 16
      %s194 = smul.addr %s193, 4
      %s195 = scalar_lea.vmem %s1, %s194
      %p196 = pneg %p62
      %p197 = pneg %p59
      %p198 = pneg %p83
      %p199 = pneg %p80
      %p200 = pneg %p104
      %p201 = pneg %p101
      %p202 = pneg %p130
      %p203 = pneg %p127
      %s204 = smul.u32 4, %s15
      %p205 = scmp.lt.s32.totalorder %s204, 7
      %s206 = scalar_select %p205, %s204, 7
      %s207 = smul.addr %s206, 16
      %s208 = smul.addr %s207, 8
      %s209 = scalar_lea.vmem %s4, %s208
      %s210 = smul.u32 4, %s15
      %p211 = scmp.lt.s32.totalorder %s210, 7
      %s212 = scalar_select %p211, %s210, 7
      %s213 = smul.addr %s212, 4
      %s214 = smul.addr %s213, 2
      %s215 = scalar_lea.vmem %s0, %s214
      %s216 = smul.u32 4, %s15
      %s217 = smul.u32 4, %s15
      %p218 = scmp.lt.s32.totalorder %s217, 7
      %s219 = scalar_select %p218, %s217, 7
      %s220 = smul.addr %s219, 16
      %s221 = smul.addr %s220, 4
      %s222 = scalar_lea.vmem %s1, %s221
      %s223 = smul.u32 4, %s15
      %s224 = smul.u32 4, %s15
      %p225 = scmp.lt.s32.totalorder %s224, 7
      %s226 = scalar_select %p225, %s224, 7
      %s227 = smul.addr %s226, 16
      %s228 = smul.addr %s227, 8
      %s229 = scalar_lea.vmem %s4, %s228
      %s230 = smul.u32 4, %s15
      %v232 = vld [vmem:[%s2] sm:$0xf]
      %v233 = vld [vmem:[%s2 + $0x4] sm:$0xf]
      %s234 = scalar_lea.vmem %s2, 64
      %v235 = vld [vmem:[%s234] sm:$0xf]
      %v236 = vld [vmem:[%s234 + $0x4] sm:$0xf]
      %v237 = vld [vmem:[%s234 + $0x8] sm:$0xf]
      %v238 = vld [vmem:[%s234 + $0xc] sm:$0xf]
      %v239 = vld [vmem:[%s234 + $0x10] sm:$0xf]
      %v240 = vld [vmem:[%s234 + $0x14] sm:$0xf]
      %v241 = vld [vmem:[%s234 + $0x18] sm:$0xf]
      %v242 = vld [vmem:[%s234 + $0x1c] sm:$0xf]
      %v243 = vld [vmem:[%s234 + $0x20] sm:$0xf]
      %v244 = vld [vmem:[%s234 + $0x24] sm:$0xf]
      %v245 = vld [vmem:[%s234 + $0x28] sm:$0xf]
      %v246 = vld [vmem:[%s234 + $0x2c] sm:$0xf]
      %v247 = vld [vmem:[%s234 + $0x30] sm:$0xf]
      %v248 = vld [vmem:[%s234 + $0x34] sm:$0xf]
      %v249 = vld [vmem:[%s234 + $0x38] sm:$0xf]
      %v250 = vld [vmem:[%s234 + $0x3c] sm:$0xf]
      %s251 = scalar_lea.vmem %s2, 128
      %v252 = vld [vmem:[%s251] sm:$0xf]
      %v253 = vld [vmem:[%s251 + $0x4] sm:$0xf]
      %v254 = vld [vmem:[%s251 + $0x8] sm:$0xf]
      %v255 = vld [vmem:[%s251 + $0xc] sm:$0xf]
      %v256 = vld [vmem:[%s251 + $0x10] sm:$0xf]
      %v257 = vld [vmem:[%s251 + $0x14] sm:$0xf]
      %v258 = vld [vmem:[%s251 + $0x18] sm:$0xf]
      %v259 = vld [vmem:[%s251 + $0x1c] sm:$0xf]
      %v260 = vld [vmem:[%s251 + $0x20] sm:$0xf]
      %v261 = vld [vmem:[%s251 + $0x24] sm:$0xf]
      %v262 = vld [vmem:[%s251 + $0x28] sm:$0xf]
      %v263 = vld [vmem:[%s251 + $0x2c] sm:$0xf]
      %v264 = vld [vmem:[%s251 + $0x30] sm:$0xf]
      %v265 = vld [vmem:[%s251 + $0x34] sm:$0xf]
      %v266 = vld [vmem:[%s251 + $0x38] sm:$0xf]
      %v267 = vld [vmem:[%s251 + $0x3c] sm:$0xf]
      %v268 = vld [vmem:[%s3] sm:$0x1]
      %v269 = vld [vmem:[%s3 + $0x1] sm:$0x1]
      %v270 = vld [vmem:[%s3 + $0x2] sm:$0x1]
      %v271 = vld [vmem:[%s215] sm:$0xff]
      %v272 = vlaneseq
      %v273 = vshrl.u32 %v272, 7
      %v274 = vadd.s32 %v273, 8
      %v275 = vadd.s32 %v273, 16
      %v276 = vadd.s32 %v273, 24
      %v277 = vadd.s32 %v273, 32
      %v278 = vadd.s32 %v273, 40
      %v279 = vadd.s32 %v273, 48
      %v280 = vadd.s32 %v273, 56
      %v281 = vadd.s32 %v273, 64
      %v282 = vadd.s32 %v273, 72
      %v283 = vadd.s32 %v273, 80
      %v284 = vadd.s32 %v273, 88
      %v285 = vadd.s32 %v273, 96
      %v286 = vadd.s32 %v273, 104
      %v287 = vadd.s32 %v273, 112
      %v288 = vadd.s32 %v273, 120
      %v289 = vlaneseq
      %v290 = vshrl.u32 %v289, 7
      %v291 = vsub.s32 1, %v290
      %v292 = vrot.slane %v271, %v291
      %v293 = vlaneseq
      %v294 = vshrl.u32 %v293, 7
      %v295 = vsub.s32 3, %v294
      %v296 = vrot.slane %v271, %v295
      %v297 = vlaneseq
      %v298 = vshrl.u32 %v297, 7
      %v299 = vsub.s32 5, %v298
      %v300 = vrot.slane %v271, %v299
      %v301 = vlaneseq
      %v302 = vshrl.u32 %v301, 7
      %v303 = vsub.s32 7, %v302
      %v304 = vrot.slane %v271, %v303
      %v305 = vlaneseq
      %v306 = vshrl.u32 %v305, 7
      %v307 = vsub.s32 1, %v306
      %v308 = vrot.slane %v292, %v307
      %v309 = vlaneseq
      %v310 = vshrl.u32 %v309, 7
      %v311 = vsub.s32 1, %v310
      %v312 = vrot.slane %v296, %v311
      %v313 = vlaneseq
      %v314 = vshrl.u32 %v313, 7
      %v315 = vsub.s32 1, %v314
      %v316 = vrot.slane %v300, %v315
      %v317 = vlaneseq
      %v318 = vshrl.u32 %v317, 7
      %v319 = vsub.s32 1, %v318
      %v320 = vrot.slane %v304, %v319
      %vm321 = vcmp.eq.s32.totalorder %v273, %v308
      %vm322 = vcmp.eq.s32.totalorder %v273, %v312
      %vm323 = vcmp.eq.s32.totalorder %v273, %v316
      %vm324 = vcmp.eq.s32.totalorder %v273, %v320
      %vm325 = vcmp.eq.s32.totalorder %v274, %v308
      %vm326 = vcmp.eq.s32.totalorder %v274, %v312
      %vm327 = vcmp.eq.s32.totalorder %v274, %v316
      %vm328 = vcmp.eq.s32.totalorder %v274, %v320
      %vm329 = vcmp.eq.s32.totalorder %v275, %v308
      %vm330 = vcmp.eq.s32.totalorder %v275, %v312
      %vm331 = vcmp.eq.s32.totalorder %v275, %v316
      %vm332 = vcmp.eq.s32.totalorder %v275, %v320
      %vm333 = vcmp.eq.s32.totalorder %v276, %v308
      %vm334 = vcmp.eq.s32.totalorder %v276, %v312
      %vm335 = vcmp.eq.s32.totalorder %v276, %v316
      %vm336 = vcmp.eq.s32.totalorder %v276, %v320
      %vm337 = vcmp.eq.s32.totalorder %v277, %v308
      %vm338 = vcmp.eq.s32.totalorder %v277, %v312
      %vm339 = vcmp.eq.s32.totalorder %v277, %v316
      %vm340 = vcmp.eq.s32.totalorder %v277, %v320
      %vm341 = vcmp.eq.s32.totalorder %v278, %v308
      %vm342 = vcmp.eq.s32.totalorder %v278, %v312
      %vm343 = vcmp.eq.s32.totalorder %v278, %v316
      %vm344 = vcmp.eq.s32.totalorder %v278, %v320
      %vm345 = vcmp.eq.s32.totalorder %v279, %v308
      %vm346 = vcmp.eq.s32.totalorder %v279, %v312
      %vm347 = vcmp.eq.s32.totalorder %v279, %v316
      %vm348 = vcmp.eq.s32.totalorder %v279, %v320
      %vm349 = vcmp.eq.s32.totalorder %v280, %v308
      %vm350 = vcmp.eq.s32.totalorder %v280, %v312
      %vm351 = vcmp.eq.s32.totalorder %v280, %v316
      %vm352 = vcmp.eq.s32.totalorder %v280, %v320
      %vm353 = vcmp.eq.s32.totalorder %v281, %v308
      %vm354 = vcmp.eq.s32.totalorder %v281, %v312
      %vm355 = vcmp.eq.s32.totalorder %v281, %v316
      %vm356 = vcmp.eq.s32.totalorder %v281, %v320
      %vm357 = vcmp.eq.s32.totalorder %v282, %v308
      %vm358 = vcmp.eq.s32.totalorder %v282, %v312
      %vm359 = vcmp.eq.s32.totalorder %v282, %v316
      %vm360 = vcmp.eq.s32.totalorder %v282, %v320
      %vm361 = vcmp.eq.s32.totalorder %v283, %v308
      %vm362 = vcmp.eq.s32.totalorder %v283, %v312
      %vm363 = vcmp.eq.s32.totalorder %v283, %v316
      %vm364 = vcmp.eq.s32.totalorder %v283, %v320
      %vm365 = vcmp.eq.s32.totalorder %v284, %v308
      %vm366 = vcmp.eq.s32.totalorder %v284, %v312
      %vm367 = vcmp.eq.s32.totalorder %v284, %v316
      %vm368 = vcmp.eq.s32.totalorder %v284, %v320
      %vm369 = vcmp.eq.s32.totalorder %v285, %v308
      %vm370 = vcmp.eq.s32.totalorder %v285, %v312
      %vm371 = vcmp.eq.s32.totalorder %v285, %v316
      %vm372 = vcmp.eq.s32.totalorder %v285, %v320
      %vm373 = vcmp.eq.s32.totalorder %v286, %v308
      %vm374 = vcmp.eq.s32.totalorder %v286, %v312
      %vm375 = vcmp.eq.s32.totalorder %v286, %v316
      %vm376 = vcmp.eq.s32.totalorder %v286, %v320
      %vm377 = vcmp.eq.s32.totalorder %v287, %v308
      %vm378 = vcmp.eq.s32.totalorder %v287, %v312
      %vm379 = vcmp.eq.s32.totalorder %v287, %v316
      %vm380 = vcmp.eq.s32.totalorder %v287, %v320
      %vm381 = vcmp.eq.s32.totalorder %v288, %v308
      %vm382 = vcmp.eq.s32.totalorder %v288, %v312
      %vm383 = vcmp.eq.s32.totalorder %v288, %v316
      %vm384 = vcmp.eq.s32.totalorder %v288, %v320
      %v385 = vsel %vm321, 1.0, 0.0
      %v386 = vsel %vm322, 1.0, 0.0
      %v387 = vsel %vm323, 1.0, 0.0
      %v388 = vsel %vm324, 1.0, 0.0
      %v389 = vsel %vm325, 1.0, 0.0
      %v390 = vsel %vm326, 1.0, 0.0
      %v391 = vsel %vm327, 1.0, 0.0
      %v392 = vsel %vm328, 1.0, 0.0
      %v393 = vsel %vm329, 1.0, 0.0
      %v394 = vsel %vm330, 1.0, 0.0
      %v395 = vsel %vm331, 1.0, 0.0
      %v396 = vsel %vm332, 1.0, 0.0
      %v397 = vsel %vm333, 1.0, 0.0
      %v398 = vsel %vm334, 1.0, 0.0
      %v399 = vsel %vm335, 1.0, 0.0
      %v400 = vsel %vm336, 1.0, 0.0
      %v401 = vsel %vm337, 1.0, 0.0
      %v402 = vsel %vm338, 1.0, 0.0
      %v403 = vsel %vm339, 1.0, 0.0
      %v404 = vsel %vm340, 1.0, 0.0
      %v405 = vsel %vm341, 1.0, 0.0
      %v406 = vsel %vm342, 1.0, 0.0
      %v407 = vsel %vm343, 1.0, 0.0
      %v408 = vsel %vm344, 1.0, 0.0
      %v409 = vsel %vm345, 1.0, 0.0
      %v410 = vsel %vm346, 1.0, 0.0
      %v411 = vsel %vm347, 1.0, 0.0
      %v412 = vsel %vm348, 1.0, 0.0
      %v413 = vsel %vm349, 1.0, 0.0
      %v414 = vsel %vm350, 1.0, 0.0
      %v415 = vsel %vm351, 1.0, 0.0
      %v416 = vsel %vm352, 1.0, 0.0
      %v417 = vsel %vm353, 1.0, 0.0
      %v418 = vsel %vm354, 1.0, 0.0
      %v419 = vsel %vm355, 1.0, 0.0
      %v420 = vsel %vm356, 1.0, 0.0
      %v421 = vsel %vm357, 1.0, 0.0
      %v422 = vsel %vm358, 1.0, 0.0
      %v423 = vsel %vm359, 1.0, 0.0
      %v424 = vsel %vm360, 1.0, 0.0
      %v425 = vsel %vm361, 1.0, 0.0
      %v426 = vsel %vm362, 1.0, 0.0
      %v427 = vsel %vm363, 1.0, 0.0
      %v428 = vsel %vm364, 1.0, 0.0
      %v429 = vsel %vm365, 1.0, 0.0
      %v430 = vsel %vm366, 1.0, 0.0
      %v431 = vsel %vm367, 1.0, 0.0
      %v432 = vsel %vm368, 1.0, 0.0
      %v433 = vsel %vm369, 1.0, 0.0
      %v434 = vsel %vm370, 1.0, 0.0
      %v435 = vsel %vm371, 1.0, 0.0
      %v436 = vsel %vm372, 1.0, 0.0
      %v437 = vsel %vm373, 1.0, 0.0
      %v438 = vsel %vm374, 1.0, 0.0
      %v439 = vsel %vm375, 1.0, 0.0
      %v440 = vsel %vm376, 1.0, 0.0
      %v441 = vsel %vm377, 1.0, 0.0
      %v442 = vsel %vm378, 1.0, 0.0
      %v443 = vsel %vm379, 1.0, 0.0
      %v444 = vsel %vm380, 1.0, 0.0
      %v445 = vsel %vm381, 1.0, 0.0
      %v446 = vsel %vm382, 1.0, 0.0
      %v447 = vsel %vm383, 1.0, 0.0
      %v448 = vsel %vm384, 1.0, 0.0
      %v449 = vpack.c.bf16 %v389, %v385
      %v450 = vpack.c.bf16 %v390, %v386
      %v451 = vpack.c.bf16 %v391, %v387
      %v452 = vpack.c.bf16 %v392, %v388
      %v453 = vpack.c.bf16 %v397, %v393
      %v454 = vpack.c.bf16 %v398, %v394
      %v455 = vpack.c.bf16 %v399, %v395
      %v456 = vpack.c.bf16 %v400, %v396
      %v457 = vpack.c.bf16 %v405, %v401
      %v458 = vpack.c.bf16 %v406, %v402
      %v459 = vpack.c.bf16 %v407, %v403
      %v460 = vpack.c.bf16 %v408, %v404
      %v461 = vpack.c.bf16 %v413, %v409
      %v462 = vpack.c.bf16 %v414, %v410
      %v463 = vpack.c.bf16 %v415, %v411
      %v464 = vpack.c.bf16 %v416, %v412
      %v465 = vpack.c.bf16 %v421, %v417
      %v466 = vpack.c.bf16 %v422, %v418
      %v467 = vpack.c.bf16 %v423, %v419
      %v468 = vpack.c.bf16 %v424, %v420
      %v469 = vpack.c.bf16 %v429, %v425
      %v470 = vpack.c.bf16 %v430, %v426
      %v471 = vpack.c.bf16 %v431, %v427
      %v472 = vpack.c.bf16 %v432, %v428
      %v473 = vpack.c.bf16 %v437, %v433
      %v474 = vpack.c.bf16 %v438, %v434
      %v475 = vpack.c.bf16 %v439, %v435
      %v476 = vpack.c.bf16 %v440, %v436
      %v477 = vpack.c.bf16 %v445, %v441
      %v478 = vpack.c.bf16 %v446, %v442
      %v479 = vpack.c.bf16 %v447, %v443
      %v480 = vpack.c.bf16 %v448, %v444
      %v481 = vlaneseq
      %v482 = vshrl.u32 %v481, 7
      %v483 = vsub.s32 0, %v482
      %v484 = vrot.slane %v271, %v483
      %v485 = vlaneseq
      %v486 = vshrl.u32 %v485, 7
      %v487 = vsub.s32 2, %v486
      %v488 = vrot.slane %v271, %v487
      %v489 = vlaneseq
      %v490 = vshrl.u32 %v489, 7
      %v491 = vsub.s32 4, %v490
      %v492 = vrot.slane %v271, %v491
      %v493 = vlaneseq
      %v494 = vshrl.u32 %v493, 7
      %v495 = vsub.s32 6, %v494
      %v496 = vrot.slane %v271, %v495
      %v497 = vlaneseq
      %v498 = vshrl.u32 %v497, 7
      %v499 = vsub.s32 0, %v498
      %v500 = vrot.slane %v484, %v499
      %v501 = vlaneseq
      %v502 = vshrl.u32 %v501, 7
      %v503 = vsub.s32 0, %v502
      %v504 = vrot.slane %v488, %v503
      %v505 = vlaneseq
      %v506 = vshrl.u32 %v505, 7
      %v507 = vsub.s32 0, %v506
      %v508 = vrot.slane %v492, %v507
      %v509 = vlaneseq
      %v510 = vshrl.u32 %v509, 7
      %v511 = vsub.s32 0, %v510
      %v512 = vrot.slane %v496, %v511
      %vm513 = vcmp.eq.s32.totalorder %v273, %v500
      %vm514 = vcmp.eq.s32.totalorder %v273, %v504
      %vm515 = vcmp.eq.s32.totalorder %v273, %v508
      %vm516 = vcmp.eq.s32.totalorder %v273, %v512
      %vm517 = vcmp.eq.s32.totalorder %v274, %v500
      %vm518 = vcmp.eq.s32.totalorder %v274, %v504
      %vm519 = vcmp.eq.s32.totalorder %v274, %v508
      %vm520 = vcmp.eq.s32.totalorder %v274, %v512
      %vm521 = vcmp.eq.s32.totalorder %v275, %v500
      %vm522 = vcmp.eq.s32.totalorder %v275, %v504
      %vm523 = vcmp.eq.s32.totalorder %v275, %v508
      %vm524 = vcmp.eq.s32.totalorder %v275, %v512
      %vm525 = vcmp.eq.s32.totalorder %v276, %v500
      %vm526 = vcmp.eq.s32.totalorder %v276, %v504
      %vm527 = vcmp.eq.s32.totalorder %v276, %v508
      %vm528 = vcmp.eq.s32.totalorder %v276, %v512
      %vm529 = vcmp.eq.s32.totalorder %v277, %v500
      %vm530 = vcmp.eq.s32.totalorder %v277, %v504
      %vm531 = vcmp.eq.s32.totalorder %v277, %v508
      %vm532 = vcmp.eq.s32.totalorder %v277, %v512
      %vm533 = vcmp.eq.s32.totalorder %v278, %v500
      %vm534 = vcmp.eq.s32.totalorder %v278, %v504
      %vm535 = vcmp.eq.s32.totalorder %v278, %v508
      %vm536 = vcmp.eq.s32.totalorder %v278, %v512
      %vm537 = vcmp.eq.s32.totalorder %v279, %v500
      %vm538 = vcmp.eq.s32.totalorder %v279, %v504
      %vm539 = vcmp.eq.s32.totalorder %v279, %v508
      %vm540 = vcmp.eq.s32.totalorder %v279, %v512
      %vm541 = vcmp.eq.s32.totalorder %v280, %v500
      %vm542 = vcmp.eq.s32.totalorder %v280, %v504
      %vm543 = vcmp.eq.s32.totalorder %v280, %v508
      %vm544 = vcmp.eq.s32.totalorder %v280, %v512
      %vm545 = vcmp.eq.s32.totalorder %v281, %v500
      %vm546 = vcmp.eq.s32.totalorder %v281, %v504
      %vm547 = vcmp.eq.s32.totalorder %v281, %v508
      %vm548 = vcmp.eq.s32.totalorder %v281, %v512
      %vm549 = vcmp.eq.s32.totalorder %v282, %v500
      %vm550 = vcmp.eq.s32.totalorder %v282, %v504
      %vm551 = vcmp.eq.s32.totalorder %v282, %v508
      %vm552 = vcmp.eq.s32.totalorder %v282, %v512
      %vm553 = vcmp.eq.s32.totalorder %v283, %v500
      %vm554 = vcmp.eq.s32.totalorder %v283, %v504
      %vm555 = vcmp.eq.s32.totalorder %v283, %v508
      %vm556 = vcmp.eq.s32.totalorder %v283, %v512
      %vm557 = vcmp.eq.s32.totalorder %v284, %v500
      %vm558 = vcmp.eq.s32.totalorder %v284, %v504
      %vm559 = vcmp.eq.s32.totalorder %v284, %v508
      %vm560 = vcmp.eq.s32.totalorder %v284, %v512
      %vm561 = vcmp.eq.s32.totalorder %v285, %v500
      %vm562 = vcmp.eq.s32.totalorder %v285, %v504
      %vm563 = vcmp.eq.s32.totalorder %v285, %v508
      %vm564 = vcmp.eq.s32.totalorder %v285, %v512
      %vm565 = vcmp.eq.s32.totalorder %v286, %v500
      %vm566 = vcmp.eq.s32.totalorder %v286, %v504
      %vm567 = vcmp.eq.s32.totalorder %v286, %v508
      %vm568 = vcmp.eq.s32.totalorder %v286, %v512
      %vm569 = vcmp.eq.s32.totalorder %v287, %v500
      %vm570 = vcmp.eq.s32.totalorder %v287, %v504
      %vm571 = vcmp.eq.s32.totalorder %v287, %v508
      %vm572 = vcmp.eq.s32.totalorder %v287, %v512
      %vm573 = vcmp.eq.s32.totalorder %v288, %v500
      %vm574 = vcmp.eq.s32.totalorder %v288, %v504
      %vm575 = vcmp.eq.s32.totalorder %v288, %v508
      %vm576 = vcmp.eq.s32.totalorder %v288, %v512
      %v577 = vsel %vm513, 1.0, 0.0
      %v578 = vsel %vm514, 1.0, 0.0
      %v579 = vsel %vm515, 1.0, 0.0
      %v580 = vsel %vm516, 1.0, 0.0
      %v581 = vsel %vm517, 1.0, 0.0
      %v582 = vsel %vm518, 1.0, 0.0
      %v583 = vsel %vm519, 1.0, 0.0
      %v584 = vsel %vm520, 1.0, 0.0
      %v585 = vsel %vm521, 1.0, 0.0
      %v586 = vsel %vm522, 1.0, 0.0
      %v587 = vsel %vm523, 1.0, 0.0
      %v588 = vsel %vm524, 1.0, 0.0
      %v589 = vsel %vm525, 1.0, 0.0
      %v590 = vsel %vm526, 1.0, 0.0
      %v591 = vsel %vm527, 1.0, 0.0
      %v592 = vsel %vm528, 1.0, 0.0
      %v593 = vsel %vm529, 1.0, 0.0
      %v594 = vsel %vm530, 1.0, 0.0
      %v595 = vsel %vm531, 1.0, 0.0
      %v596 = vsel %vm532, 1.0, 0.0
      %v597 = vsel %vm533, 1.0, 0.0
      %v598 = vsel %vm534, 1.0, 0.0
      %v599 = vsel %vm535, 1.0, 0.0
      %v600 = vsel %vm536, 1.0, 0.0
      %v601 = vsel %vm537, 1.0, 0.0
      %v602 = vsel %vm538, 1.0, 0.0
      %v603 = vsel %vm539, 1.0, 0.0
      %v604 = vsel %vm540, 1.0, 0.0
      %v605 = vsel %vm541, 1.0, 0.0
      %v606 = vsel %vm542, 1.0, 0.0
      %v607 = vsel %vm543, 1.0, 0.0
      %v608 = vsel %vm544, 1.0, 0.0
      %v609 = vsel %vm545, 1.0, 0.0
      %v610 = vsel %vm546, 1.0, 0.0
      %v611 = vsel %vm547, 1.0, 0.0
      %v612 = vsel %vm548, 1.0, 0.0
      %v613 = vsel %vm549, 1.0, 0.0
      %v614 = vsel %vm550, 1.0, 0.0
      %v615 = vsel %vm551, 1.0, 0.0
      %v616 = vsel %vm552, 1.0, 0.0
      %v617 = vsel %vm553, 1.0, 0.0
      %v618 = vsel %vm554, 1.0, 0.0
      %v619 = vsel %vm555, 1.0, 0.0
      %v620 = vsel %vm556, 1.0, 0.0
      %v621 = vsel %vm557, 1.0, 0.0
      %v622 = vsel %vm558, 1.0, 0.0
      %v623 = vsel %vm559, 1.0, 0.0
      %v624 = vsel %vm560, 1.0, 0.0
      %v625 = vsel %vm561, 1.0, 0.0
      %v626 = vsel %vm562, 1.0, 0.0
      %v627 = vsel %vm563, 1.0, 0.0
      %v628 = vsel %vm564, 1.0, 0.0
      %v629 = vsel %vm565, 1.0, 0.0
      %v630 = vsel %vm566, 1.0, 0.0
      %v631 = vsel %vm567, 1.0, 0.0
      %v632 = vsel %vm568, 1.0, 0.0
      %v633 = vsel %vm569, 1.0, 0.0
      %v634 = vsel %vm570, 1.0, 0.0
      %v635 = vsel %vm571, 1.0, 0.0
      %v636 = vsel %vm572, 1.0, 0.0
      %v637 = vsel %vm573, 1.0, 0.0
      %v638 = vsel %vm574, 1.0, 0.0
      %v639 = vsel %vm575, 1.0, 0.0
      %v640 = vsel %vm576, 1.0, 0.0
      %v641 = vpack.c.bf16 %v581, %v577
      %v642 = vpack.c.bf16 %v582, %v578
      %v643 = vpack.c.bf16 %v583, %v579
      %v644 = vpack.c.bf16 %v584, %v580
      %v645 = vpack.c.bf16 %v589, %v585
      %v646 = vpack.c.bf16 %v590, %v586
      %v647 = vpack.c.bf16 %v591, %v587
      %v648 = vpack.c.bf16 %v592, %v588
      %v649 = vpack.c.bf16 %v597, %v593
      %v650 = vpack.c.bf16 %v598, %v594
      %v651 = vpack.c.bf16 %v599, %v595
      %v652 = vpack.c.bf16 %v600, %v596
      %v653 = vpack.c.bf16 %v605, %v601
      %v654 = vpack.c.bf16 %v606, %v602
      %v655 = vpack.c.bf16 %v607, %v603
      %v656 = vpack.c.bf16 %v608, %v604
      %v657 = vpack.c.bf16 %v613, %v609
      %v658 = vpack.c.bf16 %v614, %v610
      %v659 = vpack.c.bf16 %v615, %v611
      %v660 = vpack.c.bf16 %v616, %v612
      %v661 = vpack.c.bf16 %v621, %v617
      %v662 = vpack.c.bf16 %v622, %v618
      %v663 = vpack.c.bf16 %v623, %v619
      %v664 = vpack.c.bf16 %v624, %v620
      %v665 = vpack.c.bf16 %v629, %v625
      %v666 = vpack.c.bf16 %v630, %v626
      %v667 = vpack.c.bf16 %v631, %v627
      %v668 = vpack.c.bf16 %v632, %v628
      %v669 = vpack.c.bf16 %v637, %v633
      %v670 = vpack.c.bf16 %v638, %v634
      %v671 = vpack.c.bf16 %v639, %v635
      %v672 = vpack.c.bf16 %v640, %v636
      %v673 = vlaneseq
      %v674 = vand.u32 %v673, 127
      %vm675 = vcmp.eq.s32.totalorder %v273, %v674
      %vm676 = vcmp.eq.s32.totalorder %v274, %v674
      %vm677 = vcmp.eq.s32.totalorder %v275, %v674
      %vm678 = vcmp.eq.s32.totalorder %v276, %v674
      %vm679 = vcmp.eq.s32.totalorder %v277, %v674
      %vm680 = vcmp.eq.s32.totalorder %v278, %v674
      %vm681 = vcmp.eq.s32.totalorder %v279, %v674
      %vm682 = vcmp.eq.s32.totalorder %v280, %v674
      %vm683 = vcmp.eq.s32.totalorder %v281, %v674
      %vm684 = vcmp.eq.s32.totalorder %v282, %v674
      %vm685 = vcmp.eq.s32.totalorder %v283, %v674
      %vm686 = vcmp.eq.s32.totalorder %v284, %v674
      %vm687 = vcmp.eq.s32.totalorder %v285, %v674
      %vm688 = vcmp.eq.s32.totalorder %v286, %v674
      %vm689 = vcmp.eq.s32.totalorder %v287, %v674
      %vm690 = vcmp.eq.s32.totalorder %v288, %v674
      %v691 = vsel %vm675, 1.0, 0.0
      %v692 = vsel %vm676, 1.0, 0.0
      %v693 = vsel %vm677, 1.0, 0.0
      %v694 = vsel %vm678, 1.0, 0.0
      %v695 = vsel %vm679, 1.0, 0.0
      %v696 = vsel %vm680, 1.0, 0.0
      %v697 = vsel %vm681, 1.0, 0.0
      %v698 = vsel %vm682, 1.0, 0.0
      %v699 = vsel %vm683, 1.0, 0.0
      %v700 = vsel %vm684, 1.0, 0.0
      %v701 = vsel %vm685, 1.0, 0.0
      %v702 = vsel %vm686, 1.0, 0.0
      %v703 = vsel %vm687, 1.0, 0.0
      %v704 = vsel %vm688, 1.0, 0.0
      %v705 = vsel %vm689, 1.0, 0.0
      %v706 = vsel %vm690, 1.0, 0.0
      %707 = vmatprep.subr.bf16.mxu0 %v642
      %708 = vmatpush1.bf16.xpose.msra.mxu0 %v641
      %709 = vmatprep.subr.bf16.mxu0 %v646
      %710 = vmatpush1.bf16.xpose.msra.mxu0 %v645
      %711 = vmatprep.subr.bf16.mxu0 %v650
      %712 = vmatpush1.bf16.xpose.msra.mxu0 %v649
      %713 = vmatprep.subr.bf16.mxu0 %v654
      %714 = vmatpush1.bf16.xpose.msra.mxu0 %v653
      %715 = vmatprep.subr.bf16.mxu0 %v658
      %716 = vmatpush1.bf16.xpose.msra.mxu0 %v657
      %717 = vmatprep.subr.bf16.mxu0 %v662
      %718 = vmatpush1.bf16.xpose.msra.mxu0 %v661
      %719 = vmatprep.subr.bf16.mxu0 %v666
      %720 = vmatpush1.bf16.xpose.msra.mxu0 %v665
      %721 = vmatprep.subr.bf16.mxu0 %v670
      %722 = vmatpush1.bf16.xpose.msra.mxu0 %v669
      %723 = vmatprep.subr.bf16.mxu0 0
      %724 = vmatpush1.bf16.xpose.msra.mxu0 0
      %725 = vmatprep.subr.bf16.mxu0 0
      %726 = vmatpush1.bf16.xpose.msra.mxu0 0
      %727 = vmatprep.subr.bf16.mxu0 0
      %728 = vmatpush1.bf16.xpose.msra.mxu0 0
      %729 = vmatprep.subr.bf16.mxu0 0
      %730 = vmatpush1.bf16.xpose.msra.mxu0 0
      %731 = vmatprep.subr.bf16.mxu0 0
      %732 = vmatpush1.bf16.xpose.msra.mxu0 0
      %733 = vmatprep.subr.bf16.mxu0 0
      %734 = vmatpush1.bf16.xpose.msra.mxu0 0
      %735 = vmatprep.subr.bf16.mxu0 0
      %736 = vmatpush1.bf16.xpose.msra.mxu0 0
      %737 = vmatprep.subr.bf16.mxu0 0
      %738 = vmatpush1.bf16.xpose.msra.mxu0 0
      %739 = vmatprep.mubr.bf16.mxu0 %v450
      %740 = vmatmul.mubr.bf16.gmra.mrb[0].mxu0 %v449
      %v741 = vpop.f32.mrb[0].mxu0
      %v742 = vadd.f32 %v691, %v741
      %v743 = vpop.f32.mrb[0].mxu0
      %v744 = vpop.f32.mrb[0].mxu0
      %v745 = vadd.f32 %v692, %v744
      %v746 = vpop.f32.mrb[0].mxu0
      %747 = vmatprep.mubr.bf16.mxu0 %v454
      %748 = vmatmul.mubr.bf16.gmra.mrb[0].mxu0 %v453
      %v749 = vpop.f32.mrb[0].mxu0
      %v750 = vadd.f32 %v693, %v749
      %v751 = vpop.f32.mrb[0].mxu0
      %v752 = vpop.f32.mrb[0].mxu0
      %v753 = vadd.f32 %v694, %v752
      %v754 = vpop.f32.mrb[0].mxu0
      %755 = vmatprep.mubr.bf16.mxu0 %v458
      %756 = vmatmul.mubr.bf16.gmra.mrb[0].mxu0 %v457
      %v757 = vpop.f32.mrb[0].mxu0
      %v758 = vadd.f32 %v695, %v757
      %v759 = vpop.f32.mrb[0].mxu0
      %v760 = vpop.f32.mrb[0].mxu0
      %v761 = vadd.f32 %v696, %v760
      %v762 = vpop.f32.mrb[0].mxu0
      %763 = vmatprep.mubr.bf16.mxu0 %v462
      %764 = vmatmul.mubr.bf16.gmra.mrb[0].mxu0 %v461
      %v765 = vpop.f32.mrb[0].mxu0
      %v766 = vadd.f32 %v697, %v765
      %v767 = vpop.f32.mrb[0].mxu0
      %v768 = vpop.f32.mrb[0].mxu0
      %v769 = vadd.f32 %v698, %v768
      %v770 = vpop.f32.mrb[0].mxu0
      %771 = vmatprep.mubr.bf16.mxu0 %v466
      %772 = vmatmul.mubr.bf16.gmra.mrb[0].mxu0 %v465
      %v773 = vpop.f32.mrb[0].mxu0
      %v774 = vadd.f32 %v699, %v773
      %v775 = vpop.f32.mrb[0].mxu0
      %v776 = vpop.f32.mrb[0].mxu0
      %v777 = vadd.f32 %v700, %v776
      %v778 = vpop.f32.mrb[0].mxu0
      %779 = vmatprep.mubr.bf16.mxu0 %v470
      %780 = vmatmul.mubr.bf16.gmra.mrb[0].mxu0 %v469
      %v781 = vpop.f32.mrb[0].mxu0
      %v782 = vadd.f32 %v701, %v781
      %v783 = vpop.f32.mrb[0].mxu0
      %v784 = vpop.f32.mrb[0].mxu0
      %v785 = vadd.f32 %v702, %v784
      %v786 = vpop.f32.mrb[0].mxu0
      %787 = vmatprep.mubr.bf16.mxu0 %v474
      %788 = vmatmul.mubr.bf16.gmra.mrb[0].mxu0 %v473
      %v789 = vpop.f32.mrb[0].mxu0
      %v790 = vadd.f32 %v703, %v789
      %v791 = vpop.f32.mrb[0].mxu0
      %v792 = vpop.f32.mrb[0].mxu0
      %v793 = vadd.f32 %v704, %v792
      %v794 = vpop.f32.mrb[0].mxu0
      %795 = vmatprep.mubr.bf16.mxu0 %v478
      %796 = vmatmul.mubr.bf16.gmra.mrb[0].mxu0 %v477
      %v797 = vpop.f32.mrb[0].mxu0
      %v798 = vadd.f32 %v705, %v797
      %v799 = vpop.f32.mrb[0].mxu0
      %v800 = vpop.f32.mrb[0].mxu0
      %v801 = vadd.f32 %v706, %v800
      %v802 = vpop.f32.mrb[0].mxu0
      %803 = vdwg.mxu0
      %804 = vmatprep.subr.bf16.mxu0 %v644
      %805 = vmatpush1.bf16.xpose.msra.mxu0 %v643
      %806 = vmatprep.subr.bf16.mxu0 %v648
      %807 = vmatpush1.bf16.xpose.msra.mxu0 %v647
      %808 = vmatprep.subr.bf16.mxu0 %v652
      %809 = vmatpush1.bf16.xpose.msra.mxu0 %v651
      %810 = vmatprep.subr.bf16.mxu0 %v656
      %811 = vmatpush1.bf16.xpose.msra.mxu0 %v655
      %812 = vmatprep.subr.bf16.mxu0 %v660
      %813 = vmatpush1.bf16.xpose.msra.mxu0 %v659
      %814 = vmatprep.subr.bf16.mxu0 %v664
      %815 = vmatpush1.bf16.xpose.msra.mxu0 %v663
      %816 = vmatprep.subr.bf16.mxu0 %v668
      %817 = vmatpush1.bf16.xpose.msra.mxu0 %v667
      %818 = vmatprep.subr.bf16.mxu0 %v672
      %819 = vmatpush1.bf16.xpose.msra.mxu0 %v671
      %820 = vmatprep.subr.bf16.mxu0 0
      %821 = vmatpush1.bf16.xpose.msra.mxu0 0
      %822 = vmatprep.subr.bf16.mxu0 0
      %823 = vmatpush1.bf16.xpose.msra.mxu0 0
      %824 = vmatprep.subr.bf16.mxu0 0
      %825 = vmatpush1.bf16.xpose.msra.mxu0 0
      %826 = vmatprep.subr.bf16.mxu0 0
      %827 = vmatpush1.bf16.xpose.msra.mxu0 0
      %828 = vmatprep.subr.bf16.mxu0 0
      %829 = vmatpush1.bf16.xpose.msra.mxu0 0
      %830 = vmatprep.subr.bf16.mxu0 0
      %831 = vmatpush1.bf16.xpose.msra.mxu0 0
      %832 = vmatprep.subr.bf16.mxu0 0
      %833 = vmatpush1.bf16.xpose.msra.mxu0 0
      %834 = vmatprep.subr.bf16.mxu0 0
      %835 = vmatpush1.bf16.xpose.msra.mxu0 0
      %836 = vmatprep.mubr.bf16.mxu0 %v452
      %837 = vmatmul.mubr.bf16.gmra.mrb[0].mxu0 %v451
      %v838 = vpop.f32.mrb[0].mxu0
      %v839 = vadd.f32 %v742, %v838
      %v840 = vpop.f32.mrb[0].mxu0
      %v841 = vpop.f32.mrb[0].mxu0
      %v842 = vadd.f32 %v745, %v841
      %v843 = vpop.f32.mrb[0].mxu0
      %844 = vmatprep.mubr.bf16.mxu0 %v456
      %845 = vmatmul.mubr.bf16.gmra.mrb[0].mxu0 %v455
      %v846 = vpop.f32.mrb[0].mxu0
      %v847 = vadd.f32 %v750, %v846
      %v848 = vpop.f32.mrb[0].mxu0
      %v849 = vpop.f32.mrb[0].mxu0
      %v850 = vadd.f32 %v753, %v849
      %v851 = vpop.f32.mrb[0].mxu0
      %852 = vmatprep.mubr.bf16.mxu0 %v460
      %853 = vmatmul.mubr.bf16.gmra.mrb[0].mxu0 %v459
      %v854 = vpop.f32.mrb[0].mxu0
      %v855 = vadd.f32 %v758, %v854
      %v856 = vpop.f32.mrb[0].mxu0
      %v857 = vpop.f32.mrb[0].mxu0
      %v858 = vadd.f32 %v761, %v857
      %v859 = vpop.f32.mrb[0].mxu0
      %860 = vmatprep.mubr.bf16.mxu0 %v464
      %861 = vmatmul.mubr.bf16.gmra.mrb[0].mxu0 %v463
      %v862 = vpop.f32.mrb[0].mxu0
      %v863 = vadd.f32 %v766, %v862
      %v864 = vpop.f32.mrb[0].mxu0
      %v865 = vpop.f32.mrb[0].mxu0
      %v866 = vadd.f32 %v769, %v865
      %v867 = vpop.f32.mrb[0].mxu0
      %868 = vmatprep.mubr.bf16.mxu0 %v468
      %869 = vmatmul.mubr.bf16.gmra.mrb[0].mxu0 %v467
      %v870 = vpop.f32.mrb[0].mxu0
      %v871 = vadd.f32 %v774, %v870
      %v872 = vpop.f32.mrb[0].mxu0
      %v873 = vpop.f32.mrb[0].mxu0
      %v874 = vadd.f32 %v777, %v873
      %v875 = vpop.f32.mrb[0].mxu0
      %876 = vmatprep.mubr.bf16.mxu0 %v472
      %877 = vmatmul.mubr.bf16.gmra.mrb[0].mxu0 %v471
      %v878 = vpop.f32.mrb[0].mxu0
      %v879 = vadd.f32 %v782, %v878
      %v880 = vpop.f32.mrb[0].mxu0
      %v881 = vpop.f32.mrb[0].mxu0
      %v882 = vadd.f32 %v785, %v881
      %v883 = vpop.f32.mrb[0].mxu0
      %884 = vmatprep.mubr.bf16.mxu0 %v476
      %885 = vmatmul.mubr.bf16.gmra.mrb[0].mxu0 %v475
      %v886 = vpop.f32.mrb[0].mxu0
      %v887 = vadd.f32 %v790, %v886
      %v888 = vpop.f32.mrb[0].mxu0
      %v889 = vpop.f32.mrb[0].mxu0
      %v890 = vadd.f32 %v793, %v889
      %v891 = vpop.f32.mrb[0].mxu0
      %892 = vmatprep.mubr.bf16.mxu0 %v480
      %893 = vmatmul.mubr.bf16.gmra.mrb[0].mxu0 %v479
      %v894 = vpop.f32.mrb[0].mxu0
      %v895 = vadd.f32 %v798, %v894
      %v896 = vpop.f32.mrb[0].mxu0
      %v897 = vpop.f32.mrb[0].mxu0
      %v898 = vadd.f32 %v801, %v897
      %v899 = vpop.f32.mrb[0].mxu0
      %900 = vdwg.mxu0
      %901 = vadd.xlane.f32.xlu0 %v839
      %v902 = vpop.xlane.xlu0 %901
      %903 = vadd.xlane.f32.xlu0 %v842
      %v904 = vpop.xlane.xlu0 %903
      %905 = vadd.xlane.f32.xlu0 %v847
      %v906 = vpop.xlane.xlu0 %905
      %907 = vadd.xlane.f32.xlu0 %v850
      %v908 = vpop.xlane.xlu0 %907
      %909 = vadd.xlane.f32.xlu0 %v855
      %v910 = vpop.xlane.xlu0 %909
      %911 = vadd.xlane.f32.xlu0 %v858
      %v912 = vpop.xlane.xlu0 %911
      %913 = vadd.xlane.f32.xlu0 %v863
      %v914 = vpop.xlane.xlu0 %913
      %915 = vadd.xlane.f32.xlu0 %v866
      %v916 = vpop.xlane.xlu0 %915
      %917 = vadd.xlane.f32.xlu0 %v871
      %v918 = vpop.xlane.xlu0 %917
      %919 = vadd.xlane.f32.xlu0 %v874
      %v920 = vpop.xlane.xlu0 %919
      %921 = vadd.xlane.f32.xlu0 %v879
      %v922 = vpop.xlane.xlu0 %921
      %923 = vadd.xlane.f32.xlu0 %v882
      %v924 = vpop.xlane.xlu0 %923
      %925 = vadd.xlane.f32.xlu0 %v887
      %v926 = vpop.xlane.xlu0 %925
      %927 = vadd.xlane.f32.xlu0 %v890
      %v928 = vpop.xlane.xlu0 %927
      %929 = vadd.xlane.f32.xlu0 %v895
      %v930 = vpop.xlane.xlu0 %929
      %931 = vadd.xlane.f32.xlu0 %v898
      %v932 = vpop.xlane.xlu0 %931
      %v933 = vrsqrt.pop %v902
      %v934 = vrsqrt.pop %v904
      %v935 = vrsqrt.pop %v906
      %v936 = vrsqrt.pop %v908
      %v937 = vrsqrt.pop %v910
      %v938 = vrsqrt.pop %v912
      %v939 = vrsqrt.pop %v914
      %v940 = vrsqrt.pop %v916
      %v941 = vrsqrt.pop %v918
      %v942 = vrsqrt.pop %v920
      %v943 = vrsqrt.pop %v922
      %v944 = vrsqrt.pop %v924
      %v945 = vrsqrt.pop %v926
      %v946 = vrsqrt.pop %v928
      %v947 = vrsqrt.pop %v930
      %v948 = vrsqrt.pop %v932
      %v949 = vmul.f32 %v933, %v839
      %v950 = vmul.f32 %v934, %v842
      %v951 = vmul.f32 %v935, %v847
      %v952 = vmul.f32 %v936, %v850
      %v953 = vmul.f32 %v937, %v855
      %v954 = vmul.f32 %v938, %v858
      %v955 = vmul.f32 %v939, %v863
      %v956 = vmul.f32 %v940, %v866
      %v957 = vmul.f32 %v941, %v871
      %v958 = vmul.f32 %v942, %v874
      %v959 = vmul.f32 %v943, %v879
      %v960 = vmul.f32 %v944, %v882
      %v961 = vmul.f32 %v945, %v887
      %v962 = vmul.f32 %v946, %v890
      %v963 = vmul.f32 %v947, %v895
      %v964 = vmul.f32 %v948, %v898
      %v965 = vpack.c.bf16 %v950, %v949
      %v966 = vpack.c.bf16 %v952, %v951
      %v967 = vpack.c.bf16 %v954, %v953
      %v968 = vpack.c.bf16 %v956, %v955
      %v969 = vpack.c.bf16 %v958, %v957
      %v970 = vpack.c.bf16 %v960, %v959
      %v971 = vpack.c.bf16 %v962, %v961
      %v972 = vpack.c.bf16 %v964, %v963
      %v973 = vld [vmem:[%s222] sm:$0xf]
      %v974 = vld [vmem:[%s222 + $0x4] sm:$0xf]
      %v975 = vld [vmem:[%s222 + $0x8] sm:$0xf]
      %v976 = vld [vmem:[%s222 + $0xc] sm:$0xf]
      %v977 = vld [vmem:[%s222 + $0x10] sm:$0xf]
      %v978 = vld [vmem:[%s222 + $0x14] sm:$0xf]
      %v979 = vld [vmem:[%s222 + $0x18] sm:$0xf]
      %v980 = vld [vmem:[%s222 + $0x1c] sm:$0xf]
      %v981 = vld [vmem:[%s222 + $0x20] sm:$0xf]
      %v982 = vld [vmem:[%s222 + $0x24] sm:$0xf]
      %v983 = vld [vmem:[%s222 + $0x28] sm:$0xf]
      %v984 = vld [vmem:[%s222 + $0x2c] sm:$0xf]
      %v985 = vld [vmem:[%s222 + $0x30] sm:$0xf]
      %v986 = vld [vmem:[%s222 + $0x34] sm:$0xf]
      %v987 = vld [vmem:[%s222 + $0x38] sm:$0xf]
      %v988 = vld [vmem:[%s222 + $0x3c] sm:$0xf]
      %v1005 = vunpack.c.l.b16 %v973
      %v1006 = vunpack.c.l.b16 %v974
      %v1007 = vunpack.c.l.b16 %v975
      %v1008 = vunpack.c.l.b16 %v976
      %v1009 = vunpack.c.l.b16 %v977
      %v1010 = vunpack.c.l.b16 %v978
      %v1011 = vunpack.c.l.b16 %v979
      %v1012 = vunpack.c.l.b16 %v980
      %v1013 = vunpack.c.l.b16 %v981
      %v1014 = vunpack.c.l.b16 %v982
      %v1015 = vunpack.c.l.b16 %v983
      %v1016 = vunpack.c.l.b16 %v984
      %v1017 = vunpack.c.l.b16 %v985
      %v1018 = vunpack.c.l.b16 %v986
      %v1019 = vunpack.c.l.b16 %v987
      %v1020 = vunpack.c.l.b16 %v988
      %v1021 = vpack.c.b16 %v1006, %v1005
      %v1022 = vpack.c.b16 %v1008, %v1007
      %v1023 = vpack.c.b16 %v1010, %v1009
      %v1024 = vpack.c.b16 %v1012, %v1011
      %v1025 = vpack.c.b16 %v1014, %v1013
      %v1026 = vpack.c.b16 %v1016, %v1015
      %v1027 = vpack.c.b16 %v1018, %v1017
      %v1028 = vpack.c.b16 %v1020, %v1019
      %v1031 = vunpack.c.l.b16 %v232
      %v1032 = vunpack.c.l.b16 %v233
      %v1033 = vpack.c.b16 %v1032, %v1031
      %vm1035 = vcmask 130048
      %v1037 = vsel %vm1035, %v1021, 0
      %v1040 = vsel %vm1035, %v1022, 0
      %v1043 = vsel %vm1035, %v1023, 0
      %v1046 = vsel %vm1035, %v1024, 0
      %v1049 = vsel %vm1035, %v1025, 0
      %v1052 = vsel %vm1035, %v1026, 0
      %v1055 = vsel %vm1035, %v1027, 0
      %v1058 = vsel %vm1035, %v1028, 0
      %1060 = vmatprep.subr.bf16.mxu0 0
      %1061 = vmatpush1.bf16.msra.mxu0 %v1033
      %1062 = vmatprep.subr.bf16.mxu0 0
      %1063 = vmatpush1.bf16.msra.mxu0 0
      %1064 = vmatprep.subr.bf16.mxu0 0
      %1065 = vmatpush1.bf16.msra.mxu0 0
      %1066 = vmatprep.subr.bf16.mxu0 0
      %1067 = vmatpush1.bf16.msra.mxu0 0
      %1068 = vmatprep.subr.bf16.mxu0 0
      %1069 = vmatpush1.bf16.msra.mxu0 0
      %1070 = vmatprep.subr.bf16.mxu0 0
      %1071 = vmatpush1.bf16.msra.mxu0 0
      %1072 = vmatprep.subr.bf16.mxu0 0
      %1073 = vmatpush1.bf16.msra.mxu0 0
      %1074 = vmatprep.subr.bf16.mxu0 0
      %1075 = vmatpush1.bf16.msra.mxu0 0
      %1076 = vmatprep.subr.bf16.mxu0 0
      %1077 = vmatpush1.bf16.msra.mxu0 0
      %1078 = vmatprep.subr.bf16.mxu0 0
      %1079 = vmatpush1.bf16.msra.mxu0 0
      %1080 = vmatprep.subr.bf16.mxu0 0
      %1081 = vmatpush1.bf16.msra.mxu0 0
      %1082 = vmatprep.subr.bf16.mxu0 0
      %1083 = vmatpush1.bf16.msra.mxu0 0
      %1084 = vmatprep.subr.bf16.mxu0 0
      %1085 = vmatpush1.bf16.msra.mxu0 0
      %1086 = vmatprep.subr.bf16.mxu0 0
      %1087 = vmatpush1.bf16.msra.mxu0 0
      %1088 = vmatprep.subr.bf16.mxu0 0
      %1089 = vmatpush1.bf16.msra.mxu0 0
      %1090 = vmatprep.subr.bf16.mxu0 0
      %1091 = vmatpush1.bf16.msra.mxu0 0
      %1092 = vmatprep.mubr.bf16.mxu0 0
      %1093 = vmatmul.mubr.bf16.gmra.mrb[0].mxu0 %v1037
      %v1094 = vpop.f32.mrb[0].mxu0
      %v1095 = vadd.f32 0.0, %v1094
      %v1096 = vpop.f32.mrb[0].mxu0
      %v1097 = vpop.f32.mrb[0].mxu0
      %v1098 = vadd.f32 0.0, %v1097
      %v1099 = vpop.f32.mrb[0].mxu0
      %1100 = vmatprep.mubr.bf16.mxu0 0
      %1101 = vmatmul.mubr.bf16.gmra.mrb[0].mxu0 %v1040
      %v1102 = vpop.f32.mrb[0].mxu0
      %v1103 = vadd.f32 0.0, %v1102
      %v1104 = vpop.f32.mrb[0].mxu0
      %v1105 = vpop.f32.mrb[0].mxu0
      %v1106 = vadd.f32 0.0, %v1105
      %v1107 = vpop.f32.mrb[0].mxu0
      %1108 = vmatprep.mubr.bf16.mxu0 0
      %1109 = vmatmul.mubr.bf16.gmra.mrb[0].mxu0 %v1043
      %v1110 = vpop.f32.mrb[0].mxu0
      %v1111 = vadd.f32 0.0, %v1110
      %v1112 = vpop.f32.mrb[0].mxu0
      %v1113 = vpop.f32.mrb[0].mxu0
      %v1114 = vadd.f32 0.0, %v1113
      %v1115 = vpop.f32.mrb[0].mxu0
      %1116 = vmatprep.mubr.bf16.mxu0 0
      %1117 = vmatmul.mubr.bf16.gmra.mrb[0].mxu0 %v1046
      %v1118 = vpop.f32.mrb[0].mxu0
      %v1119 = vadd.f32 0.0, %v1118
      %v1120 = vpop.f32.mrb[0].mxu0
      %v1121 = vpop.f32.mrb[0].mxu0
      %v1122 = vadd.f32 0.0, %v1121
      %v1123 = vpop.f32.mrb[0].mxu0
      %1124 = vmatprep.mubr.bf16.mxu0 0
      %1125 = vmatmul.mubr.bf16.gmra.mrb[0].mxu0 %v1049
      %v1126 = vpop.f32.mrb[0].mxu0
      %v1127 = vadd.f32 0.0, %v1126
      %v1128 = vpop.f32.mrb[0].mxu0
      %v1129 = vpop.f32.mrb[0].mxu0
      %v1130 = vadd.f32 0.0, %v1129
      %v1131 = vpop.f32.mrb[0].mxu0
      %1132 = vmatprep.mubr.bf16.mxu0 0
      %1133 = vmatmul.mubr.bf16.gmra.mrb[0].mxu0 %v1052
      %v1134 = vpop.f32.mrb[0].mxu0
      %v1135 = vadd.f32 0.0, %v1134
      %v1136 = vpop.f32.mrb[0].mxu0
      %v1137 = vpop.f32.mrb[0].mxu0
      %v1138 = vadd.f32 0.0, %v1137
      %v1139 = vpop.f32.mrb[0].mxu0
      %1140 = vmatprep.mubr.bf16.mxu0 0
      %1141 = vmatmul.mubr.bf16.gmra.mrb[0].mxu0 %v1055
      %v1142 = vpop.f32.mrb[0].mxu0
      %v1143 = vadd.f32 0.0, %v1142
      %v1144 = vpop.f32.mrb[0].mxu0
      %v1145 = vpop.f32.mrb[0].mxu0
      %v1146 = vadd.f32 0.0, %v1145
      %v1147 = vpop.f32.mrb[0].mxu0
      %1148 = vmatprep.mubr.bf16.mxu0 0
      %1149 = vmatmul.mubr.bf16.gmra.mrb[0].mxu0 %v1058
      %v1150 = vpop.f32.mrb[0].mxu0
      %v1151 = vadd.f32 0.0, %v1150
      %v1152 = vpop.f32.mrb[0].mxu0
      %v1153 = vpop.f32.mrb[0].mxu0
      %v1154 = vadd.f32 0.0, %v1153
      %v1155 = vpop.f32.mrb[0].mxu0
      %1156 = vdwg.mxu0
      %v1157 = vmul.f32 %v933, %v1095
      %v1158 = vmul.f32 %v934, %v1098
      %v1159 = vmul.f32 %v935, %v1103
      %v1160 = vmul.f32 %v936, %v1106
      %v1161 = vmul.f32 %v937, %v1111
      %v1162 = vmul.f32 %v938, %v1114
      %v1163 = vmul.f32 %v939, %v1119
      %v1164 = vmul.f32 %v940, %v1122
      %v1165 = vmul.f32 %v941, %v1127
      %v1166 = vmul.f32 %v942, %v1130
      %v1167 = vmul.f32 %v943, %v1135
      %v1168 = vmul.f32 %v944, %v1138
      %v1169 = vmul.f32 %v945, %v1143
      %v1170 = vmul.f32 %v946, %v1146
      %v1171 = vmul.f32 %v947, %v1151
      %v1172 = vmul.f32 %v948, %v1154
      %v1173 = vpack.c.bf16 %v1158, %v1157
      %v1174 = vpack.c.bf16 %v1160, %v1159
      %v1175 = vpack.c.bf16 %v1162, %v1161
      %v1176 = vpack.c.bf16 %v1164, %v1163
      %v1177 = vpack.c.bf16 %v1166, %v1165
      %v1178 = vpack.c.bf16 %v1168, %v1167
      %v1179 = vpack.c.bf16 %v1170, %v1169
      %v1180 = vpack.c.bf16 %v1172, %v1171
      %v1181 = vlaneseq
      %v1182 = vshrl.u32 %v1181, 7
      %v1183 = vsub.s32 0, %v1182
      %v1184 = vrot.slane %v268, %v1183
      %1185 = vmatprep.subr.bf16.mxu0 0
      %1186 = vmatpush1.bf16.msra.mxu0 %v1173
      %1187 = vmatprep.subr.bf16.mxu0 0
      %1188 = vmatpush1.bf16.msra.mxu0 %v1174
      %1189 = vmatprep.subr.bf16.mxu0 0
      %1190 = vmatpush1.bf16.msra.mxu0 %v1175
      %1191 = vmatprep.subr.bf16.mxu0 0
      %1192 = vmatpush1.bf16.msra.mxu0 %v1176
      %1193 = vmatprep.subr.bf16.mxu0 0
      %1194 = vmatpush1.bf16.msra.mxu0 %v1177
      %1195 = vmatprep.subr.bf16.mxu0 0
      %1196 = vmatpush1.bf16.msra.mxu0 %v1178
      %1197 = vmatprep.subr.bf16.mxu0 0
      %1198 = vmatpush1.bf16.msra.mxu0 %v1179
      %1199 = vmatprep.subr.bf16.mxu0 0
      %1200 = vmatpush1.bf16.msra.mxu0 %v1180
      %1201 = vmatprep.subr.bf16.mxu0 0
      %1202 = vmatpush1.bf16.msra.mxu0 0
      %1203 = vmatprep.subr.bf16.mxu0 0
      %1204 = vmatpush1.bf16.msra.mxu0 0
      %1205 = vmatprep.subr.bf16.mxu0 0
      %1206 = vmatpush1.bf16.msra.mxu0 0
      %1207 = vmatprep.subr.bf16.mxu0 0
      %1208 = vmatpush1.bf16.msra.mxu0 0
      %1209 = vmatprep.subr.bf16.mxu0 0
      %1210 = vmatpush1.bf16.msra.mxu0 0
      %1211 = vmatprep.subr.bf16.mxu0 0
      %1212 = vmatpush1.bf16.msra.mxu0 0
      %1213 = vmatprep.subr.bf16.mxu0 0
      %1214 = vmatpush1.bf16.msra.mxu0 0
      %1215 = vmatprep.subr.bf16.mxu0 0
      %1216 = vmatpush1.bf16.msra.mxu0 0
      %1217 = vmatprep.mubr.bf16.mxu0 0
      %1218 = vmatmul.mubr.bf16.gmra.mrb[0].mxu0 %v965
      %v1219 = vpop.f32.mrb[0].mxu0
      %v1220 = vadd.f32 %v1184, %v1219
      %v1221 = vpop.f32.mrb[0].mxu0
      %v1222 = vpop.f32.mrb[0].mxu0
      %v1223 = vadd.f32 %v1184, %v1222
      %v1224 = vpop.f32.mrb[0].mxu0
      %1225 = vmatprep.mubr.bf16.mxu0 0
      %1226 = vmatmul.mubr.bf16.gmra.mrb[0].mxu0 %v966
      %v1227 = vpop.f32.mrb[0].mxu0
      %v1228 = vadd.f32 %v1184, %v1227
      %v1229 = vpop.f32.mrb[0].mxu0
      %v1230 = vpop.f32.mrb[0].mxu0
      %v1231 = vadd.f32 %v1184, %v1230
      %v1232 = vpop.f32.mrb[0].mxu0
      %1233 = vmatprep.mubr.bf16.mxu0 0
      %1234 = vmatmul.mubr.bf16.gmra.mrb[0].mxu0 %v967
      %v1235 = vpop.f32.mrb[0].mxu0
      %v1236 = vadd.f32 %v1184, %v1235
      %v1237 = vpop.f32.mrb[0].mxu0
      %v1238 = vpop.f32.mrb[0].mxu0
      %v1239 = vadd.f32 %v1184, %v1238
      %v1240 = vpop.f32.mrb[0].mxu0
      %1241 = vmatprep.mubr.bf16.mxu0 0
      %1242 = vmatmul.mubr.bf16.gmra.mrb[0].mxu0 %v968
      %v1243 = vpop.f32.mrb[0].mxu0
      %v1244 = vadd.f32 %v1184, %v1243
      %v1245 = vpop.f32.mrb[0].mxu0
      %v1246 = vpop.f32.mrb[0].mxu0
      %v1247 = vadd.f32 %v1184, %v1246
      %v1248 = vpop.f32.mrb[0].mxu0
      %1249 = vmatprep.mubr.bf16.mxu0 0
      %1250 = vmatmul.mubr.bf16.gmra.mrb[0].mxu0 %v969
      %v1251 = vpop.f32.mrb[0].mxu0
      %v1252 = vadd.f32 %v1184, %v1251
      %v1253 = vpop.f32.mrb[0].mxu0
      %v1254 = vpop.f32.mrb[0].mxu0
      %v1255 = vadd.f32 %v1184, %v1254
      %v1256 = vpop.f32.mrb[0].mxu0
      %1257 = vmatprep.mubr.bf16.mxu0 0
      %1258 = vmatmul.mubr.bf16.gmra.mrb[0].mxu0 %v970
      %v1259 = vpop.f32.mrb[0].mxu0
      %v1260 = vadd.f32 %v1184, %v1259
      %v1261 = vpop.f32.mrb[0].mxu0
      %v1262 = vpop.f32.mrb[0].mxu0
      %v1263 = vadd.f32 %v1184, %v1262
      %v1264 = vpop.f32.mrb[0].mxu0
      %1265 = vmatprep.mubr.bf16.mxu0 0
      %1266 = vmatmul.mubr.bf16.gmra.mrb[0].mxu0 %v971
      %v1267 = vpop.f32.mrb[0].mxu0
      %v1268 = vadd.f32 %v1184, %v1267
      %v1269 = vpop.f32.mrb[0].mxu0
      %v1270 = vpop.f32.mrb[0].mxu0
      %v1271 = vadd.f32 %v1184, %v1270
      %v1272 = vpop.f32.mrb[0].mxu0
      %1273 = vmatprep.mubr.bf16.mxu0 0
      %1274 = vmatmul.mubr.bf16.gmra.mrb[0].mxu0 %v972
      %v1275 = vpop.f32.mrb[0].mxu0
      %v1276 = vadd.f32 %v1184, %v1275
      %v1277 = vpop.f32.mrb[0].mxu0
      %v1278 = vpop.f32.mrb[0].mxu0
      %v1279 = vadd.f32 %v1184, %v1278
      %v1280 = vpop.f32.mrb[0].mxu0
      %1281 = vdwg.mxu0
      %v1282 = vmax.f32 %v1220, 0.0
      %v1283 = vmax.f32 %v1223, 0.0
      %v1284 = vmax.f32 %v1228, 0.0
      %v1285 = vmax.f32 %v1231, 0.0
      %v1286 = vmax.f32 %v1236, 0.0
      %v1287 = vmax.f32 %v1239, 0.0
      %v1288 = vmax.f32 %v1244, 0.0
      %v1289 = vmax.f32 %v1247, 0.0
      %v1290 = vmax.f32 %v1252, 0.0
      %v1291 = vmax.f32 %v1255, 0.0
      %v1292 = vmax.f32 %v1260, 0.0
      %v1293 = vmax.f32 %v1263, 0.0
      %v1294 = vmax.f32 %v1268, 0.0
      %v1295 = vmax.f32 %v1271, 0.0
      %v1296 = vmax.f32 %v1276, 0.0
      %v1297 = vmax.f32 %v1279, 0.0
      %v1298 = vpack.c.bf16 %v1283, %v1282
      %v1299 = vpack.c.bf16 %v1285, %v1284
      %v1300 = vpack.c.bf16 %v1287, %v1286
      %v1301 = vpack.c.bf16 %v1289, %v1288
      %v1302 = vpack.c.bf16 %v1291, %v1290
      %v1303 = vpack.c.bf16 %v1293, %v1292
      %v1304 = vpack.c.bf16 %v1295, %v1294
      %v1305 = vpack.c.bf16 %v1297, %v1296
      %v1322 = vunpack.c.l.b16 %v235
      %v1323 = vunpack.c.l.b16 %v236
      %v1324 = vunpack.c.l.b16 %v237
      %v1325 = vunpack.c.l.b16 %v238
      %v1326 = vunpack.c.l.b16 %v239
      %v1327 = vunpack.c.l.b16 %v240
      %v1328 = vunpack.c.l.b16 %v241
      %v1329 = vunpack.c.l.b16 %v242
      %v1330 = vunpack.c.l.b16 %v243
      %v1331 = vunpack.c.l.b16 %v244
      %v1332 = vunpack.c.l.b16 %v245
      %v1333 = vunpack.c.l.b16 %v246
      %v1334 = vunpack.c.l.b16 %v247
      %v1335 = vunpack.c.l.b16 %v248
      %v1336 = vunpack.c.l.b16 %v249
      %v1337 = vunpack.c.l.b16 %v250
      %v1338 = vpack.c.b16 %v1323, %v1322
      %v1339 = vpack.c.b16 %v1325, %v1324
      %v1340 = vpack.c.b16 %v1327, %v1326
      %v1341 = vpack.c.b16 %v1329, %v1328
      %v1342 = vpack.c.b16 %v1331, %v1330
      %v1343 = vpack.c.b16 %v1333, %v1332
      %v1344 = vpack.c.b16 %v1335, %v1334
      %v1345 = vpack.c.b16 %v1337, %v1336
      %1354 = vmatprep.subr.bf16.mxu0 0
      %1355 = vmatpush1.bf16.msra.mxu0 %v1338
      %1356 = vmatprep.subr.bf16.mxu0 0
      %1357 = vmatpush1.bf16.msra.mxu0 %v1339
      %1358 = vmatprep.subr.bf16.mxu0 0
      %1359 = vmatpush1.bf16.msra.mxu0 %v1340
      %1360 = vmatprep.subr.bf16.mxu0 0
      %1361 = vmatpush1.bf16.msra.mxu0 %v1341
      %1362 = vmatprep.subr.bf16.mxu0 0
      %1363 = vmatpush1.bf16.msra.mxu0 %v1342
      %1364 = vmatprep.subr.bf16.mxu0 0
      %1365 = vmatpush1.bf16.msra.mxu0 %v1343
      %1366 = vmatprep.subr.bf16.mxu0 0
      %1367 = vmatpush1.bf16.msra.mxu0 %v1344
      %1368 = vmatprep.subr.bf16.mxu0 0
      %1369 = vmatpush1.bf16.msra.mxu0 %v1345
      %1370 = vmatprep.subr.bf16.mxu0 0
      %1371 = vmatpush1.bf16.msra.mxu0 0
      %1372 = vmatprep.subr.bf16.mxu0 0
      %1373 = vmatpush1.bf16.msra.mxu0 0
      %1374 = vmatprep.subr.bf16.mxu0 0
      %1375 = vmatpush1.bf16.msra.mxu0 0
      %1376 = vmatprep.subr.bf16.mxu0 0
      %1377 = vmatpush1.bf16.msra.mxu0 0
      %1378 = vmatprep.subr.bf16.mxu0 0
      %1379 = vmatpush1.bf16.msra.mxu0 0
      %1380 = vmatprep.subr.bf16.mxu0 0
      %1381 = vmatpush1.bf16.msra.mxu0 0
      %1382 = vmatprep.subr.bf16.mxu0 0
      %1383 = vmatpush1.bf16.msra.mxu0 0
      %1384 = vmatprep.subr.bf16.mxu0 0
      %1385 = vmatpush1.bf16.msra.mxu0 0
      %1386 = vmatprep.mubr.bf16.mxu0 0
      %1387 = vmatmul.mubr.bf16.gmra.mrb[0].mxu0 %v1298
      %v1388 = vpop.f32.mrb[0].mxu0
      %v1389 = vadd.f32 0.0, %v1388
      %v1390 = vpop.f32.mrb[0].mxu0
      %v1391 = vpop.f32.mrb[0].mxu0
      %v1392 = vadd.f32 0.0, %v1391
      %v1393 = vpop.f32.mrb[0].mxu0
      %1394 = vmatprep.mubr.bf16.mxu0 0
      %1395 = vmatmul.mubr.bf16.gmra.mrb[0].mxu0 %v1299
      %v1396 = vpop.f32.mrb[0].mxu0
      %v1397 = vadd.f32 0.0, %v1396
      %v1398 = vpop.f32.mrb[0].mxu0
      %v1399 = vpop.f32.mrb[0].mxu0
      %v1400 = vadd.f32 0.0, %v1399
      %v1401 = vpop.f32.mrb[0].mxu0
      %1402 = vmatprep.mubr.bf16.mxu0 0
      %1403 = vmatmul.mubr.bf16.gmra.mrb[0].mxu0 %v1300
      %v1404 = vpop.f32.mrb[0].mxu0
      %v1405 = vadd.f32 0.0, %v1404
      %v1406 = vpop.f32.mrb[0].mxu0
      %v1407 = vpop.f32.mrb[0].mxu0
      %v1408 = vadd.f32 0.0, %v1407
      %v1409 = vpop.f32.mrb[0].mxu0
      %1410 = vmatprep.mubr.bf16.mxu0 0
      %1411 = vmatmul.mubr.bf16.gmra.mrb[0].mxu0 %v1301
      %v1412 = vpop.f32.mrb[0].mxu0
      %v1413 = vadd.f32 0.0, %v1412
      %v1414 = vpop.f32.mrb[0].mxu0
      %v1415 = vpop.f32.mrb[0].mxu0
      %v1416 = vadd.f32 0.0, %v1415
      %v1417 = vpop.f32.mrb[0].mxu0
      %1418 = vmatprep.mubr.bf16.mxu0 0
      %1419 = vmatmul.mubr.bf16.gmra.mrb[0].mxu0 %v1302
      %v1420 = vpop.f32.mrb[0].mxu0
      %v1421 = vadd.f32 0.0, %v1420
      %v1422 = vpop.f32.mrb[0].mxu0
      %v1423 = vpop.f32.mrb[0].mxu0
      %v1424 = vadd.f32 0.0, %v1423
      %v1425 = vpop.f32.mrb[0].mxu0
      %1426 = vmatprep.mubr.bf16.mxu0 0
      %1427 = vmatmul.mubr.bf16.gmra.mrb[0].mxu0 %v1303
      %v1428 = vpop.f32.mrb[0].mxu0
      %v1429 = vadd.f32 0.0, %v1428
      %v1430 = vpop.f32.mrb[0].mxu0
      %v1431 = vpop.f32.mrb[0].mxu0
      %v1432 = vadd.f32 0.0, %v1431
      %v1433 = vpop.f32.mrb[0].mxu0
      %1434 = vmatprep.mubr.bf16.mxu0 0
      %1435 = vmatmul.mubr.bf16.gmra.mrb[0].mxu0 %v1304
      %v1436 = vpop.f32.mrb[0].mxu0
      %v1437 = vadd.f32 0.0, %v1436
      %v1438 = vpop.f32.mrb[0].mxu0
      %v1439 = vpop.f32.mrb[0].mxu0
      %v1440 = vadd.f32 0.0, %v1439
      %v1441 = vpop.f32.mrb[0].mxu0
      %1442 = vmatprep.mubr.bf16.mxu0 0
      %1443 = vmatmul.mubr.bf16.gmra.mrb[0].mxu0 %v1305
      %v1444 = vpop.f32.mrb[0].mxu0
      %v1445 = vadd.f32 0.0, %v1444
      %v1446 = vpop.f32.mrb[0].mxu0
      %v1447 = vpop.f32.mrb[0].mxu0
      %v1448 = vadd.f32 0.0, %v1447
      %v1449 = vpop.f32.mrb[0].mxu0
      %1450 = vdwg.mxu0
      %v1451 = vmul.f32 %v933, %v1389
      %v1452 = vmul.f32 %v934, %v1392
      %v1453 = vmul.f32 %v935, %v1397
      %v1454 = vmul.f32 %v936, %v1400
      %v1455 = vmul.f32 %v937, %v1405
      %v1456 = vmul.f32 %v938, %v1408
      %v1457 = vmul.f32 %v939, %v1413
      %v1458 = vmul.f32 %v940, %v1416
      %v1459 = vmul.f32 %v941, %v1421
      %v1460 = vmul.f32 %v942, %v1424
      %v1461 = vmul.f32 %v943, %v1429
      %v1462 = vmul.f32 %v944, %v1432
      %v1463 = vmul.f32 %v945, %v1437
      %v1464 = vmul.f32 %v946, %v1440
      %v1465 = vmul.f32 %v947, %v1445
      %v1466 = vmul.f32 %v948, %v1448
      %v1467 = vpack.c.bf16 %v1452, %v1451
      %v1468 = vpack.c.bf16 %v1454, %v1453
      %v1469 = vpack.c.bf16 %v1456, %v1455
      %v1470 = vpack.c.bf16 %v1458, %v1457
      %v1471 = vpack.c.bf16 %v1460, %v1459
      %v1472 = vpack.c.bf16 %v1462, %v1461
      %v1473 = vpack.c.bf16 %v1464, %v1463
      %v1474 = vpack.c.bf16 %v1466, %v1465
      %v1475 = vlaneseq
      %v1476 = vshrl.u32 %v1475, 7
      %v1477 = vsub.s32 0, %v1476
      %v1478 = vrot.slane %v269, %v1477
      %1479 = vmatprep.subr.bf16.mxu0 0
      %1480 = vmatpush1.bf16.msra.mxu0 %v1467
      %1481 = vmatprep.subr.bf16.mxu0 0
      %1482 = vmatpush1.bf16.msra.mxu0 %v1468
      %1483 = vmatprep.subr.bf16.mxu0 0
      %1484 = vmatpush1.bf16.msra.mxu0 %v1469
      %1485 = vmatprep.subr.bf16.mxu0 0
      %1486 = vmatpush1.bf16.msra.mxu0 %v1470
      %1487 = vmatprep.subr.bf16.mxu0 0
      %1488 = vmatpush1.bf16.msra.mxu0 %v1471
      %1489 = vmatprep.subr.bf16.mxu0 0
      %1490 = vmatpush1.bf16.msra.mxu0 %v1472
      %1491 = vmatprep.subr.bf16.mxu0 0
      %1492 = vmatpush1.bf16.msra.mxu0 %v1473
      %1493 = vmatprep.subr.bf16.mxu0 0
      %1494 = vmatpush1.bf16.msra.mxu0 %v1474
      %1495 = vmatprep.subr.bf16.mxu0 0
      %1496 = vmatpush1.bf16.msra.mxu0 0
      %1497 = vmatprep.subr.bf16.mxu0 0
      %1498 = vmatpush1.bf16.msra.mxu0 0
      %1499 = vmatprep.subr.bf16.mxu0 0
      %1500 = vmatpush1.bf16.msra.mxu0 0
      %1501 = vmatprep.subr.bf16.mxu0 0
      %1502 = vmatpush1.bf16.msra.mxu0 0
      %1503 = vmatprep.subr.bf16.mxu0 0
      %1504 = vmatpush1.bf16.msra.mxu0 0
      %1505 = vmatprep.subr.bf16.mxu0 0
      %1506 = vmatpush1.bf16.msra.mxu0 0
      %1507 = vmatprep.subr.bf16.mxu0 0
      %1508 = vmatpush1.bf16.msra.mxu0 0
      %1509 = vmatprep.subr.bf16.mxu0 0
      %1510 = vmatpush1.bf16.msra.mxu0 0
      %1511 = vmatprep.mubr.bf16.mxu0 0
      %1512 = vmatmul.mubr.bf16.gmra.mrb[0].mxu0 %v965
      %v1513 = vpop.f32.mrb[0].mxu0
      %v1514 = vadd.f32 %v1478, %v1513
      %v1515 = vpop.f32.mrb[0].mxu0
      %v1516 = vpop.f32.mrb[0].mxu0
      %v1517 = vadd.f32 %v1478, %v1516
      %v1518 = vpop.f32.mrb[0].mxu0
      %1519 = vmatprep.mubr.bf16.mxu0 0
      %1520 = vmatmul.mubr.bf16.gmra.mrb[0].mxu0 %v966
      %v1521 = vpop.f32.mrb[0].mxu0
      %v1522 = vadd.f32 %v1478, %v1521
      %v1523 = vpop.f32.mrb[0].mxu0
      %v1524 = vpop.f32.mrb[0].mxu0
      %v1525 = vadd.f32 %v1478, %v1524
      %v1526 = vpop.f32.mrb[0].mxu0
      %1527 = vmatprep.mubr.bf16.mxu0 0
      %1528 = vmatmul.mubr.bf16.gmra.mrb[0].mxu0 %v967
      %v1529 = vpop.f32.mrb[0].mxu0
      %v1530 = vadd.f32 %v1478, %v1529
      %v1531 = vpop.f32.mrb[0].mxu0
      %v1532 = vpop.f32.mrb[0].mxu0
      %v1533 = vadd.f32 %v1478, %v1532
      %v1534 = vpop.f32.mrb[0].mxu0
      %1535 = vmatprep.mubr.bf16.mxu0 0
      %1536 = vmatmul.mubr.bf16.gmra.mrb[0].mxu0 %v968
      %v1537 = vpop.f32.mrb[0].mxu0
      %v1538 = vadd.f32 %v1478, %v1537
      %v1539 = vpop.f32.mrb[0].mxu0
      %v1540 = vpop.f32.mrb[0].mxu0
      %v1541 = vadd.f32 %v1478, %v1540
      %v1542 = vpop.f32.mrb[0].mxu0
      %1543 = vmatprep.mubr.bf16.mxu0 0
      %1544 = vmatmul.mubr.bf16.gmra.mrb[0].mxu0 %v969
      %v1545 = vpop.f32.mrb[0].mxu0
      %v1546 = vadd.f32 %v1478, %v1545
      %v1547 = vpop.f32.mrb[0].mxu0
      %v1548 = vpop.f32.mrb[0].mxu0
      %v1549 = vadd.f32 %v1478, %v1548
      %v1550 = vpop.f32.mrb[0].mxu0
      %1551 = vmatprep.mubr.bf16.mxu0 0
      %1552 = vmatmul.mubr.bf16.gmra.mrb[0].mxu0 %v970
      %v1553 = vpop.f32.mrb[0].mxu0
      %v1554 = vadd.f32 %v1478, %v1553
      %v1555 = vpop.f32.mrb[0].mxu0
      %v1556 = vpop.f32.mrb[0].mxu0
      %v1557 = vadd.f32 %v1478, %v1556
      %v1558 = vpop.f32.mrb[0].mxu0
      %1559 = vmatprep.mubr.bf16.mxu0 0
      %1560 = vmatmul.mubr.bf16.gmra.mrb[0].mxu0 %v971
      %v1561 = vpop.f32.mrb[0].mxu0
      %v1562 = vadd.f32 %v1478, %v1561
      %v1563 = vpop.f32.mrb[0].mxu0
      %v1564 = vpop.f32.mrb[0].mxu0
      %v1565 = vadd.f32 %v1478, %v1564
      %v1566 = vpop.f32.mrb[0].mxu0
      %1567 = vmatprep.mubr.bf16.mxu0 0
      %1568 = vmatmul.mubr.bf16.gmra.mrb[0].mxu0 %v972
      %v1569 = vpop.f32.mrb[0].mxu0
      %v1570 = vadd.f32 %v1478, %v1569
      %v1571 = vpop.f32.mrb[0].mxu0
      %v1572 = vpop.f32.mrb[0].mxu0
      %v1573 = vadd.f32 %v1478, %v1572
      %v1574 = vpop.f32.mrb[0].mxu0
      %1575 = vdwg.mxu0
      %v1576 = vmax.f32 %v1514, 0.0
      %v1577 = vmax.f32 %v1517, 0.0
      %v1578 = vmax.f32 %v1522, 0.0
      %v1579 = vmax.f32 %v1525, 0.0
      %v1580 = vmax.f32 %v1530, 0.0
      %v1581 = vmax.f32 %v1533, 0.0
      %v1582 = vmax.f32 %v1538, 0.0
      %v1583 = vmax.f32 %v1541, 0.0
      %v1584 = vmax.f32 %v1546, 0.0
      %v1585 = vmax.f32 %v1549, 0.0
      %v1586 = vmax.f32 %v1554, 0.0
      %v1587 = vmax.f32 %v1557, 0.0
      %v1588 = vmax.f32 %v1562, 0.0
      %v1589 = vmax.f32 %v1565, 0.0
      %v1590 = vmax.f32 %v1570, 0.0
      %v1591 = vmax.f32 %v1573, 0.0
      %v1592 = vpack.c.bf16 %v1577, %v1576
      %v1593 = vpack.c.bf16 %v1579, %v1578
      %v1594 = vpack.c.bf16 %v1581, %v1580
      %v1595 = vpack.c.bf16 %v1583, %v1582
      %v1596 = vpack.c.bf16 %v1585, %v1584
      %v1597 = vpack.c.bf16 %v1587, %v1586
      %v1598 = vpack.c.bf16 %v1589, %v1588
      %v1599 = vpack.c.bf16 %v1591, %v1590
      %v1616 = vunpack.c.l.b16 %v252
      %v1617 = vunpack.c.l.b16 %v253
      %v1618 = vunpack.c.l.b16 %v254
      %v1619 = vunpack.c.l.b16 %v255
      %v1620 = vunpack.c.l.b16 %v256
      %v1621 = vunpack.c.l.b16 %v257
      %v1622 = vunpack.c.l.b16 %v258
      %v1623 = vunpack.c.l.b16 %v259
      %v1624 = vunpack.c.l.b16 %v260
      %v1625 = vunpack.c.l.b16 %v261
      %v1626 = vunpack.c.l.b16 %v262
      %v1627 = vunpack.c.l.b16 %v263
      %v1628 = vunpack.c.l.b16 %v264
      %v1629 = vunpack.c.l.b16 %v265
      %v1630 = vunpack.c.l.b16 %v266
      %v1631 = vunpack.c.l.b16 %v267
      %v1632 = vpack.c.b16 %v1617, %v1616
      %v1633 = vpack.c.b16 %v1619, %v1618
      %v1634 = vpack.c.b16 %v1621, %v1620
      %v1635 = vpack.c.b16 %v1623, %v1622
      %v1636 = vpack.c.b16 %v1625, %v1624
      %v1637 = vpack.c.b16 %v1627, %v1626
      %v1638 = vpack.c.b16 %v1629, %v1628
      %v1639 = vpack.c.b16 %v1631, %v1630
      %1648 = vmatprep.subr.bf16.mxu0 0
      %1649 = vmatpush1.bf16.msra.mxu0 %v1632
      %1650 = vmatprep.subr.bf16.mxu0 0
      %1651 = vmatpush1.bf16.msra.mxu0 %v1633
      %1652 = vmatprep.subr.bf16.mxu0 0
      %1653 = vmatpush1.bf16.msra.mxu0 %v1634
      %1654 = vmatprep.subr.bf16.mxu0 0
      %1655 = vmatpush1.bf16.msra.mxu0 %v1635
      %1656 = vmatprep.subr.bf16.mxu0 0
      %1657 = vmatpush1.bf16.msra.mxu0 %v1636
      %1658 = vmatprep.subr.bf16.mxu0 0
      %1659 = vmatpush1.bf16.msra.mxu0 %v1637
      %1660 = vmatprep.subr.bf16.mxu0 0
      %1661 = vmatpush1.bf16.msra.mxu0 %v1638
      %1662 = vmatprep.subr.bf16.mxu0 0
      %1663 = vmatpush1.bf16.msra.mxu0 %v1639
      %1664 = vmatprep.subr.bf16.mxu0 0
      %1665 = vmatpush1.bf16.msra.mxu0 0
      %1666 = vmatprep.subr.bf16.mxu0 0
      %1667 = vmatpush1.bf16.msra.mxu0 0
      %1668 = vmatprep.subr.bf16.mxu0 0
      %1669 = vmatpush1.bf16.msra.mxu0 0
      %1670 = vmatprep.subr.bf16.mxu0 0
      %1671 = vmatpush1.bf16.msra.mxu0 0
      %1672 = vmatprep.subr.bf16.mxu0 0
      %1673 = vmatpush1.bf16.msra.mxu0 0
      %1674 = vmatprep.subr.bf16.mxu0 0
      %1675 = vmatpush1.bf16.msra.mxu0 0
      %1676 = vmatprep.subr.bf16.mxu0 0
      %1677 = vmatpush1.bf16.msra.mxu0 0
      %1678 = vmatprep.subr.bf16.mxu0 0
      %1679 = vmatpush1.bf16.msra.mxu0 0
      %1680 = vmatprep.mubr.bf16.mxu0 0
      %1681 = vmatmul.mubr.bf16.gmra.mrb[0].mxu0 %v1592
      %v1682 = vpop.f32.mrb[0].mxu0
      %v1683 = vadd.f32 0.0, %v1682
      %v1684 = vpop.f32.mrb[0].mxu0
      %v1685 = vpop.f32.mrb[0].mxu0
      %v1686 = vadd.f32 0.0, %v1685
      %v1687 = vpop.f32.mrb[0].mxu0
      %1688 = vmatprep.mubr.bf16.mxu0 0
      %1689 = vmatmul.mubr.bf16.gmra.mrb[0].mxu0 %v1593
      %v1690 = vpop.f32.mrb[0].mxu0
      %v1691 = vadd.f32 0.0, %v1690
      %v1692 = vpop.f32.mrb[0].mxu0
      %v1693 = vpop.f32.mrb[0].mxu0
      %v1694 = vadd.f32 0.0, %v1693
      %v1695 = vpop.f32.mrb[0].mxu0
      %1696 = vmatprep.mubr.bf16.mxu0 0
      %1697 = vmatmul.mubr.bf16.gmra.mrb[0].mxu0 %v1594
      %v1698 = vpop.f32.mrb[0].mxu0
      %v1699 = vadd.f32 0.0, %v1698
      %v1700 = vpop.f32.mrb[0].mxu0
      %v1701 = vpop.f32.mrb[0].mxu0
      %v1702 = vadd.f32 0.0, %v1701
      %v1703 = vpop.f32.mrb[0].mxu0
      %1704 = vmatprep.mubr.bf16.mxu0 0
      %1705 = vmatmul.mubr.bf16.gmra.mrb[0].mxu0 %v1595
      %v1706 = vpop.f32.mrb[0].mxu0
      %v1707 = vadd.f32 0.0, %v1706
      %v1708 = vpop.f32.mrb[0].mxu0
      %v1709 = vpop.f32.mrb[0].mxu0
      %v1710 = vadd.f32 0.0, %v1709
      %v1711 = vpop.f32.mrb[0].mxu0
      %1712 = vmatprep.mubr.bf16.mxu0 0
      %1713 = vmatmul.mubr.bf16.gmra.mrb[0].mxu0 %v1596
      %v1714 = vpop.f32.mrb[0].mxu0
      %v1715 = vadd.f32 0.0, %v1714
      %v1716 = vpop.f32.mrb[0].mxu0
      %v1717 = vpop.f32.mrb[0].mxu0
      %v1718 = vadd.f32 0.0, %v1717
      %v1719 = vpop.f32.mrb[0].mxu0
      %1720 = vmatprep.mubr.bf16.mxu0 0
      %1721 = vmatmul.mubr.bf16.gmra.mrb[0].mxu0 %v1597
      %v1722 = vpop.f32.mrb[0].mxu0
      %v1723 = vadd.f32 0.0, %v1722
      %v1724 = vpop.f32.mrb[0].mxu0
      %v1725 = vpop.f32.mrb[0].mxu0
      %v1726 = vadd.f32 0.0, %v1725
      %v1727 = vpop.f32.mrb[0].mxu0
      %1728 = vmatprep.mubr.bf16.mxu0 0
      %1729 = vmatmul.mubr.bf16.gmra.mrb[0].mxu0 %v1598
      %v1730 = vpop.f32.mrb[0].mxu0
      %v1731 = vadd.f32 0.0, %v1730
      %v1732 = vpop.f32.mrb[0].mxu0
      %v1733 = vpop.f32.mrb[0].mxu0
      %v1734 = vadd.f32 0.0, %v1733
      %v1735 = vpop.f32.mrb[0].mxu0
      %1736 = vmatprep.mubr.bf16.mxu0 0
      %1737 = vmatmul.mubr.bf16.gmra.mrb[0].mxu0 %v1599
      %v1738 = vpop.f32.mrb[0].mxu0
      %v1739 = vadd.f32 0.0, %v1738
      %v1740 = vpop.f32.mrb[0].mxu0
      %v1741 = vpop.f32.mrb[0].mxu0
      %v1742 = vadd.f32 0.0, %v1741
      %v1743 = vpop.f32.mrb[0].mxu0
      %1744 = vdwg.mxu0
      %v1745 = vmul.f32 %v933, %v1683
      %v1746 = vmul.f32 %v934, %v1686
      %v1747 = vmul.f32 %v935, %v1691
      %v1748 = vmul.f32 %v936, %v1694
      %v1749 = vmul.f32 %v937, %v1699
      %v1750 = vmul.f32 %v938, %v1702
      %v1751 = vmul.f32 %v939, %v1707
      %v1752 = vmul.f32 %v940, %v1710
      %v1753 = vmul.f32 %v941, %v1715
      %v1754 = vmul.f32 %v942, %v1718
      %v1755 = vmul.f32 %v943, %v1723
      %v1756 = vmul.f32 %v944, %v1726
      %v1757 = vmul.f32 %v945, %v1731
      %v1758 = vmul.f32 %v946, %v1734
      %v1759 = vmul.f32 %v947, %v1739
      %v1760 = vmul.f32 %v948, %v1742
      %v1761 = vpack.c.bf16 %v1746, %v1745
      %v1762 = vpack.c.bf16 %v1748, %v1747
      %v1763 = vpack.c.bf16 %v1750, %v1749
      %v1764 = vpack.c.bf16 %v1752, %v1751
      %v1765 = vpack.c.bf16 %v1754, %v1753
      %v1766 = vpack.c.bf16 %v1756, %v1755
      %v1767 = vpack.c.bf16 %v1758, %v1757
      %v1768 = vpack.c.bf16 %v1760, %v1759
      %v1769 = vlaneseq
      %v1770 = vshrl.u32 %v1769, 7
      %v1771 = vsub.s32 0, %v1770
      %v1772 = vrot.slane %v270, %v1771
      %1773 = vmatprep.subr.bf16.mxu0 0
      %1774 = vmatpush1.bf16.msra.mxu0 %v1761
      %1775 = vmatprep.subr.bf16.mxu0 0
      %1776 = vmatpush1.bf16.msra.mxu0 %v1762
      %1777 = vmatprep.subr.bf16.mxu0 0
      %1778 = vmatpush1.bf16.msra.mxu0 %v1763
      %1779 = vmatprep.subr.bf16.mxu0 0
      %1780 = vmatpush1.bf16.msra.mxu0 %v1764
      %1781 = vmatprep.subr.bf16.mxu0 0
      %1782 = vmatpush1.bf16.msra.mxu0 %v1765
      %1783 = vmatprep.subr.bf16.mxu0 0
      %1784 = vmatpush1.bf16.msra.mxu0 %v1766
      %1785 = vmatprep.subr.bf16.mxu0 0
      %1786 = vmatpush1.bf16.msra.mxu0 %v1767
      %1787 = vmatprep.subr.bf16.mxu0 0
      %1788 = vmatpush1.bf16.msra.mxu0 %v1768
      %1789 = vmatprep.subr.bf16.mxu0 0
      %1790 = vmatpush1.bf16.msra.mxu0 0
      %1791 = vmatprep.subr.bf16.mxu0 0
      %1792 = vmatpush1.bf16.msra.mxu0 0
      %1793 = vmatprep.subr.bf16.mxu0 0
      %1794 = vmatpush1.bf16.msra.mxu0 0
      %1795 = vmatprep.subr.bf16.mxu0 0
      %1796 = vmatpush1.bf16.msra.mxu0 0
      %1797 = vmatprep.subr.bf16.mxu0 0
      %1798 = vmatpush1.bf16.msra.mxu0 0
      %1799 = vmatprep.subr.bf16.mxu0 0
      %1800 = vmatpush1.bf16.msra.mxu0 0
      %1801 = vmatprep.subr.bf16.mxu0 0
      %1802 = vmatpush1.bf16.msra.mxu0 0
      %1803 = vmatprep.subr.bf16.mxu0 0
      %1804 = vmatpush1.bf16.msra.mxu0 0
      %1805 = vmatprep.mubr.bf16.mxu0 0
      %1806 = vmatmul.mubr.bf16.gmra.mrb[0].mxu0 %v965
      %v1807 = vpop.f32.mrb[0].mxu0
      %v1808 = vadd.f32 %v1772, %v1807
      %v1809 = vpop.f32.mrb[0].mxu0
      %v1810 = vpop.f32.mrb[0].mxu0
      %v1811 = vadd.f32 %v1772, %v1810
      %v1812 = vpop.f32.mrb[0].mxu0
      %1813 = vmatprep.mubr.bf16.mxu0 0
      %1814 = vmatmul.mubr.bf16.gmra.mrb[0].mxu0 %v966
      %v1815 = vpop.f32.mrb[0].mxu0
      %v1816 = vadd.f32 %v1772, %v1815
      %v1817 = vpop.f32.mrb[0].mxu0
      %v1818 = vpop.f32.mrb[0].mxu0
      %v1819 = vadd.f32 %v1772, %v1818
      %v1820 = vpop.f32.mrb[0].mxu0
      %1821 = vmatprep.mubr.bf16.mxu0 0
      %1822 = vmatmul.mubr.bf16.gmra.mrb[0].mxu0 %v967
      %v1823 = vpop.f32.mrb[0].mxu0
      %v1824 = vadd.f32 %v1772, %v1823
      %v1825 = vpop.f32.mrb[0].mxu0
      %v1826 = vpop.f32.mrb[0].mxu0
      %v1827 = vadd.f32 %v1772, %v1826
      %v1828 = vpop.f32.mrb[0].mxu0
      %1829 = vmatprep.mubr.bf16.mxu0 0
      %1830 = vmatmul.mubr.bf16.gmra.mrb[0].mxu0 %v968
      %v1831 = vpop.f32.mrb[0].mxu0
      %v1832 = vadd.f32 %v1772, %v1831
      %v1833 = vpop.f32.mrb[0].mxu0
      %v1834 = vpop.f32.mrb[0].mxu0
      %v1835 = vadd.f32 %v1772, %v1834
      %v1836 = vpop.f32.mrb[0].mxu0
      %1837 = vmatprep.mubr.bf16.mxu0 0
      %1838 = vmatmul.mubr.bf16.gmra.mrb[0].mxu0 %v969
      %v1839 = vpop.f32.mrb[0].mxu0
      %v1840 = vadd.f32 %v1772, %v1839
      %v1841 = vpop.f32.mrb[0].mxu0
      %v1842 = vpop.f32.mrb[0].mxu0
      %v1843 = vadd.f32 %v1772, %v1842
      %v1844 = vpop.f32.mrb[0].mxu0
      %1845 = vmatprep.mubr.bf16.mxu0 0
      %1846 = vmatmul.mubr.bf16.gmra.mrb[0].mxu0 %v970
      %v1847 = vpop.f32.mrb[0].mxu0
      %v1848 = vadd.f32 %v1772, %v1847
      %v1849 = vpop.f32.mrb[0].mxu0
      %v1850 = vpop.f32.mrb[0].mxu0
      %v1851 = vadd.f32 %v1772, %v1850
      %v1852 = vpop.f32.mrb[0].mxu0
      %1853 = vmatprep.mubr.bf16.mxu0 0
      %1854 = vmatmul.mubr.bf16.gmra.mrb[0].mxu0 %v971
      %v1855 = vpop.f32.mrb[0].mxu0
      %v1856 = vadd.f32 %v1772, %v1855
      %v1857 = vpop.f32.mrb[0].mxu0
      %v1858 = vpop.f32.mrb[0].mxu0
      %v1859 = vadd.f32 %v1772, %v1858
      %v1860 = vpop.f32.mrb[0].mxu0
      %1861 = vmatprep.mubr.bf16.mxu0 0
      %1862 = vmatmul.mubr.bf16.gmra.mrb[0].mxu0 %v972
      %v1863 = vpop.f32.mrb[0].mxu0
      %v1864 = vadd.f32 %v1772, %v1863
      %v1865 = vpop.f32.mrb[0].mxu0
      %v1866 = vpop.f32.mrb[0].mxu0
      %v1867 = vadd.f32 %v1772, %v1866
      %v1868 = vpop.f32.mrb[0].mxu0
      %1869 = vdwg.mxu0
      %vm1870 = vcmask 7168
      %1871 = vst.msk [vmem:[%s229] sm:$0xff] %vm1870, %v1808
      %1872 = vst.msk [vmem:[%s229 + $0x8] sm:$0xff] %vm1870, %v1811
      %1873 = vst.msk [vmem:[%s229 + $0x10] sm:$0xff] %vm1870, %v1816
      %1874 = vst.msk [vmem:[%s229 + $0x18] sm:$0xff] %vm1870, %v1819
      %1875 = vst.msk [vmem:[%s229 + $0x20] sm:$0xff] %vm1870, %v1824
      %1876 = vst.msk [vmem:[%s229 + $0x28] sm:$0xff] %vm1870, %v1827
      %1877 = vst.msk [vmem:[%s229 + $0x30] sm:$0xff] %vm1870, %v1832
      %1878 = vst.msk [vmem:[%s229 + $0x38] sm:$0xff] %vm1870, %v1835
      %1879 = vst.msk [vmem:[%s229 + $0x40] sm:$0xff] %vm1870, %v1840
      %1880 = vst.msk [vmem:[%s229 + $0x48] sm:$0xff] %vm1870, %v1843
      %1881 = vst.msk [vmem:[%s229 + $0x50] sm:$0xff] %vm1870, %v1848
      %1882 = vst.msk [vmem:[%s229 + $0x58] sm:$0xff] %vm1870, %v1851
      %1883 = vst.msk [vmem:[%s229 + $0x60] sm:$0xff] %vm1870, %v1856
      %1884 = vst.msk [vmem:[%s229 + $0x68] sm:$0xff] %vm1870, %v1859
      %1885 = vst.msk [vmem:[%s229 + $0x70] sm:$0xff] %vm1870, %v1864
      %1886 = vst.msk [vmem:[%s229 + $0x78] sm:$0xff] %vm1870, %v1867
      %s1887 = scalar_lea.vmem %s215, 8
      %v1888 = vld [vmem:[%s1887] sm:$0xff]
      %v1889 = vlaneseq
      %v1890 = vshrl.u32 %v1889, 7
      %v1891 = vsub.s32 1, %v1890
      %v1892 = vrot.slane %v1888, %v1891
      %v1893 = vlaneseq
      %v1894 = vshrl.u32 %v1893, 7
      %v1895 = vsub.s32 3, %v1894
      %v1896 = vrot.slane %v1888, %v1895
      %v1897 = vlaneseq
      %v1898 = vshrl.u32 %v1897, 7
      %v1899 = vsub.s32 5, %v1898
      %v1900 = vrot.slane %v1888, %v1899
      %v1901 = vlaneseq
      %v1902 = vshrl.u32 %v1901, 7
      %v1903 = vsub.s32 7, %v1902
      %v1904 = vrot.slane %v1888, %v1903
      %v1905 = vlaneseq
      %v1906 = vshrl.u32 %v1905, 7
      %v1907 = vsub.s32 1, %v1906
      %v1908 = vrot.slane %v1892, %v1907
      %v1909 = vlaneseq
      %v1910 = vshrl.u32 %v1909, 7
      %v1911 = vsub.s32 1, %v1910
      %v1912 = vrot.slane %v1896, %v1911
      %v1913 = vlaneseq
      %v1914 = vshrl.u32 %v1913, 7
      %v1915 = vsub.s32 1, %v1914
      %v1916 = vrot.slane %v1900, %v1915
      %v1917 = vlaneseq
      %v1918 = vshrl.u32 %v1917, 7
      %v1919 = vsub.s32 1, %v1918
      %v1920 = vrot.slane %v1904, %v1919
      %vm1921 = vcmp.eq.s32.totalorder %v273, %v1908
      %vm1922 = vcmp.eq.s32.totalorder %v273, %v1912
      %vm1923 = vcmp.eq.s32.totalorder %v273, %v1916
      %vm1924 = vcmp.eq.s32.totalorder %v273, %v1920
      %vm1925 = vcmp.eq.s32.totalorder %v274, %v1908
      %vm1926 = vcmp.eq.s32.totalorder %v274, %v1912
      %vm1927 = vcmp.eq.s32.totalorder %v274, %v1916
      %vm1928 = vcmp.eq.s32.totalorder %v274, %v1920
      %vm1929 = vcmp.eq.s32.totalorder %v275, %v1908
      %vm1930 = vcmp.eq.s32.totalorder %v275, %v1912
      %vm1931 = vcmp.eq.s32.totalorder %v275, %v1916
      %vm1932 = vcmp.eq.s32.totalorder %v275, %v1920
      %vm1933 = vcmp.eq.s32.totalorder %v276, %v1908
      %vm1934 = vcmp.eq.s32.totalorder %v276, %v1912
      %vm1935 = vcmp.eq.s32.totalorder %v276, %v1916
      %vm1936 = vcmp.eq.s32.totalorder %v276, %v1920
      %vm1937 = vcmp.eq.s32.totalorder %v277, %v1908
      %vm1938 = vcmp.eq.s32.totalorder %v277, %v1912
      %vm1939 = vcmp.eq.s32.totalorder %v277, %v1916
      %vm1940 = vcmp.eq.s32.totalorder %v277, %v1920
      %vm1941 = vcmp.eq.s32.totalorder %v278, %v1908
      %vm1942 = vcmp.eq.s32.totalorder %v278, %v1912
      %vm1943 = vcmp.eq.s32.totalorder %v278, %v1916
      %vm1944 = vcmp.eq.s32.totalorder %v278, %v1920
      %vm1945 = vcmp.eq.s32.totalorder %v279, %v1908
      %vm1946 = vcmp.eq.s32.totalorder %v279, %v1912
      %vm1947 = vcmp.eq.s32.totalorder %v279, %v1916
      %vm1948 = vcmp.eq.s32.totalorder %v279, %v1920
      %vm1949 = vcmp.eq.s32.totalorder %v280, %v1908
      %vm1950 = vcmp.eq.s32.totalorder %v280, %v1912
      %vm1951 = vcmp.eq.s32.totalorder %v280, %v1916
      %vm1952 = vcmp.eq.s32.totalorder %v280, %v1920
      %vm1953 = vcmp.eq.s32.totalorder %v281, %v1908
      %vm1954 = vcmp.eq.s32.totalorder %v281, %v1912
      %vm1955 = vcmp.eq.s32.totalorder %v281, %v1916
      %vm1956 = vcmp.eq.s32.totalorder %v281, %v1920
      %vm1957 = vcmp.eq.s32.totalorder %v282, %v1908
      %vm1958 = vcmp.eq.s32.totalorder %v282, %v1912
      %vm1959 = vcmp.eq.s32.totalorder %v282, %v1916
      %vm1960 = vcmp.eq.s32.totalorder %v282, %v1920
      %vm1961 = vcmp.eq.s32.totalorder %v283, %v1908
      %vm1962 = vcmp.eq.s32.totalorder %v283, %v1912
      %vm1963 = vcmp.eq.s32.totalorder %v283, %v1916
      %vm1964 = vcmp.eq.s32.totalorder %v283, %v1920
      %vm1965 = vcmp.eq.s32.totalorder %v284, %v1908
      %vm1966 = vcmp.eq.s32.totalorder %v284, %v1912
      %vm1967 = vcmp.eq.s32.totalorder %v284, %v1916
      %vm1968 = vcmp.eq.s32.totalorder %v284, %v1920
      %vm1969 = vcmp.eq.s32.totalorder %v285, %v1908
      %vm1970 = vcmp.eq.s32.totalorder %v285, %v1912
      %vm1971 = vcmp.eq.s32.totalorder %v285, %v1916
      %vm1972 = vcmp.eq.s32.totalorder %v285, %v1920
      %vm1973 = vcmp.eq.s32.totalorder %v286, %v1908
      %vm1974 = vcmp.eq.s32.totalorder %v286, %v1912
      %vm1975 = vcmp.eq.s32.totalorder %v286, %v1916
      %vm1976 = vcmp.eq.s32.totalorder %v286, %v1920
      %vm1977 = vcmp.eq.s32.totalorder %v287, %v1908
      %vm1978 = vcmp.eq.s32.totalorder %v287, %v1912
      %vm1979 = vcmp.eq.s32.totalorder %v287, %v1916
      %vm1980 = vcmp.eq.s32.totalorder %v287, %v1920
      %vm1981 = vcmp.eq.s32.totalorder %v288, %v1908
      %vm1982 = vcmp.eq.s32.totalorder %v288, %v1912
      %vm1983 = vcmp.eq.s32.totalorder %v288, %v1916
      %vm1984 = vcmp.eq.s32.totalorder %v288, %v1920
      %v1985 = vsel %vm1921, 1.0, 0.0
      %v1986 = vsel %vm1922, 1.0, 0.0
      %v1987 = vsel %vm1923, 1.0, 0.0
      %v1988 = vsel %vm1924, 1.0, 0.0
      %v1989 = vsel %vm1925, 1.0, 0.0
      %v1990 = vsel %vm1926, 1.0, 0.0
      %v1991 = vsel %vm1927, 1.0, 0.0
      %v1992 = vsel %vm1928, 1.0, 0.0
      %v1993 = vsel %vm1929, 1.0, 0.0
      %v1994 = vsel %vm1930, 1.0, 0.0
      %v1995 = vsel %vm1931, 1.0, 0.0
      %v1996 = vsel %vm1932, 1.0, 0.0
      %v1997 = vsel %vm1933, 1.0, 0.0
      %v1998 = vsel %vm1934, 1.0, 0.0
      %v1999 = vsel %vm1935, 1.0, 0.0
      %v2000 = vsel %vm1936, 1.0, 0.0
      %v2001 = vsel %vm1937, 1.0, 0.0
      %v2002 = vsel %vm1938, 1.0, 0.0
      %v2003 = vsel %vm1939, 1.0, 0.0
      %v2004 = vsel %vm1940, 1.0, 0.0
      %v2005 = vsel %vm1941, 1.0, 0.0
      %v2006 = vsel %vm1942, 1.0, 0.0
      %v2007 = vsel %vm1943, 1.0, 0.0
      %v2008 = vsel %vm1944, 1.0, 0.0
      %v2009 = vsel %vm1945, 1.0, 0.0
      %v2010 = vsel %vm1946, 1.0, 0.0
      %v2011 = vsel %vm1947, 1.0, 0.0
      %v2012 = vsel %vm1948, 1.0, 0.0
      %v2013 = vsel %vm1949, 1.0, 0.0
      %v2014 = vsel %vm1950, 1.0, 0.0
      %v2015 = vsel %vm1951, 1.0, 0.0
      %v2016 = vsel %vm1952, 1.0, 0.0
      %v2017 = vsel %vm1953, 1.0, 0.0
      %v2018 = vsel %vm1954, 1.0, 0.0
      %v2019 = vsel %vm1955, 1.0, 0.0
      %v2020 = vsel %vm1956, 1.0, 0.0
      %v2021 = vsel %vm1957, 1.0, 0.0
      %v2022 = vsel %vm1958, 1.0, 0.0
      %v2023 = vsel %vm1959, 1.0, 0.0
      %v2024 = vsel %vm1960, 1.0, 0.0
      %v2025 = vsel %vm1961, 1.0, 0.0
      %v2026 = vsel %vm1962, 1.0, 0.0
      %v2027 = vsel %vm1963, 1.0, 0.0
      %v2028 = vsel %vm1964, 1.0, 0.0
      %v2029 = vsel %vm1965, 1.0, 0.0
      %v2030 = vsel %vm1966, 1.0, 0.0
      %v2031 = vsel %vm1967, 1.0, 0.0
      %v2032 = vsel %vm1968, 1.0, 0.0
      %v2033 = vsel %vm1969, 1.0, 0.0
      %v2034 = vsel %vm1970, 1.0, 0.0
      %v2035 = vsel %vm1971, 1.0, 0.0
      %v2036 = vsel %vm1972, 1.0, 0.0
      %v2037 = vsel %vm1973, 1.0, 0.0
      %v2038 = vsel %vm1974, 1.0, 0.0
      %v2039 = vsel %vm1975, 1.0, 0.0
      %v2040 = vsel %vm1976, 1.0, 0.0
      %v2041 = vsel %vm1977, 1.0, 0.0
      %v2042 = vsel %vm1978, 1.0, 0.0
      %v2043 = vsel %vm1979, 1.0, 0.0
      %v2044 = vsel %vm1980, 1.0, 0.0
      %v2045 = vsel %vm1981, 1.0, 0.0
      %v2046 = vsel %vm1982, 1.0, 0.0
      %v2047 = vsel %vm1983, 1.0, 0.0
      %v2048 = vsel %vm1984, 1.0, 0.0
      %v2049 = vpack.c.bf16 %v1989, %v1985
      %v2050 = vpack.c.bf16 %v1990, %v1986
      %v2051 = vpack.c.bf16 %v1991, %v1987
      %v2052 = vpack.c.bf16 %v1992, %v1988
      %v2053 = vpack.c.bf16 %v1997, %v1993
      %v2054 = vpack.c.bf16 %v1998, %v1994
      %v2055 = vpack.c.bf16 %v1999, %v1995
      %v2056 = vpack.c.bf16 %v2000, %v1996
      %v2057 = vpack.c.bf16 %v2005, %v2001
      %v2058 = vpack.c.bf16 %v2006, %v2002
      %v2059 = vpack.c.bf16 %v2007, %v2003
      %v2060 = vpack.c.bf16 %v2008, %v2004
      %v2061 = vpack.c.bf16 %v2013, %v2009
      %v2062 = vpack.c.bf16 %v2014, %v2010
      %v2063 = vpack.c.bf16 %v2015, %v2011
      %v2064 = vpack.c.bf16 %v2016, %v2012
      %v2065 = vpack.c.bf16 %v2021, %v2017
      %v2066 = vpack.c.bf16 %v2022, %v2018
      %v2067 = vpack.c.bf16 %v2023, %v2019
      %v2068 = vpack.c.bf16 %v2024, %v2020
      %v2069 = vpack.c.bf16 %v2029, %v2025
      %v2070 = vpack.c.bf16 %v2030, %v2026
      %v2071 = vpack.c.bf16 %v2031, %v2027
      %v2072 = vpack.c.bf16 %v2032, %v2028
      %v2073 = vpack.c.bf16 %v2037, %v2033
      %v2074 = vpack.c.bf16 %v2038, %v2034
      %v2075 = vpack.c.bf16 %v2039, %v2035
      %v2076 = vpack.c.bf16 %v2040, %v2036
      %v2077 = vpack.c.bf16 %v2045, %v2041
      %v2078 = vpack.c.bf16 %v2046, %v2042
      %v2079 = vpack.c.bf16 %v2047, %v2043
      %v2080 = vpack.c.bf16 %v2048, %v2044
      %v2081 = vlaneseq
      %v2082 = vshrl.u32 %v2081, 7
      %v2083 = vsub.s32 0, %v2082
      %v2084 = vrot.slane %v1888, %v2083
      %v2085 = vlaneseq
      %v2086 = vshrl.u32 %v2085, 7
      %v2087 = vsub.s32 2, %v2086
      %v2088 = vrot.slane %v1888, %v2087
      %v2089 = vlaneseq
      %v2090 = vshrl.u32 %v2089, 7
      %v2091 = vsub.s32 4, %v2090
      %v2092 = vrot.slane %v1888, %v2091
      %v2093 = vlaneseq
      %v2094 = vshrl.u32 %v2093, 7
      %v2095 = vsub.s32 6, %v2094
      %v2096 = vrot.slane %v1888, %v2095
      %v2097 = vlaneseq
      %v2098 = vshrl.u32 %v2097, 7
      %v2099 = vsub.s32 0, %v2098
      %v2100 = vrot.slane %v2084, %v2099
      %v2101 = vlaneseq
      %v2102 = vshrl.u32 %v2101, 7
      %v2103 = vsub.s32 0, %v2102
      %v2104 = vrot.slane %v2088, %v2103
      %v2105 = vlaneseq
      %v2106 = vshrl.u32 %v2105, 7
      %v2107 = vsub.s32 0, %v2106
      %v2108 = vrot.slane %v2092, %v2107
      %v2109 = vlaneseq
      %v2110 = vshrl.u32 %v2109, 7
      %v2111 = vsub.s32 0, %v2110
      %v2112 = vrot.slane %v2096, %v2111
      %vm2113 = vcmp.eq.s32.totalorder %v273, %v2100
      %vm2114 = vcmp.eq.s32.totalorder %v273, %v2104
      %vm2115 = vcmp.eq.s32.totalorder %v273, %v2108
      %vm2116 = vcmp.eq.s32.totalorder %v273, %v2112
      %vm2117 = vcmp.eq.s32.totalorder %v274, %v2100
      %vm2118 = vcmp.eq.s32.totalorder %v274, %v2104
      %vm2119 = vcmp.eq.s32.totalorder %v274, %v2108
      %vm2120 = vcmp.eq.s32.totalorder %v274, %v2112
      %vm2121 = vcmp.eq.s32.totalorder %v275, %v2100
      %vm2122 = vcmp.eq.s32.totalorder %v275, %v2104
      %vm2123 = vcmp.eq.s32.totalorder %v275, %v2108
      %vm2124 = vcmp.eq.s32.totalorder %v275, %v2112
      %vm2125 = vcmp.eq.s32.totalorder %v276, %v2100
      %vm2126 = vcmp.eq.s32.totalorder %v276, %v2104
      %vm2127 = vcmp.eq.s32.totalorder %v276, %v2108
      %vm2128 = vcmp.eq.s32.totalorder %v276, %v2112
      %vm2129 = vcmp.eq.s32.totalorder %v277, %v2100
      %vm2130 = vcmp.eq.s32.totalorder %v277, %v2104
      %vm2131 = vcmp.eq.s32.totalorder %v277, %v2108
      %vm2132 = vcmp.eq.s32.totalorder %v277, %v2112
      %vm2133 = vcmp.eq.s32.totalorder %v278, %v2100
      %vm2134 = vcmp.eq.s32.totalorder %v278, %v2104
      %vm2135 = vcmp.eq.s32.totalorder %v278, %v2108
      %vm2136 = vcmp.eq.s32.totalorder %v278, %v2112
      %vm2137 = vcmp.eq.s32.totalorder %v279, %v2100
      %vm2138 = vcmp.eq.s32.totalorder %v279, %v2104
      %vm2139 = vcmp.eq.s32.totalorder %v279, %v2108
      %vm2140 = vcmp.eq.s32.totalorder %v279, %v2112
      %vm2141 = vcmp.eq.s32.totalorder %v280, %v2100
      %vm2142 = vcmp.eq.s32.totalorder %v280, %v2104
      %vm2143 = vcmp.eq.s32.totalorder %v280, %v2108
      %vm2144 = vcmp.eq.s32.totalorder %v280, %v2112
      %vm2145 = vcmp.eq.s32.totalorder %v281, %v2100
      %vm2146 = vcmp.eq.s32.totalorder %v281, %v2104
      %vm2147 = vcmp.eq.s32.totalorder %v281, %v2108
      %vm2148 = vcmp.eq.s32.totalorder %v281, %v2112
      %vm2149 = vcmp.eq.s32.totalorder %v282, %v2100
      %vm2150 = vcmp.eq.s32.totalorder %v282, %v2104
      %vm2151 = vcmp.eq.s32.totalorder %v282, %v2108
      %vm2152 = vcmp.eq.s32.totalorder %v282, %v2112
      %vm2153 = vcmp.eq.s32.totalorder %v283, %v2100
      %vm2154 = vcmp.eq.s32.totalorder %v283, %v2104
      %vm2155 = vcmp.eq.s32.totalorder %v283, %v2108
      %vm2156 = vcmp.eq.s32.totalorder %v283, %v2112
      %vm2157 = vcmp.eq.s32.totalorder %v284, %v2100
      %vm2158 = vcmp.eq.s32.totalorder %v284, %v2104
      %vm2159 = vcmp.eq.s32.totalorder %v284, %v2108
      %vm2160 = vcmp.eq.s32.totalorder %v284, %v2112
      %vm2161 = vcmp.eq.s32.totalorder %v285, %v2100
      %vm2162 = vcmp.eq.s32.totalorder %v285, %v2104
      %vm2163 = vcmp.eq.s32.totalorder %v285, %v2108
      %vm2164 = vcmp.eq.s32.totalorder %v285, %v2112
      %vm2165 = vcmp.eq.s32.totalorder %v286, %v2100
      %vm2166 = vcmp.eq.s32.totalorder %v286, %v2104
      %vm2167 = vcmp.eq.s32.totalorder %v286, %v2108
      %vm2168 = vcmp.eq.s32.totalorder %v286, %v2112
      %vm2169 = vcmp.eq.s32.totalorder %v287, %v2100
      %vm2170 = vcmp.eq.s32.totalorder %v287, %v2104
      %vm2171 = vcmp.eq.s32.totalorder %v287, %v2108
      %vm2172 = vcmp.eq.s32.totalorder %v287, %v2112
      %vm2173 = vcmp.eq.s32.totalorder %v288, %v2100
      %vm2174 = vcmp.eq.s32.totalorder %v288, %v2104
      %vm2175 = vcmp.eq.s32.totalorder %v288, %v2108
      %vm2176 = vcmp.eq.s32.totalorder %v288, %v2112
      %v2177 = vsel %vm2113, 1.0, 0.0
      %v2178 = vsel %vm2114, 1.0, 0.0
      %v2179 = vsel %vm2115, 1.0, 0.0
      %v2180 = vsel %vm2116, 1.0, 0.0
      %v2181 = vsel %vm2117, 1.0, 0.0
      %v2182 = vsel %vm2118, 1.0, 0.0
      %v2183 = vsel %vm2119, 1.0, 0.0
      %v2184 = vsel %vm2120, 1.0, 0.0
      %v2185 = vsel %vm2121, 1.0, 0.0
      %v2186 = vsel %vm2122, 1.0, 0.0
      %v2187 = vsel %vm2123, 1.0, 0.0
      %v2188 = vsel %vm2124, 1.0, 0.0
      %v2189 = vsel %vm2125, 1.0, 0.0
      %v2190 = vsel %vm2126, 1.0, 0.0
      %v2191 = vsel %vm2127, 1.0, 0.0
      %v2192 = vsel %vm2128, 1.0, 0.0
      %v2193 = vsel %vm2129, 1.0, 0.0
      %v2194 = vsel %vm2130, 1.0, 0.0
      %v2195 = vsel %vm2131, 1.0, 0.0
      %v2196 = vsel %vm2132, 1.0, 0.0
      %v2197 = vsel %vm2133, 1.0, 0.0
      %v2198 = vsel %vm2134, 1.0, 0.0
      %v2199 = vsel %vm2135, 1.0, 0.0
      %v2200 = vsel %vm2136, 1.0, 0.0
      %v2201 = vsel %vm2137, 1.0, 0.0
      %v2202 = vsel %vm2138, 1.0, 0.0
      %v2203 = vsel %vm2139, 1.0, 0.0
      %v2204 = vsel %vm2140, 1.0, 0.0
      %v2205 = vsel %vm2141, 1.0, 0.0
      %v2206 = vsel %vm2142, 1.0, 0.0
      %v2207 = vsel %vm2143, 1.0, 0.0
      %v2208 = vsel %vm2144, 1.0, 0.0
      %v2209 = vsel %vm2145, 1.0, 0.0
      %v2210 = vsel %vm2146, 1.0, 0.0
      %v2211 = vsel %vm2147, 1.0, 0.0
      %v2212 = vsel %vm2148, 1.0, 0.0
      %v2213 = vsel %vm2149, 1.0, 0.0
      %v2214 = vsel %vm2150, 1.0, 0.0
      %v2215 = vsel %vm2151, 1.0, 0.0
      %v2216 = vsel %vm2152, 1.0, 0.0
      %v2217 = vsel %vm2153, 1.0, 0.0
      %v2218 = vsel %vm2154, 1.0, 0.0
      %v2219 = vsel %vm2155, 1.0, 0.0
      %v2220 = vsel %vm2156, 1.0, 0.0
      %v2221 = vsel %vm2157, 1.0, 0.0
      %v2222 = vsel %vm2158, 1.0, 0.0
      %v2223 = vsel %vm2159, 1.0, 0.0
      %v2224 = vsel %vm2160, 1.0, 0.0
      %v2225 = vsel %vm2161, 1.0, 0.0
      %v2226 = vsel %vm2162, 1.0, 0.0
      %v2227 = vsel %vm2163, 1.0, 0.0
      %v2228 = vsel %vm2164, 1.0, 0.0
      %v2229 = vsel %vm2165, 1.0, 0.0
      %v2230 = vsel %vm2166, 1.0, 0.0
      %v2231 = vsel %vm2167, 1.0, 0.0
      %v2232 = vsel %vm2168, 1.0, 0.0
      %v2233 = vsel %vm2169, 1.0, 0.0
      %v2234 = vsel %vm2170, 1.0, 0.0
      %v2235 = vsel %vm2171, 1.0, 0.0
      %v2236 = vsel %vm2172, 1.0, 0.0
      %v2237 = vsel %vm2173, 1.0, 0.0
      %v2238 = vsel %vm2174, 1.0, 0.0
      %v2239 = vsel %vm2175, 1.0, 0.0
      %v2240 = vsel %vm2176, 1.0, 0.0
      %v2241 = vpack.c.bf16 %v2181, %v2177
      %v2242 = vpack.c.bf16 %v2182, %v2178
      %v2243 = vpack.c.bf16 %v2183, %v2179
      %v2244 = vpack.c.bf16 %v2184, %v2180
      %v2245 = vpack.c.bf16 %v2189, %v2185
      %v2246 = vpack.c.bf16 %v2190, %v2186
      %v2247 = vpack.c.bf16 %v2191, %v2187
      %v2248 = vpack.c.bf16 %v2192, %v2188
      %v2249 = vpack.c.bf16 %v2197, %v2193
      %v2250 = vpack.c.bf16 %v2198, %v2194
      %v2251 = vpack.c.bf16 %v2199, %v2195
      %v2252 = vpack.c.bf16 %v2200, %v2196
      %v2253 = vpack.c.bf16 %v2205, %v2201
      %v2254 = vpack.c.bf16 %v2206, %v2202
      %v2255 = vpack.c.bf16 %v2207, %v2203
      %v2256 = vpack.c.bf16 %v2208, %v2204
      %v2257 = vpack.c.bf16 %v2213, %v2209
      %v2258 = vpack.c.bf16 %v2214, %v2210
      %v2259 = vpack.c.bf16 %v2215, %v2211
      %v2260 = vpack.c.bf16 %v2216, %v2212
      %v2261 = vpack.c.bf16 %v2221, %v2217
      %v2262 = vpack.c.bf16 %v2222, %v2218
      %v2263 = vpack.c.bf16 %v2223, %v2219
      %v2264 = vpack.c.bf16 %v2224, %v2220
      %v2265 = vpack.c.bf16 %v2229, %v2225
      %v2266 = vpack.c.bf16 %v2230, %v2226
      %v2267 = vpack.c.bf16 %v2231, %v2227
      %v2268 = vpack.c.bf16 %v2232, %v2228
      %v2269 = vpack.c.bf16 %v2237, %v2233
      %v2270 = vpack.c.bf16 %v2238, %v2234
      %v2271 = vpack.c.bf16 %v2239, %v2235
      %v2272 = vpack.c.bf16 %v2240, %v2236
      %2273 = vmatprep.subr.bf16.mxu0 %v2242
      %2274 = vmatpush1.bf16.xpose.msra.mxu0 %v2241
      %2275 = vmatprep.subr.bf16.mxu0 %v2246
      %2276 = vmatpush1.bf16.xpose.msra.mxu0 %v2245
      %2277 = vmatprep.subr.bf16.mxu0 %v2250
      %2278 = vmatpush1.bf16.xpose.msra.mxu0 %v2249
      %2279 = vmatprep.subr.bf16.mxu0 %v2254
      %2280 = vmatpush1.bf16.xpose.msra.mxu0 %v2253
      %2281 = vmatprep.subr.bf16.mxu0 %v2258
      %2282 = vmatpush1.bf16.xpose.msra.mxu0 %v2257
      %2283 = vmatprep.subr.bf16.mxu0 %v2262
      %2284 = vmatpush1.bf16.xpose.msra.mxu0 %v2261
      %2285 = vmatprep.subr.bf16.mxu0 %v2266
      %2286 = vmatpush1.bf16.xpose.msra.mxu0 %v2265
      %2287 = vmatprep.subr.bf16.mxu0 %v2270
      %2288 = vmatpush1.bf16.xpose.msra.mxu0 %v2269
      %2289 = vmatprep.subr.bf16.mxu0 0
      %2290 = vmatpush1.bf16.xpose.msra.mxu0 0
      %2291 = vmatprep.subr.bf16.mxu0 0
      %2292 = vmatpush1.bf16.xpose.msra.mxu0 0
      %2293 = vmatprep.subr.bf16.mxu0 0
      %2294 = vmatpush1.bf16.xpose.msra.mxu0 0
      %2295 = vmatprep.subr.bf16.mxu0 0
      %2296 = vmatpush1.bf16.xpose.msra.mxu0 0
      %2297 = vmatprep.subr.bf16.mxu0 0
      %2298 = vmatpush1.bf16.xpose.msra.mxu0 0
      %2299 = vmatprep.subr.bf16.mxu0 0
      %2300 = vmatpush1.bf16.xpose.msra.mxu0 0
      %2301 = vmatprep.subr.bf16.mxu0 0
      %2302 = vmatpush1.bf16.xpose.msra.mxu0 0
      %2303 = vmatprep.subr.bf16.mxu0 0
      %2304 = vmatpush1.bf16.xpose.msra.mxu0 0
      %2305 = vmatprep.mubr.bf16.mxu0 %v2050
      %2306 = vmatmul.mubr.bf16.gmra.mrb[0].mxu0 %v2049
      %v2307 = vpop.f32.mrb[0].mxu0
      %v2308 = vadd.f32 %v691, %v2307
      %v2309 = vpop.f32.mrb[0].mxu0
      %v2310 = vpop.f32.mrb[0].mxu0
      %v2311 = vadd.f32 %v692, %v2310
      %v2312 = vpop.f32.mrb[0].mxu0
      %2313 = vmatprep.mubr.bf16.mxu0 %v2054
      %2314 = vmatmul.mubr.bf16.gmra.mrb[0].mxu0 %v2053
      %v2315 = vpop.f32.mrb[0].mxu0
      %v2316 = vadd.f32 %v693, %v2315
      %v2317 = vpop.f32.mrb[0].mxu0
      %v2318 = vpop.f32.mrb[0].mxu0
      %v2319 = vadd.f32 %v694, %v2318
      %v2320 = vpop.f32.mrb[0].mxu0
      %2321 = vmatprep.mubr.bf16.mxu0 %v2058
      %2322 = vmatmul.mubr.bf16.gmra.mrb[0].mxu0 %v2057
      %v2323 = vpop.f32.mrb[0].mxu0
      %v2324 = vadd.f32 %v695, %v2323
      %v2325 = vpop.f32.mrb[0].mxu0
      %v2326 = vpop.f32.mrb[0].mxu0
      %v2327 = vadd.f32 %v696, %v2326
      %v2328 = vpop.f32.mrb[0].mxu0
      %2329 = vmatprep.mubr.bf16.mxu0 %v2062
      %2330 = vmatmul.mubr.bf16.gmra.mrb[0].mxu0 %v2061
      %v2331 = vpop.f32.mrb[0].mxu0
      %v2332 = vadd.f32 %v697, %v2331
      %v2333 = vpop.f32.mrb[0].mxu0
      %v2334 = vpop.f32.mrb[0].mxu0
      %v2335 = vadd.f32 %v698, %v2334
      %v2336 = vpop.f32.mrb[0].mxu0
      %2337 = vmatprep.mubr.bf16.mxu0 %v2066
      %2338 = vmatmul.mubr.bf16.gmra.mrb[0].mxu0 %v2065
      %v2339 = vpop.f32.mrb[0].mxu0
      %v2340 = vadd.f32 %v699, %v2339
      %v2341 = vpop.f32.mrb[0].mxu0
      %v2342 = vpop.f32.mrb[0].mxu0
      %v2343 = vadd.f32 %v700, %v2342
      %v2344 = vpop.f32.mrb[0].mxu0
      %2345 = vmatprep.mubr.bf16.mxu0 %v2070
      %2346 = vmatmul.mubr.bf16.gmra.mrb[0].mxu0 %v2069
      %v2347 = vpop.f32.mrb[0].mxu0
      %v2348 = vadd.f32 %v701, %v2347
      %v2349 = vpop.f32.mrb[0].mxu0
      %v2350 = vpop.f32.mrb[0].mxu0
      %v2351 = vadd.f32 %v702, %v2350
      %v2352 = vpop.f32.mrb[0].mxu0
      %2353 = vmatprep.mubr.bf16.mxu0 %v2074
      %2354 = vmatmul.mubr.bf16.gmra.mrb[0].mxu0 %v2073
      %v2355 = vpop.f32.mrb[0].mxu0
      %v2356 = vadd.f32 %v703, %v2355
      %v2357 = vpop.f32.mrb[0].mxu0
      %v2358 = vpop.f32.mrb[0].mxu0
      %v2359 = vadd.f32 %v704, %v2358
      %v2360 = vpop.f32.mrb[0].mxu0
      %2361 = vmatprep.mubr.bf16.mxu0 %v2078
      %2362 = vmatmul.mubr.bf16.gmra.mrb[0].mxu0 %v2077
      %v2363 = vpop.f32.mrb[0].mxu0
      %v2364 = vadd.f32 %v705, %v2363
      %v2365 = vpop.f32.mrb[0].mxu0
      %v2366 = vpop.f32.mrb[0].mxu0
      %v2367 = vadd.f32 %v706, %v2366
      %v2368 = vpop.f32.mrb[0].mxu0
      %2369 = vdwg.mxu0
      %2370 = vmatprep.subr.bf16.mxu0 %v2244
      %2371 = vmatpush1.bf16.xpose.msra.mxu0 %v2243
      %2372 = vmatprep.subr.bf16.mxu0 %v2248
      %2373 = vmatpush1.bf16.xpose.msra.mxu0 %v2247
      %2374 = vmatprep.subr.bf16.mxu0 %v2252
      %2375 = vmatpush1.bf16.xpose.msra.mxu0 %v2251
      %2376 = vmatprep.subr.bf16.mxu0 %v2256
      %2377 = vmatpush1.bf16.xpose.msra.mxu0 %v2255
      %2378 = vmatprep.subr.bf16.mxu0 %v2260
      %2379 = vmatpush1.bf16.xpose.msra.mxu0 %v2259
      %2380 = vmatprep.subr.bf16.mxu0 %v2264
      %2381 = vmatpush1.bf16.xpose.msra.mxu0 %v2263
      %2382 = vmatprep.subr.bf16.mxu0 %v2268
      %2383 = vmatpush1.bf16.xpose.msra.mxu0 %v2267
      %2384 = vmatprep.subr.bf16.mxu0 %v2272
      %2385 = vmatpush1.bf16.xpose.msra.mxu0 %v2271
      %2386 = vmatprep.subr.bf16.mxu0 0
      %2387 = vmatpush1.bf16.xpose.msra.mxu0 0
      %2388 = vmatprep.subr.bf16.mxu0 0
      %2389 = vmatpush1.bf16.xpose.msra.mxu0 0
      %2390 = vmatprep.subr.bf16.mxu0 0
      %2391 = vmatpush1.bf16.xpose.msra.mxu0 0
      %2392 = vmatprep.subr.bf16.mxu0 0
      %2393 = vmatpush1.bf16.xpose.msra.mxu0 0
      %2394 = vmatprep.subr.bf16.mxu0 0
      %2395 = vmatpush1.bf16.xpose.msra.mxu0 0
      %2396 = vmatprep.subr.bf16.mxu0 0
      %2397 = vmatpush1.bf16.xpose.msra.mxu0 0
      %2398 = vmatprep.subr.bf16.mxu0 0
      %2399 = vmatpush1.bf16.xpose.msra.mxu0 0
      %2400 = vmatprep.subr.bf16.mxu0 0
      %2401 = vmatpush1.bf16.xpose.msra.mxu0 0
      %2402 = vmatprep.mubr.bf16.mxu0 %v2052
      %2403 = vmatmul.mubr.bf16.gmra.mrb[0].mxu0 %v2051
      %v2404 = vpop.f32.mrb[0].mxu0
      %v2405 = vadd.f32 %v2308, %v2404
      %v2406 = vpop.f32.mrb[0].mxu0
      %v2407 = vpop.f32.mrb[0].mxu0
      %v2408 = vadd.f32 %v2311, %v2407
      %v2409 = vpop.f32.mrb[0].mxu0
      %2410 = vmatprep.mubr.bf16.mxu0 %v2056
      %2411 = vmatmul.mubr.bf16.gmra.mrb[0].mxu0 %v2055
      %v2412 = vpop.f32.mrb[0].mxu0
      %v2413 = vadd.f32 %v2316, %v2412
      %v2414 = vpop.f32.mrb[0].mxu0
      %v2415 = vpop.f32.mrb[0].mxu0
      %v2416 = vadd.f32 %v2319, %v2415
      %v2417 = vpop.f32.mrb[0].mxu0
      %2418 = vmatprep.mubr.bf16.mxu0 %v2060
      %2419 = vmatmul.mubr.bf16.gmra.mrb[0].mxu0 %v2059
      %v2420 = vpop.f32.mrb[0].mxu0
      %v2421 = vadd.f32 %v2324, %v2420
      %v2422 = vpop.f32.mrb[0].mxu0
      %v2423 = vpop.f32.mrb[0].mxu0
      %v2424 = vadd.f32 %v2327, %v2423
      %v2425 = vpop.f32.mrb[0].mxu0
      %2426 = vmatprep.mubr.bf16.mxu0 %v2064
      %2427 = vmatmul.mubr.bf16.gmra.mrb[0].mxu0 %v2063
      %v2428 = vpop.f32.mrb[0].mxu0
      %v2429 = vadd.f32 %v2332, %v2428
      %v2430 = vpop.f32.mrb[0].mxu0
      %v2431 = vpop.f32.mrb[0].mxu0
      %v2432 = vadd.f32 %v2335, %v2431
      %v2433 = vpop.f32.mrb[0].mxu0
      %2434 = vmatprep.mubr.bf16.mxu0 %v2068
      %2435 = vmatmul.mubr.bf16.gmra.mrb[0].mxu0 %v2067
      %v2436 = vpop.f32.mrb[0].mxu0
      %v2437 = vadd.f32 %v2340, %v2436
      %v2438 = vpop.f32.mrb[0].mxu0
      %v2439 = vpop.f32.mrb[0].mxu0
      %v2440 = vadd.f32 %v2343, %v2439
      %v2441 = vpop.f32.mrb[0].mxu0
      %2442 = vmatprep.mubr.bf16.mxu0 %v2072
      %2443 = vmatmul.mubr.bf16.gmra.mrb[0].mxu0 %v2071
      %v2444 = vpop.f32.mrb[0].mxu0
      %v2445 = vadd.f32 %v2348, %v2444
      %v2446 = vpop.f32.mrb[0].mxu0
      %v2447 = vpop.f32.mrb[0].mxu0
      %v2448 = vadd.f32 %v2351, %v2447
      %v2449 = vpop.f32.mrb[0].mxu0
      %2450 = vmatprep.mubr.bf16.mxu0 %v2076
      %2451 = vmatmul.mubr.bf16.gmra.mrb[0].mxu0 %v2075
      %v2452 = vpop.f32.mrb[0].mxu0
      %v2453 = vadd.f32 %v2356, %v2452
      %v2454 = vpop.f32.mrb[0].mxu0
      %v2455 = vpop.f32.mrb[0].mxu0
      %v2456 = vadd.f32 %v2359, %v2455
      %v2457 = vpop.f32.mrb[0].mxu0
      %2458 = vmatprep.mubr.bf16.mxu0 %v2080
      %2459 = vmatmul.mubr.bf16.gmra.mrb[0].mxu0 %v2079
      %v2460 = vpop.f32.mrb[0].mxu0
      %v2461 = vadd.f32 %v2364, %v2460
      %v2462 = vpop.f32.mrb[0].mxu0
      %v2463 = vpop.f32.mrb[0].mxu0
      %v2464 = vadd.f32 %v2367, %v2463
      %v2465 = vpop.f32.mrb[0].mxu0
      %2466 = vdwg.mxu0
      %2467 = vadd.xlane.f32.xlu0 %v2405
      %v2468 = vpop.xlane.xlu0 %2467
      %2469 = vadd.xlane.f32.xlu0 %v2408
      %v2470 = vpop.xlane.xlu0 %2469
      %2471 = vadd.xlane.f32.xlu0 %v2413
      %v2472 = vpop.xlane.xlu0 %2471
      %2473 = vadd.xlane.f32.xlu0 %v2416
      %v2474 = vpop.xlane.xlu0 %2473
      %2475 = vadd.xlane.f32.xlu0 %v2421
      %v2476 = vpop.xlane.xlu0 %2475
      %2477 = vadd.xlane.f32.xlu0 %v2424
      %v2478 = vpop.xlane.xlu0 %2477
      %2479 = vadd.xlane.f32.xlu0 %v2429
      %v2480 = vpop.xlane.xlu0 %2479
      %2481 = vadd.xlane.f32.xlu0 %v2432
      %v2482 = vpop.xlane.xlu0 %2481
      %2483 = vadd.xlane.f32.xlu0 %v2437
      %v2484 = vpop.xlane.xlu0 %2483
      %2485 = vadd.xlane.f32.xlu0 %v2440
      %v2486 = vpop.xlane.xlu0 %2485
      %2487 = vadd.xlane.f32.xlu0 %v2445
      %v2488 = vpop.xlane.xlu0 %2487
      %2489 = vadd.xlane.f32.xlu0 %v2448
      %v2490 = vpop.xlane.xlu0 %2489
      %2491 = vadd.xlane.f32.xlu0 %v2453
      %v2492 = vpop.xlane.xlu0 %2491
      %2493 = vadd.xlane.f32.xlu0 %v2456
      %v2494 = vpop.xlane.xlu0 %2493
      %2495 = vadd.xlane.f32.xlu0 %v2461
      %v2496 = vpop.xlane.xlu0 %2495
      %2497 = vadd.xlane.f32.xlu0 %v2464
      %v2498 = vpop.xlane.xlu0 %2497
      %v2499 = vrsqrt.pop %v2468
      %v2500 = vrsqrt.pop %v2470
      %v2501 = vrsqrt.pop %v2472
      %v2502 = vrsqrt.pop %v2474
      %v2503 = vrsqrt.pop %v2476
      %v2504 = vrsqrt.pop %v2478
      %v2505 = vrsqrt.pop %v2480
      %v2506 = vrsqrt.pop %v2482
      %v2507 = vrsqrt.pop %v2484
      %v2508 = vrsqrt.pop %v2486
      %v2509 = vrsqrt.pop %v2488
      %v2510 = vrsqrt.pop %v2490
      %v2511 = vrsqrt.pop %v2492
      %v2512 = vrsqrt.pop %v2494
      %v2513 = vrsqrt.pop %v2496
      %v2514 = vrsqrt.pop %v2498
      %v2515 = vmul.f32 %v2499, %v2405
      %v2516 = vmul.f32 %v2500, %v2408
      %v2517 = vmul.f32 %v2501, %v2413
      %v2518 = vmul.f32 %v2502, %v2416
      %v2519 = vmul.f32 %v2503, %v2421
      %v2520 = vmul.f32 %v2504, %v2424
      %v2521 = vmul.f32 %v2505, %v2429
      %v2522 = vmul.f32 %v2506, %v2432
      %v2523 = vmul.f32 %v2507, %v2437
      %v2524 = vmul.f32 %v2508, %v2440
      %v2525 = vmul.f32 %v2509, %v2445
      %v2526 = vmul.f32 %v2510, %v2448
      %v2527 = vmul.f32 %v2511, %v2453
      %v2528 = vmul.f32 %v2512, %v2456
      %v2529 = vmul.f32 %v2513, %v2461
      %v2530 = vmul.f32 %v2514, %v2464
      %v2531 = vpack.c.bf16 %v2516, %v2515
      %v2532 = vpack.c.bf16 %v2518, %v2517
      %v2533 = vpack.c.bf16 %v2520, %v2519
      %v2534 = vpack.c.bf16 %v2522, %v2521
      %v2535 = vpack.c.bf16 %v2524, %v2523
      %v2536 = vpack.c.bf16 %v2526, %v2525
      %v2537 = vpack.c.bf16 %v2528, %v2527
      %v2538 = vpack.c.bf16 %v2530, %v2529
      %s2539 = scalar_lea.vmem %s222, 64
      %v2540 = vld [vmem:[%s2539] sm:$0xf]
      %v2541 = vld [vmem:[%s2539 + $0x4] sm:$0xf]
      %v2542 = vld [vmem:[%s2539 + $0x8] sm:$0xf]
      %v2543 = vld [vmem:[%s2539 + $0xc] sm:$0xf]
      %v2544 = vld [vmem:[%s2539 + $0x10] sm:$0xf]
      %v2545 = vld [vmem:[%s2539 + $0x14] sm:$0xf]
      %v2546 = vld [vmem:[%s2539 + $0x18] sm:$0xf]
      %v2547 = vld [vmem:[%s2539 + $0x1c] sm:$0xf]
      %v2548 = vld [vmem:[%s2539 + $0x20] sm:$0xf]
      %v2549 = vld [vmem:[%s2539 + $0x24] sm:$0xf]
      %v2550 = vld [vmem:[%s2539 + $0x28] sm:$0xf]
      %v2551 = vld [vmem:[%s2539 + $0x2c] sm:$0xf]
      %v2552 = vld [vmem:[%s2539 + $0x30] sm:$0xf]
      %v2553 = vld [vmem:[%s2539 + $0x34] sm:$0xf]
      %v2554 = vld [vmem:[%s2539 + $0x38] sm:$0xf]
      %v2555 = vld [vmem:[%s2539 + $0x3c] sm:$0xf]
      %v2572 = vunpack.c.l.b16 %v2540
      %v2573 = vunpack.c.l.b16 %v2541
      %v2574 = vunpack.c.l.b16 %v2542
      %v2575 = vunpack.c.l.b16 %v2543
      %v2576 = vunpack.c.l.b16 %v2544
      %v2577 = vunpack.c.l.b16 %v2545
      %v2578 = vunpack.c.l.b16 %v2546
      %v2579 = vunpack.c.l.b16 %v2547
      %v2580 = vunpack.c.l.b16 %v2548
      %v2581 = vunpack.c.l.b16 %v2549
      %v2582 = vunpack.c.l.b16 %v2550
      %v2583 = vunpack.c.l.b16 %v2551
      %v2584 = vunpack.c.l.b16 %v2552
      %v2585 = vunpack.c.l.b16 %v2553
      %v2586 = vunpack.c.l.b16 %v2554
      %v2587 = vunpack.c.l.b16 %v2555
      %v2588 = vpack.c.b16 %v2573, %v2572
      %v2589 = vpack.c.b16 %v2575, %v2574
      %v2590 = vpack.c.b16 %v2577, %v2576
      %v2591 = vpack.c.b16 %v2579, %v2578
      %v2592 = vpack.c.b16 %v2581, %v2580
      %v2593 = vpack.c.b16 %v2583, %v2582
      %v2594 = vpack.c.b16 %v2585, %v2584
      %v2595 = vpack.c.b16 %v2587, %v2586
      %v2597 = vsel %vm1035, %v2588, 0
      %v2600 = vsel %vm1035, %v2589, 0
      %v2603 = vsel %vm1035, %v2590, 0
      %v2606 = vsel %vm1035, %v2591, 0
      %v2609 = vsel %vm1035, %v2592, 0
      %v2612 = vsel %vm1035, %v2593, 0
      %v2615 = vsel %vm1035, %v2594, 0
      %v2618 = vsel %vm1035, %v2595, 0
      %2620 = vmatprep.subr.bf16.mxu0 0
      %2621 = vmatpush1.bf16.msra.mxu0 %v1033
      %2622 = vmatprep.subr.bf16.mxu0 0
      %2623 = vmatpush1.bf16.msra.mxu0 0
      %2624 = vmatprep.subr.bf16.mxu0 0
      %2625 = vmatpush1.bf16.msra.mxu0 0
      %2626 = vmatprep.subr.bf16.mxu0 0
      %2627 = vmatpush1.bf16.msra.mxu0 0
      %2628 = vmatprep.subr.bf16.mxu0 0
      %2629 = vmatpush1.bf16.msra.mxu0 0
      %2630 = vmatprep.subr.bf16.mxu0 0
      %2631 = vmatpush1.bf16.msra.mxu0 0
      %2632 = vmatprep.subr.bf16.mxu0 0
      %2633 = vmatpush1.bf16.msra.mxu0 0
      %2634 = vmatprep.subr.bf16.mxu0 0
      %2635 = vmatpush1.bf16.msra.mxu0 0
      %2636 = vmatprep.subr.bf16.mxu0 0
      %2637 = vmatpush1.bf16.msra.mxu0 0
      %2638 = vmatprep.subr.bf16.mxu0 0
      %2639 = vmatpush1.bf16.msra.mxu0 0
      %2640 = vmatprep.subr.bf16.mxu0 0
      %2641 = vmatpush1.bf16.msra.mxu0 0
      %2642 = vmatprep.subr.bf16.mxu0 0
      %2643 = vmatpush1.bf16.msra.mxu0 0
      %2644 = vmatprep.subr.bf16.mxu0 0
      %2645 = vmatpush1.bf16.msra.mxu0 0
      %2646 = vmatprep.subr.bf16.mxu0 0
      %2647 = vmatpush1.bf16.msra.mxu0 0
      %2648 = vmatprep.subr.bf16.mxu0 0
      %2649 = vmatpush1.bf16.msra.mxu0 0
      %2650 = vmatprep.subr.bf16.mxu0 0
      %2651 = vmatpush1.bf16.msra.mxu0 0
      %2652 = vmatprep.mubr.bf16.mxu0 0
      %2653 = vmatmul.mubr.bf16.gmra.mrb[0].mxu0 %v2597
      %v2654 = vpop.f32.mrb[0].mxu0
      %v2655 = vadd.f32 0.0, %v2654
      %v2656 = vpop.f32.mrb[0].mxu0
      %v2657 = vpop.f32.mrb[0].mxu0
      %v2658 = vadd.f32 0.0, %v2657
      %v2659 = vpop.f32.mrb[0].mxu0
      %2660 = vmatprep.mubr.bf16.mxu0 0
      %2661 = vmatmul.mubr.bf16.gmra.mrb[0].mxu0 %v2600
      %v2662 = vpop.f32.mrb[0].mxu0
      %v2663 = vadd.f32 0.0, %v2662
      %v2664 = vpop.f32.mrb[0].mxu0
      %v2665 = vpop.f32.mrb[0].mxu0
      %v2666 = vadd.f32 0.0, %v2665
      %v2667 = vpop.f32.mrb[0].mxu0
      %2668 = vmatprep.mubr.bf16.mxu0 0
      %2669 = vmatmul.mubr.bf16.gmra.mrb[0].mxu0 %v2603
      %v2670 = vpop.f32.mrb[0].mxu0
      %v2671 = vadd.f32 0.0, %v2670
      %v2672 = vpop.f32.mrb[0].mxu0
      %v2673 = vpop.f32.mrb[0].mxu0
      %v2674 = vadd.f32 0.0, %v2673
      %v2675 = vpop.f32.mrb[0].mxu0
      %2676 = vmatprep.mubr.bf16.mxu0 0
      %2677 = vmatmul.mubr.bf16.gmra.mrb[0].mxu0 %v2606
      %v2678 = vpop.f32.mrb[0].mxu0
      %v2679 = vadd.f32 0.0, %v2678
      %v2680 = vpop.f32.mrb[0].mxu0
      %v2681 = vpop.f32.mrb[0].mxu0
      %v2682 = vadd.f32 0.0, %v2681
      %v2683 = vpop.f32.mrb[0].mxu0
      %2684 = vmatprep.mubr.bf16.mxu0 0
      %2685 = vmatmul.mubr.bf16.gmra.mrb[0].mxu0 %v2609
      %v2686 = vpop.f32.mrb[0].mxu0
      %v2687 = vadd.f32 0.0, %v2686
      %v2688 = vpop.f32.mrb[0].mxu0
      %v2689 = vpop.f32.mrb[0].mxu0
      %v2690 = vadd.f32 0.0, %v2689
      %v2691 = vpop.f32.mrb[0].mxu0
      %2692 = vmatprep.mubr.bf16.mxu0 0
      %2693 = vmatmul.mubr.bf16.gmra.mrb[0].mxu0 %v2612
      %v2694 = vpop.f32.mrb[0].mxu0
      %v2695 = vadd.f32 0.0, %v2694
      %v2696 = vpop.f32.mrb[0].mxu0
      %v2697 = vpop.f32.mrb[0].mxu0
      %v2698 = vadd.f32 0.0, %v2697
      %v2699 = vpop.f32.mrb[0].mxu0
      %2700 = vmatprep.mubr.bf16.mxu0 0
      %2701 = vmatmul.mubr.bf16.gmra.mrb[0].mxu0 %v2615
      %v2702 = vpop.f32.mrb[0].mxu0
      %v2703 = vadd.f32 0.0, %v2702
      %v2704 = vpop.f32.mrb[0].mxu0
      %v2705 = vpop.f32.mrb[0].mxu0
      %v2706 = vadd.f32 0.0, %v2705
      %v2707 = vpop.f32.mrb[0].mxu0
      %2708 = vmatprep.mubr.bf16.mxu0 0
      %2709 = vmatmul.mubr.bf16.gmra.mrb[0].mxu0 %v2618
      %v2710 = vpop.f32.mrb[0].mxu0
      %v2711 = vadd.f32 0.0, %v2710
      %v2712 = vpop.f32.mrb[0].mxu0
      %v2713 = vpop.f32.mrb[0].mxu0
      %v2714 = vadd.f32 0.0, %v2713
      %v2715 = vpop.f32.mrb[0].mxu0
      %2716 = vdwg.mxu0
      %v2717 = vmul.f32 %v2499, %v2655
      %v2718 = vmul.f32 %v2500, %v2658
      %v2719 = vmul.f32 %v2501, %v2663
      %v2720 = vmul.f32 %v2502, %v2666
      %v2721 = vmul.f32 %v2503, %v2671
      %v2722 = vmul.f32 %v2504, %v2674
      %v2723 = vmul.f32 %v2505, %v2679
      %v2724 = vmul.f32 %v2506, %v2682
      %v2725 = vmul.f32 %v2507, %v2687
      %v2726 = vmul.f32 %v2508, %v2690
      %v2727 = vmul.f32 %v2509, %v2695
      %v2728 = vmul.f32 %v2510, %v2698
      %v2729 = vmul.f32 %v2511, %v2703
      %v2730 = vmul.f32 %v2512, %v2706
      %v2731 = vmul.f32 %v2513, %v2711
      %v2732 = vmul.f32 %v2514, %v2714
      %v2733 = vpack.c.bf16 %v2718, %v2717
      %v2734 = vpack.c.bf16 %v2720, %v2719
      %v2735 = vpack.c.bf16 %v2722, %v2721
      %v2736 = vpack.c.bf16 %v2724, %v2723
      %v2737 = vpack.c.bf16 %v2726, %v2725
      %v2738 = vpack.c.bf16 %v2728, %v2727
      %v2739 = vpack.c.bf16 %v2730, %v2729
      %v2740 = vpack.c.bf16 %v2732, %v2731
      %2741 = vmatprep.subr.bf16.mxu0 0
      %2742 = vmatpush1.bf16.msra.mxu0 %v2733
      %2743 = vmatprep.subr.bf16.mxu0 0
      %2744 = vmatpush1.bf16.msra.mxu0 %v2734
      %2745 = vmatprep.subr.bf16.mxu0 0
      %2746 = vmatpush1.bf16.msra.mxu0 %v2735
      %2747 = vmatprep.subr.bf16.mxu0 0
      %2748 = vmatpush1.bf16.msra.mxu0 %v2736
      %2749 = vmatprep.subr.bf16.mxu0 0
      %2750 = vmatpush1.bf16.msra.mxu0 %v2737
      %2751 = vmatprep.subr.bf16.mxu0 0
      %2752 = vmatpush1.bf16.msra.mxu0 %v2738
      %2753 = vmatprep.subr.bf16.mxu0 0
      %2754 = vmatpush1.bf16.msra.mxu0 %v2739
      %2755 = vmatprep.subr.bf16.mxu0 0
      %2756 = vmatpush1.bf16.msra.mxu0 %v2740
      %2757 = vmatprep.subr.bf16.mxu0 0
      %2758 = vmatpush1.bf16.msra.mxu0 0
      %2759 = vmatprep.subr.bf16.mxu0 0
      %2760 = vmatpush1.bf16.msra.mxu0 0
      %2761 = vmatprep.subr.bf16.mxu0 0
      %2762 = vmatpush1.bf16.msra.mxu0 0
      %2763 = vmatprep.subr.bf16.mxu0 0
      %2764 = vmatpush1.bf16.msra.mxu0 0
      %2765 = vmatprep.subr.bf16.mxu0 0
      %2766 = vmatpush1.bf16.msra.mxu0 0
      %2767 = vmatprep.subr.bf16.mxu0 0
      %2768 = vmatpush1.bf16.msra.mxu0 0
      %2769 = vmatprep.subr.bf16.mxu0 0
      %2770 = vmatpush1.bf16.msra.mxu0 0
      %2771 = vmatprep.subr.bf16.mxu0 0
      %2772 = vmatpush1.bf16.msra.mxu0 0
      %2773 = vmatprep.mubr.bf16.mxu0 0
      %2774 = vmatmul.mubr.bf16.gmra.mrb[0].mxu0 %v2531
      %v2775 = vpop.f32.mrb[0].mxu0
      %v2776 = vadd.f32 %v1184, %v2775
      %v2777 = vpop.f32.mrb[0].mxu0
      %v2778 = vpop.f32.mrb[0].mxu0
      %v2779 = vadd.f32 %v1184, %v2778
      %v2780 = vpop.f32.mrb[0].mxu0
      %2781 = vmatprep.mubr.bf16.mxu0 0
      %2782 = vmatmul.mubr.bf16.gmra.mrb[0].mxu0 %v2532
      %v2783 = vpop.f32.mrb[0].mxu0
      %v2784 = vadd.f32 %v1184, %v2783
      %v2785 = vpop.f32.mrb[0].mxu0
      %v2786 = vpop.f32.mrb[0].mxu0
      %v2787 = vadd.f32 %v1184, %v2786
      %v2788 = vpop.f32.mrb[0].mxu0
      %2789 = vmatprep.mubr.bf16.mxu0 0
      %2790 = vmatmul.mubr.bf16.gmra.mrb[0].mxu0 %v2533
      %v2791 = vpop.f32.mrb[0].mxu0
      %v2792 = vadd.f32 %v1184, %v2791
      %v2793 = vpop.f32.mrb[0].mxu0
      %v2794 = vpop.f32.mrb[0].mxu0
      %v2795 = vadd.f32 %v1184, %v2794
      %v2796 = vpop.f32.mrb[0].mxu0
      %2797 = vmatprep.mubr.bf16.mxu0 0
      %2798 = vmatmul.mubr.bf16.gmra.mrb[0].mxu0 %v2534
      %v2799 = vpop.f32.mrb[0].mxu0
      %v2800 = vadd.f32 %v1184, %v2799
      %v2801 = vpop.f32.mrb[0].mxu0
      %v2802 = vpop.f32.mrb[0].mxu0
      %v2803 = vadd.f32 %v1184, %v2802
      %v2804 = vpop.f32.mrb[0].mxu0
      %2805 = vmatprep.mubr.bf16.mxu0 0
      %2806 = vmatmul.mubr.bf16.gmra.mrb[0].mxu0 %v2535
      %v2807 = vpop.f32.mrb[0].mxu0
      %v2808 = vadd.f32 %v1184, %v2807
      %v2809 = vpop.f32.mrb[0].mxu0
      %v2810 = vpop.f32.mrb[0].mxu0
      %v2811 = vadd.f32 %v1184, %v2810
      %v2812 = vpop.f32.mrb[0].mxu0
      %2813 = vmatprep.mubr.bf16.mxu0 0
      %2814 = vmatmul.mubr.bf16.gmra.mrb[0].mxu0 %v2536
      %v2815 = vpop.f32.mrb[0].mxu0
      %v2816 = vadd.f32 %v1184, %v2815
      %v2817 = vpop.f32.mrb[0].mxu0
      %v2818 = vpop.f32.mrb[0].mxu0
      %v2819 = vadd.f32 %v1184, %v2818
      %v2820 = vpop.f32.mrb[0].mxu0
      %2821 = vmatprep.mubr.bf16.mxu0 0
      %2822 = vmatmul.mubr.bf16.gmra.mrb[0].mxu0 %v2537
      %v2823 = vpop.f32.mrb[0].mxu0
      %v2824 = vadd.f32 %v1184, %v2823
      %v2825 = vpop.f32.mrb[0].mxu0
      %v2826 = vpop.f32.mrb[0].mxu0
      %v2827 = vadd.f32 %v1184, %v2826
      %v2828 = vpop.f32.mrb[0].mxu0
      %2829 = vmatprep.mubr.bf16.mxu0 0
      %2830 = vmatmul.mubr.bf16.gmra.mrb[0].mxu0 %v2538
      %v2831 = vpop.f32.mrb[0].mxu0
      %v2832 = vadd.f32 %v1184, %v2831
      %v2833 = vpop.f32.mrb[0].mxu0
      %v2834 = vpop.f32.mrb[0].mxu0
      %v2835 = vadd.f32 %v1184, %v2834
      %v2836 = vpop.f32.mrb[0].mxu0
      %2837 = vdwg.mxu0
      %v2838 = vmax.f32 %v2776, 0.0
      %v2839 = vmax.f32 %v2779, 0.0
      %v2840 = vmax.f32 %v2784, 0.0
      %v2841 = vmax.f32 %v2787, 0.0
      %v2842 = vmax.f32 %v2792, 0.0
      %v2843 = vmax.f32 %v2795, 0.0
      %v2844 = vmax.f32 %v2800, 0.0
      %v2845 = vmax.f32 %v2803, 0.0
      %v2846 = vmax.f32 %v2808, 0.0
      %v2847 = vmax.f32 %v2811, 0.0
      %v2848 = vmax.f32 %v2816, 0.0
      %v2849 = vmax.f32 %v2819, 0.0
      %v2850 = vmax.f32 %v2824, 0.0
      %v2851 = vmax.f32 %v2827, 0.0
      %v2852 = vmax.f32 %v2832, 0.0
      %v2853 = vmax.f32 %v2835, 0.0
      %v2854 = vpack.c.bf16 %v2839, %v2838
      %v2855 = vpack.c.bf16 %v2841, %v2840
      %v2856 = vpack.c.bf16 %v2843, %v2842
      %v2857 = vpack.c.bf16 %v2845, %v2844
      %v2858 = vpack.c.bf16 %v2847, %v2846
      %v2859 = vpack.c.bf16 %v2849, %v2848
      %v2860 = vpack.c.bf16 %v2851, %v2850
      %v2861 = vpack.c.bf16 %v2853, %v2852
      %2862 = vmatprep.subr.bf16.mxu0 0
      %2863 = vmatpush1.bf16.msra.mxu0 %v1338
      %2864 = vmatprep.subr.bf16.mxu0 0
      %2865 = vmatpush1.bf16.msra.mxu0 %v1339
      %2866 = vmatprep.subr.bf16.mxu0 0
      %2867 = vmatpush1.bf16.msra.mxu0 %v1340
      %2868 = vmatprep.subr.bf16.mxu0 0
      %2869 = vmatpush1.bf16.msra.mxu0 %v1341
      %2870 = vmatprep.subr.bf16.mxu0 0
      %2871 = vmatpush1.bf16.msra.mxu0 %v1342
      %2872 = vmatprep.subr.bf16.mxu0 0
      %2873 = vmatpush1.bf16.msra.mxu0 %v1343
      %2874 = vmatprep.subr.bf16.mxu0 0
      %2875 = vmatpush1.bf16.msra.mxu0 %v1344
      %2876 = vmatprep.subr.bf16.mxu0 0
      %2877 = vmatpush1.bf16.msra.mxu0 %v1345
      %2878 = vmatprep.subr.bf16.mxu0 0
      %2879 = vmatpush1.bf16.msra.mxu0 0
      %2880 = vmatprep.subr.bf16.mxu0 0
      %2881 = vmatpush1.bf16.msra.mxu0 0
      %2882 = vmatprep.subr.bf16.mxu0 0
      %2883 = vmatpush1.bf16.msra.mxu0 0
      %2884 = vmatprep.subr.bf16.mxu0 0
      %2885 = vmatpush1.bf16.msra.mxu0 0
      %2886 = vmatprep.subr.bf16.mxu0 0
      %2887 = vmatpush1.bf16.msra.mxu0 0
      %2888 = vmatprep.subr.bf16.mxu0 0
      %2889 = vmatpush1.bf16.msra.mxu0 0
      %2890 = vmatprep.subr.bf16.mxu0 0
      %2891 = vmatpush1.bf16.msra.mxu0 0
      %2892 = vmatprep.subr.bf16.mxu0 0
      %2893 = vmatpush1.bf16.msra.mxu0 0
      %2894 = vmatprep.mubr.bf16.mxu0 0
      %2895 = vmatmul.mubr.bf16.gmra.mrb[0].mxu0 %v2854
      %v2896 = vpop.f32.mrb[0].mxu0
      %v2897 = vadd.f32 0.0, %v2896
      %v2898 = vpop.f32.mrb[0].mxu0
      %v2899 = vpop.f32.mrb[0].mxu0
      %v2900 = vadd.f32 0.0, %v2899
      %v2901 = vpop.f32.mrb[0].mxu0
      %2902 = vmatprep.mubr.bf16.mxu0 0
      %2903 = vmatmul.mubr.bf16.gmra.mrb[0].mxu0 %v2855
      %v2904 = vpop.f32.mrb[0].mxu0
      %v2905 = vadd.f32 0.0, %v2904
      %v2906 = vpop.f32.mrb[0].mxu0
      %v2907 = vpop.f32.mrb[0].mxu0
      %v2908 = vadd.f32 0.0, %v2907
      %v2909 = vpop.f32.mrb[0].mxu0
      %2910 = vmatprep.mubr.bf16.mxu0 0
      %2911 = vmatmul.mubr.bf16.gmra.mrb[0].mxu0 %v2856
      %v2912 = vpop.f32.mrb[0].mxu0
      %v2913 = vadd.f32 0.0, %v2912
      %v2914 = vpop.f32.mrb[0].mxu0
      %v2915 = vpop.f32.mrb[0].mxu0
      %v2916 = vadd.f32 0.0, %v2915
      %v2917 = vpop.f32.mrb[0].mxu0
      %2918 = vmatprep.mubr.bf16.mxu0 0
      %2919 = vmatmul.mubr.bf16.gmra.mrb[0].mxu0 %v2857
      %v2920 = vpop.f32.mrb[0].mxu0
      %v2921 = vadd.f32 0.0, %v2920
      %v2922 = vpop.f32.mrb[0].mxu0
      %v2923 = vpop.f32.mrb[0].mxu0
      %v2924 = vadd.f32 0.0, %v2923
      %v2925 = vpop.f32.mrb[0].mxu0
      %2926 = vmatprep.mubr.bf16.mxu0 0
      %2927 = vmatmul.mubr.bf16.gmra.mrb[0].mxu0 %v2858
      %v2928 = vpop.f32.mrb[0].mxu0
      %v2929 = vadd.f32 0.0, %v2928
      %v2930 = vpop.f32.mrb[0].mxu0
      %v2931 = vpop.f32.mrb[0].mxu0
      %v2932 = vadd.f32 0.0, %v2931
      %v2933 = vpop.f32.mrb[0].mxu0
      %2934 = vmatprep.mubr.bf16.mxu0 0
      %2935 = vmatmul.mubr.bf16.gmra.mrb[0].mxu0 %v2859
      %v2936 = vpop.f32.mrb[0].mxu0
      %v2937 = vadd.f32 0.0, %v2936
      %v2938 = vpop.f32.mrb[0].mxu0
      %v2939 = vpop.f32.mrb[0].mxu0
      %v2940 = vadd.f32 0.0, %v2939
      %v2941 = vpop.f32.mrb[0].mxu0
      %2942 = vmatprep.mubr.bf16.mxu0 0
      %2943 = vmatmul.mubr.bf16.gmra.mrb[0].mxu0 %v2860
      %v2944 = vpop.f32.mrb[0].mxu0
      %v2945 = vadd.f32 0.0, %v2944
      %v2946 = vpop.f32.mrb[0].mxu0
      %v2947 = vpop.f32.mrb[0].mxu0
      %v2948 = vadd.f32 0.0, %v2947
      %v2949 = vpop.f32.mrb[0].mxu0
      %2950 = vmatprep.mubr.bf16.mxu0 0
      %2951 = vmatmul.mubr.bf16.gmra.mrb[0].mxu0 %v2861
      %v2952 = vpop.f32.mrb[0].mxu0
      %v2953 = vadd.f32 0.0, %v2952
      %v2954 = vpop.f32.mrb[0].mxu0
      %v2955 = vpop.f32.mrb[0].mxu0
      %v2956 = vadd.f32 0.0, %v2955
      %v2957 = vpop.f32.mrb[0].mxu0
      %2958 = vdwg.mxu0
      %v2959 = vmul.f32 %v2499, %v2897
      %v2960 = vmul.f32 %v2500, %v2900
      %v2961 = vmul.f32 %v2501, %v2905
      %v2962 = vmul.f32 %v2502, %v2908
      %v2963 = vmul.f32 %v2503, %v2913
      %v2964 = vmul.f32 %v2504, %v2916
      %v2965 = vmul.f32 %v2505, %v2921
      %v2966 = vmul.f32 %v2506, %v2924
      %v2967 = vmul.f32 %v2507, %v2929
      %v2968 = vmul.f32 %v2508, %v2932
      %v2969 = vmul.f32 %v2509, %v2937
      %v2970 = vmul.f32 %v2510, %v2940
      %v2971 = vmul.f32 %v2511, %v2945
      %v2972 = vmul.f32 %v2512, %v2948
      %v2973 = vmul.f32 %v2513, %v2953
      %v2974 = vmul.f32 %v2514, %v2956
      %v2975 = vpack.c.bf16 %v2960, %v2959
      %v2976 = vpack.c.bf16 %v2962, %v2961
      %v2977 = vpack.c.bf16 %v2964, %v2963
      %v2978 = vpack.c.bf16 %v2966, %v2965
      %v2979 = vpack.c.bf16 %v2968, %v2967
      %v2980 = vpack.c.bf16 %v2970, %v2969
      %v2981 = vpack.c.bf16 %v2972, %v2971
      %v2982 = vpack.c.bf16 %v2974, %v2973
      %2983 = vmatprep.subr.bf16.mxu0 0
      %2984 = vmatpush1.bf16.msra.mxu0 %v2975
      %2985 = vmatprep.subr.bf16.mxu0 0
      %2986 = vmatpush1.bf16.msra.mxu0 %v2976
      %2987 = vmatprep.subr.bf16.mxu0 0
      %2988 = vmatpush1.bf16.msra.mxu0 %v2977
      %2989 = vmatprep.subr.bf16.mxu0 0
      %2990 = vmatpush1.bf16.msra.mxu0 %v2978
      %2991 = vmatprep.subr.bf16.mxu0 0
      %2992 = vmatpush1.bf16.msra.mxu0 %v2979
      %2993 = vmatprep.subr.bf16.mxu0 0
      %2994 = vmatpush1.bf16.msra.mxu0 %v2980
      %2995 = vmatprep.subr.bf16.mxu0 0
      %2996 = vmatpush1.bf16.msra.mxu0 %v2981
      %2997 = vmatprep.subr.bf16.mxu0 0
      %2998 = vmatpush1.bf16.msra.mxu0 %v2982
      %2999 = vmatprep.subr.bf16.mxu0 0
      %3000 = vmatpush1.bf16.msra.mxu0 0
      %3001 = vmatprep.subr.bf16.mxu0 0
      %3002 = vmatpush1.bf16.msra.mxu0 0
      %3003 = vmatprep.subr.bf16.mxu0 0
      %3004 = vmatpush1.bf16.msra.mxu0 0
      %3005 = vmatprep.subr.bf16.mxu0 0
      %3006 = vmatpush1.bf16.msra.mxu0 0
      %3007 = vmatprep.subr.bf16.mxu0 0
      %3008 = vmatpush1.bf16.msra.mxu0 0
      %3009 = vmatprep.subr.bf16.mxu0 0
      %3010 = vmatpush1.bf16.msra.mxu0 0
      %3011 = vmatprep.subr.bf16.mxu0 0
      %3012 = vmatpush1.bf16.msra.mxu0 0
      %3013 = vmatprep.subr.bf16.mxu0 0
      %3014 = vmatpush1.bf16.msra.mxu0 0
      %3015 = vmatprep.mubr.bf16.mxu0 0
      %3016 = vmatmul.mubr.bf16.gmra.mrb[0].mxu0 %v2531
      %v3017 = vpop.f32.mrb[0].mxu0
      %v3018 = vadd.f32 %v1478, %v3017
      %v3019 = vpop.f32.mrb[0].mxu0
      %v3020 = vpop.f32.mrb[0].mxu0
      %v3021 = vadd.f32 %v1478, %v3020
      %v3022 = vpop.f32.mrb[0].mxu0
      %3023 = vmatprep.mubr.bf16.mxu0 0
      %3024 = vmatmul.mubr.bf16.gmra.mrb[0].mxu0 %v2532
      %v3025 = vpop.f32.mrb[0].mxu0
      %v3026 = vadd.f32 %v1478, %v3025
      %v3027 = vpop.f32.mrb[0].mxu0
      %v3028 = vpop.f32.mrb[0].mxu0
      %v3029 = vadd.f32 %v1478, %v3028
      %v3030 = vpop.f32.mrb[0].mxu0
      %3031 = vmatprep.mubr.bf16.mxu0 0
      %3032 = vmatmul.mubr.bf16.gmra.mrb[0].mxu0 %v2533
      %v3033 = vpop.f32.mrb[0].mxu0
      %v3034 = vadd.f32 %v1478, %v3033
      %v3035 = vpop.f32.mrb[0].mxu0
      %v3036 = vpop.f32.mrb[0].mxu0
      %v3037 = vadd.f32 %v1478, %v3036
      %v3038 = vpop.f32.mrb[0].mxu0
      %3039 = vmatprep.mubr.bf16.mxu0 0
      %3040 = vmatmul.mubr.bf16.gmra.mrb[0].mxu0 %v2534
      %v3041 = vpop.f32.mrb[0].mxu0
      %v3042 = vadd.f32 %v1478, %v3041
      %v3043 = vpop.f32.mrb[0].mxu0
      %v3044 = vpop.f32.mrb[0].mxu0
      %v3045 = vadd.f32 %v1478, %v3044
      %v3046 = vpop.f32.mrb[0].mxu0
      %3047 = vmatprep.mubr.bf16.mxu0 0
      %3048 = vmatmul.mubr.bf16.gmra.mrb[0].mxu0 %v2535
      %v3049 = vpop.f32.mrb[0].mxu0
      %v3050 = vadd.f32 %v1478, %v3049
      %v3051 = vpop.f32.mrb[0].mxu0
      %v3052 = vpop.f32.mrb[0].mxu0
      %v3053 = vadd.f32 %v1478, %v3052
      %v3054 = vpop.f32.mrb[0].mxu0
      %3055 = vmatprep.mubr.bf16.mxu0 0
      %3056 = vmatmul.mubr.bf16.gmra.mrb[0].mxu0 %v2536
      %v3057 = vpop.f32.mrb[0].mxu0
      %v3058 = vadd.f32 %v1478, %v3057
      %v3059 = vpop.f32.mrb[0].mxu0
      %v3060 = vpop.f32.mrb[0].mxu0
      %v3061 = vadd.f32 %v1478, %v3060
      %v3062 = vpop.f32.mrb[0].mxu0
      %3063 = vmatprep.mubr.bf16.mxu0 0
      %3064 = vmatmul.mubr.bf16.gmra.mrb[0].mxu0 %v2537
      %v3065 = vpop.f32.mrb[0].mxu0
      %v3066 = vadd.f32 %v1478, %v3065
      %v3067 = vpop.f32.mrb[0].mxu0
      %v3068 = vpop.f32.mrb[0].mxu0
      %v3069 = vadd.f32 %v1478, %v3068
      %v3070 = vpop.f32.mrb[0].mxu0
      %3071 = vmatprep.mubr.bf16.mxu0 0
      %3072 = vmatmul.mubr.bf16.gmra.mrb[0].mxu0 %v2538
      %v3073 = vpop.f32.mrb[0].mxu0
      %v3074 = vadd.f32 %v1478, %v3073
      %v3075 = vpop.f32.mrb[0].mxu0
      %v3076 = vpop.f32.mrb[0].mxu0
      %v3077 = vadd.f32 %v1478, %v3076
      %v3078 = vpop.f32.mrb[0].mxu0
      %3079 = vdwg.mxu0
      %v3080 = vmax.f32 %v3018, 0.0
      %v3081 = vmax.f32 %v3021, 0.0
      %v3082 = vmax.f32 %v3026, 0.0
      %v3083 = vmax.f32 %v3029, 0.0
      %v3084 = vmax.f32 %v3034, 0.0
      %v3085 = vmax.f32 %v3037, 0.0
      %v3086 = vmax.f32 %v3042, 0.0
      %v3087 = vmax.f32 %v3045, 0.0
      %v3088 = vmax.f32 %v3050, 0.0
      %v3089 = vmax.f32 %v3053, 0.0
      %v3090 = vmax.f32 %v3058, 0.0
      %v3091 = vmax.f32 %v3061, 0.0
      %v3092 = vmax.f32 %v3066, 0.0
      %v3093 = vmax.f32 %v3069, 0.0
      %v3094 = vmax.f32 %v3074, 0.0
      %v3095 = vmax.f32 %v3077, 0.0
      %v3096 = vpack.c.bf16 %v3081, %v3080
      %v3097 = vpack.c.bf16 %v3083, %v3082
      %v3098 = vpack.c.bf16 %v3085, %v3084
      %v3099 = vpack.c.bf16 %v3087, %v3086
      %v3100 = vpack.c.bf16 %v3089, %v3088
      %v3101 = vpack.c.bf16 %v3091, %v3090
      %v3102 = vpack.c.bf16 %v3093, %v3092
      %v3103 = vpack.c.bf16 %v3095, %v3094
      %3104 = vmatprep.subr.bf16.mxu0 0
      %3105 = vmatpush1.bf16.msra.mxu0 %v1632
      %3106 = vmatprep.subr.bf16.mxu0 0
      %3107 = vmatpush1.bf16.msra.mxu0 %v1633
      %3108 = vmatprep.subr.bf16.mxu0 0
      %3109 = vmatpush1.bf16.msra.mxu0 %v1634
      %3110 = vmatprep.subr.bf16.mxu0 0
      %3111 = vmatpush1.bf16.msra.mxu0 %v1635
      %3112 = vmatprep.subr.bf16.mxu0 0
      %3113 = vmatpush1.bf16.msra.mxu0 %v1636
      %3114 = vmatprep.subr.bf16.mxu0 0
      %3115 = vmatpush1.bf16.msra.mxu0 %v1637
      %3116 = vmatprep.subr.bf16.mxu0 0
      %3117 = vmatpush1.bf16.msra.mxu0 %v1638
      %3118 = vmatprep.subr.bf16.mxu0 0
      %3119 = vmatpush1.bf16.msra.mxu0 %v1639
      %3120 = vmatprep.subr.bf16.mxu0 0
      %3121 = vmatpush1.bf16.msra.mxu0 0
      %3122 = vmatprep.subr.bf16.mxu0 0
      %3123 = vmatpush1.bf16.msra.mxu0 0
      %3124 = vmatprep.subr.bf16.mxu0 0
      %3125 = vmatpush1.bf16.msra.mxu0 0
      %3126 = vmatprep.subr.bf16.mxu0 0
      %3127 = vmatpush1.bf16.msra.mxu0 0
      %3128 = vmatprep.subr.bf16.mxu0 0
      %3129 = vmatpush1.bf16.msra.mxu0 0
      %3130 = vmatprep.subr.bf16.mxu0 0
      %3131 = vmatpush1.bf16.msra.mxu0 0
      %3132 = vmatprep.subr.bf16.mxu0 0
      %3133 = vmatpush1.bf16.msra.mxu0 0
      %3134 = vmatprep.subr.bf16.mxu0 0
      %3135 = vmatpush1.bf16.msra.mxu0 0
      %3136 = vmatprep.mubr.bf16.mxu0 0
      %3137 = vmatmul.mubr.bf16.gmra.mrb[0].mxu0 %v3096
      %v3138 = vpop.f32.mrb[0].mxu0
      %v3139 = vadd.f32 0.0, %v3138
      %v3140 = vpop.f32.mrb[0].mxu0
      %v3141 = vpop.f32.mrb[0].mxu0
      %v3142 = vadd.f32 0.0, %v3141
      %v3143 = vpop.f32.mrb[0].mxu0
      %3144 = vmatprep.mubr.bf16.mxu0 0
      %3145 = vmatmul.mubr.bf16.gmra.mrb[0].mxu0 %v3097
      %v3146 = vpop.f32.mrb[0].mxu0
      %v3147 = vadd.f32 0.0, %v3146
      %v3148 = vpop.f32.mrb[0].mxu0
      %v3149 = vpop.f32.mrb[0].mxu0
      %v3150 = vadd.f32 0.0, %v3149
      %v3151 = vpop.f32.mrb[0].mxu0
      %3152 = vmatprep.mubr.bf16.mxu0 0
      %3153 = vmatmul.mubr.bf16.gmra.mrb[0].mxu0 %v3098
      %v3154 = vpop.f32.mrb[0].mxu0
      %v3155 = vadd.f32 0.0, %v3154
      %v3156 = vpop.f32.mrb[0].mxu0
      %v3157 = vpop.f32.mrb[0].mxu0
      %v3158 = vadd.f32 0.0, %v3157
      %v3159 = vpop.f32.mrb[0].mxu0
      %3160 = vmatprep.mubr.bf16.mxu0 0
      %3161 = vmatmul.mubr.bf16.gmra.mrb[0].mxu0 %v3099
      %v3162 = vpop.f32.mrb[0].mxu0
      %v3163 = vadd.f32 0.0, %v3162
      %v3164 = vpop.f32.mrb[0].mxu0
      %v3165 = vpop.f32.mrb[0].mxu0
      %v3166 = vadd.f32 0.0, %v3165
      %v3167 = vpop.f32.mrb[0].mxu0
      %3168 = vmatprep.mubr.bf16.mxu0 0
      %3169 = vmatmul.mubr.bf16.gmra.mrb[0].mxu0 %v3100
      %v3170 = vpop.f32.mrb[0].mxu0
      %v3171 = vadd.f32 0.0, %v3170
      %v3172 = vpop.f32.mrb[0].mxu0
      %v3173 = vpop.f32.mrb[0].mxu0
      %v3174 = vadd.f32 0.0, %v3173
      %v3175 = vpop.f32.mrb[0].mxu0
      %3176 = vmatprep.mubr.bf16.mxu0 0
      %3177 = vmatmul.mubr.bf16.gmra.mrb[0].mxu0 %v3101
      %v3178 = vpop.f32.mrb[0].mxu0
      %v3179 = vadd.f32 0.0, %v3178
      %v3180 = vpop.f32.mrb[0].mxu0
      %v3181 = vpop.f32.mrb[0].mxu0
      %v3182 = vadd.f32 0.0, %v3181
      %v3183 = vpop.f32.mrb[0].mxu0
      %3184 = vmatprep.mubr.bf16.mxu0 0
      %3185 = vmatmul.mubr.bf16.gmra.mrb[0].mxu0 %v3102
      %v3186 = vpop.f32.mrb[0].mxu0
      %v3187 = vadd.f32 0.0, %v3186
      %v3188 = vpop.f32.mrb[0].mxu0
      %v3189 = vpop.f32.mrb[0].mxu0
      %v3190 = vadd.f32 0.0, %v3189
      %v3191 = vpop.f32.mrb[0].mxu0
      %3192 = vmatprep.mubr.bf16.mxu0 0
      %3193 = vmatmul.mubr.bf16.gmra.mrb[0].mxu0 %v3103
      %v3194 = vpop.f32.mrb[0].mxu0
      %v3195 = vadd.f32 0.0, %v3194
      %v3196 = vpop.f32.mrb[0].mxu0
      %v3197 = vpop.f32.mrb[0].mxu0
      %v3198 = vadd.f32 0.0, %v3197
      %v3199 = vpop.f32.mrb[0].mxu0
      %3200 = vdwg.mxu0
      %v3201 = vmul.f32 %v2499, %v3139
      %v3202 = vmul.f32 %v2500, %v3142
      %v3203 = vmul.f32 %v2501, %v3147
      %v3204 = vmul.f32 %v2502, %v3150
      %v3205 = vmul.f32 %v2503, %v3155
      %v3206 = vmul.f32 %v2504, %v3158
      %v3207 = vmul.f32 %v2505, %v3163
      %v3208 = vmul.f32 %v2506, %v3166
      %v3209 = vmul.f32 %v2507, %v3171
      %v3210 = vmul.f32 %v2508, %v3174
      %v3211 = vmul.f32 %v2509, %v3179
      %v3212 = vmul.f32 %v2510, %v3182
      %v3213 = vmul.f32 %v2511, %v3187
      %v3214 = vmul.f32 %v2512, %v3190
      %v3215 = vmul.f32 %v2513, %v3195
      %v3216 = vmul.f32 %v2514, %v3198
      %v3217 = vpack.c.bf16 %v3202, %v3201
      %v3218 = vpack.c.bf16 %v3204, %v3203
      %v3219 = vpack.c.bf16 %v3206, %v3205
      %v3220 = vpack.c.bf16 %v3208, %v3207
      %v3221 = vpack.c.bf16 %v3210, %v3209
      %v3222 = vpack.c.bf16 %v3212, %v3211
      %v3223 = vpack.c.bf16 %v3214, %v3213
      %v3224 = vpack.c.bf16 %v3216, %v3215
      %3225 = vmatprep.subr.bf16.mxu0 0
      %3226 = vmatpush1.bf16.msra.mxu0 %v3217
      %3227 = vmatprep.subr.bf16.mxu0 0
      %3228 = vmatpush1.bf16.msra.mxu0 %v3218
      %3229 = vmatprep.subr.bf16.mxu0 0
      %3230 = vmatpush1.bf16.msra.mxu0 %v3219
      %3231 = vmatprep.subr.bf16.mxu0 0
      %3232 = vmatpush1.bf16.msra.mxu0 %v3220
      %3233 = vmatprep.subr.bf16.mxu0 0
      %3234 = vmatpush1.bf16.msra.mxu0 %v3221
      %3235 = vmatprep.subr.bf16.mxu0 0
      %3236 = vmatpush1.bf16.msra.mxu0 %v3222
      %3237 = vmatprep.subr.bf16.mxu0 0
      %3238 = vmatpush1.bf16.msra.mxu0 %v3223
      %3239 = vmatprep.subr.bf16.mxu0 0
      %3240 = vmatpush1.bf16.msra.mxu0 %v3224
      %3241 = vmatprep.subr.bf16.mxu0 0
      %3242 = vmatpush1.bf16.msra.mxu0 0
      %3243 = vmatprep.subr.bf16.mxu0 0
      %3244 = vmatpush1.bf16.msra.mxu0 0
      %3245 = vmatprep.subr.bf16.mxu0 0
      %3246 = vmatpush1.bf16.msra.mxu0 0
      %3247 = vmatprep.subr.bf16.mxu0 0
      %3248 = vmatpush1.bf16.msra.mxu0 0
      %3249 = vmatprep.subr.bf16.mxu0 0
      %3250 = vmatpush1.bf16.msra.mxu0 0
      %3251 = vmatprep.subr.bf16.mxu0 0
      %3252 = vmatpush1.bf16.msra.mxu0 0
      %3253 = vmatprep.subr.bf16.mxu0 0
      %3254 = vmatpush1.bf16.msra.mxu0 0
      %3255 = vmatprep.subr.bf16.mxu0 0
      %3256 = vmatpush1.bf16.msra.mxu0 0
      %3257 = vmatprep.mubr.bf16.mxu0 0
      %3258 = vmatmul.mubr.bf16.gmra.mrb[0].mxu0 %v2531
      %v3259 = vpop.f32.mrb[0].mxu0
      %v3260 = vadd.f32 %v1772, %v3259
      %v3261 = vpop.f32.mrb[0].mxu0
      %v3262 = vpop.f32.mrb[0].mxu0
      %v3263 = vadd.f32 %v1772, %v3262
      %v3264 = vpop.f32.mrb[0].mxu0
      %3265 = vmatprep.mubr.bf16.mxu0 0
      %3266 = vmatmul.mubr.bf16.gmra.mrb[0].mxu0 %v2532
      %v3267 = vpop.f32.mrb[0].mxu0
      %v3268 = vadd.f32 %v1772, %v3267
      %v3269 = vpop.f32.mrb[0].mxu0
      %v3270 = vpop.f32.mrb[0].mxu0
      %v3271 = vadd.f32 %v1772, %v3270
      %v3272 = vpop.f32.mrb[0].mxu0
      %3273 = vmatprep.mubr.bf16.mxu0 0
      %3274 = vmatmul.mubr.bf16.gmra.mrb[0].mxu0 %v2533
      %v3275 = vpop.f32.mrb[0].mxu0
      %v3276 = vadd.f32 %v1772, %v3275
      %v3277 = vpop.f32.mrb[0].mxu0
      %v3278 = vpop.f32.mrb[0].mxu0
      %v3279 = vadd.f32 %v1772, %v3278
      %v3280 = vpop.f32.mrb[0].mxu0
      %3281 = vmatprep.mubr.bf16.mxu0 0
      %3282 = vmatmul.mubr.bf16.gmra.mrb[0].mxu0 %v2534
      %v3283 = vpop.f32.mrb[0].mxu0
      %v3284 = vadd.f32 %v1772, %v3283
      %v3285 = vpop.f32.mrb[0].mxu0
      %v3286 = vpop.f32.mrb[0].mxu0
      %v3287 = vadd.f32 %v1772, %v3286
      %v3288 = vpop.f32.mrb[0].mxu0
      %3289 = vmatprep.mubr.bf16.mxu0 0
      %3290 = vmatmul.mubr.bf16.gmra.mrb[0].mxu0 %v2535
      %v3291 = vpop.f32.mrb[0].mxu0
      %v3292 = vadd.f32 %v1772, %v3291
      %v3293 = vpop.f32.mrb[0].mxu0
      %v3294 = vpop.f32.mrb[0].mxu0
      %v3295 = vadd.f32 %v1772, %v3294
      %v3296 = vpop.f32.mrb[0].mxu0
      %3297 = vmatprep.mubr.bf16.mxu0 0
      %3298 = vmatmul.mubr.bf16.gmra.mrb[0].mxu0 %v2536
      %v3299 = vpop.f32.mrb[0].mxu0
      %v3300 = vadd.f32 %v1772, %v3299
      %v3301 = vpop.f32.mrb[0].mxu0
      %v3302 = vpop.f32.mrb[0].mxu0
      %v3303 = vadd.f32 %v1772, %v3302
      %v3304 = vpop.f32.mrb[0].mxu0
      %3305 = vmatprep.mubr.bf16.mxu0 0
      %3306 = vmatmul.mubr.bf16.gmra.mrb[0].mxu0 %v2537
      %v3307 = vpop.f32.mrb[0].mxu0
      %v3308 = vadd.f32 %v1772, %v3307
      %v3309 = vpop.f32.mrb[0].mxu0
      %v3310 = vpop.f32.mrb[0].mxu0
      %v3311 = vadd.f32 %v1772, %v3310
      %v3312 = vpop.f32.mrb[0].mxu0
      %3313 = vmatprep.mubr.bf16.mxu0 0
      %3314 = vmatmul.mubr.bf16.gmra.mrb[0].mxu0 %v2538
      %v3315 = vpop.f32.mrb[0].mxu0
      %v3316 = vadd.f32 %v1772, %v3315
      %v3317 = vpop.f32.mrb[0].mxu0
      %v3318 = vpop.f32.mrb[0].mxu0
      %v3319 = vadd.f32 %v1772, %v3318
      %v3320 = vpop.f32.mrb[0].mxu0
      %3321 = vdwg.mxu0
      %s3322 = scalar_lea.vmem %s229, 128
      %3323 = vst.msk [vmem:[%s3322] sm:$0xff] %vm1870, %v3260
      %3324 = vst.msk [vmem:[%s3322 + $0x8] sm:$0xff] %vm1870, %v3263
      %3325 = vst.msk [vmem:[%s3322 + $0x10] sm:$0xff] %vm1870, %v3268
      %3326 = vst.msk [vmem:[%s3322 + $0x18] sm:$0xff] %vm1870, %v3271
      %3327 = vst.msk [vmem:[%s3322 + $0x20] sm:$0xff] %vm1870, %v3276
      %3328 = vst.msk [vmem:[%s3322 + $0x28] sm:$0xff] %vm1870, %v3279
      %3329 = vst.msk [vmem:[%s3322 + $0x30] sm:$0xff] %vm1870, %v3284
      %3330 = vst.msk [vmem:[%s3322 + $0x38] sm:$0xff] %vm1870, %v3287
      %3331 = vst.msk [vmem:[%s3322 + $0x40] sm:$0xff] %vm1870, %v3292
      %3332 = vst.msk [vmem:[%s3322 + $0x48] sm:$0xff] %vm1870, %v3295
      %3333 = vst.msk [vmem:[%s3322 + $0x50] sm:$0xff] %vm1870, %v3300
      %3334 = vst.msk [vmem:[%s3322 + $0x58] sm:$0xff] %vm1870, %v3303
      %3335 = vst.msk [vmem:[%s3322 + $0x60] sm:$0xff] %vm1870, %v3308
      %3336 = vst.msk [vmem:[%s3322 + $0x68] sm:$0xff] %vm1870, %v3311
      %3337 = vst.msk [vmem:[%s3322 + $0x70] sm:$0xff] %vm1870, %v3316
      %3338 = vst.msk [vmem:[%s3322 + $0x78] sm:$0xff] %vm1870, %v3319
      %s3339 = scalar_lea.vmem %s215, 16
      %v3340 = vld [vmem:[%s3339] sm:$0xff]
      %v3341 = vlaneseq
      %v3342 = vshrl.u32 %v3341, 7
      %v3343 = vsub.s32 1, %v3342
      %v3344 = vrot.slane %v3340, %v3343
      %v3345 = vlaneseq
      %v3346 = vshrl.u32 %v3345, 7
      %v3347 = vsub.s32 3, %v3346
      %v3348 = vrot.slane %v3340, %v3347
      %v3349 = vlaneseq
      %v3350 = vshrl.u32 %v3349, 7
      %v3351 = vsub.s32 5, %v3350
      %v3352 = vrot.slane %v3340, %v3351
      %v3353 = vlaneseq
      %v3354 = vshrl.u32 %v3353, 7
      %v3355 = vsub.s32 7, %v3354
      %v3356 = vrot.slane %v3340, %v3355
      %v3357 = vlaneseq
      %v3358 = vshrl.u32 %v3357, 7
      %v3359 = vsub.s32 1, %v3358
      %v3360 = vrot.slane %v3344, %v3359
      %v3361 = vlaneseq
      %v3362 = vshrl.u32 %v3361, 7
      %v3363 = vsub.s32 1, %v3362
      %v3364 = vrot.slane %v3348, %v3363
      %v3365 = vlaneseq
      %v3366 = vshrl.u32 %v3365, 7
      %v3367 = vsub.s32 1, %v3366
      %v3368 = vrot.slane %v3352, %v3367
      %v3369 = vlaneseq
      %v3370 = vshrl.u32 %v3369, 7
      %v3371 = vsub.s32 1, %v3370
      %v3372 = vrot.slane %v3356, %v3371
      %vm3373 = vcmp.eq.s32.totalorder %v273, %v3360
      %vm3374 = vcmp.eq.s32.totalorder %v273, %v3364
      %vm3375 = vcmp.eq.s32.totalorder %v273, %v3368
      %vm3376 = vcmp.eq.s32.totalorder %v273, %v3372
      %vm3377 = vcmp.eq.s32.totalorder %v274, %v3360
      %vm3378 = vcmp.eq.s32.totalorder %v274, %v3364
      %vm3379 = vcmp.eq.s32.totalorder %v274, %v3368
      %vm3380 = vcmp.eq.s32.totalorder %v274, %v3372
      %vm3381 = vcmp.eq.s32.totalorder %v275, %v3360
      %vm3382 = vcmp.eq.s32.totalorder %v275, %v3364
      %vm3383 = vcmp.eq.s32.totalorder %v275, %v3368
      %vm3384 = vcmp.eq.s32.totalorder %v275, %v3372
      %vm3385 = vcmp.eq.s32.totalorder %v276, %v3360
      %vm3386 = vcmp.eq.s32.totalorder %v276, %v3364
      %vm3387 = vcmp.eq.s32.totalorder %v276, %v3368
      %vm3388 = vcmp.eq.s32.totalorder %v276, %v3372
      %vm3389 = vcmp.eq.s32.totalorder %v277, %v3360
      %vm3390 = vcmp.eq.s32.totalorder %v277, %v3364
      %vm3391 = vcmp.eq.s32.totalorder %v277, %v3368
      %vm3392 = vcmp.eq.s32.totalorder %v277, %v3372
      %vm3393 = vcmp.eq.s32.totalorder %v278, %v3360
      %vm3394 = vcmp.eq.s32.totalorder %v278, %v3364
      %vm3395 = vcmp.eq.s32.totalorder %v278, %v3368
      %vm3396 = vcmp.eq.s32.totalorder %v278, %v3372
      %vm3397 = vcmp.eq.s32.totalorder %v279, %v3360
      %vm3398 = vcmp.eq.s32.totalorder %v279, %v3364
      %vm3399 = vcmp.eq.s32.totalorder %v279, %v3368
      %vm3400 = vcmp.eq.s32.totalorder %v279, %v3372
      %vm3401 = vcmp.eq.s32.totalorder %v280, %v3360
      %vm3402 = vcmp.eq.s32.totalorder %v280, %v3364
      %vm3403 = vcmp.eq.s32.totalorder %v280, %v3368
      %vm3404 = vcmp.eq.s32.totalorder %v280, %v3372
      %vm3405 = vcmp.eq.s32.totalorder %v281, %v3360
      %vm3406 = vcmp.eq.s32.totalorder %v281, %v3364
      %vm3407 = vcmp.eq.s32.totalorder %v281, %v3368
      %vm3408 = vcmp.eq.s32.totalorder %v281, %v3372
      %vm3409 = vcmp.eq.s32.totalorder %v282, %v3360
      %vm3410 = vcmp.eq.s32.totalorder %v282, %v3364
      %vm3411 = vcmp.eq.s32.totalorder %v282, %v3368
      %vm3412 = vcmp.eq.s32.totalorder %v282, %v3372
      %vm3413 = vcmp.eq.s32.totalorder %v283, %v3360
      %vm3414 = vcmp.eq.s32.totalorder %v283, %v3364
      %vm3415 = vcmp.eq.s32.totalorder %v283, %v3368
      %vm3416 = vcmp.eq.s32.totalorder %v283, %v3372
      %vm3417 = vcmp.eq.s32.totalorder %v284, %v3360
      %vm3418 = vcmp.eq.s32.totalorder %v284, %v3364
      %vm3419 = vcmp.eq.s32.totalorder %v284, %v3368
      %vm3420 = vcmp.eq.s32.totalorder %v284, %v3372
      %vm3421 = vcmp.eq.s32.totalorder %v285, %v3360
      %vm3422 = vcmp.eq.s32.totalorder %v285, %v3364
      %vm3423 = vcmp.eq.s32.totalorder %v285, %v3368
      %vm3424 = vcmp.eq.s32.totalorder %v285, %v3372
      %vm3425 = vcmp.eq.s32.totalorder %v286, %v3360
      %vm3426 = vcmp.eq.s32.totalorder %v286, %v3364
      %vm3427 = vcmp.eq.s32.totalorder %v286, %v3368
      %vm3428 = vcmp.eq.s32.totalorder %v286, %v3372
      %vm3429 = vcmp.eq.s32.totalorder %v287, %v3360
      %vm3430 = vcmp.eq.s32.totalorder %v287, %v3364
      %vm3431 = vcmp.eq.s32.totalorder %v287, %v3368
      %vm3432 = vcmp.eq.s32.totalorder %v287, %v3372
      %vm3433 = vcmp.eq.s32.totalorder %v288, %v3360
      %vm3434 = vcmp.eq.s32.totalorder %v288, %v3364
      %vm3435 = vcmp.eq.s32.totalorder %v288, %v3368
      %vm3436 = vcmp.eq.s32.totalorder %v288, %v3372
      %v3437 = vsel %vm3373, 1.0, 0.0
      %v3438 = vsel %vm3374, 1.0, 0.0
      %v3439 = vsel %vm3375, 1.0, 0.0
      %v3440 = vsel %vm3376, 1.0, 0.0
      %v3441 = vsel %vm3377, 1.0, 0.0
      %v3442 = vsel %vm3378, 1.0, 0.0
      %v3443 = vsel %vm3379, 1.0, 0.0
      %v3444 = vsel %vm3380, 1.0, 0.0
      %v3445 = vsel %vm3381, 1.0, 0.0
      %v3446 = vsel %vm3382, 1.0, 0.0
      %v3447 = vsel %vm3383, 1.0, 0.0
      %v3448 = vsel %vm3384, 1.0, 0.0
      %v3449 = vsel %vm3385, 1.0, 0.0
      %v3450 = vsel %vm3386, 1.0, 0.0
      %v3451 = vsel %vm3387, 1.0, 0.0
      %v3452 = vsel %vm3388, 1.0, 0.0
      %v3453 = vsel %vm3389, 1.0, 0.0
      %v3454 = vsel %vm3390, 1.0, 0.0
      %v3455 = vsel %vm3391, 1.0, 0.0
      %v3456 = vsel %vm3392, 1.0, 0.0
      %v3457 = vsel %vm3393, 1.0, 0.0
      %v3458 = vsel %vm3394, 1.0, 0.0
      %v3459 = vsel %vm3395, 1.0, 0.0
      %v3460 = vsel %vm3396, 1.0, 0.0
      %v3461 = vsel %vm3397, 1.0, 0.0
      %v3462 = vsel %vm3398, 1.0, 0.0
      %v3463 = vsel %vm3399, 1.0, 0.0
      %v3464 = vsel %vm3400, 1.0, 0.0
      %v3465 = vsel %vm3401, 1.0, 0.0
      %v3466 = vsel %vm3402, 1.0, 0.0
      %v3467 = vsel %vm3403, 1.0, 0.0
      %v3468 = vsel %vm3404, 1.0, 0.0
      %v3469 = vsel %vm3405, 1.0, 0.0
      %v3470 = vsel %vm3406, 1.0, 0.0
      %v3471 = vsel %vm3407, 1.0, 0.0
      %v3472 = vsel %vm3408, 1.0, 0.0
      %v3473 = vsel %vm3409, 1.0, 0.0
      %v3474 = vsel %vm3410, 1.0, 0.0
      %v3475 = vsel %vm3411, 1.0, 0.0
      %v3476 = vsel %vm3412, 1.0, 0.0
      %v3477 = vsel %vm3413, 1.0, 0.0
      %v3478 = vsel %vm3414, 1.0, 0.0
      %v3479 = vsel %vm3415, 1.0, 0.0
      %v3480 = vsel %vm3416, 1.0, 0.0
      %v3481 = vsel %vm3417, 1.0, 0.0
      %v3482 = vsel %vm3418, 1.0, 0.0
      %v3483 = vsel %vm3419, 1.0, 0.0
      %v3484 = vsel %vm3420, 1.0, 0.0
      %v3485 = vsel %vm3421, 1.0, 0.0
      %v3486 = vsel %vm3422, 1.0, 0.0
      %v3487 = vsel %vm3423, 1.0, 0.0
      %v3488 = vsel %vm3424, 1.0, 0.0
      %v3489 = vsel %vm3425, 1.0, 0.0
      %v3490 = vsel %vm3426, 1.0, 0.0
      %v3491 = vsel %vm3427, 1.0, 0.0
      %v3492 = vsel %vm3428, 1.0, 0.0
      %v3493 = vsel %vm3429, 1.0, 0.0
      %v3494 = vsel %vm3430, 1.0, 0.0
      %v3495 = vsel %vm3431, 1.0, 0.0
      %v3496 = vsel %vm3432, 1.0, 0.0
      %v3497 = vsel %vm3433, 1.0, 0.0
      %v3498 = vsel %vm3434, 1.0, 0.0
      %v3499 = vsel %vm3435, 1.0, 0.0
      %v3500 = vsel %vm3436, 1.0, 0.0
      %v3501 = vpack.c.bf16 %v3441, %v3437
      %v3502 = vpack.c.bf16 %v3442, %v3438
      %v3503 = vpack.c.bf16 %v3443, %v3439
      %v3504 = vpack.c.bf16 %v3444, %v3440
      %v3505 = vpack.c.bf16 %v3449, %v3445
      %v3506 = vpack.c.bf16 %v3450, %v3446
      %v3507 = vpack.c.bf16 %v3451, %v3447
      %v3508 = vpack.c.bf16 %v3452, %v3448
      %v3509 = vpack.c.bf16 %v3457, %v3453
      %v3510 = vpack.c.bf16 %v3458, %v3454
      %v3511 = vpack.c.bf16 %v3459, %v3455
      %v3512 = vpack.c.bf16 %v3460, %v3456
      %v3513 = vpack.c.bf16 %v3465, %v3461
      %v3514 = vpack.c.bf16 %v3466, %v3462
      %v3515 = vpack.c.bf16 %v3467, %v3463
      %v3516 = vpack.c.bf16 %v3468, %v3464
      %v3517 = vpack.c.bf16 %v3473, %v3469
      %v3518 = vpack.c.bf16 %v3474, %v3470
      %v3519 = vpack.c.bf16 %v3475, %v3471
      %v3520 = vpack.c.bf16 %v3476, %v3472
      %v3521 = vpack.c.bf16 %v3481, %v3477
      %v3522 = vpack.c.bf16 %v3482, %v3478
      %v3523 = vpack.c.bf16 %v3483, %v3479
      %v3524 = vpack.c.bf16 %v3484, %v3480
      %v3525 = vpack.c.bf16 %v3489, %v3485
      %v3526 = vpack.c.bf16 %v3490, %v3486
      %v3527 = vpack.c.bf16 %v3491, %v3487
      %v3528 = vpack.c.bf16 %v3492, %v3488
      %v3529 = vpack.c.bf16 %v3497, %v3493
      %v3530 = vpack.c.bf16 %v3498, %v3494
      %v3531 = vpack.c.bf16 %v3499, %v3495
      %v3532 = vpack.c.bf16 %v3500, %v3496
      %v3533 = vlaneseq
      %v3534 = vshrl.u32 %v3533, 7
      %v3535 = vsub.s32 0, %v3534
      %v3536 = vrot.slane %v3340, %v3535
      %v3537 = vlaneseq
      %v3538 = vshrl.u32 %v3537, 7
      %v3539 = vsub.s32 2, %v3538
      %v3540 = vrot.slane %v3340, %v3539
      %v3541 = vlaneseq
      %v3542 = vshrl.u32 %v3541, 7
      %v3543 = vsub.s32 4, %v3542
      %v3544 = vrot.slane %v3340, %v3543
      %v3545 = vlaneseq
      %v3546 = vshrl.u32 %v3545, 7
      %v3547 = vsub.s32 6, %v3546
      %v3548 = vrot.slane %v3340, %v3547
      %v3549 = vlaneseq
      %v3550 = vshrl.u32 %v3549, 7
      %v3551 = vsub.s32 0, %v3550
      %v3552 = vrot.slane %v3536, %v3551
      %v3553 = vlaneseq
      %v3554 = vshrl.u32 %v3553, 7
      %v3555 = vsub.s32 0, %v3554
      %v3556 = vrot.slane %v3540, %v3555
      %v3557 = vlaneseq
      %v3558 = vshrl.u32 %v3557, 7
      %v3559 = vsub.s32 0, %v3558
      %v3560 = vrot.slane %v3544, %v3559
      %v3561 = vlaneseq
      %v3562 = vshrl.u32 %v3561, 7
      %v3563 = vsub.s32 0, %v3562
      %v3564 = vrot.slane %v3548, %v3563
      %vm3565 = vcmp.eq.s32.totalorder %v273, %v3552
      %vm3566 = vcmp.eq.s32.totalorder %v273, %v3556
      %vm3567 = vcmp.eq.s32.totalorder %v273, %v3560
      %vm3568 = vcmp.eq.s32.totalorder %v273, %v3564
      %vm3569 = vcmp.eq.s32.totalorder %v274, %v3552
      %vm3570 = vcmp.eq.s32.totalorder %v274, %v3556
      %vm3571 = vcmp.eq.s32.totalorder %v274, %v3560
      %vm3572 = vcmp.eq.s32.totalorder %v274, %v3564
      %vm3573 = vcmp.eq.s32.totalorder %v275, %v3552
      %vm3574 = vcmp.eq.s32.totalorder %v275, %v3556
      %vm3575 = vcmp.eq.s32.totalorder %v275, %v3560
      %vm3576 = vcmp.eq.s32.totalorder %v275, %v3564
      %vm3577 = vcmp.eq.s32.totalorder %v276, %v3552
      %vm3578 = vcmp.eq.s32.totalorder %v276, %v3556
      %vm3579 = vcmp.eq.s32.totalorder %v276, %v3560
      %vm3580 = vcmp.eq.s32.totalorder %v276, %v3564
      %vm3581 = vcmp.eq.s32.totalorder %v277, %v3552
      %vm3582 = vcmp.eq.s32.totalorder %v277, %v3556
      %vm3583 = vcmp.eq.s32.totalorder %v277, %v3560
      %vm3584 = vcmp.eq.s32.totalorder %v277, %v3564
      %vm3585 = vcmp.eq.s32.totalorder %v278, %v3552
      %vm3586 = vcmp.eq.s32.totalorder %v278, %v3556
      %vm3587 = vcmp.eq.s32.totalorder %v278, %v3560
      %vm3588 = vcmp.eq.s32.totalorder %v278, %v3564
      %vm3589 = vcmp.eq.s32.totalorder %v279, %v3552
      %vm3590 = vcmp.eq.s32.totalorder %v279, %v3556
      %vm3591 = vcmp.eq.s32.totalorder %v279, %v3560
      %vm3592 = vcmp.eq.s32.totalorder %v279, %v3564
      %vm3593 = vcmp.eq.s32.totalorder %v280, %v3552
      %vm3594 = vcmp.eq.s32.totalorder %v280, %v3556
      %vm3595 = vcmp.eq.s32.totalorder %v280, %v3560
      %vm3596 = vcmp.eq.s32.totalorder %v280, %v3564
      %vm3597 = vcmp.eq.s32.totalorder %v281, %v3552
      %vm3598 = vcmp.eq.s32.totalorder %v281, %v3556
      %vm3599 = vcmp.eq.s32.totalorder %v281, %v3560
      %vm3600 = vcmp.eq.s32.totalorder %v281, %v3564
      %vm3601 = vcmp.eq.s32.totalorder %v282, %v3552
      %vm3602 = vcmp.eq.s32.totalorder %v282, %v3556
      %vm3603 = vcmp.eq.s32.totalorder %v282, %v3560
      %vm3604 = vcmp.eq.s32.totalorder %v282, %v3564
      %vm3605 = vcmp.eq.s32.totalorder %v283, %v3552
      %vm3606 = vcmp.eq.s32.totalorder %v283, %v3556
      %vm3607 = vcmp.eq.s32.totalorder %v283, %v3560
      %vm3608 = vcmp.eq.s32.totalorder %v283, %v3564
      %vm3609 = vcmp.eq.s32.totalorder %v284, %v3552
      %vm3610 = vcmp.eq.s32.totalorder %v284, %v3556
      %vm3611 = vcmp.eq.s32.totalorder %v284, %v3560
      %vm3612 = vcmp.eq.s32.totalorder %v284, %v3564
      %vm3613 = vcmp.eq.s32.totalorder %v285, %v3552
      %vm3614 = vcmp.eq.s32.totalorder %v285, %v3556
      %vm3615 = vcmp.eq.s32.totalorder %v285, %v3560
      %vm3616 = vcmp.eq.s32.totalorder %v285, %v3564
      %vm3617 = vcmp.eq.s32.totalorder %v286, %v3552
      %vm3618 = vcmp.eq.s32.totalorder %v286, %v3556
      %vm3619 = vcmp.eq.s32.totalorder %v286, %v3560
      %vm3620 = vcmp.eq.s32.totalorder %v286, %v3564
      %vm3621 = vcmp.eq.s32.totalorder %v287, %v3552
      %vm3622 = vcmp.eq.s32.totalorder %v287, %v3556
      %vm3623 = vcmp.eq.s32.totalorder %v287, %v3560
      %vm3624 = vcmp.eq.s32.totalorder %v287, %v3564
      %vm3625 = vcmp.eq.s32.totalorder %v288, %v3552
      %vm3626 = vcmp.eq.s32.totalorder %v288, %v3556
      %vm3627 = vcmp.eq.s32.totalorder %v288, %v3560
      %vm3628 = vcmp.eq.s32.totalorder %v288, %v3564
      %v3629 = vsel %vm3565, 1.0, 0.0
      %v3630 = vsel %vm3566, 1.0, 0.0
      %v3631 = vsel %vm3567, 1.0, 0.0
      %v3632 = vsel %vm3568, 1.0, 0.0
      %v3633 = vsel %vm3569, 1.0, 0.0
      %v3634 = vsel %vm3570, 1.0, 0.0
      %v3635 = vsel %vm3571, 1.0, 0.0
      %v3636 = vsel %vm3572, 1.0, 0.0
      %v3637 = vsel %vm3573, 1.0, 0.0
      %v3638 = vsel %vm3574, 1.0, 0.0
      %v3639 = vsel %vm3575, 1.0, 0.0
      %v3640 = vsel %vm3576, 1.0, 0.0
      %v3641 = vsel %vm3577, 1.0, 0.0
      %v3642 = vsel %vm3578, 1.0, 0.0
      %v3643 = vsel %vm3579, 1.0, 0.0
      %v3644 = vsel %vm3580, 1.0, 0.0
      %v3645 = vsel %vm3581, 1.0, 0.0
      %v3646 = vsel %vm3582, 1.0, 0.0
      %v3647 = vsel %vm3583, 1.0, 0.0
      %v3648 = vsel %vm3584, 1.0, 0.0
      %v3649 = vsel %vm3585, 1.0, 0.0
      %v3650 = vsel %vm3586, 1.0, 0.0
      %v3651 = vsel %vm3587, 1.0, 0.0
      %v3652 = vsel %vm3588, 1.0, 0.0
      %v3653 = vsel %vm3589, 1.0, 0.0
      %v3654 = vsel %vm3590, 1.0, 0.0
      %v3655 = vsel %vm3591, 1.0, 0.0
      %v3656 = vsel %vm3592, 1.0, 0.0
      %v3657 = vsel %vm3593, 1.0, 0.0
      %v3658 = vsel %vm3594, 1.0, 0.0
      %v3659 = vsel %vm3595, 1.0, 0.0
      %v3660 = vsel %vm3596, 1.0, 0.0
      %v3661 = vsel %vm3597, 1.0, 0.0
      %v3662 = vsel %vm3598, 1.0, 0.0
      %v3663 = vsel %vm3599, 1.0, 0.0
      %v3664 = vsel %vm3600, 1.0, 0.0
      %v3665 = vsel %vm3601, 1.0, 0.0
      %v3666 = vsel %vm3602, 1.0, 0.0
      %v3667 = vsel %vm3603, 1.0, 0.0
      %v3668 = vsel %vm3604, 1.0, 0.0
      %v3669 = vsel %vm3605, 1.0, 0.0
      %v3670 = vsel %vm3606, 1.0, 0.0
      %v3671 = vsel %vm3607, 1.0, 0.0
      %v3672 = vsel %vm3608, 1.0, 0.0
      %v3673 = vsel %vm3609, 1.0, 0.0
      %v3674 = vsel %vm3610, 1.0, 0.0
      %v3675 = vsel %vm3611, 1.0, 0.0
      %v3676 = vsel %vm3612, 1.0, 0.0
      %v3677 = vsel %vm3613, 1.0, 0.0
      %v3678 = vsel %vm3614, 1.0, 0.0
      %v3679 = vsel %vm3615, 1.0, 0.0
      %v3680 = vsel %vm3616, 1.0, 0.0
      %v3681 = vsel %vm3617, 1.0, 0.0
      %v3682 = vsel %vm3618, 1.0, 0.0
      %v3683 = vsel %vm3619, 1.0, 0.0
      %v3684 = vsel %vm3620, 1.0, 0.0
      %v3685 = vsel %vm3621, 1.0, 0.0
      %v3686 = vsel %vm3622, 1.0, 0.0
      %v3687 = vsel %vm3623, 1.0, 0.0
      %v3688 = vsel %vm3624, 1.0, 0.0
      %v3689 = vsel %vm3625, 1.0, 0.0
      %v3690 = vsel %vm3626, 1.0, 0.0
      %v3691 = vsel %vm3627, 1.0, 0.0
      %v3692 = vsel %vm3628, 1.0, 0.0
      %v3693 = vpack.c.bf16 %v3633, %v3629
      %v3694 = vpack.c.bf16 %v3634, %v3630
      %v3695 = vpack.c.bf16 %v3635, %v3631
      %v3696 = vpack.c.bf16 %v3636, %v3632
      %v3697 = vpack.c.bf16 %v3641, %v3637
      %v3698 = vpack.c.bf16 %v3642, %v3638
      %v3699 = vpack.c.bf16 %v3643, %v3639
      %v3700 = vpack.c.bf16 %v3644, %v3640
      %v3701 = vpack.c.bf16 %v3649, %v3645
      %v3702 = vpack.c.bf16 %v3650, %v3646
      %v3703 = vpack.c.bf16 %v3651, %v3647
      %v3704 = vpack.c.bf16 %v3652, %v3648
      %v3705 = vpack.c.bf16 %v3657, %v3653
      %v3706 = vpack.c.bf16 %v3658, %v3654
      %v3707 = vpack.c.bf16 %v3659, %v3655
      %v3708 = vpack.c.bf16 %v3660, %v3656
      %v3709 = vpack.c.bf16 %v3665, %v3661
      %v3710 = vpack.c.bf16 %v3666, %v3662
      %v3711 = vpack.c.bf16 %v3667, %v3663
      %v3712 = vpack.c.bf16 %v3668, %v3664
      %v3713 = vpack.c.bf16 %v3673, %v3669
      %v3714 = vpack.c.bf16 %v3674, %v3670
      %v3715 = vpack.c.bf16 %v3675, %v3671
      %v3716 = vpack.c.bf16 %v3676, %v3672
      %v3717 = vpack.c.bf16 %v3681, %v3677
      %v3718 = vpack.c.bf16 %v3682, %v3678
      %v3719 = vpack.c.bf16 %v3683, %v3679
      %v3720 = vpack.c.bf16 %v3684, %v3680
      %v3721 = vpack.c.bf16 %v3689, %v3685
      %v3722 = vpack.c.bf16 %v3690, %v3686
      %v3723 = vpack.c.bf16 %v3691, %v3687
      %v3724 = vpack.c.bf16 %v3692, %v3688
      %3725 = vmatprep.subr.bf16.mxu0 %v3694
      %3726 = vmatpush1.bf16.xpose.msra.mxu0 %v3693
      %3727 = vmatprep.subr.bf16.mxu0 %v3698
      %3728 = vmatpush1.bf16.xpose.msra.mxu0 %v3697
      %3729 = vmatprep.subr.bf16.mxu0 %v3702
      %3730 = vmatpush1.bf16.xpose.msra.mxu0 %v3701
      %3731 = vmatprep.subr.bf16.mxu0 %v3706
      %3732 = vmatpush1.bf16.xpose.msra.mxu0 %v3705
      %3733 = vmatprep.subr.bf16.mxu0 %v3710
      %3734 = vmatpush1.bf16.xpose.msra.mxu0 %v3709
      %3735 = vmatprep.subr.bf16.mxu0 %v3714
      %3736 = vmatpush1.bf16.xpose.msra.mxu0 %v3713
      %3737 = vmatprep.subr.bf16.mxu0 %v3718
      %3738 = vmatpush1.bf16.xpose.msra.mxu0 %v3717
      %3739 = vmatprep.subr.bf16.mxu0 %v3722
      %3740 = vmatpush1.bf16.xpose.msra.mxu0 %v3721
      %3741 = vmatprep.subr.bf16.mxu0 0
      %3742 = vmatpush1.bf16.xpose.msra.mxu0 0
      %3743 = vmatprep.subr.bf16.mxu0 0
      %3744 = vmatpush1.bf16.xpose.msra.mxu0 0
      %3745 = vmatprep.subr.bf16.mxu0 0
      %3746 = vmatpush1.bf16.xpose.msra.mxu0 0
      %3747 = vmatprep.subr.bf16.mxu0 0
      %3748 = vmatpush1.bf16.xpose.msra.mxu0 0
      %3749 = vmatprep.subr.bf16.mxu0 0
      %3750 = vmatpush1.bf16.xpose.msra.mxu0 0
      %3751 = vmatprep.subr.bf16.mxu0 0
      %3752 = vmatpush1.bf16.xpose.msra.mxu0 0
      %3753 = vmatprep.subr.bf16.mxu0 0
      %3754 = vmatpush1.bf16.xpose.msra.mxu0 0
      %3755 = vmatprep.subr.bf16.mxu0 0
      %3756 = vmatpush1.bf16.xpose.msra.mxu0 0
      %3757 = vmatprep.mubr.bf16.mxu0 %v3502
      %3758 = vmatmul.mubr.bf16.gmra.mrb[0].mxu0 %v3501
      %v3759 = vpop.f32.mrb[0].mxu0
      %v3760 = vadd.f32 %v691, %v3759
      %v3761 = vpop.f32.mrb[0].mxu0
      %v3762 = vpop.f32.mrb[0].mxu0
      %v3763 = vadd.f32 %v692, %v3762
      %v3764 = vpop.f32.mrb[0].mxu0
      %3765 = vmatprep.mubr.bf16.mxu0 %v3506
      %3766 = vmatmul.mubr.bf16.gmra.mrb[0].mxu0 %v3505
      %v3767 = vpop.f32.mrb[0].mxu0
      %v3768 = vadd.f32 %v693, %v3767
      %v3769 = vpop.f32.mrb[0].mxu0
      %v3770 = vpop.f32.mrb[0].mxu0
      %v3771 = vadd.f32 %v694, %v3770
      %v3772 = vpop.f32.mrb[0].mxu0
      %3773 = vmatprep.mubr.bf16.mxu0 %v3510
      %3774 = vmatmul.mubr.bf16.gmra.mrb[0].mxu0 %v3509
      %v3775 = vpop.f32.mrb[0].mxu0
      %v3776 = vadd.f32 %v695, %v3775
      %v3777 = vpop.f32.mrb[0].mxu0
      %v3778 = vpop.f32.mrb[0].mxu0
      %v3779 = vadd.f32 %v696, %v3778
      %v3780 = vpop.f32.mrb[0].mxu0
      %3781 = vmatprep.mubr.bf16.mxu0 %v3514
      %3782 = vmatmul.mubr.bf16.gmra.mrb[0].mxu0 %v3513
      %v3783 = vpop.f32.mrb[0].mxu0
      %v3784 = vadd.f32 %v697, %v3783
      %v3785 = vpop.f32.mrb[0].mxu0
      %v3786 = vpop.f32.mrb[0].mxu0
      %v3787 = vadd.f32 %v698, %v3786
      %v3788 = vpop.f32.mrb[0].mxu0
      %3789 = vmatprep.mubr.bf16.mxu0 %v3518
      %3790 = vmatmul.mubr.bf16.gmra.mrb[0].mxu0 %v3517
      %v3791 = vpop.f32.mrb[0].mxu0
      %v3792 = vadd.f32 %v699, %v3791
      %v3793 = vpop.f32.mrb[0].mxu0
      %v3794 = vpop.f32.mrb[0].mxu0
      %v3795 = vadd.f32 %v700, %v3794
      %v3796 = vpop.f32.mrb[0].mxu0
      %3797 = vmatprep.mubr.bf16.mxu0 %v3522
      %3798 = vmatmul.mubr.bf16.gmra.mrb[0].mxu0 %v3521
      %v3799 = vpop.f32.mrb[0].mxu0
      %v3800 = vadd.f32 %v701, %v3799
      %v3801 = vpop.f32.mrb[0].mxu0
      %v3802 = vpop.f32.mrb[0].mxu0
      %v3803 = vadd.f32 %v702, %v3802
      %v3804 = vpop.f32.mrb[0].mxu0
      %3805 = vmatprep.mubr.bf16.mxu0 %v3526
      %3806 = vmatmul.mubr.bf16.gmra.mrb[0].mxu0 %v3525
      %v3807 = vpop.f32.mrb[0].mxu0
      %v3808 = vadd.f32 %v703, %v3807
      %v3809 = vpop.f32.mrb[0].mxu0
      %v3810 = vpop.f32.mrb[0].mxu0
      %v3811 = vadd.f32 %v704, %v3810
      %v3812 = vpop.f32.mrb[0].mxu0
      %3813 = vmatprep.mubr.bf16.mxu0 %v3530
      %3814 = vmatmul.mubr.bf16.gmra.mrb[0].mxu0 %v3529
      %v3815 = vpop.f32.mrb[0].mxu0
      %v3816 = vadd.f32 %v705, %v3815
      %v3817 = vpop.f32.mrb[0].mxu0
      %v3818 = vpop.f32.mrb[0].mxu0
      %v3819 = vadd.f32 %v706, %v3818
      %v3820 = vpop.f32.mrb[0].mxu0
      %3821 = vdwg.mxu0
      %3822 = vmatprep.subr.bf16.mxu0 %v3696
      %3823 = vmatpush1.bf16.xpose.msra.mxu0 %v3695
      %3824 = vmatprep.subr.bf16.mxu0 %v3700
      %3825 = vmatpush1.bf16.xpose.msra.mxu0 %v3699
      %3826 = vmatprep.subr.bf16.mxu0 %v3704
      %3827 = vmatpush1.bf16.xpose.msra.mxu0 %v3703
      %3828 = vmatprep.subr.bf16.mxu0 %v3708
      %3829 = vmatpush1.bf16.xpose.msra.mxu0 %v3707
      %3830 = vmatprep.subr.bf16.mxu0 %v3712
      %3831 = vmatpush1.bf16.xpose.msra.mxu0 %v3711
      %3832 = vmatprep.subr.bf16.mxu0 %v3716
      %3833 = vmatpush1.bf16.xpose.msra.mxu0 %v3715
      %3834 = vmatprep.subr.bf16.mxu0 %v3720
      %3835 = vmatpush1.bf16.xpose.msra.mxu0 %v3719
      %3836 = vmatprep.subr.bf16.mxu0 %v3724
      %3837 = vmatpush1.bf16.xpose.msra.mxu0 %v3723
      %3838 = vmatprep.subr.bf16.mxu0 0
      %3839 = vmatpush1.bf16.xpose.msra.mxu0 0
      %3840 = vmatprep.subr.bf16.mxu0 0
      %3841 = vmatpush1.bf16.xpose.msra.mxu0 0
      %3842 = vmatprep.subr.bf16.mxu0 0
      %3843 = vmatpush1.bf16.xpose.msra.mxu0 0
      %3844 = vmatprep.subr.bf16.mxu0 0
      %3845 = vmatpush1.bf16.xpose.msra.mxu0 0
      %3846 = vmatprep.subr.bf16.mxu0 0
      %3847 = vmatpush1.bf16.xpose.msra.mxu0 0
      %3848 = vmatprep.subr.bf16.mxu0 0
      %3849 = vmatpush1.bf16.xpose.msra.mxu0 0
      %3850 = vmatprep.subr.bf16.mxu0 0
      %3851 = vmatpush1.bf16.xpose.msra.mxu0 0
      %3852 = vmatprep.subr.bf16.mxu0 0
      %3853 = vmatpush1.bf16.xpose.msra.mxu0 0
      %3854 = vmatprep.mubr.bf16.mxu0 %v3504
      %3855 = vmatmul.mubr.bf16.gmra.mrb[0].mxu0 %v3503
      %v3856 = vpop.f32.mrb[0].mxu0
      %v3857 = vadd.f32 %v3760, %v3856
      %v3858 = vpop.f32.mrb[0].mxu0
      %v3859 = vpop.f32.mrb[0].mxu0
      %v3860 = vadd.f32 %v3763, %v3859
      %v3861 = vpop.f32.mrb[0].mxu0
      %3862 = vmatprep.mubr.bf16.mxu0 %v3508
      %3863 = vmatmul.mubr.bf16.gmra.mrb[0].mxu0 %v3507
      %v3864 = vpop.f32.mrb[0].mxu0
      %v3865 = vadd.f32 %v3768, %v3864
      %v3866 = vpop.f32.mrb[0].mxu0
      %v3867 = vpop.f32.mrb[0].mxu0
      %v3868 = vadd.f32 %v3771, %v3867
      %v3869 = vpop.f32.mrb[0].mxu0
      %3870 = vmatprep.mubr.bf16.mxu0 %v3512
      %3871 = vmatmul.mubr.bf16.gmra.mrb[0].mxu0 %v3511
      %v3872 = vpop.f32.mrb[0].mxu0
      %v3873 = vadd.f32 %v3776, %v3872
      %v3874 = vpop.f32.mrb[0].mxu0
      %v3875 = vpop.f32.mrb[0].mxu0
      %v3876 = vadd.f32 %v3779, %v3875
      %v3877 = vpop.f32.mrb[0].mxu0
      %3878 = vmatprep.mubr.bf16.mxu0 %v3516
      %3879 = vmatmul.mubr.bf16.gmra.mrb[0].mxu0 %v3515
      %v3880 = vpop.f32.mrb[0].mxu0
      %v3881 = vadd.f32 %v3784, %v3880
      %v3882 = vpop.f32.mrb[0].mxu0
      %v3883 = vpop.f32.mrb[0].mxu0
      %v3884 = vadd.f32 %v3787, %v3883
      %v3885 = vpop.f32.mrb[0].mxu0
      %3886 = vmatprep.mubr.bf16.mxu0 %v3520
      %3887 = vmatmul.mubr.bf16.gmra.mrb[0].mxu0 %v3519
      %v3888 = vpop.f32.mrb[0].mxu0
      %v3889 = vadd.f32 %v3792, %v3888
      %v3890 = vpop.f32.mrb[0].mxu0
      %v3891 = vpop.f32.mrb[0].mxu0
      %v3892 = vadd.f32 %v3795, %v3891
      %v3893 = vpop.f32.mrb[0].mxu0
      %3894 = vmatprep.mubr.bf16.mxu0 %v3524
      %3895 = vmatmul.mubr.bf16.gmra.mrb[0].mxu0 %v3523
      %v3896 = vpop.f32.mrb[0].mxu0
      %v3897 = vadd.f32 %v3800, %v3896
      %v3898 = vpop.f32.mrb[0].mxu0
      %v3899 = vpop.f32.mrb[0].mxu0
      %v3900 = vadd.f32 %v3803, %v3899
      %v3901 = vpop.f32.mrb[0].mxu0
      %3902 = vmatprep.mubr.bf16.mxu0 %v3528
      %3903 = vmatmul.mubr.bf16.gmra.mrb[0].mxu0 %v3527
      %v3904 = vpop.f32.mrb[0].mxu0
      %v3905 = vadd.f32 %v3808, %v3904
      %v3906 = vpop.f32.mrb[0].mxu0
      %v3907 = vpop.f32.mrb[0].mxu0
      %v3908 = vadd.f32 %v3811, %v3907
      %v3909 = vpop.f32.mrb[0].mxu0
      %3910 = vmatprep.mubr.bf16.mxu0 %v3532
      %3911 = vmatmul.mubr.bf16.gmra.mrb[0].mxu0 %v3531
      %v3912 = vpop.f32.mrb[0].mxu0
      %v3913 = vadd.f32 %v3816, %v3912
      %v3914 = vpop.f32.mrb[0].mxu0
      %v3915 = vpop.f32.mrb[0].mxu0
      %v3916 = vadd.f32 %v3819, %v3915
      %v3917 = vpop.f32.mrb[0].mxu0
      %3918 = vdwg.mxu0
      %3919 = vadd.xlane.f32.xlu0 %v3857
      %v3920 = vpop.xlane.xlu0 %3919
      %3921 = vadd.xlane.f32.xlu0 %v3860
      %v3922 = vpop.xlane.xlu0 %3921
      %3923 = vadd.xlane.f32.xlu0 %v3865
      %v3924 = vpop.xlane.xlu0 %3923
      %3925 = vadd.xlane.f32.xlu0 %v3868
      %v3926 = vpop.xlane.xlu0 %3925
      %3927 = vadd.xlane.f32.xlu0 %v3873
      %v3928 = vpop.xlane.xlu0 %3927
      %3929 = vadd.xlane.f32.xlu0 %v3876
      %v3930 = vpop.xlane.xlu0 %3929
      %3931 = vadd.xlane.f32.xlu0 %v3881
      %v3932 = vpop.xlane.xlu0 %3931
      %3933 = vadd.xlane.f32.xlu0 %v3884
      %v3934 = vpop.xlane.xlu0 %3933
      %3935 = vadd.xlane.f32.xlu0 %v3889
      %v3936 = vpop.xlane.xlu0 %3935
      %3937 = vadd.xlane.f32.xlu0 %v3892
      %v3938 = vpop.xlane.xlu0 %3937
      %3939 = vadd.xlane.f32.xlu0 %v3897
      %v3940 = vpop.xlane.xlu0 %3939
      %3941 = vadd.xlane.f32.xlu0 %v3900
      %v3942 = vpop.xlane.xlu0 %3941
      %3943 = vadd.xlane.f32.xlu0 %v3905
      %v3944 = vpop.xlane.xlu0 %3943
      %3945 = vadd.xlane.f32.xlu0 %v3908
      %v3946 = vpop.xlane.xlu0 %3945
      %3947 = vadd.xlane.f32.xlu0 %v3913
      %v3948 = vpop.xlane.xlu0 %3947
      %3949 = vadd.xlane.f32.xlu0 %v3916
      %v3950 = vpop.xlane.xlu0 %3949
      %v3951 = vrsqrt.pop %v3920
      %v3952 = vrsqrt.pop %v3922
      %v3953 = vrsqrt.pop %v3924
      %v3954 = vrsqrt.pop %v3926
      %v3955 = vrsqrt.pop %v3928
      %v3956 = vrsqrt.pop %v3930
      %v3957 = vrsqrt.pop %v3932
      %v3958 = vrsqrt.pop %v3934
      %v3959 = vrsqrt.pop %v3936
      %v3960 = vrsqrt.pop %v3938
      %v3961 = vrsqrt.pop %v3940
      %v3962 = vrsqrt.pop %v3942
      %v3963 = vrsqrt.pop %v3944
      %v3964 = vrsqrt.pop %v3946
      %v3965 = vrsqrt.pop %v3948
      %v3966 = vrsqrt.pop %v3950
      %v3967 = vmul.f32 %v3951, %v3857
      %v3968 = vmul.f32 %v3952, %v3860
      %v3969 = vmul.f32 %v3953, %v3865
      %v3970 = vmul.f32 %v3954, %v3868
      %v3971 = vmul.f32 %v3955, %v3873
      %v3972 = vmul.f32 %v3956, %v3876
      %v3973 = vmul.f32 %v3957, %v3881
      %v3974 = vmul.f32 %v3958, %v3884
      %v3975 = vmul.f32 %v3959, %v3889
      %v3976 = vmul.f32 %v3960, %v3892
      %v3977 = vmul.f32 %v3961, %v3897
      %v3978 = vmul.f32 %v3962, %v3900
      %v3979 = vmul.f32 %v3963, %v3905
      %v3980 = vmul.f32 %v3964, %v3908
      %v3981 = vmul.f32 %v3965, %v3913
      %v3982 = vmul.f32 %v3966, %v3916
      %v3983 = vpack.c.bf16 %v3968, %v3967
      %v3984 = vpack.c.bf16 %v3970, %v3969
      %v3985 = vpack.c.bf16 %v3972, %v3971
      %v3986 = vpack.c.bf16 %v3974, %v3973
      %v3987 = vpack.c.bf16 %v3976, %v3975
      %v3988 = vpack.c.bf16 %v3978, %v3977
      %v3989 = vpack.c.bf16 %v3980, %v3979
      %v3990 = vpack.c.bf16 %v3982, %v3981
      %s3991 = scalar_lea.vmem %s222, 128
      %v3992 = vld [vmem:[%s3991] sm:$0xf]
      %v3993 = vld [vmem:[%s3991 + $0x4] sm:$0xf]
      %v3994 = vld [vmem:[%s3991 + $0x8] sm:$0xf]
      %v3995 = vld [vmem:[%s3991 + $0xc] sm:$0xf]
      %v3996 = vld [vmem:[%s3991 + $0x10] sm:$0xf]
      %v3997 = vld [vmem:[%s3991 + $0x14] sm:$0xf]
      %v3998 = vld [vmem:[%s3991 + $0x18] sm:$0xf]
      %v3999 = vld [vmem:[%s3991 + $0x1c] sm:$0xf]
      %v4000 = vld [vmem:[%s3991 + $0x20] sm:$0xf]
      %v4001 = vld [vmem:[%s3991 + $0x24] sm:$0xf]
      %v4002 = vld [vmem:[%s3991 + $0x28] sm:$0xf]
      %v4003 = vld [vmem:[%s3991 + $0x2c] sm:$0xf]
      %v4004 = vld [vmem:[%s3991 + $0x30] sm:$0xf]
      %v4005 = vld [vmem:[%s3991 + $0x34] sm:$0xf]
      %v4006 = vld [vmem:[%s3991 + $0x38] sm:$0xf]
      %v4007 = vld [vmem:[%s3991 + $0x3c] sm:$0xf]
      %v4024 = vunpack.c.l.b16 %v3992
      %v4025 = vunpack.c.l.b16 %v3993
      %v4026 = vunpack.c.l.b16 %v3994
      %v4027 = vunpack.c.l.b16 %v3995
      %v4028 = vunpack.c.l.b16 %v3996
      %v4029 = vunpack.c.l.b16 %v3997
      %v4030 = vunpack.c.l.b16 %v3998
      %v4031 = vunpack.c.l.b16 %v3999
      %v4032 = vunpack.c.l.b16 %v4000
      %v4033 = vunpack.c.l.b16 %v4001
      %v4034 = vunpack.c.l.b16 %v4002
      %v4035 = vunpack.c.l.b16 %v4003
      %v4036 = vunpack.c.l.b16 %v4004
      %v4037 = vunpack.c.l.b16 %v4005
      %v4038 = vunpack.c.l.b16 %v4006
      %v4039 = vunpack.c.l.b16 %v4007
      %v4040 = vpack.c.b16 %v4025, %v4024
      %v4041 = vpack.c.b16 %v4027, %v4026
      %v4042 = vpack.c.b16 %v4029, %v4028
      %v4043 = vpack.c.b16 %v4031, %v4030
      %v4044 = vpack.c.b16 %v4033, %v4032
      %v4045 = vpack.c.b16 %v4035, %v4034
      %v4046 = vpack.c.b16 %v4037, %v4036
      %v4047 = vpack.c.b16 %v4039, %v4038
      %v4049 = vsel %vm1035, %v4040, 0
      %v4052 = vsel %vm1035, %v4041, 0
      %v4055 = vsel %vm1035, %v4042, 0
      %v4058 = vsel %vm1035, %v4043, 0
      %v4061 = vsel %vm1035, %v4044, 0
      %v4064 = vsel %vm1035, %v4045, 0
      %v4067 = vsel %vm1035, %v4046, 0
      %v4070 = vsel %vm1035, %v4047, 0
      %4072 = vmatprep.subr.bf16.mxu0 0
      %4073 = vmatpush1.bf16.msra.mxu0 %v1033
      %4074 = vmatprep.subr.bf16.mxu0 0
      %4075 = vmatpush1.bf16.msra.mxu0 0
      %4076 = vmatprep.subr.bf16.mxu0 0
      %4077 = vmatpush1.bf16.msra.mxu0 0
      %4078 = vmatprep.subr.bf16.mxu0 0
      %4079 = vmatpush1.bf16.msra.mxu0 0
      %4080 = vmatprep.subr.bf16.mxu0 0
      %4081 = vmatpush1.bf16.msra.mxu0 0
      %4082 = vmatprep.subr.bf16.mxu0 0
      %4083 = vmatpush1.bf16.msra.mxu0 0
      %4084 = vmatprep.subr.bf16.mxu0 0
      %4085 = vmatpush1.bf16.msra.mxu0 0
      %4086 = vmatprep.subr.bf16.mxu0 0
      %4087 = vmatpush1.bf16.msra.mxu0 0
      %4088 = vmatprep.subr.bf16.mxu0 0
      %4089 = vmatpush1.bf16.msra.mxu0 0
      %4090 = vmatprep.subr.bf16.mxu0 0
      %4091 = vmatpush1.bf16.msra.mxu0 0
      %4092 = vmatprep.subr.bf16.mxu0 0
      %4093 = vmatpush1.bf16.msra.mxu0 0
      %4094 = vmatprep.subr.bf16.mxu0 0
      %4095 = vmatpush1.bf16.msra.mxu0 0
      %4096 = vmatprep.subr.bf16.mxu0 0
      %4097 = vmatpush1.bf16.msra.mxu0 0
      %4098 = vmatprep.subr.bf16.mxu0 0
      %4099 = vmatpush1.bf16.msra.mxu0 0
      %4100 = vmatprep.subr.bf16.mxu0 0
      %4101 = vmatpush1.bf16.msra.mxu0 0
      %4102 = vmatprep.subr.bf16.mxu0 0
      %4103 = vmatpush1.bf16.msra.mxu0 0
      %4104 = vmatprep.mubr.bf16.mxu0 0
      %4105 = vmatmul.mubr.bf16.gmra.mrb[0].mxu0 %v4049
      %v4106 = vpop.f32.mrb[0].mxu0
      %v4107 = vadd.f32 0.0, %v4106
      %v4108 = vpop.f32.mrb[0].mxu0
      %v4109 = vpop.f32.mrb[0].mxu0
      %v4110 = vadd.f32 0.0, %v4109
      %v4111 = vpop.f32.mrb[0].mxu0
      %4112 = vmatprep.mubr.bf16.mxu0 0
      %4113 = vmatmul.mubr.bf16.gmra.mrb[0].mxu0 %v4052
      %v4114 = vpop.f32.mrb[0].mxu0
      %v4115 = vadd.f32 0.0, %v4114
      %v4116 = vpop.f32.mrb[0].mxu0
      %v4117 = vpop.f32.mrb[0].mxu0
      %v4118 = vadd.f32 0.0, %v4117
      %v4119 = vpop.f32.mrb[0].mxu0
      %4120 = vmatprep.mubr.bf16.mxu0 0
      %4121 = vmatmul.mubr.bf16.gmra.mrb[0].mxu0 %v4055
      %v4122 = vpop.f32.mrb[0].mxu0
      %v4123 = vadd.f32 0.0, %v4122
      %v4124 = vpop.f32.mrb[0].mxu0
      %v4125 = vpop.f32.mrb[0].mxu0
      %v4126 = vadd.f32 0.0, %v4125
      %v4127 = vpop.f32.mrb[0].mxu0
      %4128 = vmatprep.mubr.bf16.mxu0 0
      %4129 = vmatmul.mubr.bf16.gmra.mrb[0].mxu0 %v4058
      %v4130 = vpop.f32.mrb[0].mxu0
      %v4131 = vadd.f32 0.0, %v4130
      %v4132 = vpop.f32.mrb[0].mxu0
      %v4133 = vpop.f32.mrb[0].mxu0
      %v4134 = vadd.f32 0.0, %v4133
      %v4135 = vpop.f32.mrb[0].mxu0
      %4136 = vmatprep.mubr.bf16.mxu0 0
      %4137 = vmatmul.mubr.bf16.gmra.mrb[0].mxu0 %v4061
      %v4138 = vpop.f32.mrb[0].mxu0
      %v4139 = vadd.f32 0.0, %v4138
      %v4140 = vpop.f32.mrb[0].mxu0
      %v4141 = vpop.f32.mrb[0].mxu0
      %v4142 = vadd.f32 0.0, %v4141
      %v4143 = vpop.f32.mrb[0].mxu0
      %4144 = vmatprep.mubr.bf16.mxu0 0
      %4145 = vmatmul.mubr.bf16.gmra.mrb[0].mxu0 %v4064
      %v4146 = vpop.f32.mrb[0].mxu0
      %v4147 = vadd.f32 0.0, %v4146
      %v4148 = vpop.f32.mrb[0].mxu0
      %v4149 = vpop.f32.mrb[0].mxu0
      %v4150 = vadd.f32 0.0, %v4149
      %v4151 = vpop.f32.mrb[0].mxu0
      %4152 = vmatprep.mubr.bf16.mxu0 0
      %4153 = vmatmul.mubr.bf16.gmra.mrb[0].mxu0 %v4067
      %v4154 = vpop.f32.mrb[0].mxu0
      %v4155 = vadd.f32 0.0, %v4154
      %v4156 = vpop.f32.mrb[0].mxu0
      %v4157 = vpop.f32.mrb[0].mxu0
      %v4158 = vadd.f32 0.0, %v4157
      %v4159 = vpop.f32.mrb[0].mxu0
      %4160 = vmatprep.mubr.bf16.mxu0 0
      %4161 = vmatmul.mubr.bf16.gmra.mrb[0].mxu0 %v4070
      %v4162 = vpop.f32.mrb[0].mxu0
      %v4163 = vadd.f32 0.0, %v4162
      %v4164 = vpop.f32.mrb[0].mxu0
      %v4165 = vpop.f32.mrb[0].mxu0
      %v4166 = vadd.f32 0.0, %v4165
      %v4167 = vpop.f32.mrb[0].mxu0
      %4168 = vdwg.mxu0
      %v4169 = vmul.f32 %v3951, %v4107
      %v4170 = vmul.f32 %v3952, %v4110
      %v4171 = vmul.f32 %v3953, %v4115
      %v4172 = vmul.f32 %v3954, %v4118
      %v4173 = vmul.f32 %v3955, %v4123
      %v4174 = vmul.f32 %v3956, %v4126
      %v4175 = vmul.f32 %v3957, %v4131
      %v4176 = vmul.f32 %v3958, %v4134
      %v4177 = vmul.f32 %v3959, %v4139
      %v4178 = vmul.f32 %v3960, %v4142
      %v4179 = vmul.f32 %v3961, %v4147
      %v4180 = vmul.f32 %v3962, %v4150
      %v4181 = vmul.f32 %v3963, %v4155
      %v4182 = vmul.f32 %v3964, %v4158
      %v4183 = vmul.f32 %v3965, %v4163
      %v4184 = vmul.f32 %v3966, %v4166
      %v4185 = vpack.c.bf16 %v4170, %v4169
      %v4186 = vpack.c.bf16 %v4172, %v4171
      %v4187 = vpack.c.bf16 %v4174, %v4173
      %v4188 = vpack.c.bf16 %v4176, %v4175
      %v4189 = vpack.c.bf16 %v4178, %v4177
      %v4190 = vpack.c.bf16 %v4180, %v4179
      %v4191 = vpack.c.bf16 %v4182, %v4181
      %v4192 = vpack.c.bf16 %v4184, %v4183
      %4193 = vmatprep.subr.bf16.mxu0 0
      %4194 = vmatpush1.bf16.msra.mxu0 %v4185
      %4195 = vmatprep.subr.bf16.mxu0 0
      %4196 = vmatpush1.bf16.msra.mxu0 %v4186
      %4197 = vmatprep.subr.bf16.mxu0 0
      %4198 = vmatpush1.bf16.msra.mxu0 %v4187
      %4199 = vmatprep.subr.bf16.mxu0 0
      %4200 = vmatpush1.bf16.msra.mxu0 %v4188
      %4201 = vmatprep.subr.bf16.mxu0 0
      %4202 = vmatpush1.bf16.msra.mxu0 %v4189
      %4203 = vmatprep.subr.bf16.mxu0 0
      %4204 = vmatpush1.bf16.msra.mxu0 %v4190
      %4205 = vmatprep.subr.bf16.mxu0 0
      %4206 = vmatpush1.bf16.msra.mxu0 %v4191
      %4207 = vmatprep.subr.bf16.mxu0 0
      %4208 = vmatpush1.bf16.msra.mxu0 %v4192
      %4209 = vmatprep.subr.bf16.mxu0 0
      %4210 = vmatpush1.bf16.msra.mxu0 0
      %4211 = vmatprep.subr.bf16.mxu0 0
      %4212 = vmatpush1.bf16.msra.mxu0 0
      %4213 = vmatprep.subr.bf16.mxu0 0
      %4214 = vmatpush1.bf16.msra.mxu0 0
      %4215 = vmatprep.subr.bf16.mxu0 0
      %4216 = vmatpush1.bf16.msra.mxu0 0
      %4217 = vmatprep.subr.bf16.mxu0 0
      %4218 = vmatpush1.bf16.msra.mxu0 0
      %4219 = vmatprep.subr.bf16.mxu0 0
      %4220 = vmatpush1.bf16.msra.mxu0 0
      %4221 = vmatprep.subr.bf16.mxu0 0
      %4222 = vmatpush1.bf16.msra.mxu0 0
      %4223 = vmatprep.subr.bf16.mxu0 0
      %4224 = vmatpush1.bf16.msra.mxu0 0
      %4225 = vmatprep.mubr.bf16.mxu0 0
      %4226 = vmatmul.mubr.bf16.gmra.mrb[0].mxu0 %v3983
      %v4227 = vpop.f32.mrb[0].mxu0
      %v4228 = vadd.f32 %v1184, %v4227
      %v4229 = vpop.f32.mrb[0].mxu0
      %v4230 = vpop.f32.mrb[0].mxu0
      %v4231 = vadd.f32 %v1184, %v4230
      %v4232 = vpop.f32.mrb[0].mxu0
      %4233 = vmatprep.mubr.bf16.mxu0 0
      %4234 = vmatmul.mubr.bf16.gmra.mrb[0].mxu0 %v3984
      %v4235 = vpop.f32.mrb[0].mxu0
      %v4236 = vadd.f32 %v1184, %v4235
      %v4237 = vpop.f32.mrb[0].mxu0
      %v4238 = vpop.f32.mrb[0].mxu0
      %v4239 = vadd.f32 %v1184, %v4238
      %v4240 = vpop.f32.mrb[0].mxu0
      %4241 = vmatprep.mubr.bf16.mxu0 0
      %4242 = vmatmul.mubr.bf16.gmra.mrb[0].mxu0 %v3985
      %v4243 = vpop.f32.mrb[0].mxu0
      %v4244 = vadd.f32 %v1184, %v4243
      %v4245 = vpop.f32.mrb[0].mxu0
      %v4246 = vpop.f32.mrb[0].mxu0
      %v4247 = vadd.f32 %v1184, %v4246
      %v4248 = vpop.f32.mrb[0].mxu0
      %4249 = vmatprep.mubr.bf16.mxu0 0
      %4250 = vmatmul.mubr.bf16.gmra.mrb[0].mxu0 %v3986
      %v4251 = vpop.f32.mrb[0].mxu0
      %v4252 = vadd.f32 %v1184, %v4251
      %v4253 = vpop.f32.mrb[0].mxu0
      %v4254 = vpop.f32.mrb[0].mxu0
      %v4255 = vadd.f32 %v1184, %v4254
      %v4256 = vpop.f32.mrb[0].mxu0
      %4257 = vmatprep.mubr.bf16.mxu0 0
      %4258 = vmatmul.mubr.bf16.gmra.mrb[0].mxu0 %v3987
      %v4259 = vpop.f32.mrb[0].mxu0
      %v4260 = vadd.f32 %v1184, %v4259
      %v4261 = vpop.f32.mrb[0].mxu0
      %v4262 = vpop.f32.mrb[0].mxu0
      %v4263 = vadd.f32 %v1184, %v4262
      %v4264 = vpop.f32.mrb[0].mxu0
      %4265 = vmatprep.mubr.bf16.mxu0 0
      %4266 = vmatmul.mubr.bf16.gmra.mrb[0].mxu0 %v3988
      %v4267 = vpop.f32.mrb[0].mxu0
      %v4268 = vadd.f32 %v1184, %v4267
      %v4269 = vpop.f32.mrb[0].mxu0
      %v4270 = vpop.f32.mrb[0].mxu0
      %v4271 = vadd.f32 %v1184, %v4270
      %v4272 = vpop.f32.mrb[0].mxu0
      %4273 = vmatprep.mubr.bf16.mxu0 0
      %4274 = vmatmul.mubr.bf16.gmra.mrb[0].mxu0 %v3989
      %v4275 = vpop.f32.mrb[0].mxu0
      %v4276 = vadd.f32 %v1184, %v4275
      %v4277 = vpop.f32.mrb[0].mxu0
      %v4278 = vpop.f32.mrb[0].mxu0
      %v4279 = vadd.f32 %v1184, %v4278
      %v4280 = vpop.f32.mrb[0].mxu0
      %4281 = vmatprep.mubr.bf16.mxu0 0
      %4282 = vmatmul.mubr.bf16.gmra.mrb[0].mxu0 %v3990
      %v4283 = vpop.f32.mrb[0].mxu0
      %v4284 = vadd.f32 %v1184, %v4283
      %v4285 = vpop.f32.mrb[0].mxu0
      %v4286 = vpop.f32.mrb[0].mxu0
      %v4287 = vadd.f32 %v1184, %v4286
      %v4288 = vpop.f32.mrb[0].mxu0
      %4289 = vdwg.mxu0
      %v4290 = vmax.f32 %v4228, 0.0
      %v4291 = vmax.f32 %v4231, 0.0
      %v4292 = vmax.f32 %v4236, 0.0
      %v4293 = vmax.f32 %v4239, 0.0
      %v4294 = vmax.f32 %v4244, 0.0
      %v4295 = vmax.f32 %v4247, 0.0
      %v4296 = vmax.f32 %v4252, 0.0
      %v4297 = vmax.f32 %v4255, 0.0
      %v4298 = vmax.f32 %v4260, 0.0
      %v4299 = vmax.f32 %v4263, 0.0
      %v4300 = vmax.f32 %v4268, 0.0
      %v4301 = vmax.f32 %v4271, 0.0
      %v4302 = vmax.f32 %v4276, 0.0
      %v4303 = vmax.f32 %v4279, 0.0
      %v4304 = vmax.f32 %v4284, 0.0
      %v4305 = vmax.f32 %v4287, 0.0
      %v4306 = vpack.c.bf16 %v4291, %v4290
      %v4307 = vpack.c.bf16 %v4293, %v4292
      %v4308 = vpack.c.bf16 %v4295, %v4294
      %v4309 = vpack.c.bf16 %v4297, %v4296
      %v4310 = vpack.c.bf16 %v4299, %v4298
      %v4311 = vpack.c.bf16 %v4301, %v4300
      %v4312 = vpack.c.bf16 %v4303, %v4302
      %v4313 = vpack.c.bf16 %v4305, %v4304
      %4314 = vmatprep.subr.bf16.mxu0 0
      %4315 = vmatpush1.bf16.msra.mxu0 %v1338
      %4316 = vmatprep.subr.bf16.mxu0 0
      %4317 = vmatpush1.bf16.msra.mxu0 %v1339
      %4318 = vmatprep.subr.bf16.mxu0 0
      %4319 = vmatpush1.bf16.msra.mxu0 %v1340
      %4320 = vmatprep.subr.bf16.mxu0 0
      %4321 = vmatpush1.bf16.msra.mxu0 %v1341
      %4322 = vmatprep.subr.bf16.mxu0 0
      %4323 = vmatpush1.bf16.msra.mxu0 %v1342
      %4324 = vmatprep.subr.bf16.mxu0 0
      %4325 = vmatpush1.bf16.msra.mxu0 %v1343
      %4326 = vmatprep.subr.bf16.mxu0 0
      %4327 = vmatpush1.bf16.msra.mxu0 %v1344
      %4328 = vmatprep.subr.bf16.mxu0 0
      %4329 = vmatpush1.bf16.msra.mxu0 %v1345
      %4330 = vmatprep.subr.bf16.mxu0 0
      %4331 = vmatpush1.bf16.msra.mxu0 0
      %4332 = vmatprep.subr.bf16.mxu0 0
      %4333 = vmatpush1.bf16.msra.mxu0 0
      %4334 = vmatprep.subr.bf16.mxu0 0
      %4335 = vmatpush1.bf16.msra.mxu0 0
      %4336 = vmatprep.subr.bf16.mxu0 0
      %4337 = vmatpush1.bf16.msra.mxu0 0
      %4338 = vmatprep.subr.bf16.mxu0 0
      %4339 = vmatpush1.bf16.msra.mxu0 0
      %4340 = vmatprep.subr.bf16.mxu0 0
      %4341 = vmatpush1.bf16.msra.mxu0 0
      %4342 = vmatprep.subr.bf16.mxu0 0
      %4343 = vmatpush1.bf16.msra.mxu0 0
      %4344 = vmatprep.subr.bf16.mxu0 0
      %4345 = vmatpush1.bf16.msra.mxu0 0
      %4346 = vmatprep.mubr.bf16.mxu0 0
      %4347 = vmatmul.mubr.bf16.gmra.mrb[0].mxu0 %v4306
      %v4348 = vpop.f32.mrb[0].mxu0
      %v4349 = vadd.f32 0.0, %v4348
      %v4350 = vpop.f32.mrb[0].mxu0
      %v4351 = vpop.f32.mrb[0].mxu0
      %v4352 = vadd.f32 0.0, %v4351
      %v4353 = vpop.f32.mrb[0].mxu0
      %4354 = vmatprep.mubr.bf16.mxu0 0
      %4355 = vmatmul.mubr.bf16.gmra.mrb[0].mxu0 %v4307
      %v4356 = vpop.f32.mrb[0].mxu0
      %v4357 = vadd.f32 0.0, %v4356
      %v4358 = vpop.f32.mrb[0].mxu0
      %v4359 = vpop.f32.mrb[0].mxu0
      %v4360 = vadd.f32 0.0, %v4359
      %v4361 = vpop.f32.mrb[0].mxu0
      %4362 = vmatprep.mubr.bf16.mxu0 0
      %4363 = vmatmul.mubr.bf16.gmra.mrb[0].mxu0 %v4308
      %v4364 = vpop.f32.mrb[0].mxu0
      %v4365 = vadd.f32 0.0, %v4364
      %v4366 = vpop.f32.mrb[0].mxu0
      %v4367 = vpop.f32.mrb[0].mxu0
      %v4368 = vadd.f32 0.0, %v4367
      %v4369 = vpop.f32.mrb[0].mxu0
      %4370 = vmatprep.mubr.bf16.mxu0 0
      %4371 = vmatmul.mubr.bf16.gmra.mrb[0].mxu0 %v4309
      %v4372 = vpop.f32.mrb[0].mxu0
      %v4373 = vadd.f32 0.0, %v4372
      %v4374 = vpop.f32.mrb[0].mxu0
      %v4375 = vpop.f32.mrb[0].mxu0
      %v4376 = vadd.f32 0.0, %v4375
      %v4377 = vpop.f32.mrb[0].mxu0
      %4378 = vmatprep.mubr.bf16.mxu0 0
      %4379 = vmatmul.mubr.bf16.gmra.mrb[0].mxu0 %v4310
      %v4380 = vpop.f32.mrb[0].mxu0
      %v4381 = vadd.f32 0.0, %v4380
      %v4382 = vpop.f32.mrb[0].mxu0
      %v4383 = vpop.f32.mrb[0].mxu0
      %v4384 = vadd.f32 0.0, %v4383
      %v4385 = vpop.f32.mrb[0].mxu0
      %4386 = vmatprep.mubr.bf16.mxu0 0
      %4387 = vmatmul.mubr.bf16.gmra.mrb[0].mxu0 %v4311
      %v4388 = vpop.f32.mrb[0].mxu0
      %v4389 = vadd.f32 0.0, %v4388
      %v4390 = vpop.f32.mrb[0].mxu0
      %v4391 = vpop.f32.mrb[0].mxu0
      %v4392 = vadd.f32 0.0, %v4391
      %v4393 = vpop.f32.mrb[0].mxu0
      %4394 = vmatprep.mubr.bf16.mxu0 0
      %4395 = vmatmul.mubr.bf16.gmra.mrb[0].mxu0 %v4312
      %v4396 = vpop.f32.mrb[0].mxu0
      %v4397 = vadd.f32 0.0, %v4396
      %v4398 = vpop.f32.mrb[0].mxu0
      %v4399 = vpop.f32.mrb[0].mxu0
      %v4400 = vadd.f32 0.0, %v4399
      %v4401 = vpop.f32.mrb[0].mxu0
      %4402 = vmatprep.mubr.bf16.mxu0 0
      %4403 = vmatmul.mubr.bf16.gmra.mrb[0].mxu0 %v4313
      %v4404 = vpop.f32.mrb[0].mxu0
      %v4405 = vadd.f32 0.0, %v4404
      %v4406 = vpop.f32.mrb[0].mxu0
      %v4407 = vpop.f32.mrb[0].mxu0
      %v4408 = vadd.f32 0.0, %v4407
      %v4409 = vpop.f32.mrb[0].mxu0
      %4410 = vdwg.mxu0
      %v4411 = vmul.f32 %v3951, %v4349
      %v4412 = vmul.f32 %v3952, %v4352
      %v4413 = vmul.f32 %v3953, %v4357
      %v4414 = vmul.f32 %v3954, %v4360
      %v4415 = vmul.f32 %v3955, %v4365
      %v4416 = vmul.f32 %v3956, %v4368
      %v4417 = vmul.f32 %v3957, %v4373
      %v4418 = vmul.f32 %v3958, %v4376
      %v4419 = vmul.f32 %v3959, %v4381
      %v4420 = vmul.f32 %v3960, %v4384
      %v4421 = vmul.f32 %v3961, %v4389
      %v4422 = vmul.f32 %v3962, %v4392
      %v4423 = vmul.f32 %v3963, %v4397
      %v4424 = vmul.f32 %v3964, %v4400
      %v4425 = vmul.f32 %v3965, %v4405
      %v4426 = vmul.f32 %v3966, %v4408
      %v4427 = vpack.c.bf16 %v4412, %v4411
      %v4428 = vpack.c.bf16 %v4414, %v4413
      %v4429 = vpack.c.bf16 %v4416, %v4415
      %v4430 = vpack.c.bf16 %v4418, %v4417
      %v4431 = vpack.c.bf16 %v4420, %v4419
      %v4432 = vpack.c.bf16 %v4422, %v4421
      %v4433 = vpack.c.bf16 %v4424, %v4423
      %v4434 = vpack.c.bf16 %v4426, %v4425
      %4435 = vmatprep.subr.bf16.mxu0 0
      %4436 = vmatpush1.bf16.msra.mxu0 %v4427
      %4437 = vmatprep.subr.bf16.mxu0 0
      %4438 = vmatpush1.bf16.msra.mxu0 %v4428
      %4439 = vmatprep.subr.bf16.mxu0 0
      %4440 = vmatpush1.bf16.msra.mxu0 %v4429
      %4441 = vmatprep.subr.bf16.mxu0 0
      %4442 = vmatpush1.bf16.msra.mxu0 %v4430
      %4443 = vmatprep.subr.bf16.mxu0 0
      %4444 = vmatpush1.bf16.msra.mxu0 %v4431
      %4445 = vmatprep.subr.bf16.mxu0 0
      %4446 = vmatpush1.bf16.msra.mxu0 %v4432
      %4447 = vmatprep.subr.bf16.mxu0 0
      %4448 = vmatpush1.bf16.msra.mxu0 %v4433
      %4449 = vmatprep.subr.bf16.mxu0 0
      %4450 = vmatpush1.bf16.msra.mxu0 %v4434
      %4451 = vmatprep.subr.bf16.mxu0 0
      %4452 = vmatpush1.bf16.msra.mxu0 0
      %4453 = vmatprep.subr.bf16.mxu0 0
      %4454 = vmatpush1.bf16.msra.mxu0 0
      %4455 = vmatprep.subr.bf16.mxu0 0
      %4456 = vmatpush1.bf16.msra.mxu0 0
      %4457 = vmatprep.subr.bf16.mxu0 0
      %4458 = vmatpush1.bf16.msra.mxu0 0
      %4459 = vmatprep.subr.bf16.mxu0 0
      %4460 = vmatpush1.bf16.msra.mxu0 0
      %4461 = vmatprep.subr.bf16.mxu0 0
      %4462 = vmatpush1.bf16.msra.mxu0 0
      %4463 = vmatprep.subr.bf16.mxu0 0
      %4464 = vmatpush1.bf16.msra.mxu0 0
      %4465 = vmatprep.subr.bf16.mxu0 0
      %4466 = vmatpush1.bf16.msra.mxu0 0
      %4467 = vmatprep.mubr.bf16.mxu0 0
      %4468 = vmatmul.mubr.bf16.gmra.mrb[0].mxu0 %v3983
      %v4469 = vpop.f32.mrb[0].mxu0
      %v4470 = vadd.f32 %v1478, %v4469
      %v4471 = vpop.f32.mrb[0].mxu0
      %v4472 = vpop.f32.mrb[0].mxu0
      %v4473 = vadd.f32 %v1478, %v4472
      %v4474 = vpop.f32.mrb[0].mxu0
      %4475 = vmatprep.mubr.bf16.mxu0 0
      %4476 = vmatmul.mubr.bf16.gmra.mrb[0].mxu0 %v3984
      %v4477 = vpop.f32.mrb[0].mxu0
      %v4478 = vadd.f32 %v1478, %v4477
      %v4479 = vpop.f32.mrb[0].mxu0
      %v4480 = vpop.f32.mrb[0].mxu0
      %v4481 = vadd.f32 %v1478, %v4480
      %v4482 = vpop.f32.mrb[0].mxu0
      %4483 = vmatprep.mubr.bf16.mxu0 0
      %4484 = vmatmul.mubr.bf16.gmra.mrb[0].mxu0 %v3985
      %v4485 = vpop.f32.mrb[0].mxu0
      %v4486 = vadd.f32 %v1478, %v4485
      %v4487 = vpop.f32.mrb[0].mxu0
      %v4488 = vpop.f32.mrb[0].mxu0
      %v4489 = vadd.f32 %v1478, %v4488
      %v4490 = vpop.f32.mrb[0].mxu0
      %4491 = vmatprep.mubr.bf16.mxu0 0
      %4492 = vmatmul.mubr.bf16.gmra.mrb[0].mxu0 %v3986
      %v4493 = vpop.f32.mrb[0].mxu0
      %v4494 = vadd.f32 %v1478, %v4493
      %v4495 = vpop.f32.mrb[0].mxu0
      %v4496 = vpop.f32.mrb[0].mxu0
      %v4497 = vadd.f32 %v1478, %v4496
      %v4498 = vpop.f32.mrb[0].mxu0
      %4499 = vmatprep.mubr.bf16.mxu0 0
      %4500 = vmatmul.mubr.bf16.gmra.mrb[0].mxu0 %v3987
      %v4501 = vpop.f32.mrb[0].mxu0
      %v4502 = vadd.f32 %v1478, %v4501
      %v4503 = vpop.f32.mrb[0].mxu0
      %v4504 = vpop.f32.mrb[0].mxu0
      %v4505 = vadd.f32 %v1478, %v4504
      %v4506 = vpop.f32.mrb[0].mxu0
      %4507 = vmatprep.mubr.bf16.mxu0 0
      %4508 = vmatmul.mubr.bf16.gmra.mrb[0].mxu0 %v3988
      %v4509 = vpop.f32.mrb[0].mxu0
      %v4510 = vadd.f32 %v1478, %v4509
      %v4511 = vpop.f32.mrb[0].mxu0
      %v4512 = vpop.f32.mrb[0].mxu0
      %v4513 = vadd.f32 %v1478, %v4512
      %v4514 = vpop.f32.mrb[0].mxu0
      %4515 = vmatprep.mubr.bf16.mxu0 0
      %4516 = vmatmul.mubr.bf16.gmra.mrb[0].mxu0 %v3989
      %v4517 = vpop.f32.mrb[0].mxu0
      %v4518 = vadd.f32 %v1478, %v4517
      %v4519 = vpop.f32.mrb[0].mxu0
      %v4520 = vpop.f32.mrb[0].mxu0
      %v4521 = vadd.f32 %v1478, %v4520
      %v4522 = vpop.f32.mrb[0].mxu0
      %4523 = vmatprep.mubr.bf16.mxu0 0
      %4524 = vmatmul.mubr.bf16.gmra.mrb[0].mxu0 %v3990
      %v4525 = vpop.f32.mrb[0].mxu0
      %v4526 = vadd.f32 %v1478, %v4525
      %v4527 = vpop.f32.mrb[0].mxu0
      %v4528 = vpop.f32.mrb[0].mxu0
      %v4529 = vadd.f32 %v1478, %v4528
      %v4530 = vpop.f32.mrb[0].mxu0
      %4531 = vdwg.mxu0
      %v4532 = vmax.f32 %v4470, 0.0
      %v4533 = vmax.f32 %v4473, 0.0
      %v4534 = vmax.f32 %v4478, 0.0
      %v4535 = vmax.f32 %v4481, 0.0
      %v4536 = vmax.f32 %v4486, 0.0
      %v4537 = vmax.f32 %v4489, 0.0
      %v4538 = vmax.f32 %v4494, 0.0
      %v4539 = vmax.f32 %v4497, 0.0
      %v4540 = vmax.f32 %v4502, 0.0
      %v4541 = vmax.f32 %v4505, 0.0
      %v4542 = vmax.f32 %v4510, 0.0
      %v4543 = vmax.f32 %v4513, 0.0
      %v4544 = vmax.f32 %v4518, 0.0
      %v4545 = vmax.f32 %v4521, 0.0
      %v4546 = vmax.f32 %v4526, 0.0
      %v4547 = vmax.f32 %v4529, 0.0
      %v4548 = vpack.c.bf16 %v4533, %v4532
      %v4549 = vpack.c.bf16 %v4535, %v4534
      %v4550 = vpack.c.bf16 %v4537, %v4536
      %v4551 = vpack.c.bf16 %v4539, %v4538
      %v4552 = vpack.c.bf16 %v4541, %v4540
      %v4553 = vpack.c.bf16 %v4543, %v4542
      %v4554 = vpack.c.bf16 %v4545, %v4544
      %v4555 = vpack.c.bf16 %v4547, %v4546
      %4556 = vmatprep.subr.bf16.mxu0 0
      %4557 = vmatpush1.bf16.msra.mxu0 %v1632
      %4558 = vmatprep.subr.bf16.mxu0 0
      %4559 = vmatpush1.bf16.msra.mxu0 %v1633
      %4560 = vmatprep.subr.bf16.mxu0 0
      %4561 = vmatpush1.bf16.msra.mxu0 %v1634
      %4562 = vmatprep.subr.bf16.mxu0 0
      %4563 = vmatpush1.bf16.msra.mxu0 %v1635
      %4564 = vmatprep.subr.bf16.mxu0 0
      %4565 = vmatpush1.bf16.msra.mxu0 %v1636
      %4566 = vmatprep.subr.bf16.mxu0 0
      %4567 = vmatpush1.bf16.msra.mxu0 %v1637
      %4568 = vmatprep.subr.bf16.mxu0 0
      %4569 = vmatpush1.bf16.msra.mxu0 %v1638
      %4570 = vmatprep.subr.bf16.mxu0 0
      %4571 = vmatpush1.bf16.msra.mxu0 %v1639
      %4572 = vmatprep.subr.bf16.mxu0 0
      %4573 = vmatpush1.bf16.msra.mxu0 0
      %4574 = vmatprep.subr.bf16.mxu0 0
      %4575 = vmatpush1.bf16.msra.mxu0 0
      %4576 = vmatprep.subr.bf16.mxu0 0
      %4577 = vmatpush1.bf16.msra.mxu0 0
      %4578 = vmatprep.subr.bf16.mxu0 0
      %4579 = vmatpush1.bf16.msra.mxu0 0
      %4580 = vmatprep.subr.bf16.mxu0 0
      %4581 = vmatpush1.bf16.msra.mxu0 0
      %4582 = vmatprep.subr.bf16.mxu0 0
      %4583 = vmatpush1.bf16.msra.mxu0 0
      %4584 = vmatprep.subr.bf16.mxu0 0
      %4585 = vmatpush1.bf16.msra.mxu0 0
      %4586 = vmatprep.subr.bf16.mxu0 0
      %4587 = vmatpush1.bf16.msra.mxu0 0
      %4588 = vmatprep.mubr.bf16.mxu0 0
      %4589 = vmatmul.mubr.bf16.gmra.mrb[0].mxu0 %v4548
      %v4590 = vpop.f32.mrb[0].mxu0
      %v4591 = vadd.f32 0.0, %v4590
      %v4592 = vpop.f32.mrb[0].mxu0
      %v4593 = vpop.f32.mrb[0].mxu0
      %v4594 = vadd.f32 0.0, %v4593
      %v4595 = vpop.f32.mrb[0].mxu0
      %4596 = vmatprep.mubr.bf16.mxu0 0
      %4597 = vmatmul.mubr.bf16.gmra.mrb[0].mxu0 %v4549
      %v4598 = vpop.f32.mrb[0].mxu0
      %v4599 = vadd.f32 0.0, %v4598
      %v4600 = vpop.f32.mrb[0].mxu0
      %v4601 = vpop.f32.mrb[0].mxu0
      %v4602 = vadd.f32 0.0, %v4601
      %v4603 = vpop.f32.mrb[0].mxu0
      %4604 = vmatprep.mubr.bf16.mxu0 0
      %4605 = vmatmul.mubr.bf16.gmra.mrb[0].mxu0 %v4550
      %v4606 = vpop.f32.mrb[0].mxu0
      %v4607 = vadd.f32 0.0, %v4606
      %v4608 = vpop.f32.mrb[0].mxu0
      %v4609 = vpop.f32.mrb[0].mxu0
      %v4610 = vadd.f32 0.0, %v4609
      %v4611 = vpop.f32.mrb[0].mxu0
      %4612 = vmatprep.mubr.bf16.mxu0 0
      %4613 = vmatmul.mubr.bf16.gmra.mrb[0].mxu0 %v4551
      %v4614 = vpop.f32.mrb[0].mxu0
      %v4615 = vadd.f32 0.0, %v4614
      %v4616 = vpop.f32.mrb[0].mxu0
      %v4617 = vpop.f32.mrb[0].mxu0
      %v4618 = vadd.f32 0.0, %v4617
      %v4619 = vpop.f32.mrb[0].mxu0
      %4620 = vmatprep.mubr.bf16.mxu0 0
      %4621 = vmatmul.mubr.bf16.gmra.mrb[0].mxu0 %v4552
      %v4622 = vpop.f32.mrb[0].mxu0
      %v4623 = vadd.f32 0.0, %v4622
      %v4624 = vpop.f32.mrb[0].mxu0
      %v4625 = vpop.f32.mrb[0].mxu0
      %v4626 = vadd.f32 0.0, %v4625
      %v4627 = vpop.f32.mrb[0].mxu0
      %4628 = vmatprep.mubr.bf16.mxu0 0
      %4629 = vmatmul.mubr.bf16.gmra.mrb[0].mxu0 %v4553
      %v4630 = vpop.f32.mrb[0].mxu0
      %v4631 = vadd.f32 0.0, %v4630
      %v4632 = vpop.f32.mrb[0].mxu0
      %v4633 = vpop.f32.mrb[0].mxu0
      %v4634 = vadd.f32 0.0, %v4633
      %v4635 = vpop.f32.mrb[0].mxu0
      %4636 = vmatprep.mubr.bf16.mxu0 0
      %4637 = vmatmul.mubr.bf16.gmra.mrb[0].mxu0 %v4554
      %v4638 = vpop.f32.mrb[0].mxu0
      %v4639 = vadd.f32 0.0, %v4638
      %v4640 = vpop.f32.mrb[0].mxu0
      %v4641 = vpop.f32.mrb[0].mxu0
      %v4642 = vadd.f32 0.0, %v4641
      %v4643 = vpop.f32.mrb[0].mxu0
      %4644 = vmatprep.mubr.bf16.mxu0 0
      %4645 = vmatmul.mubr.bf16.gmra.mrb[0].mxu0 %v4555
      %v4646 = vpop.f32.mrb[0].mxu0
      %v4647 = vadd.f32 0.0, %v4646
      %v4648 = vpop.f32.mrb[0].mxu0
      %v4649 = vpop.f32.mrb[0].mxu0
      %v4650 = vadd.f32 0.0, %v4649
      %v4651 = vpop.f32.mrb[0].mxu0
      %4652 = vdwg.mxu0
      %v4653 = vmul.f32 %v3951, %v4591
      %v4654 = vmul.f32 %v3952, %v4594
      %v4655 = vmul.f32 %v3953, %v4599
      %v4656 = vmul.f32 %v3954, %v4602
      %v4657 = vmul.f32 %v3955, %v4607
      %v4658 = vmul.f32 %v3956, %v4610
      %v4659 = vmul.f32 %v3957, %v4615
      %v4660 = vmul.f32 %v3958, %v4618
      %v4661 = vmul.f32 %v3959, %v4623
      %v4662 = vmul.f32 %v3960, %v4626
      %v4663 = vmul.f32 %v3961, %v4631
      %v4664 = vmul.f32 %v3962, %v4634
      %v4665 = vmul.f32 %v3963, %v4639
      %v4666 = vmul.f32 %v3964, %v4642
      %v4667 = vmul.f32 %v3965, %v4647
      %v4668 = vmul.f32 %v3966, %v4650
      %v4669 = vpack.c.bf16 %v4654, %v4653
      %v4670 = vpack.c.bf16 %v4656, %v4655
      %v4671 = vpack.c.bf16 %v4658, %v4657
      %v4672 = vpack.c.bf16 %v4660, %v4659
      %v4673 = vpack.c.bf16 %v4662, %v4661
      %v4674 = vpack.c.bf16 %v4664, %v4663
      %v4675 = vpack.c.bf16 %v4666, %v4665
      %v4676 = vpack.c.bf16 %v4668, %v4667
      %4677 = vmatprep.subr.bf16.mxu0 0
      %4678 = vmatpush1.bf16.msra.mxu0 %v4669
      %4679 = vmatprep.subr.bf16.mxu0 0
      %4680 = vmatpush1.bf16.msra.mxu0 %v4670
      %4681 = vmatprep.subr.bf16.mxu0 0
      %4682 = vmatpush1.bf16.msra.mxu0 %v4671
      %4683 = vmatprep.subr.bf16.mxu0 0
      %4684 = vmatpush1.bf16.msra.mxu0 %v4672
      %4685 = vmatprep.subr.bf16.mxu0 0
      %4686 = vmatpush1.bf16.msra.mxu0 %v4673
      %4687 = vmatprep.subr.bf16.mxu0 0
      %4688 = vmatpush1.bf16.msra.mxu0 %v4674
      %4689 = vmatprep.subr.bf16.mxu0 0
      %4690 = vmatpush1.bf16.msra.mxu0 %v4675
      %4691 = vmatprep.subr.bf16.mxu0 0
      %4692 = vmatpush1.bf16.msra.mxu0 %v4676
      %4693 = vmatprep.subr.bf16.mxu0 0
      %4694 = vmatpush1.bf16.msra.mxu0 0
      %4695 = vmatprep.subr.bf16.mxu0 0
      %4696 = vmatpush1.bf16.msra.mxu0 0
      %4697 = vmatprep.subr.bf16.mxu0 0
      %4698 = vmatpush1.bf16.msra.mxu0 0
      %4699 = vmatprep.subr.bf16.mxu0 0
      %4700 = vmatpush1.bf16.msra.mxu0 0
      %4701 = vmatprep.subr.bf16.mxu0 0
      %4702 = vmatpush1.bf16.msra.mxu0 0
      %4703 = vmatprep.subr.bf16.mxu0 0
      %4704 = vmatpush1.bf16.msra.mxu0 0
      %4705 = vmatprep.subr.bf16.mxu0 0
      %4706 = vmatpush1.bf16.msra.mxu0 0
      %4707 = vmatprep.subr.bf16.mxu0 0
      %4708 = vmatpush1.bf16.msra.mxu0 0
      %4709 = vmatprep.mubr.bf16.mxu0 0
      %4710 = vmatmul.mubr.bf16.gmra.mrb[0].mxu0 %v3983
      %v4711 = vpop.f32.mrb[0].mxu0
      %v4712 = vadd.f32 %v1772, %v4711
      %v4713 = vpop.f32.mrb[0].mxu0
      %v4714 = vpop.f32.mrb[0].mxu0
      %v4715 = vadd.f32 %v1772, %v4714
      %v4716 = vpop.f32.mrb[0].mxu0
      %4717 = vmatprep.mubr.bf16.mxu0 0
      %4718 = vmatmul.mubr.bf16.gmra.mrb[0].mxu0 %v3984
      %v4719 = vpop.f32.mrb[0].mxu0
      %v4720 = vadd.f32 %v1772, %v4719
      %v4721 = vpop.f32.mrb[0].mxu0
      %v4722 = vpop.f32.mrb[0].mxu0
      %v4723 = vadd.f32 %v1772, %v4722
      %v4724 = vpop.f32.mrb[0].mxu0
      %4725 = vmatprep.mubr.bf16.mxu0 0
      %4726 = vmatmul.mubr.bf16.gmra.mrb[0].mxu0 %v3985
      %v4727 = vpop.f32.mrb[0].mxu0
      %v4728 = vadd.f32 %v1772, %v4727
      %v4729 = vpop.f32.mrb[0].mxu0
      %v4730 = vpop.f32.mrb[0].mxu0
      %v4731 = vadd.f32 %v1772, %v4730
      %v4732 = vpop.f32.mrb[0].mxu0
      %4733 = vmatprep.mubr.bf16.mxu0 0
      %4734 = vmatmul.mubr.bf16.gmra.mrb[0].mxu0 %v3986
      %v4735 = vpop.f32.mrb[0].mxu0
      %v4736 = vadd.f32 %v1772, %v4735
      %v4737 = vpop.f32.mrb[0].mxu0
      %v4738 = vpop.f32.mrb[0].mxu0
      %v4739 = vadd.f32 %v1772, %v4738
      %v4740 = vpop.f32.mrb[0].mxu0
      %4741 = vmatprep.mubr.bf16.mxu0 0
      %4742 = vmatmul.mubr.bf16.gmra.mrb[0].mxu0 %v3987
      %v4743 = vpop.f32.mrb[0].mxu0
      %v4744 = vadd.f32 %v1772, %v4743
      %v4745 = vpop.f32.mrb[0].mxu0
      %v4746 = vpop.f32.mrb[0].mxu0
      %v4747 = vadd.f32 %v1772, %v4746
      %v4748 = vpop.f32.mrb[0].mxu0
      %4749 = vmatprep.mubr.bf16.mxu0 0
      %4750 = vmatmul.mubr.bf16.gmra.mrb[0].mxu0 %v3988
      %v4751 = vpop.f32.mrb[0].mxu0
      %v4752 = vadd.f32 %v1772, %v4751
      %v4753 = vpop.f32.mrb[0].mxu0
      %v4754 = vpop.f32.mrb[0].mxu0
      %v4755 = vadd.f32 %v1772, %v4754
      %v4756 = vpop.f32.mrb[0].mxu0
      %4757 = vmatprep.mubr.bf16.mxu0 0
      %4758 = vmatmul.mubr.bf16.gmra.mrb[0].mxu0 %v3989
      %v4759 = vpop.f32.mrb[0].mxu0
      %v4760 = vadd.f32 %v1772, %v4759
      %v4761 = vpop.f32.mrb[0].mxu0
      %v4762 = vpop.f32.mrb[0].mxu0
      %v4763 = vadd.f32 %v1772, %v4762
      %v4764 = vpop.f32.mrb[0].mxu0
      %4765 = vmatprep.mubr.bf16.mxu0 0
      %4766 = vmatmul.mubr.bf16.gmra.mrb[0].mxu0 %v3990
      %v4767 = vpop.f32.mrb[0].mxu0
      %v4768 = vadd.f32 %v1772, %v4767
      %v4769 = vpop.f32.mrb[0].mxu0
      %v4770 = vpop.f32.mrb[0].mxu0
      %v4771 = vadd.f32 %v1772, %v4770
      %v4772 = vpop.f32.mrb[0].mxu0
      %4773 = vdwg.mxu0
      %s4774 = scalar_lea.vmem %s229, 256
      %4775 = vst.msk [vmem:[%s4774] sm:$0xff] %vm1870, %v4712
      %4776 = vst.msk [vmem:[%s4774 + $0x8] sm:$0xff] %vm1870, %v4715
      %4777 = vst.msk [vmem:[%s4774 + $0x10] sm:$0xff] %vm1870, %v4720
      %4778 = vst.msk [vmem:[%s4774 + $0x18] sm:$0xff] %vm1870, %v4723
      %4779 = vst.msk [vmem:[%s4774 + $0x20] sm:$0xff] %vm1870, %v4728
      %4780 = vst.msk [vmem:[%s4774 + $0x28] sm:$0xff] %vm1870, %v4731
      %4781 = vst.msk [vmem:[%s4774 + $0x30] sm:$0xff] %vm1870, %v4736
      %4782 = vst.msk [vmem:[%s4774 + $0x38] sm:$0xff] %vm1870, %v4739
      %4783 = vst.msk [vmem:[%s4774 + $0x40] sm:$0xff] %vm1870, %v4744
      %4784 = vst.msk [vmem:[%s4774 + $0x48] sm:$0xff] %vm1870, %v4747
      %4785 = vst.msk [vmem:[%s4774 + $0x50] sm:$0xff] %vm1870, %v4752
      %4786 = vst.msk [vmem:[%s4774 + $0x58] sm:$0xff] %vm1870, %v4755
      %4787 = vst.msk [vmem:[%s4774 + $0x60] sm:$0xff] %vm1870, %v4760
      %4788 = vst.msk [vmem:[%s4774 + $0x68] sm:$0xff] %vm1870, %v4763
      %4789 = vst.msk [vmem:[%s4774 + $0x70] sm:$0xff] %vm1870, %v4768
      %4790 = vst.msk [vmem:[%s4774 + $0x78] sm:$0xff] %vm1870, %v4771
      %s4791 = scalar_lea.vmem %s215, 24
      %v4792 = vld [vmem:[%s4791] sm:$0xff]
      %v4793 = vlaneseq
      %v4794 = vshrl.u32 %v4793, 7
      %v4795 = vsub.s32 1, %v4794
      %v4796 = vrot.slane %v4792, %v4795
      %v4797 = vlaneseq
      %v4798 = vshrl.u32 %v4797, 7
      %v4799 = vsub.s32 3, %v4798
      %v4800 = vrot.slane %v4792, %v4799
      %v4801 = vlaneseq
      %v4802 = vshrl.u32 %v4801, 7
      %v4803 = vsub.s32 5, %v4802
      %v4804 = vrot.slane %v4792, %v4803
      %v4805 = vlaneseq
      %v4806 = vshrl.u32 %v4805, 7
      %v4807 = vsub.s32 7, %v4806
      %v4808 = vrot.slane %v4792, %v4807
      %v4809 = vlaneseq
      %v4810 = vshrl.u32 %v4809, 7
      %v4811 = vsub.s32 1, %v4810
      %v4812 = vrot.slane %v4796, %v4811
      %v4813 = vlaneseq
      %v4814 = vshrl.u32 %v4813, 7
      %v4815 = vsub.s32 1, %v4814
      %v4816 = vrot.slane %v4800, %v4815
      %v4817 = vlaneseq
      %v4818 = vshrl.u32 %v4817, 7
      %v4819 = vsub.s32 1, %v4818
      %v4820 = vrot.slane %v4804, %v4819
      %v4821 = vlaneseq
      %v4822 = vshrl.u32 %v4821, 7
      %v4823 = vsub.s32 1, %v4822
      %v4824 = vrot.slane %v4808, %v4823
      %vm4825 = vcmp.eq.s32.totalorder %v273, %v4812
      %vm4826 = vcmp.eq.s32.totalorder %v273, %v4816
      %vm4827 = vcmp.eq.s32.totalorder %v273, %v4820
      %vm4828 = vcmp.eq.s32.totalorder %v273, %v4824
      %vm4829 = vcmp.eq.s32.totalorder %v274, %v4812
      %vm4830 = vcmp.eq.s32.totalorder %v274, %v4816
      %vm4831 = vcmp.eq.s32.totalorder %v274, %v4820
      %vm4832 = vcmp.eq.s32.totalorder %v274, %v4824
      %vm4833 = vcmp.eq.s32.totalorder %v275, %v4812
      %vm4834 = vcmp.eq.s32.totalorder %v275, %v4816
      %vm4835 = vcmp.eq.s32.totalorder %v275, %v4820
      %vm4836 = vcmp.eq.s32.totalorder %v275, %v4824
      %vm4837 = vcmp.eq.s32.totalorder %v276, %v4812
      %vm4838 = vcmp.eq.s32.totalorder %v276, %v4816
      %vm4839 = vcmp.eq.s32.totalorder %v276, %v4820
      %vm4840 = vcmp.eq.s32.totalorder %v276, %v4824
      %vm4841 = vcmp.eq.s32.totalorder %v277, %v4812
      %vm4842 = vcmp.eq.s32.totalorder %v277, %v4816
      %vm4843 = vcmp.eq.s32.totalorder %v277, %v4820
      %vm4844 = vcmp.eq.s32.totalorder %v277, %v4824
      %vm4845 = vcmp.eq.s32.totalorder %v278, %v4812
      %vm4846 = vcmp.eq.s32.totalorder %v278, %v4816
      %vm4847 = vcmp.eq.s32.totalorder %v278, %v4820
      %vm4848 = vcmp.eq.s32.totalorder %v278, %v4824
      %vm4849 = vcmp.eq.s32.totalorder %v279, %v4812
      %vm4850 = vcmp.eq.s32.totalorder %v279, %v4816
      %vm4851 = vcmp.eq.s32.totalorder %v279, %v4820
      %vm4852 = vcmp.eq.s32.totalorder %v279, %v4824
      %vm4853 = vcmp.eq.s32.totalorder %v280, %v4812
      %vm4854 = vcmp.eq.s32.totalorder %v280, %v4816
      %vm4855 = vcmp.eq.s32.totalorder %v280, %v4820
      %vm4856 = vcmp.eq.s32.totalorder %v280, %v4824
      %vm4857 = vcmp.eq.s32.totalorder %v281, %v4812
      %vm4858 = vcmp.eq.s32.totalorder %v281, %v4816
      %vm4859 = vcmp.eq.s32.totalorder %v281, %v4820
      %vm4860 = vcmp.eq.s32.totalorder %v281, %v4824
      %vm4861 = vcmp.eq.s32.totalorder %v282, %v4812
      %vm4862 = vcmp.eq.s32.totalorder %v282, %v4816
      %vm4863 = vcmp.eq.s32.totalorder %v282, %v4820
      %vm4864 = vcmp.eq.s32.totalorder %v282, %v4824
      %vm4865 = vcmp.eq.s32.totalorder %v283, %v4812
      %vm4866 = vcmp.eq.s32.totalorder %v283, %v4816
      %vm4867 = vcmp.eq.s32.totalorder %v283, %v4820
      %vm4868 = vcmp.eq.s32.totalorder %v283, %v4824
      %vm4869 = vcmp.eq.s32.totalorder %v284, %v4812
      %vm4870 = vcmp.eq.s32.totalorder %v284, %v4816
      %vm4871 = vcmp.eq.s32.totalorder %v284, %v4820
      %vm4872 = vcmp.eq.s32.totalorder %v284, %v4824
      %vm4873 = vcmp.eq.s32.totalorder %v285, %v4812
      %vm4874 = vcmp.eq.s32.totalorder %v285, %v4816
      %vm4875 = vcmp.eq.s32.totalorder %v285, %v4820
      %vm4876 = vcmp.eq.s32.totalorder %v285, %v4824
      %vm4877 = vcmp.eq.s32.totalorder %v286, %v4812
      %vm4878 = vcmp.eq.s32.totalorder %v286, %v4816
      %vm4879 = vcmp.eq.s32.totalorder %v286, %v4820
      %vm4880 = vcmp.eq.s32.totalorder %v286, %v4824
      %vm4881 = vcmp.eq.s32.totalorder %v287, %v4812
      %vm4882 = vcmp.eq.s32.totalorder %v287, %v4816
      %vm4883 = vcmp.eq.s32.totalorder %v287, %v4820
      %vm4884 = vcmp.eq.s32.totalorder %v287, %v4824
      %vm4885 = vcmp.eq.s32.totalorder %v288, %v4812
      %vm4886 = vcmp.eq.s32.totalorder %v288, %v4816
      %vm4887 = vcmp.eq.s32.totalorder %v288, %v4820
      %vm4888 = vcmp.eq.s32.totalorder %v288, %v4824
      %v4889 = vsel %vm4825, 1.0, 0.0
      %v4890 = vsel %vm4826, 1.0, 0.0
      %v4891 = vsel %vm4827, 1.0, 0.0
      %v4892 = vsel %vm4828, 1.0, 0.0
      %v4893 = vsel %vm4829, 1.0, 0.0
      %v4894 = vsel %vm4830, 1.0, 0.0
      %v4895 = vsel %vm4831, 1.0, 0.0
      %v4896 = vsel %vm4832, 1.0, 0.0
      %v4897 = vsel %vm4833, 1.0, 0.0
      %v4898 = vsel %vm4834, 1.0, 0.0
      %v4899 = vsel %vm4835, 1.0, 0.0
      %v4900 = vsel %vm4836, 1.0, 0.0
      %v4901 = vsel %vm4837, 1.0, 0.0
      %v4902 = vsel %vm4838, 1.0, 0.0
      %v4903 = vsel %vm4839, 1.0, 0.0
      %v4904 = vsel %vm4840, 1.0, 0.0
      %v4905 = vsel %vm4841, 1.0, 0.0
      %v4906 = vsel %vm4842, 1.0, 0.0
      %v4907 = vsel %vm4843, 1.0, 0.0
      %v4908 = vsel %vm4844, 1.0, 0.0
      %v4909 = vsel %vm4845, 1.0, 0.0
      %v4910 = vsel %vm4846, 1.0, 0.0
      %v4911 = vsel %vm4847, 1.0, 0.0
      %v4912 = vsel %vm4848, 1.0, 0.0
      %v4913 = vsel %vm4849, 1.0, 0.0
      %v4914 = vsel %vm4850, 1.0, 0.0
      %v4915 = vsel %vm4851, 1.0, 0.0
      %v4916 = vsel %vm4852, 1.0, 0.0
      %v4917 = vsel %vm4853, 1.0, 0.0
      %v4918 = vsel %vm4854, 1.0, 0.0
      %v4919 = vsel %vm4855, 1.0, 0.0
      %v4920 = vsel %vm4856, 1.0, 0.0
      %v4921 = vsel %vm4857, 1.0, 0.0
      %v4922 = vsel %vm4858, 1.0, 0.0
      %v4923 = vsel %vm4859, 1.0, 0.0
      %v4924 = vsel %vm4860, 1.0, 0.0
      %v4925 = vsel %vm4861, 1.0, 0.0
      %v4926 = vsel %vm4862, 1.0, 0.0
      %v4927 = vsel %vm4863, 1.0, 0.0
      %v4928 = vsel %vm4864, 1.0, 0.0
      %v4929 = vsel %vm4865, 1.0, 0.0
      %v4930 = vsel %vm4866, 1.0, 0.0
      %v4931 = vsel %vm4867, 1.0, 0.0
      %v4932 = vsel %vm4868, 1.0, 0.0
      %v4933 = vsel %vm4869, 1.0, 0.0
      %v4934 = vsel %vm4870, 1.0, 0.0
      %v4935 = vsel %vm4871, 1.0, 0.0
      %v4936 = vsel %vm4872, 1.0, 0.0
      %v4937 = vsel %vm4873, 1.0, 0.0
      %v4938 = vsel %vm4874, 1.0, 0.0
      %v4939 = vsel %vm4875, 1.0, 0.0
      %v4940 = vsel %vm4876, 1.0, 0.0
      %v4941 = vsel %vm4877, 1.0, 0.0
      %v4942 = vsel %vm4878, 1.0, 0.0
      %v4943 = vsel %vm4879, 1.0, 0.0
      %v4944 = vsel %vm4880, 1.0, 0.0
      %v4945 = vsel %vm4881, 1.0, 0.0
      %v4946 = vsel %vm4882, 1.0, 0.0
      %v4947 = vsel %vm4883, 1.0, 0.0
      %v4948 = vsel %vm4884, 1.0, 0.0
      %v4949 = vsel %vm4885, 1.0, 0.0
      %v4950 = vsel %vm4886, 1.0, 0.0
      %v4951 = vsel %vm4887, 1.0, 0.0
      %v4952 = vsel %vm4888, 1.0, 0.0
      %v4953 = vpack.c.bf16 %v4893, %v4889
      %v4954 = vpack.c.bf16 %v4894, %v4890
      %v4955 = vpack.c.bf16 %v4895, %v4891
      %v4956 = vpack.c.bf16 %v4896, %v4892
      %v4957 = vpack.c.bf16 %v4901, %v4897
      %v4958 = vpack.c.bf16 %v4902, %v4898
      %v4959 = vpack.c.bf16 %v4903, %v4899
      %v4960 = vpack.c.bf16 %v4904, %v4900
      %v4961 = vpack.c.bf16 %v4909, %v4905
      %v4962 = vpack.c.bf16 %v4910, %v4906
      %v4963 = vpack.c.bf16 %v4911, %v4907
      %v4964 = vpack.c.bf16 %v4912, %v4908
      %v4965 = vpack.c.bf16 %v4917, %v4913
      %v4966 = vpack.c.bf16 %v4918, %v4914
      %v4967 = vpack.c.bf16 %v4919, %v4915
      %v4968 = vpack.c.bf16 %v4920, %v4916
      %v4969 = vpack.c.bf16 %v4925, %v4921
      %v4970 = vpack.c.bf16 %v4926, %v4922
      %v4971 = vpack.c.bf16 %v4927, %v4923
      %v4972 = vpack.c.bf16 %v4928, %v4924
      %v4973 = vpack.c.bf16 %v4933, %v4929
      %v4974 = vpack.c.bf16 %v4934, %v4930
      %v4975 = vpack.c.bf16 %v4935, %v4931
      %v4976 = vpack.c.bf16 %v4936, %v4932
      %v4977 = vpack.c.bf16 %v4941, %v4937
      %v4978 = vpack.c.bf16 %v4942, %v4938
      %v4979 = vpack.c.bf16 %v4943, %v4939
      %v4980 = vpack.c.bf16 %v4944, %v4940
      %v4981 = vpack.c.bf16 %v4949, %v4945
      %v4982 = vpack.c.bf16 %v4950, %v4946
      %v4983 = vpack.c.bf16 %v4951, %v4947
      %v4984 = vpack.c.bf16 %v4952, %v4948
      %v4985 = vlaneseq
      %v4986 = vshrl.u32 %v4985, 7
      %v4987 = vsub.s32 0, %v4986
      %v4988 = vrot.slane %v4792, %v4987
      %v4989 = vlaneseq
      %v4990 = vshrl.u32 %v4989, 7
      %v4991 = vsub.s32 2, %v4990
      %v4992 = vrot.slane %v4792, %v4991
      %v4993 = vlaneseq
      %v4994 = vshrl.u32 %v4993, 7
      %v4995 = vsub.s32 4, %v4994
      %v4996 = vrot.slane %v4792, %v4995
      %v4997 = vlaneseq
      %v4998 = vshrl.u32 %v4997, 7
      %v4999 = vsub.s32 6, %v4998
      %v5000 = vrot.slane %v4792, %v4999
      %v5001 = vlaneseq
      %v5002 = vshrl.u32 %v5001, 7
      %v5003 = vsub.s32 0, %v5002
      %v5004 = vrot.slane %v4988, %v5003
      %v5005 = vlaneseq
      %v5006 = vshrl.u32 %v5005, 7
      %v5007 = vsub.s32 0, %v5006
      %v5008 = vrot.slane %v4992, %v5007
      %v5009 = vlaneseq
      %v5010 = vshrl.u32 %v5009, 7
      %v5011 = vsub.s32 0, %v5010
      %v5012 = vrot.slane %v4996, %v5011
      %v5013 = vlaneseq
      %v5014 = vshrl.u32 %v5013, 7
      %v5015 = vsub.s32 0, %v5014
      %v5016 = vrot.slane %v5000, %v5015
      %vm5017 = vcmp.eq.s32.totalorder %v273, %v5004
      %vm5018 = vcmp.eq.s32.totalorder %v273, %v5008
      %vm5019 = vcmp.eq.s32.totalorder %v273, %v5012
      %vm5020 = vcmp.eq.s32.totalorder %v273, %v5016
      %vm5021 = vcmp.eq.s32.totalorder %v274, %v5004
      %vm5022 = vcmp.eq.s32.totalorder %v274, %v5008
      %vm5023 = vcmp.eq.s32.totalorder %v274, %v5012
      %vm5024 = vcmp.eq.s32.totalorder %v274, %v5016
      %vm5025 = vcmp.eq.s32.totalorder %v275, %v5004
      %vm5026 = vcmp.eq.s32.totalorder %v275, %v5008
      %vm5027 = vcmp.eq.s32.totalorder %v275, %v5012
      %vm5028 = vcmp.eq.s32.totalorder %v275, %v5016
      %vm5029 = vcmp.eq.s32.totalorder %v276, %v5004
      %vm5030 = vcmp.eq.s32.totalorder %v276, %v5008
      %vm5031 = vcmp.eq.s32.totalorder %v276, %v5012
      %vm5032 = vcmp.eq.s32.totalorder %v276, %v5016
      %vm5033 = vcmp.eq.s32.totalorder %v277, %v5004
      %vm5034 = vcmp.eq.s32.totalorder %v277, %v5008
      %vm5035 = vcmp.eq.s32.totalorder %v277, %v5012
      %vm5036 = vcmp.eq.s32.totalorder %v277, %v5016
      %vm5037 = vcmp.eq.s32.totalorder %v278, %v5004
      %vm5038 = vcmp.eq.s32.totalorder %v278, %v5008
      %vm5039 = vcmp.eq.s32.totalorder %v278, %v5012
      %vm5040 = vcmp.eq.s32.totalorder %v278, %v5016
      %vm5041 = vcmp.eq.s32.totalorder %v279, %v5004
      %vm5042 = vcmp.eq.s32.totalorder %v279, %v5008
      %vm5043 = vcmp.eq.s32.totalorder %v279, %v5012
      %vm5044 = vcmp.eq.s32.totalorder %v279, %v5016
      %vm5045 = vcmp.eq.s32.totalorder %v280, %v5004
      %vm5046 = vcmp.eq.s32.totalorder %v280, %v5008
      %vm5047 = vcmp.eq.s32.totalorder %v280, %v5012
      %vm5048 = vcmp.eq.s32.totalorder %v280, %v5016
      %vm5049 = vcmp.eq.s32.totalorder %v281, %v5004
      %vm5050 = vcmp.eq.s32.totalorder %v281, %v5008
      %vm5051 = vcmp.eq.s32.totalorder %v281, %v5012
      %vm5052 = vcmp.eq.s32.totalorder %v281, %v5016
      %vm5053 = vcmp.eq.s32.totalorder %v282, %v5004
      %vm5054 = vcmp.eq.s32.totalorder %v282, %v5008
      %vm5055 = vcmp.eq.s32.totalorder %v282, %v5012
      %vm5056 = vcmp.eq.s32.totalorder %v282, %v5016
      %vm5057 = vcmp.eq.s32.totalorder %v283, %v5004
      %vm5058 = vcmp.eq.s32.totalorder %v283, %v5008
      %vm5059 = vcmp.eq.s32.totalorder %v283, %v5012
      %vm5060 = vcmp.eq.s32.totalorder %v283, %v5016
      %vm5061 = vcmp.eq.s32.totalorder %v284, %v5004
      %vm5062 = vcmp.eq.s32.totalorder %v284, %v5008
      %vm5063 = vcmp.eq.s32.totalorder %v284, %v5012
      %vm5064 = vcmp.eq.s32.totalorder %v284, %v5016
      %vm5065 = vcmp.eq.s32.totalorder %v285, %v5004
      %vm5066 = vcmp.eq.s32.totalorder %v285, %v5008
      %vm5067 = vcmp.eq.s32.totalorder %v285, %v5012
      %vm5068 = vcmp.eq.s32.totalorder %v285, %v5016
      %vm5069 = vcmp.eq.s32.totalorder %v286, %v5004
      %vm5070 = vcmp.eq.s32.totalorder %v286, %v5008
      %vm5071 = vcmp.eq.s32.totalorder %v286, %v5012
      %vm5072 = vcmp.eq.s32.totalorder %v286, %v5016
      %vm5073 = vcmp.eq.s32.totalorder %v287, %v5004
      %vm5074 = vcmp.eq.s32.totalorder %v287, %v5008
      %vm5075 = vcmp.eq.s32.totalorder %v287, %v5012
      %vm5076 = vcmp.eq.s32.totalorder %v287, %v5016
      %vm5077 = vcmp.eq.s32.totalorder %v288, %v5004
      %vm5078 = vcmp.eq.s32.totalorder %v288, %v5008
      %vm5079 = vcmp.eq.s32.totalorder %v288, %v5012
      %vm5080 = vcmp.eq.s32.totalorder %v288, %v5016
      %v5081 = vsel %vm5017, 1.0, 0.0
      %v5082 = vsel %vm5018, 1.0, 0.0
      %v5083 = vsel %vm5019, 1.0, 0.0
      %v5084 = vsel %vm5020, 1.0, 0.0
      %v5085 = vsel %vm5021, 1.0, 0.0
      %v5086 = vsel %vm5022, 1.0, 0.0
      %v5087 = vsel %vm5023, 1.0, 0.0
      %v5088 = vsel %vm5024, 1.0, 0.0
      %v5089 = vsel %vm5025, 1.0, 0.0
      %v5090 = vsel %vm5026, 1.0, 0.0
      %v5091 = vsel %vm5027, 1.0, 0.0
      %v5092 = vsel %vm5028, 1.0, 0.0
      %v5093 = vsel %vm5029, 1.0, 0.0
      %v5094 = vsel %vm5030, 1.0, 0.0
      %v5095 = vsel %vm5031, 1.0, 0.0
      %v5096 = vsel %vm5032, 1.0, 0.0
      %v5097 = vsel %vm5033, 1.0, 0.0
      %v5098 = vsel %vm5034, 1.0, 0.0
      %v5099 = vsel %vm5035, 1.0, 0.0
      %v5100 = vsel %vm5036, 1.0, 0.0
      %v5101 = vsel %vm5037, 1.0, 0.0
      %v5102 = vsel %vm5038, 1.0, 0.0
      %v5103 = vsel %vm5039, 1.0, 0.0
      %v5104 = vsel %vm5040, 1.0, 0.0
      %v5105 = vsel %vm5041, 1.0, 0.0
      %v5106 = vsel %vm5042, 1.0, 0.0
      %v5107 = vsel %vm5043, 1.0, 0.0
      %v5108 = vsel %vm5044, 1.0, 0.0
      %v5109 = vsel %vm5045, 1.0, 0.0
      %v5110 = vsel %vm5046, 1.0, 0.0
      %v5111 = vsel %vm5047, 1.0, 0.0
      %v5112 = vsel %vm5048, 1.0, 0.0
      %v5113 = vsel %vm5049, 1.0, 0.0
      %v5114 = vsel %vm5050, 1.0, 0.0
      %v5115 = vsel %vm5051, 1.0, 0.0
      %v5116 = vsel %vm5052, 1.0, 0.0
      %v5117 = vsel %vm5053, 1.0, 0.0
      %v5118 = vsel %vm5054, 1.0, 0.0
      %v5119 = vsel %vm5055, 1.0, 0.0
      %v5120 = vsel %vm5056, 1.0, 0.0
      %v5121 = vsel %vm5057, 1.0, 0.0
      %v5122 = vsel %vm5058, 1.0, 0.0
      %v5123 = vsel %vm5059, 1.0, 0.0
      %v5124 = vsel %vm5060, 1.0, 0.0
      %v5125 = vsel %vm5061, 1.0, 0.0
      %v5126 = vsel %vm5062, 1.0, 0.0
      %v5127 = vsel %vm5063, 1.0, 0.0
      %v5128 = vsel %vm5064, 1.0, 0.0
      %v5129 = vsel %vm5065, 1.0, 0.0
      %v5130 = vsel %vm5066, 1.0, 0.0
      %v5131 = vsel %vm5067, 1.0, 0.0
      %v5132 = vsel %vm5068, 1.0, 0.0
      %v5133 = vsel %vm5069, 1.0, 0.0
      %v5134 = vsel %vm5070, 1.0, 0.0
      %v5135 = vsel %vm5071, 1.0, 0.0
      %v5136 = vsel %vm5072, 1.0, 0.0
      %v5137 = vsel %vm5073, 1.0, 0.0
      %v5138 = vsel %vm5074, 1.0, 0.0
      %v5139 = vsel %vm5075, 1.0, 0.0
      %v5140 = vsel %vm5076, 1.0, 0.0
      %v5141 = vsel %vm5077, 1.0, 0.0
      %v5142 = vsel %vm5078, 1.0, 0.0
      %v5143 = vsel %vm5079, 1.0, 0.0
      %v5144 = vsel %vm5080, 1.0, 0.0
      %v5145 = vpack.c.bf16 %v5085, %v5081
      %v5146 = vpack.c.bf16 %v5086, %v5082
      %v5147 = vpack.c.bf16 %v5087, %v5083
      %v5148 = vpack.c.bf16 %v5088, %v5084
      %v5149 = vpack.c.bf16 %v5093, %v5089
      %v5150 = vpack.c.bf16 %v5094, %v5090
      %v5151 = vpack.c.bf16 %v5095, %v5091
      %v5152 = vpack.c.bf16 %v5096, %v5092
      %v5153 = vpack.c.bf16 %v5101, %v5097
      %v5154 = vpack.c.bf16 %v5102, %v5098
      %v5155 = vpack.c.bf16 %v5103, %v5099
      %v5156 = vpack.c.bf16 %v5104, %v5100
      %v5157 = vpack.c.bf16 %v5109, %v5105
      %v5158 = vpack.c.bf16 %v5110, %v5106
      %v5159 = vpack.c.bf16 %v5111, %v5107
      %v5160 = vpack.c.bf16 %v5112, %v5108
      %v5161 = vpack.c.bf16 %v5117, %v5113
      %v5162 = vpack.c.bf16 %v5118, %v5114
      %v5163 = vpack.c.bf16 %v5119, %v5115
      %v5164 = vpack.c.bf16 %v5120, %v5116
      %v5165 = vpack.c.bf16 %v5125, %v5121
      %v5166 = vpack.c.bf16 %v5126, %v5122
      %v5167 = vpack.c.bf16 %v5127, %v5123
      %v5168 = vpack.c.bf16 %v5128, %v5124
      %v5169 = vpack.c.bf16 %v5133, %v5129
      %v5170 = vpack.c.bf16 %v5134, %v5130
      %v5171 = vpack.c.bf16 %v5135, %v5131
      %v5172 = vpack.c.bf16 %v5136, %v5132
      %v5173 = vpack.c.bf16 %v5141, %v5137
      %v5174 = vpack.c.bf16 %v5142, %v5138
      %v5175 = vpack.c.bf16 %v5143, %v5139
      %v5176 = vpack.c.bf16 %v5144, %v5140
      %5177 = vmatprep.subr.bf16.mxu0 %v5146
      %5178 = vmatpush1.bf16.xpose.msra.mxu0 %v5145
      %5179 = vmatprep.subr.bf16.mxu0 %v5150
      %5180 = vmatpush1.bf16.xpose.msra.mxu0 %v5149
      %5181 = vmatprep.subr.bf16.mxu0 %v5154
      %5182 = vmatpush1.bf16.xpose.msra.mxu0 %v5153
      %5183 = vmatprep.subr.bf16.mxu0 %v5158
      %5184 = vmatpush1.bf16.xpose.msra.mxu0 %v5157
      %5185 = vmatprep.subr.bf16.mxu0 %v5162
      %5186 = vmatpush1.bf16.xpose.msra.mxu0 %v5161
      %5187 = vmatprep.subr.bf16.mxu0 %v5166
      %5188 = vmatpush1.bf16.xpose.msra.mxu0 %v5165
      %5189 = vmatprep.subr.bf16.mxu0 %v5170
      %5190 = vmatpush1.bf16.xpose.msra.mxu0 %v5169
      %5191 = vmatprep.subr.bf16.mxu0 %v5174
      %5192 = vmatpush1.bf16.xpose.msra.mxu0 %v5173
      %5193 = vmatprep.subr.bf16.mxu0 0
      %5194 = vmatpush1.bf16.xpose.msra.mxu0 0
      %5195 = vmatprep.subr.bf16.mxu0 0
      %5196 = vmatpush1.bf16.xpose.msra.mxu0 0
      %5197 = vmatprep.subr.bf16.mxu0 0
      %5198 = vmatpush1.bf16.xpose.msra.mxu0 0
      %5199 = vmatprep.subr.bf16.mxu0 0
      %5200 = vmatpush1.bf16.xpose.msra.mxu0 0
      %5201 = vmatprep.subr.bf16.mxu0 0
      %5202 = vmatpush1.bf16.xpose.msra.mxu0 0
      %5203 = vmatprep.subr.bf16.mxu0 0
      %5204 = vmatpush1.bf16.xpose.msra.mxu0 0
      %5205 = vmatprep.subr.bf16.mxu0 0
      %5206 = vmatpush1.bf16.xpose.msra.mxu0 0
      %5207 = vmatprep.subr.bf16.mxu0 0
      %5208 = vmatpush1.bf16.xpose.msra.mxu0 0
      %5209 = vmatprep.mubr.bf16.mxu0 %v4954
      %5210 = vmatmul.mubr.bf16.gmra.mrb[0].mxu0 %v4953
      %v5211 = vpop.f32.mrb[0].mxu0
      %v5212 = vadd.f32 %v691, %v5211
      %v5213 = vpop.f32.mrb[0].mxu0
      %v5214 = vpop.f32.mrb[0].mxu0
      %v5215 = vadd.f32 %v692, %v5214
      %v5216 = vpop.f32.mrb[0].mxu0
      %5217 = vmatprep.mubr.bf16.mxu0 %v4958
      %5218 = vmatmul.mubr.bf16.gmra.mrb[0].mxu0 %v4957
      %v5219 = vpop.f32.mrb[0].mxu0
      %v5220 = vadd.f32 %v693, %v5219
      %v5221 = vpop.f32.mrb[0].mxu0
      %v5222 = vpop.f32.mrb[0].mxu0
      %v5223 = vadd.f32 %v694, %v5222
      %v5224 = vpop.f32.mrb[0].mxu0
      %5225 = vmatprep.mubr.bf16.mxu0 %v4962
      %5226 = vmatmul.mubr.bf16.gmra.mrb[0].mxu0 %v4961
      %v5227 = vpop.f32.mrb[0].mxu0
      %v5228 = vadd.f32 %v695, %v5227
      %v5229 = vpop.f32.mrb[0].mxu0
      %v5230 = vpop.f32.mrb[0].mxu0
      %v5231 = vadd.f32 %v696, %v5230
      %v5232 = vpop.f32.mrb[0].mxu0
      %5233 = vmatprep.mubr.bf16.mxu0 %v4966
      %5234 = vmatmul.mubr.bf16.gmra.mrb[0].mxu0 %v4965
      %v5235 = vpop.f32.mrb[0].mxu0
      %v5236 = vadd.f32 %v697, %v5235
      %v5237 = vpop.f32.mrb[0].mxu0
      %v5238 = vpop.f32.mrb[0].mxu0
      %v5239 = vadd.f32 %v698, %v5238
      %v5240 = vpop.f32.mrb[0].mxu0
      %5241 = vmatprep.mubr.bf16.mxu0 %v4970
      %5242 = vmatmul.mubr.bf16.gmra.mrb[0].mxu0 %v4969
      %v5243 = vpop.f32.mrb[0].mxu0
      %v5244 = vadd.f32 %v699, %v5243
      %v5245 = vpop.f32.mrb[0].mxu0
      %v5246 = vpop.f32.mrb[0].mxu0
      %v5247 = vadd.f32 %v700, %v5246
      %v5248 = vpop.f32.mrb[0].mxu0
      %5249 = vmatprep.mubr.bf16.mxu0 %v4974
      %5250 = vmatmul.mubr.bf16.gmra.mrb[0].mxu0 %v4973
      %v5251 = vpop.f32.mrb[0].mxu0
      %v5252 = vadd.f32 %v701, %v5251
      %v5253 = vpop.f32.mrb[0].mxu0
      %v5254 = vpop.f32.mrb[0].mxu0
      %v5255 = vadd.f32 %v702, %v5254
      %v5256 = vpop.f32.mrb[0].mxu0
      %5257 = vmatprep.mubr.bf16.mxu0 %v4978
      %5258 = vmatmul.mubr.bf16.gmra.mrb[0].mxu0 %v4977
      %v5259 = vpop.f32.mrb[0].mxu0
      %v5260 = vadd.f32 %v703, %v5259
      %v5261 = vpop.f32.mrb[0].mxu0
      %v5262 = vpop.f32.mrb[0].mxu0
      %v5263 = vadd.f32 %v704, %v5262
      %v5264 = vpop.f32.mrb[0].mxu0
      %5265 = vmatprep.mubr.bf16.mxu0 %v4982
      %5266 = vmatmul.mubr.bf16.gmra.mrb[0].mxu0 %v4981
      %v5267 = vpop.f32.mrb[0].mxu0
      %v5268 = vadd.f32 %v705, %v5267
      %v5269 = vpop.f32.mrb[0].mxu0
      %v5270 = vpop.f32.mrb[0].mxu0
      %v5271 = vadd.f32 %v706, %v5270
      %v5272 = vpop.f32.mrb[0].mxu0
      %5273 = vdwg.mxu0
      %5274 = vmatprep.subr.bf16.mxu0 %v5148
      %5275 = vmatpush1.bf16.xpose.msra.mxu0 %v5147
      %5276 = vmatprep.subr.bf16.mxu0 %v5152
      %5277 = vmatpush1.bf16.xpose.msra.mxu0 %v5151
      %5278 = vmatprep.subr.bf16.mxu0 %v5156
      %5279 = vmatpush1.bf16.xpose.msra.mxu0 %v5155
      %5280 = vmatprep.subr.bf16.mxu0 %v5160
      %5281 = vmatpush1.bf16.xpose.msra.mxu0 %v5159
      %5282 = vmatprep.subr.bf16.mxu0 %v5164
      %5283 = vmatpush1.bf16.xpose.msra.mxu0 %v5163
      %5284 = vmatprep.subr.bf16.mxu0 %v5168
      %5285 = vmatpush1.bf16.xpose.msra.mxu0 %v5167
      %5286 = vmatprep.subr.bf16.mxu0 %v5172
      %5287 = vmatpush1.bf16.xpose.msra.mxu0 %v5171
      %5288 = vmatprep.subr.bf16.mxu0 %v5176
      %5289 = vmatpush1.bf16.xpose.msra.mxu0 %v5175
      %5290 = vmatprep.subr.bf16.mxu0 0
      %5291 = vmatpush1.bf16.xpose.msra.mxu0 0
      %5292 = vmatprep.subr.bf16.mxu0 0
      %5293 = vmatpush1.bf16.xpose.msra.mxu0 0
      %5294 = vmatprep.subr.bf16.mxu0 0
      %5295 = vmatpush1.bf16.xpose.msra.mxu0 0
      %5296 = vmatprep.subr.bf16.mxu0 0
      %5297 = vmatpush1.bf16.xpose.msra.mxu0 0
      %5298 = vmatprep.subr.bf16.mxu0 0
      %5299 = vmatpush1.bf16.xpose.msra.mxu0 0
      %5300 = vmatprep.subr.bf16.mxu0 0
      %5301 = vmatpush1.bf16.xpose.msra.mxu0 0
      %5302 = vmatprep.subr.bf16.mxu0 0
      %5303 = vmatpush1.bf16.xpose.msra.mxu0 0
      %5304 = vmatprep.subr.bf16.mxu0 0
      %5305 = vmatpush1.bf16.xpose.msra.mxu0 0
      %5306 = vmatprep.mubr.bf16.mxu0 %v4956
      %5307 = vmatmul.mubr.bf16.gmra.mrb[0].mxu0 %v4955
      %v5308 = vpop.f32.mrb[0].mxu0
      %v5309 = vadd.f32 %v5212, %v5308
      %v5310 = vpop.f32.mrb[0].mxu0
      %v5311 = vpop.f32.mrb[0].mxu0
      %v5312 = vadd.f32 %v5215, %v5311
      %v5313 = vpop.f32.mrb[0].mxu0
      %5314 = vmatprep.mubr.bf16.mxu0 %v4960
      %5315 = vmatmul.mubr.bf16.gmra.mrb[0].mxu0 %v4959
      %v5316 = vpop.f32.mrb[0].mxu0
      %v5317 = vadd.f32 %v5220, %v5316
      %v5318 = vpop.f32.mrb[0].mxu0
      %v5319 = vpop.f32.mrb[0].mxu0
      %v5320 = vadd.f32 %v5223, %v5319
      %v5321 = vpop.f32.mrb[0].mxu0
      %5322 = vmatprep.mubr.bf16.mxu0 %v4964
      %5323 = vmatmul.mubr.bf16.gmra.mrb[0].mxu0 %v4963
      %v5324 = vpop.f32.mrb[0].mxu0
      %v5325 = vadd.f32 %v5228, %v5324
      %v5326 = vpop.f32.mrb[0].mxu0
      %v5327 = vpop.f32.mrb[0].mxu0
      %v5328 = vadd.f32 %v5231, %v5327
      %v5329 = vpop.f32.mrb[0].mxu0
      %5330 = vmatprep.mubr.bf16.mxu0 %v4968
      %5331 = vmatmul.mubr.bf16.gmra.mrb[0].mxu0 %v4967
      %v5332 = vpop.f32.mrb[0].mxu0
      %v5333 = vadd.f32 %v5236, %v5332
      %v5334 = vpop.f32.mrb[0].mxu0
      %v5335 = vpop.f32.mrb[0].mxu0
      %v5336 = vadd.f32 %v5239, %v5335
      %v5337 = vpop.f32.mrb[0].mxu0
      %5338 = vmatprep.mubr.bf16.mxu0 %v4972
      %5339 = vmatmul.mubr.bf16.gmra.mrb[0].mxu0 %v4971
      %v5340 = vpop.f32.mrb[0].mxu0
      %v5341 = vadd.f32 %v5244, %v5340
      %v5342 = vpop.f32.mrb[0].mxu0
      %v5343 = vpop.f32.mrb[0].mxu0
      %v5344 = vadd.f32 %v5247, %v5343
      %v5345 = vpop.f32.mrb[0].mxu0
      %5346 = vmatprep.mubr.bf16.mxu0 %v4976
      %5347 = vmatmul.mubr.bf16.gmra.mrb[0].mxu0 %v4975
      %v5348 = vpop.f32.mrb[0].mxu0
      %v5349 = vadd.f32 %v5252, %v5348
      %v5350 = vpop.f32.mrb[0].mxu0
      %v5351 = vpop.f32.mrb[0].mxu0
      %v5352 = vadd.f32 %v5255, %v5351
      %v5353 = vpop.f32.mrb[0].mxu0
      %5354 = vmatprep.mubr.bf16.mxu0 %v4980
      %5355 = vmatmul.mubr.bf16.gmra.mrb[0].mxu0 %v4979
      %v5356 = vpop.f32.mrb[0].mxu0
      %v5357 = vadd.f32 %v5260, %v5356
      %v5358 = vpop.f32.mrb[0].mxu0
      %v5359 = vpop.f32.mrb[0].mxu0
      %v5360 = vadd.f32 %v5263, %v5359
      %v5361 = vpop.f32.mrb[0].mxu0
      %5362 = vmatprep.mubr.bf16.mxu0 %v4984
      %5363 = vmatmul.mubr.bf16.gmra.mrb[0].mxu0 %v4983
      %v5364 = vpop.f32.mrb[0].mxu0
      %v5365 = vadd.f32 %v5268, %v5364
      %v5366 = vpop.f32.mrb[0].mxu0
      %v5367 = vpop.f32.mrb[0].mxu0
      %v5368 = vadd.f32 %v5271, %v5367
      %v5369 = vpop.f32.mrb[0].mxu0
      %5370 = vdwg.mxu0
      %5371 = vadd.xlane.f32.xlu0 %v5309
      %v5372 = vpop.xlane.xlu0 %5371
      %5373 = vadd.xlane.f32.xlu0 %v5312
      %v5374 = vpop.xlane.xlu0 %5373
      %5375 = vadd.xlane.f32.xlu0 %v5317
      %v5376 = vpop.xlane.xlu0 %5375
      %5377 = vadd.xlane.f32.xlu0 %v5320
      %v5378 = vpop.xlane.xlu0 %5377
      %5379 = vadd.xlane.f32.xlu0 %v5325
      %v5380 = vpop.xlane.xlu0 %5379
      %5381 = vadd.xlane.f32.xlu0 %v5328
      %v5382 = vpop.xlane.xlu0 %5381
      %5383 = vadd.xlane.f32.xlu0 %v5333
      %v5384 = vpop.xlane.xlu0 %5383
      %5385 = vadd.xlane.f32.xlu0 %v5336
      %v5386 = vpop.xlane.xlu0 %5385
      %5387 = vadd.xlane.f32.xlu0 %v5341
      %v5388 = vpop.xlane.xlu0 %5387
      %5389 = vadd.xlane.f32.xlu0 %v5344
      %v5390 = vpop.xlane.xlu0 %5389
      %5391 = vadd.xlane.f32.xlu0 %v5349
      %v5392 = vpop.xlane.xlu0 %5391
      %5393 = vadd.xlane.f32.xlu0 %v5352
      %v5394 = vpop.xlane.xlu0 %5393
      %5395 = vadd.xlane.f32.xlu0 %v5357
      %v5396 = vpop.xlane.xlu0 %5395
      %5397 = vadd.xlane.f32.xlu0 %v5360
      %v5398 = vpop.xlane.xlu0 %5397
      %5399 = vadd.xlane.f32.xlu0 %v5365
      %v5400 = vpop.xlane.xlu0 %5399
      %5401 = vadd.xlane.f32.xlu0 %v5368
      %v5402 = vpop.xlane.xlu0 %5401
      %v5403 = vrsqrt.pop %v5372
      %v5404 = vrsqrt.pop %v5374
      %v5405 = vrsqrt.pop %v5376
      %v5406 = vrsqrt.pop %v5378
      %v5407 = vrsqrt.pop %v5380
      %v5408 = vrsqrt.pop %v5382
      %v5409 = vrsqrt.pop %v5384
      %v5410 = vrsqrt.pop %v5386
      %v5411 = vrsqrt.pop %v5388
      %v5412 = vrsqrt.pop %v5390
      %v5413 = vrsqrt.pop %v5392
      %v5414 = vrsqrt.pop %v5394
      %v5415 = vrsqrt.pop %v5396
      %v5416 = vrsqrt.pop %v5398
      %v5417 = vrsqrt.pop %v5400
      %v5418 = vrsqrt.pop %v5402
      %v5419 = vmul.f32 %v5403, %v5309
      %v5420 = vmul.f32 %v5404, %v5312
      %v5421 = vmul.f32 %v5405, %v5317
      %v5422 = vmul.f32 %v5406, %v5320
      %v5423 = vmul.f32 %v5407, %v5325
      %v5424 = vmul.f32 %v5408, %v5328
      %v5425 = vmul.f32 %v5409, %v5333
      %v5426 = vmul.f32 %v5410, %v5336
      %v5427 = vmul.f32 %v5411, %v5341
      %v5428 = vmul.f32 %v5412, %v5344
      %v5429 = vmul.f32 %v5413, %v5349
      %v5430 = vmul.f32 %v5414, %v5352
      %v5431 = vmul.f32 %v5415, %v5357
      %v5432 = vmul.f32 %v5416, %v5360
      %v5433 = vmul.f32 %v5417, %v5365
      %v5434 = vmul.f32 %v5418, %v5368
      %v5435 = vpack.c.bf16 %v5420, %v5419
      %v5436 = vpack.c.bf16 %v5422, %v5421
      %v5437 = vpack.c.bf16 %v5424, %v5423
      %v5438 = vpack.c.bf16 %v5426, %v5425
      %v5439 = vpack.c.bf16 %v5428, %v5427
      %v5440 = vpack.c.bf16 %v5430, %v5429
      %v5441 = vpack.c.bf16 %v5432, %v5431
      %v5442 = vpack.c.bf16 %v5434, %v5433
      %s5443 = scalar_lea.vmem %s222, 192
      %v5444 = vld [vmem:[%s5443] sm:$0xf]
      %v5445 = vld [vmem:[%s5443 + $0x4] sm:$0xf]
      %v5446 = vld [vmem:[%s5443 + $0x8] sm:$0xf]
      %v5447 = vld [vmem:[%s5443 + $0xc] sm:$0xf]
      %v5448 = vld [vmem:[%s5443 + $0x10] sm:$0xf]
      %v5449 = vld [vmem:[%s5443 + $0x14] sm:$0xf]
      %v5450 = vld [vmem:[%s5443 + $0x18] sm:$0xf]
      %v5451 = vld [vmem:[%s5443 + $0x1c] sm:$0xf]
      %v5452 = vld [vmem:[%s5443 + $0x20] sm:$0xf]
      %v5453 = vld [vmem:[%s5443 + $0x24] sm:$0xf]
      %v5454 = vld [vmem:[%s5443 + $0x28] sm:$0xf]
      %v5455 = vld [vmem:[%s5443 + $0x2c] sm:$0xf]
      %v5456 = vld [vmem:[%s5443 + $0x30] sm:$0xf]
      %v5457 = vld [vmem:[%s5443 + $0x34] sm:$0xf]
      %v5458 = vld [vmem:[%s5443 + $0x38] sm:$0xf]
      %v5459 = vld [vmem:[%s5443 + $0x3c] sm:$0xf]
      %v5476 = vunpack.c.l.b16 %v5444
      %v5477 = vunpack.c.l.b16 %v5445
      %v5478 = vunpack.c.l.b16 %v5446
      %v5479 = vunpack.c.l.b16 %v5447
      %v5480 = vunpack.c.l.b16 %v5448
      %v5481 = vunpack.c.l.b16 %v5449
      %v5482 = vunpack.c.l.b16 %v5450
      %v5483 = vunpack.c.l.b16 %v5451
      %v5484 = vunpack.c.l.b16 %v5452
      %v5485 = vunpack.c.l.b16 %v5453
      %v5486 = vunpack.c.l.b16 %v5454
      %v5487 = vunpack.c.l.b16 %v5455
      %v5488 = vunpack.c.l.b16 %v5456
      %v5489 = vunpack.c.l.b16 %v5457
      %v5490 = vunpack.c.l.b16 %v5458
      %v5491 = vunpack.c.l.b16 %v5459
      %v5492 = vpack.c.b16 %v5477, %v5476
      %v5493 = vpack.c.b16 %v5479, %v5478
      %v5494 = vpack.c.b16 %v5481, %v5480
      %v5495 = vpack.c.b16 %v5483, %v5482
      %v5496 = vpack.c.b16 %v5485, %v5484
      %v5497 = vpack.c.b16 %v5487, %v5486
      %v5498 = vpack.c.b16 %v5489, %v5488
      %v5499 = vpack.c.b16 %v5491, %v5490
      %v5501 = vsel %vm1035, %v5492, 0
      %v5504 = vsel %vm1035, %v5493, 0
      %v5507 = vsel %vm1035, %v5494, 0
      %v5510 = vsel %vm1035, %v5495, 0
      %v5513 = vsel %vm1035, %v5496, 0
      %v5516 = vsel %vm1035, %v5497, 0
      %v5519 = vsel %vm1035, %v5498, 0
      %v5522 = vsel %vm1035, %v5499, 0
      %5524 = vmatprep.subr.bf16.mxu0 0
      %5525 = vmatpush1.bf16.msra.mxu0 %v1033
      %5526 = vmatprep.subr.bf16.mxu0 0
      %5527 = vmatpush1.bf16.msra.mxu0 0
      %5528 = vmatprep.subr.bf16.mxu0 0
      %5529 = vmatpush1.bf16.msra.mxu0 0
      %5530 = vmatprep.subr.bf16.mxu0 0
      %5531 = vmatpush1.bf16.msra.mxu0 0
      %5532 = vmatprep.subr.bf16.mxu0 0
      %5533 = vmatpush1.bf16.msra.mxu0 0
      %5534 = vmatprep.subr.bf16.mxu0 0
      %5535 = vmatpush1.bf16.msra.mxu0 0
      %5536 = vmatprep.subr.bf16.mxu0 0
      %5537 = vmatpush1.bf16.msra.mxu0 0
      %5538 = vmatprep.subr.bf16.mxu0 0
      %5539 = vmatpush1.bf16.msra.mxu0 0
      %5540 = vmatprep.subr.bf16.mxu0 0
      %5541 = vmatpush1.bf16.msra.mxu0 0
      %5542 = vmatprep.subr.bf16.mxu0 0
      %5543 = vmatpush1.bf16.msra.mxu0 0
      %5544 = vmatprep.subr.bf16.mxu0 0
      %5545 = vmatpush1.bf16.msra.mxu0 0
      %5546 = vmatprep.subr.bf16.mxu0 0
      %5547 = vmatpush1.bf16.msra.mxu0 0
      %5548 = vmatprep.subr.bf16.mxu0 0
      %5549 = vmatpush1.bf16.msra.mxu0 0
      %5550 = vmatprep.subr.bf16.mxu0 0
      %5551 = vmatpush1.bf16.msra.mxu0 0
      %5552 = vmatprep.subr.bf16.mxu0 0
      %5553 = vmatpush1.bf16.msra.mxu0 0
      %5554 = vmatprep.subr.bf16.mxu0 0
      %5555 = vmatpush1.bf16.msra.mxu0 0
      %5556 = vmatprep.mubr.bf16.mxu0 0
      %5557 = vmatmul.mubr.bf16.gmra.mrb[0].mxu0 %v5501
      %v5558 = vpop.f32.mrb[0].mxu0
      %v5559 = vadd.f32 0.0, %v5558
      %v5560 = vpop.f32.mrb[0].mxu0
      %v5561 = vpop.f32.mrb[0].mxu0
      %v5562 = vadd.f32 0.0, %v5561
      %v5563 = vpop.f32.mrb[0].mxu0
      %5564 = vmatprep.mubr.bf16.mxu0 0
      %5565 = vmatmul.mubr.bf16.gmra.mrb[0].mxu0 %v5504
      %v5566 = vpop.f32.mrb[0].mxu0
      %v5567 = vadd.f32 0.0, %v5566
      %v5568 = vpop.f32.mrb[0].mxu0
      %v5569 = vpop.f32.mrb[0].mxu0
      %v5570 = vadd.f32 0.0, %v5569
      %v5571 = vpop.f32.mrb[0].mxu0
      %5572 = vmatprep.mubr.bf16.mxu0 0
      %5573 = vmatmul.mubr.bf16.gmra.mrb[0].mxu0 %v5507
      %v5574 = vpop.f32.mrb[0].mxu0
      %v5575 = vadd.f32 0.0, %v5574
      %v5576 = vpop.f32.mrb[0].mxu0
      %v5577 = vpop.f32.mrb[0].mxu0
      %v5578 = vadd.f32 0.0, %v5577
      %v5579 = vpop.f32.mrb[0].mxu0
      %5580 = vmatprep.mubr.bf16.mxu0 0
      %5581 = vmatmul.mubr.bf16.gmra.mrb[0].mxu0 %v5510
      %v5582 = vpop.f32.mrb[0].mxu0
      %v5583 = vadd.f32 0.0, %v5582
      %v5584 = vpop.f32.mrb[0].mxu0
      %v5585 = vpop.f32.mrb[0].mxu0
      %v5586 = vadd.f32 0.0, %v5585
      %v5587 = vpop.f32.mrb[0].mxu0
      %5588 = vmatprep.mubr.bf16.mxu0 0
      %5589 = vmatmul.mubr.bf16.gmra.mrb[0].mxu0 %v5513
      %v5590 = vpop.f32.mrb[0].mxu0
      %v5591 = vadd.f32 0.0, %v5590
      %v5592 = vpop.f32.mrb[0].mxu0
      %v5593 = vpop.f32.mrb[0].mxu0
      %v5594 = vadd.f32 0.0, %v5593
      %v5595 = vpop.f32.mrb[0].mxu0
      %5596 = vmatprep.mubr.bf16.mxu0 0
      %5597 = vmatmul.mubr.bf16.gmra.mrb[0].mxu0 %v5516
      %v5598 = vpop.f32.mrb[0].mxu0
      %v5599 = vadd.f32 0.0, %v5598
      %v5600 = vpop.f32.mrb[0].mxu0
      %v5601 = vpop.f32.mrb[0].mxu0
      %v5602 = vadd.f32 0.0, %v5601
      %v5603 = vpop.f32.mrb[0].mxu0
      %5604 = vmatprep.mubr.bf16.mxu0 0
      %5605 = vmatmul.mubr.bf16.gmra.mrb[0].mxu0 %v5519
      %v5606 = vpop.f32.mrb[0].mxu0
      %v5607 = vadd.f32 0.0, %v5606
      %v5608 = vpop.f32.mrb[0].mxu0
      %v5609 = vpop.f32.mrb[0].mxu0
      %v5610 = vadd.f32 0.0, %v5609
      %v5611 = vpop.f32.mrb[0].mxu0
      %5612 = vmatprep.mubr.bf16.mxu0 0
      %5613 = vmatmul.mubr.bf16.gmra.mrb[0].mxu0 %v5522
      %v5614 = vpop.f32.mrb[0].mxu0
      %v5615 = vadd.f32 0.0, %v5614
      %v5616 = vpop.f32.mrb[0].mxu0
      %v5617 = vpop.f32.mrb[0].mxu0
      %v5618 = vadd.f32 0.0, %v5617
      %v5619 = vpop.f32.mrb[0].mxu0
      %5620 = vdwg.mxu0
      %v5621 = vmul.f32 %v5403, %v5559
      %v5622 = vmul.f32 %v5404, %v5562
      %v5623 = vmul.f32 %v5405, %v5567
      %v5624 = vmul.f32 %v5406, %v5570
      %v5625 = vmul.f32 %v5407, %v5575
      %v5626 = vmul.f32 %v5408, %v5578
      %v5627 = vmul.f32 %v5409, %v5583
      %v5628 = vmul.f32 %v5410, %v5586
      %v5629 = vmul.f32 %v5411, %v5591
      %v5630 = vmul.f32 %v5412, %v5594
      %v5631 = vmul.f32 %v5413, %v5599
      %v5632 = vmul.f32 %v5414, %v5602
      %v5633 = vmul.f32 %v5415, %v5607
      %v5634 = vmul.f32 %v5416, %v5610
      %v5635 = vmul.f32 %v5417, %v5615
      %v5636 = vmul.f32 %v5418, %v5618
      %v5637 = vpack.c.bf16 %v5622, %v5621
      %v5638 = vpack.c.bf16 %v5624, %v5623
      %v5639 = vpack.c.bf16 %v5626, %v5625
      %v5640 = vpack.c.bf16 %v5628, %v5627
      %v5641 = vpack.c.bf16 %v5630, %v5629
      %v5642 = vpack.c.bf16 %v5632, %v5631
      %v5643 = vpack.c.bf16 %v5634, %v5633
      %v5644 = vpack.c.bf16 %v5636, %v5635
      %5645 = vmatprep.subr.bf16.mxu0 0
      %5646 = vmatpush1.bf16.msra.mxu0 %v5637
      %5647 = vmatprep.subr.bf16.mxu0 0
      %5648 = vmatpush1.bf16.msra.mxu0 %v5638
      %5649 = vmatprep.subr.bf16.mxu0 0
      %5650 = vmatpush1.bf16.msra.mxu0 %v5639
      %5651 = vmatprep.subr.bf16.mxu0 0
      %5652 = vmatpush1.bf16.msra.mxu0 %v5640
      %5653 = vmatprep.subr.bf16.mxu0 0
      %5654 = vmatpush1.bf16.msra.mxu0 %v5641
      %5655 = vmatprep.subr.bf16.mxu0 0
      %5656 = vmatpush1.bf16.msra.mxu0 %v5642
      %5657 = vmatprep.subr.bf16.mxu0 0
      %5658 = vmatpush1.bf16.msra.mxu0 %v5643
      %5659 = vmatprep.subr.bf16.mxu0 0
      %5660 = vmatpush1.bf16.msra.mxu0 %v5644
      %5661 = vmatprep.subr.bf16.mxu0 0
      %5662 = vmatpush1.bf16.msra.mxu0 0
      %5663 = vmatprep.subr.bf16.mxu0 0
      %5664 = vmatpush1.bf16.msra.mxu0 0
      %5665 = vmatprep.subr.bf16.mxu0 0
      %5666 = vmatpush1.bf16.msra.mxu0 0
      %5667 = vmatprep.subr.bf16.mxu0 0
      %5668 = vmatpush1.bf16.msra.mxu0 0
      %5669 = vmatprep.subr.bf16.mxu0 0
      %5670 = vmatpush1.bf16.msra.mxu0 0
      %5671 = vmatprep.subr.bf16.mxu0 0
      %5672 = vmatpush1.bf16.msra.mxu0 0
      %5673 = vmatprep.subr.bf16.mxu0 0
      %5674 = vmatpush1.bf16.msra.mxu0 0
      %5675 = vmatprep.subr.bf16.mxu0 0
      %5676 = vmatpush1.bf16.msra.mxu0 0
      %5677 = vmatprep.mubr.bf16.mxu0 0
      %5678 = vmatmul.mubr.bf16.gmra.mrb[0].mxu0 %v5435
      %v5679 = vpop.f32.mrb[0].mxu0
      %v5680 = vadd.f32 %v1184, %v5679
      %v5681 = vpop.f32.mrb[0].mxu0
      %v5682 = vpop.f32.mrb[0].mxu0
      %v5683 = vadd.f32 %v1184, %v5682
      %v5684 = vpop.f32.mrb[0].mxu0
      %5685 = vmatprep.mubr.bf16.mxu0 0
      %5686 = vmatmul.mubr.bf16.gmra.mrb[0].mxu0 %v5436
      %v5687 = vpop.f32.mrb[0].mxu0
      %v5688 = vadd.f32 %v1184, %v5687
      %v5689 = vpop.f32.mrb[0].mxu0
      %v5690 = vpop.f32.mrb[0].mxu0
      %v5691 = vadd.f32 %v1184, %v5690
      %v5692 = vpop.f32.mrb[0].mxu0
      %5693 = vmatprep.mubr.bf16.mxu0 0
      %5694 = vmatmul.mubr.bf16.gmra.mrb[0].mxu0 %v5437
      %v5695 = vpop.f32.mrb[0].mxu0
      %v5696 = vadd.f32 %v1184, %v5695
      %v5697 = vpop.f32.mrb[0].mxu0
      %v5698 = vpop.f32.mrb[0].mxu0
      %v5699 = vadd.f32 %v1184, %v5698
      %v5700 = vpop.f32.mrb[0].mxu0
      %5701 = vmatprep.mubr.bf16.mxu0 0
      %5702 = vmatmul.mubr.bf16.gmra.mrb[0].mxu0 %v5438
      %v5703 = vpop.f32.mrb[0].mxu0
      %v5704 = vadd.f32 %v1184, %v5703
      %v5705 = vpop.f32.mrb[0].mxu0
      %v5706 = vpop.f32.mrb[0].mxu0
      %v5707 = vadd.f32 %v1184, %v5706
      %v5708 = vpop.f32.mrb[0].mxu0
      %5709 = vmatprep.mubr.bf16.mxu0 0
      %5710 = vmatmul.mubr.bf16.gmra.mrb[0].mxu0 %v5439
      %v5711 = vpop.f32.mrb[0].mxu0
      %v5712 = vadd.f32 %v1184, %v5711
      %v5713 = vpop.f32.mrb[0].mxu0
      %v5714 = vpop.f32.mrb[0].mxu0
      %v5715 = vadd.f32 %v1184, %v5714
      %v5716 = vpop.f32.mrb[0].mxu0
      %5717 = vmatprep.mubr.bf16.mxu0 0
      %5718 = vmatmul.mubr.bf16.gmra.mrb[0].mxu0 %v5440
      %v5719 = vpop.f32.mrb[0].mxu0
      %v5720 = vadd.f32 %v1184, %v5719
      %v5721 = vpop.f32.mrb[0].mxu0
      %v5722 = vpop.f32.mrb[0].mxu0
      %v5723 = vadd.f32 %v1184, %v5722
      %v5724 = vpop.f32.mrb[0].mxu0
      %5725 = vmatprep.mubr.bf16.mxu0 0
      %5726 = vmatmul.mubr.bf16.gmra.mrb[0].mxu0 %v5441
      %v5727 = vpop.f32.mrb[0].mxu0
      %v5728 = vadd.f32 %v1184, %v5727
      %v5729 = vpop.f32.mrb[0].mxu0
      %v5730 = vpop.f32.mrb[0].mxu0
      %v5731 = vadd.f32 %v1184, %v5730
      %v5732 = vpop.f32.mrb[0].mxu0
      %5733 = vmatprep.mubr.bf16.mxu0 0
      %5734 = vmatmul.mubr.bf16.gmra.mrb[0].mxu0 %v5442
      %v5735 = vpop.f32.mrb[0].mxu0
      %v5736 = vadd.f32 %v1184, %v5735
      %v5737 = vpop.f32.mrb[0].mxu0
      %v5738 = vpop.f32.mrb[0].mxu0
      %v5739 = vadd.f32 %v1184, %v5738
      %v5740 = vpop.f32.mrb[0].mxu0
      %5741 = vdwg.mxu0
      %v5742 = vmax.f32 %v5680, 0.0
      %v5743 = vmax.f32 %v5683, 0.0
      %v5744 = vmax.f32 %v5688, 0.0
      %v5745 = vmax.f32 %v5691, 0.0
      %v5746 = vmax.f32 %v5696, 0.0
      %v5747 = vmax.f32 %v5699, 0.0
      %v5748 = vmax.f32 %v5704, 0.0
      %v5749 = vmax.f32 %v5707, 0.0
      %v5750 = vmax.f32 %v5712, 0.0
      %v5751 = vmax.f32 %v5715, 0.0
      %v5752 = vmax.f32 %v5720, 0.0
      %v5753 = vmax.f32 %v5723, 0.0
      %v5754 = vmax.f32 %v5728, 0.0
      %v5755 = vmax.f32 %v5731, 0.0
      %v5756 = vmax.f32 %v5736, 0.0
      %v5757 = vmax.f32 %v5739, 0.0
      %v5758 = vpack.c.bf16 %v5743, %v5742
      %v5759 = vpack.c.bf16 %v5745, %v5744
      %v5760 = vpack.c.bf16 %v5747, %v5746
      %v5761 = vpack.c.bf16 %v5749, %v5748
      %v5762 = vpack.c.bf16 %v5751, %v5750
      %v5763 = vpack.c.bf16 %v5753, %v5752
      %v5764 = vpack.c.bf16 %v5755, %v5754
      %v5765 = vpack.c.bf16 %v5757, %v5756
      %5766 = vmatprep.subr.bf16.mxu0 0
      %5767 = vmatpush1.bf16.msra.mxu0 %v1338
      %5768 = vmatprep.subr.bf16.mxu0 0
      %5769 = vmatpush1.bf16.msra.mxu0 %v1339
      %5770 = vmatprep.subr.bf16.mxu0 0
      %5771 = vmatpush1.bf16.msra.mxu0 %v1340
      %5772 = vmatprep.subr.bf16.mxu0 0
      %5773 = vmatpush1.bf16.msra.mxu0 %v1341
      %5774 = vmatprep.subr.bf16.mxu0 0
      %5775 = vmatpush1.bf16.msra.mxu0 %v1342
      %5776 = vmatprep.subr.bf16.mxu0 0
      %5777 = vmatpush1.bf16.msra.mxu0 %v1343
      %5778 = vmatprep.subr.bf16.mxu0 0
      %5779 = vmatpush1.bf16.msra.mxu0 %v1344
      %5780 = vmatprep.subr.bf16.mxu0 0
      %5781 = vmatpush1.bf16.msra.mxu0 %v1345
      %5782 = vmatprep.subr.bf16.mxu0 0
      %5783 = vmatpush1.bf16.msra.mxu0 0
      %5784 = vmatprep.subr.bf16.mxu0 0
      %5785 = vmatpush1.bf16.msra.mxu0 0
      %5786 = vmatprep.subr.bf16.mxu0 0
      %5787 = vmatpush1.bf16.msra.mxu0 0
      %5788 = vmatprep.subr.bf16.mxu0 0
      %5789 = vmatpush1.bf16.msra.mxu0 0
      %5790 = vmatprep.subr.bf16.mxu0 0
      %5791 = vmatpush1.bf16.msra.mxu0 0
      %5792 = vmatprep.subr.bf16.mxu0 0
      %5793 = vmatpush1.bf16.msra.mxu0 0
      %5794 = vmatprep.subr.bf16.mxu0 0
      %5795 = vmatpush1.bf16.msra.mxu0 0
      %5796 = vmatprep.subr.bf16.mxu0 0
      %5797 = vmatpush1.bf16.msra.mxu0 0
      %5798 = vmatprep.mubr.bf16.mxu0 0
      %5799 = vmatmul.mubr.bf16.gmra.mrb[0].mxu0 %v5758
      %v5800 = vpop.f32.mrb[0].mxu0
      %v5801 = vadd.f32 0.0, %v5800
      %v5802 = vpop.f32.mrb[0].mxu0
      %v5803 = vpop.f32.mrb[0].mxu0
      %v5804 = vadd.f32 0.0, %v5803
      %v5805 = vpop.f32.mrb[0].mxu0
      %5806 = vmatprep.mubr.bf16.mxu0 0
      %5807 = vmatmul.mubr.bf16.gmra.mrb[0].mxu0 %v5759
      %v5808 = vpop.f32.mrb[0].mxu0
      %v5809 = vadd.f32 0.0, %v5808
      %v5810 = vpop.f32.mrb[0].mxu0
      %v5811 = vpop.f32.mrb[0].mxu0
      %v5812 = vadd.f32 0.0, %v5811
      %v5813 = vpop.f32.mrb[0].mxu0
      %5814 = vmatprep.mubr.bf16.mxu0 0
      %5815 = vmatmul.mubr.bf16.gmra.mrb[0].mxu0 %v5760
      %v5816 = vpop.f32.mrb[0].mxu0
      %v5817 = vadd.f32 0.0, %v5816
      %v5818 = vpop.f32.mrb[0].mxu0
      %v5819 = vpop.f32.mrb[0].mxu0
      %v5820 = vadd.f32 0.0, %v5819
      %v5821 = vpop.f32.mrb[0].mxu0
      %5822 = vmatprep.mubr.bf16.mxu0 0
      %5823 = vmatmul.mubr.bf16.gmra.mrb[0].mxu0 %v5761
      %v5824 = vpop.f32.mrb[0].mxu0
      %v5825 = vadd.f32 0.0, %v5824
      %v5826 = vpop.f32.mrb[0].mxu0
      %v5827 = vpop.f32.mrb[0].mxu0
      %v5828 = vadd.f32 0.0, %v5827
      %v5829 = vpop.f32.mrb[0].mxu0
      %5830 = vmatprep.mubr.bf16.mxu0 0
      %5831 = vmatmul.mubr.bf16.gmra.mrb[0].mxu0 %v5762
      %v5832 = vpop.f32.mrb[0].mxu0
      %v5833 = vadd.f32 0.0, %v5832
      %v5834 = vpop.f32.mrb[0].mxu0
      %v5835 = vpop.f32.mrb[0].mxu0
      %v5836 = vadd.f32 0.0, %v5835
      %v5837 = vpop.f32.mrb[0].mxu0
      %5838 = vmatprep.mubr.bf16.mxu0 0
      %5839 = vmatmul.mubr.bf16.gmra.mrb[0].mxu0 %v5763
      %v5840 = vpop.f32.mrb[0].mxu0
      %v5841 = vadd.f32 0.0, %v5840
      %v5842 = vpop.f32.mrb[0].mxu0
      %v5843 = vpop.f32.mrb[0].mxu0
      %v5844 = vadd.f32 0.0, %v5843
      %v5845 = vpop.f32.mrb[0].mxu0
      %5846 = vmatprep.mubr.bf16.mxu0 0
      %5847 = vmatmul.mubr.bf16.gmra.mrb[0].mxu0 %v5764
      %v5848 = vpop.f32.mrb[0].mxu0
      %v5849 = vadd.f32 0.0, %v5848
      %v5850 = vpop.f32.mrb[0].mxu0
      %v5851 = vpop.f32.mrb[0].mxu0
      %v5852 = vadd.f32 0.0, %v5851
      %v5853 = vpop.f32.mrb[0].mxu0
      %5854 = vmatprep.mubr.bf16.mxu0 0
      %5855 = vmatmul.mubr.bf16.gmra.mrb[0].mxu0 %v5765
      %v5856 = vpop.f32.mrb[0].mxu0
      %v5857 = vadd.f32 0.0, %v5856
      %v5858 = vpop.f32.mrb[0].mxu0
      %v5859 = vpop.f32.mrb[0].mxu0
      %v5860 = vadd.f32 0.0, %v5859
      %v5861 = vpop.f32.mrb[0].mxu0
      %5862 = vdwg.mxu0
      %v5863 = vmul.f32 %v5403, %v5801
      %v5864 = vmul.f32 %v5404, %v5804
      %v5865 = vmul.f32 %v5405, %v5809
      %v5866 = vmul.f32 %v5406, %v5812
      %v5867 = vmul.f32 %v5407, %v5817
      %v5868 = vmul.f32 %v5408, %v5820
      %v5869 = vmul.f32 %v5409, %v5825
      %v5870 = vmul.f32 %v5410, %v5828
      %v5871 = vmul.f32 %v5411, %v5833
      %v5872 = vmul.f32 %v5412, %v5836
      %v5873 = vmul.f32 %v5413, %v5841
      %v5874 = vmul.f32 %v5414, %v5844
      %v5875 = vmul.f32 %v5415, %v5849
      %v5876 = vmul.f32 %v5416, %v5852
      %v5877 = vmul.f32 %v5417, %v5857
      %v5878 = vmul.f32 %v5418, %v5860
      %v5879 = vpack.c.bf16 %v5864, %v5863
      %v5880 = vpack.c.bf16 %v5866, %v5865
      %v5881 = vpack.c.bf16 %v5868, %v5867
      %v5882 = vpack.c.bf16 %v5870, %v5869
      %v5883 = vpack.c.bf16 %v5872, %v5871
      %v5884 = vpack.c.bf16 %v5874, %v5873
      %v5885 = vpack.c.bf16 %v5876, %v5875
      %v5886 = vpack.c.bf16 %v5878, %v5877
      %5887 = vmatprep.subr.bf16.mxu0 0
      %5888 = vmatpush1.bf16.msra.mxu0 %v5879
      %5889 = vmatprep.subr.bf16.mxu0 0
      %5890 = vmatpush1.bf16.msra.mxu0 %v5880
      %5891 = vmatprep.subr.bf16.mxu0 0
      %5892 = vmatpush1.bf16.msra.mxu0 %v5881
      %5893 = vmatprep.subr.bf16.mxu0 0
      %5894 = vmatpush1.bf16.msra.mxu0 %v5882
      %5895 = vmatprep.subr.bf16.mxu0 0
      %5896 = vmatpush1.bf16.msra.mxu0 %v5883
      %5897 = vmatprep.subr.bf16.mxu0 0
      %5898 = vmatpush1.bf16.msra.mxu0 %v5884
      %5899 = vmatprep.subr.bf16.mxu0 0
      %5900 = vmatpush1.bf16.msra.mxu0 %v5885
      %5901 = vmatprep.subr.bf16.mxu0 0
      %5902 = vmatpush1.bf16.msra.mxu0 %v5886
      %5903 = vmatprep.subr.bf16.mxu0 0
      %5904 = vmatpush1.bf16.msra.mxu0 0
      %5905 = vmatprep.subr.bf16.mxu0 0
      %5906 = vmatpush1.bf16.msra.mxu0 0
      %5907 = vmatprep.subr.bf16.mxu0 0
      %5908 = vmatpush1.bf16.msra.mxu0 0
      %5909 = vmatprep.subr.bf16.mxu0 0
      %5910 = vmatpush1.bf16.msra.mxu0 0
      %5911 = vmatprep.subr.bf16.mxu0 0
      %5912 = vmatpush1.bf16.msra.mxu0 0
      %5913 = vmatprep.subr.bf16.mxu0 0
      %5914 = vmatpush1.bf16.msra.mxu0 0
      %5915 = vmatprep.subr.bf16.mxu0 0
      %5916 = vmatpush1.bf16.msra.mxu0 0
      %5917 = vmatprep.subr.bf16.mxu0 0
      %5918 = vmatpush1.bf16.msra.mxu0 0
      %5919 = vmatprep.mubr.bf16.mxu0 0
      %5920 = vmatmul.mubr.bf16.gmra.mrb[0].mxu0 %v5435
      %v5921 = vpop.f32.mrb[0].mxu0
      %v5922 = vadd.f32 %v1478, %v5921
      %v5923 = vpop.f32.mrb[0].mxu0
      %v5924 = vpop.f32.mrb[0].mxu0
      %v5925 = vadd.f32 %v1478, %v5924
      %v5926 = vpop.f32.mrb[0].mxu0
      %5927 = vmatprep.mubr.bf16.mxu0 0
      %5928 = vmatmul.mubr.bf16.gmra.mrb[0].mxu0 %v5436
      %v5929 = vpop.f32.mrb[0].mxu0
      %v5930 = vadd.f32 %v1478, %v5929
      %v5931 = vpop.f32.mrb[0].mxu0
      %v5932 = vpop.f32.mrb[0].mxu0
      %v5933 = vadd.f32 %v1478, %v5932
      %v5934 = vpop.f32.mrb[0].mxu0
      %5935 = vmatprep.mubr.bf16.mxu0 0
      %5936 = vmatmul.mubr.bf16.gmra.mrb[0].mxu0 %v5437
      %v5937 = vpop.f32.mrb[0].mxu0
      %v5938 = vadd.f32 %v1478, %v5937
      %v5939 = vpop.f32.mrb[0].mxu0
      %v5940 = vpop.f32.mrb[0].mxu0
      %v5941 = vadd.f32 %v1478, %v5940
      %v5942 = vpop.f32.mrb[0].mxu0
      %5943 = vmatprep.mubr.bf16.mxu0 0
      %5944 = vmatmul.mubr.bf16.gmra.mrb[0].mxu0 %v5438
      %v5945 = vpop.f32.mrb[0].mxu0
      %v5946 = vadd.f32 %v1478, %v5945
      %v5947 = vpop.f32.mrb[0].mxu0
      %v5948 = vpop.f32.mrb[0].mxu0
      %v5949 = vadd.f32 %v1478, %v5948
      %v5950 = vpop.f32.mrb[0].mxu0
      %5951 = vmatprep.mubr.bf16.mxu0 0
      %5952 = vmatmul.mubr.bf16.gmra.mrb[0].mxu0 %v5439
      %v5953 = vpop.f32.mrb[0].mxu0
      %v5954 = vadd.f32 %v1478, %v5953
      %v5955 = vpop.f32.mrb[0].mxu0
      %v5956 = vpop.f32.mrb[0].mxu0
      %v5957 = vadd.f32 %v1478, %v5956
      %v5958 = vpop.f32.mrb[0].mxu0
      %5959 = vmatprep.mubr.bf16.mxu0 0
      %5960 = vmatmul.mubr.bf16.gmra.mrb[0].mxu0 %v5440
      %v5961 = vpop.f32.mrb[0].mxu0
      %v5962 = vadd.f32 %v1478, %v5961
      %v5963 = vpop.f32.mrb[0].mxu0
      %v5964 = vpop.f32.mrb[0].mxu0
      %v5965 = vadd.f32 %v1478, %v5964
      %v5966 = vpop.f32.mrb[0].mxu0
      %5967 = vmatprep.mubr.bf16.mxu0 0
      %5968 = vmatmul.mubr.bf16.gmra.mrb[0].mxu0 %v5441
      %v5969 = vpop.f32.mrb[0].mxu0
      %v5970 = vadd.f32 %v1478, %v5969
      %v5971 = vpop.f32.mrb[0].mxu0
      %v5972 = vpop.f32.mrb[0].mxu0
      %v5973 = vadd.f32 %v1478, %v5972
      %v5974 = vpop.f32.mrb[0].mxu0
      %5975 = vmatprep.mubr.bf16.mxu0 0
      %5976 = vmatmul.mubr.bf16.gmra.mrb[0].mxu0 %v5442
      %v5977 = vpop.f32.mrb[0].mxu0
      %v5978 = vadd.f32 %v1478, %v5977
      %v5979 = vpop.f32.mrb[0].mxu0
      %v5980 = vpop.f32.mrb[0].mxu0
      %v5981 = vadd.f32 %v1478, %v5980
      %v5982 = vpop.f32.mrb[0].mxu0
      %5983 = vdwg.mxu0
      %v5984 = vmax.f32 %v5922, 0.0
      %v5985 = vmax.f32 %v5925, 0.0
      %v5986 = vmax.f32 %v5930, 0.0
      %v5987 = vmax.f32 %v5933, 0.0
      %v5988 = vmax.f32 %v5938, 0.0
      %v5989 = vmax.f32 %v5941, 0.0
      %v5990 = vmax.f32 %v5946, 0.0
      %v5991 = vmax.f32 %v5949, 0.0
      %v5992 = vmax.f32 %v5954, 0.0
      %v5993 = vmax.f32 %v5957, 0.0
      %v5994 = vmax.f32 %v5962, 0.0
      %v5995 = vmax.f32 %v5965, 0.0
      %v5996 = vmax.f32 %v5970, 0.0
      %v5997 = vmax.f32 %v5973, 0.0
      %v5998 = vmax.f32 %v5978, 0.0
      %v5999 = vmax.f32 %v5981, 0.0
      %v6000 = vpack.c.bf16 %v5985, %v5984
      %v6001 = vpack.c.bf16 %v5987, %v5986
      %v6002 = vpack.c.bf16 %v5989, %v5988
      %v6003 = vpack.c.bf16 %v5991, %v5990
      %v6004 = vpack.c.bf16 %v5993, %v5992
      %v6005 = vpack.c.bf16 %v5995, %v5994
      %v6006 = vpack.c.bf16 %v5997, %v5996
      %v6007 = vpack.c.bf16 %v5999, %v5998
      %6008 = vmatprep.subr.bf16.mxu0 0
      %6009 = vmatpush1.bf16.msra.mxu0 %v1632
      %6010 = vmatprep.subr.bf16.mxu0 0
      %6011 = vmatpush1.bf16.msra.mxu0 %v1633
      %6012 = vmatprep.subr.bf16.mxu0 0
      %6013 = vmatpush1.bf16.msra.mxu0 %v1634
      %6014 = vmatprep.subr.bf16.mxu0 0
      %6015 = vmatpush1.bf16.msra.mxu0 %v1635
      %6016 = vmatprep.subr.bf16.mxu0 0
      %6017 = vmatpush1.bf16.msra.mxu0 %v1636
      %6018 = vmatprep.subr.bf16.mxu0 0
      %6019 = vmatpush1.bf16.msra.mxu0 %v1637
      %6020 = vmatprep.subr.bf16.mxu0 0
      %6021 = vmatpush1.bf16.msra.mxu0 %v1638
      %6022 = vmatprep.subr.bf16.mxu0 0
      %6023 = vmatpush1.bf16.msra.mxu0 %v1639
      %6024 = vmatprep.subr.bf16.mxu0 0
      %6025 = vmatpush1.bf16.msra.mxu0 0
      %6026 = vmatprep.subr.bf16.mxu0 0
      %6027 = vmatpush1.bf16.msra.mxu0 0
      %6028 = vmatprep.subr.bf16.mxu0 0
      %6029 = vmatpush1.bf16.msra.mxu0 0
      %6030 = vmatprep.subr.bf16.mxu0 0
      %6031 = vmatpush1.bf16.msra.mxu0 0
      %6032 = vmatprep.subr.bf16.mxu0 0
      %6033 = vmatpush1.bf16.msra.mxu0 0
      %6034 = vmatprep.subr.bf16.mxu0 0
      %6035 = vmatpush1.bf16.msra.mxu0 0
      %6036 = vmatprep.subr.bf16.mxu0 0
      %6037 = vmatpush1.bf16.msra.mxu0 0
      %6038 = vmatprep.subr.bf16.mxu0 0
      %6039 = vmatpush1.bf16.msra.mxu0 0
      %6040 = vmatprep.mubr.bf16.mxu0 0
      %6041 = vmatmul.mubr.bf16.gmra.mrb[0].mxu0 %v6000
      %v6042 = vpop.f32.mrb[0].mxu0
      %v6043 = vadd.f32 0.0, %v6042
      %v6044 = vpop.f32.mrb[0].mxu0
      %v6045 = vpop.f32.mrb[0].mxu0
      %v6046 = vadd.f32 0.0, %v6045
      %v6047 = vpop.f32.mrb[0].mxu0
      %6048 = vmatprep.mubr.bf16.mxu0 0
      %6049 = vmatmul.mubr.bf16.gmra.mrb[0].mxu0 %v6001
      %v6050 = vpop.f32.mrb[0].mxu0
      %v6051 = vadd.f32 0.0, %v6050
      %v6052 = vpop.f32.mrb[0].mxu0
      %v6053 = vpop.f32.mrb[0].mxu0
      %v6054 = vadd.f32 0.0, %v6053
      %v6055 = vpop.f32.mrb[0].mxu0
      %6056 = vmatprep.mubr.bf16.mxu0 0
      %6057 = vmatmul.mubr.bf16.gmra.mrb[0].mxu0 %v6002
      %v6058 = vpop.f32.mrb[0].mxu0
      %v6059 = vadd.f32 0.0, %v6058
      %v6060 = vpop.f32.mrb[0].mxu0
      %v6061 = vpop.f32.mrb[0].mxu0
      %v6062 = vadd.f32 0.0, %v6061
      %v6063 = vpop.f32.mrb[0].mxu0
      %6064 = vmatprep.mubr.bf16.mxu0 0
      %6065 = vmatmul.mubr.bf16.gmra.mrb[0].mxu0 %v6003
      %v6066 = vpop.f32.mrb[0].mxu0
      %v6067 = vadd.f32 0.0, %v6066
      %v6068 = vpop.f32.mrb[0].mxu0
      %v6069 = vpop.f32.mrb[0].mxu0
      %v6070 = vadd.f32 0.0, %v6069
      %v6071 = vpop.f32.mrb[0].mxu0
      %6072 = vmatprep.mubr.bf16.mxu0 0
      %6073 = vmatmul.mubr.bf16.gmra.mrb[0].mxu0 %v6004
      %v6074 = vpop.f32.mrb[0].mxu0
      %v6075 = vadd.f32 0.0, %v6074
      %v6076 = vpop.f32.mrb[0].mxu0
      %v6077 = vpop.f32.mrb[0].mxu0
      %v6078 = vadd.f32 0.0, %v6077
      %v6079 = vpop.f32.mrb[0].mxu0
      %6080 = vmatprep.mubr.bf16.mxu0 0
      %6081 = vmatmul.mubr.bf16.gmra.mrb[0].mxu0 %v6005
      %v6082 = vpop.f32.mrb[0].mxu0
      %v6083 = vadd.f32 0.0, %v6082
      %v6084 = vpop.f32.mrb[0].mxu0
      %v6085 = vpop.f32.mrb[0].mxu0
      %v6086 = vadd.f32 0.0, %v6085
      %v6087 = vpop.f32.mrb[0].mxu0
      %6088 = vmatprep.mubr.bf16.mxu0 0
      %6089 = vmatmul.mubr.bf16.gmra.mrb[0].mxu0 %v6006
      %v6090 = vpop.f32.mrb[0].mxu0
      %v6091 = vadd.f32 0.0, %v6090
      %v6092 = vpop.f32.mrb[0].mxu0
      %v6093 = vpop.f32.mrb[0].mxu0
      %v6094 = vadd.f32 0.0, %v6093
      %v6095 = vpop.f32.mrb[0].mxu0
      %6096 = vmatprep.mubr.bf16.mxu0 0
      %6097 = vmatmul.mubr.bf16.gmra.mrb[0].mxu0 %v6007
      %v6098 = vpop.f32.mrb[0].mxu0
      %v6099 = vadd.f32 0.0, %v6098
      %v6100 = vpop.f32.mrb[0].mxu0
      %v6101 = vpop.f32.mrb[0].mxu0
      %v6102 = vadd.f32 0.0, %v6101
      %v6103 = vpop.f32.mrb[0].mxu0
      %6104 = vdwg.mxu0
      %v6105 = vmul.f32 %v5403, %v6043
      %v6106 = vmul.f32 %v5404, %v6046
      %v6107 = vmul.f32 %v5405, %v6051
      %v6108 = vmul.f32 %v5406, %v6054
      %v6109 = vmul.f32 %v5407, %v6059
      %v6110 = vmul.f32 %v5408, %v6062
      %v6111 = vmul.f32 %v5409, %v6067
      %v6112 = vmul.f32 %v5410, %v6070
      %v6113 = vmul.f32 %v5411, %v6075
      %v6114 = vmul.f32 %v5412, %v6078
      %v6115 = vmul.f32 %v5413, %v6083
      %v6116 = vmul.f32 %v5414, %v6086
      %v6117 = vmul.f32 %v5415, %v6091
      %v6118 = vmul.f32 %v5416, %v6094
      %v6119 = vmul.f32 %v5417, %v6099
      %v6120 = vmul.f32 %v5418, %v6102
      %v6121 = vpack.c.bf16 %v6106, %v6105
      %v6122 = vpack.c.bf16 %v6108, %v6107
      %v6123 = vpack.c.bf16 %v6110, %v6109
      %v6124 = vpack.c.bf16 %v6112, %v6111
      %v6125 = vpack.c.bf16 %v6114, %v6113
      %v6126 = vpack.c.bf16 %v6116, %v6115
      %v6127 = vpack.c.bf16 %v6118, %v6117
      %v6128 = vpack.c.bf16 %v6120, %v6119
      %6129 = vmatprep.subr.bf16.mxu0 0
      %6130 = vmatpush1.bf16.msra.mxu0 %v6121
      %6131 = vmatprep.subr.bf16.mxu0 0
      %6132 = vmatpush1.bf16.msra.mxu0 %v6122
      %6133 = vmatprep.subr.bf16.mxu0 0
      %6134 = vmatpush1.bf16.msra.mxu0 %v6123
      %6135 = vmatprep.subr.bf16.mxu0 0
      %6136 = vmatpush1.bf16.msra.mxu0 %v6124
      %6137 = vmatprep.subr.bf16.mxu0 0
      %6138 = vmatpush1.bf16.msra.mxu0 %v6125
      %6139 = vmatprep.subr.bf16.mxu0 0
      %6140 = vmatpush1.bf16.msra.mxu0 %v6126
      %6141 = vmatprep.subr.bf16.mxu0 0
      %6142 = vmatpush1.bf16.msra.mxu0 %v6127
      %6143 = vmatprep.subr.bf16.mxu0 0
      %6144 = vmatpush1.bf16.msra.mxu0 %v6128
      %6145 = vmatprep.subr.bf16.mxu0 0
      %6146 = vmatpush1.bf16.msra.mxu0 0
      %6147 = vmatprep.subr.bf16.mxu0 0
      %6148 = vmatpush1.bf16.msra.mxu0 0
      %6149 = vmatprep.subr.bf16.mxu0 0
      %6150 = vmatpush1.bf16.msra.mxu0 0
      %6151 = vmatprep.subr.bf16.mxu0 0
      %6152 = vmatpush1.bf16.msra.mxu0 0
      %6153 = vmatprep.subr.bf16.mxu0 0
      %6154 = vmatpush1.bf16.msra.mxu0 0
      %6155 = vmatprep.subr.bf16.mxu0 0
      %6156 = vmatpush1.bf16.msra.mxu0 0
      %6157 = vmatprep.subr.bf16.mxu0 0
      %6158 = vmatpush1.bf16.msra.mxu0 0
      %6159 = vmatprep.subr.bf16.mxu0 0
      %6160 = vmatpush1.bf16.msra.mxu0 0
      %6161 = vmatprep.mubr.bf16.mxu0 0
      %6162 = vmatmul.mubr.bf16.gmra.mrb[0].mxu0 %v5435
      %v6163 = vpop.f32.mrb[0].mxu0
      %v6164 = vadd.f32 %v1772, %v6163
      %v6165 = vpop.f32.mrb[0].mxu0
      %v6166 = vpop.f32.mrb[0].mxu0
      %v6167 = vadd.f32 %v1772, %v6166
      %v6168 = vpop.f32.mrb[0].mxu0
      %6169 = vmatprep.mubr.bf16.mxu0 0
      %6170 = vmatmul.mubr.bf16.gmra.mrb[0].mxu0 %v5436
      %v6171 = vpop.f32.mrb[0].mxu0
      %v6172 = vadd.f32 %v1772, %v6171
      %v6173 = vpop.f32.mrb[0].mxu0
      %v6174 = vpop.f32.mrb[0].mxu0
      %v6175 = vadd.f32 %v1772, %v6174
      %v6176 = vpop.f32.mrb[0].mxu0
      %6177 = vmatprep.mubr.bf16.mxu0 0
      %6178 = vmatmul.mubr.bf16.gmra.mrb[0].mxu0 %v5437
      %v6179 = vpop.f32.mrb[0].mxu0
      %v6180 = vadd.f32 %v1772, %v6179
      %v6181 = vpop.f32.mrb[0].mxu0
      %v6182 = vpop.f32.mrb[0].mxu0
      %v6183 = vadd.f32 %v1772, %v6182
      %v6184 = vpop.f32.mrb[0].mxu0
      %6185 = vmatprep.mubr.bf16.mxu0 0
      %6186 = vmatmul.mubr.bf16.gmra.mrb[0].mxu0 %v5438
      %v6187 = vpop.f32.mrb[0].mxu0
      %v6188 = vadd.f32 %v1772, %v6187
      %v6189 = vpop.f32.mrb[0].mxu0
      %v6190 = vpop.f32.mrb[0].mxu0
      %v6191 = vadd.f32 %v1772, %v6190
      %v6192 = vpop.f32.mrb[0].mxu0
      %6193 = vmatprep.mubr.bf16.mxu0 0
      %6194 = vmatmul.mubr.bf16.gmra.mrb[0].mxu0 %v5439
      %v6195 = vpop.f32.mrb[0].mxu0
      %v6196 = vadd.f32 %v1772, %v6195
      %v6197 = vpop.f32.mrb[0].mxu0
      %v6198 = vpop.f32.mrb[0].mxu0
      %v6199 = vadd.f32 %v1772, %v6198
      %v6200 = vpop.f32.mrb[0].mxu0
      %6201 = vmatprep.mubr.bf16.mxu0 0
      %6202 = vmatmul.mubr.bf16.gmra.mrb[0].mxu0 %v5440
      %v6203 = vpop.f32.mrb[0].mxu0
      %v6204 = vadd.f32 %v1772, %v6203
      %v6205 = vpop.f32.mrb[0].mxu0
      %v6206 = vpop.f32.mrb[0].mxu0
      %v6207 = vadd.f32 %v1772, %v6206
      %v6208 = vpop.f32.mrb[0].mxu0
      %6209 = vmatprep.mubr.bf16.mxu0 0
      %6210 = vmatmul.mubr.bf16.gmra.mrb[0].mxu0 %v5441
      %v6211 = vpop.f32.mrb[0].mxu0
      %v6212 = vadd.f32 %v1772, %v6211
      %v6213 = vpop.f32.mrb[0].mxu0
      %v6214 = vpop.f32.mrb[0].mxu0
      %v6215 = vadd.f32 %v1772, %v6214
      %v6216 = vpop.f32.mrb[0].mxu0
      %6217 = vmatprep.mubr.bf16.mxu0 0
      %6218 = vmatmul.mubr.bf16.gmra.mrb[0].mxu0 %v5442
      %v6219 = vpop.f32.mrb[0].mxu0
      %v6220 = vadd.f32 %v1772, %v6219
      %v6221 = vpop.f32.mrb[0].mxu0
      %v6222 = vpop.f32.mrb[0].mxu0
      %v6223 = vadd.f32 %v1772, %v6222
      %v6224 = vpop.f32.mrb[0].mxu0
      %6225 = vdwg.mxu0
      %s6226 = scalar_lea.vmem %s229, 384
      %6227 = vst.msk [vmem:[%s6226] sm:$0xff] %vm1870, %v6164
      %6228 = vst.msk [vmem:[%s6226 + $0x8] sm:$0xff] %vm1870, %v6167
      %6229 = vst.msk [vmem:[%s6226 + $0x10] sm:$0xff] %vm1870, %v6172
      %6230 = vst.msk [vmem:[%s6226 + $0x18] sm:$0xff] %vm1870, %v6175
      %6231 = vst.msk [vmem:[%s6226 + $0x20] sm:$0xff] %vm1870, %v6180
      %6232 = vst.msk [vmem:[%s6226 + $0x28] sm:$0xff] %vm1870, %v6183
      %6233 = vst.msk [vmem:[%s6226 + $0x30] sm:$0xff] %vm1870, %v6188
      %6234 = vst.msk [vmem:[%s6226 + $0x38] sm:$0xff] %vm1870, %v6191
      %6235 = vst.msk [vmem:[%s6226 + $0x40] sm:$0xff] %vm1870, %v6196
      %6236 = vst.msk [vmem:[%s6226 + $0x48] sm:$0xff] %vm1870, %v6199
      %6237 = vst.msk [vmem:[%s6226 + $0x50] sm:$0xff] %vm1870, %v6204
      %6238 = vst.msk [vmem:[%s6226 + $0x58] sm:$0xff] %vm1870, %v6207
      %6239 = vst.msk [vmem:[%s6226 + $0x60] sm:$0xff] %vm1870, %v6212
      %6240 = vst.msk [vmem:[%s6226 + $0x68] sm:$0xff] %vm1870, %v6215
      %6241 = vst.msk [vmem:[%s6226 + $0x70] sm:$0xff] %vm1870, %v6220
      %6242 = vst.msk [vmem:[%s6226 + $0x78] sm:$0xff] %vm1870, %v6223
      %s6243 = smul.u32 4, %s15
      %p6244 = scmp.lt.s32.totalorder %s6243, 7
      %s6245 = scalar_select %p6244, %s6243, 7
      %s6246 = smul.addr %s6245, 16
      %s6247 = smul.addr %s6246, 8
      %s6248 = scalar_lea.vmem %s4, %s6247
      // Predicated region
      $region37: #{cavity_gnn_forward.1} parent=35 // pred_check
        %p6249 = pneg %p127
      $region38: #{cavity_gnn_forward.1} parent=35 // pred_check_branch
        %6251 = sbr.rel (%p6249) target = $region40
      $region39: #{cavity_gnn_forward.1} parent=35 // pred_region
        %s6252 = smul.u32 4, %s15
      $region40: #{cavity_gnn_forward.1} parent=35 // pred_fallthru
        _
    $region36: #{cavity_gnn_forward.1} parent=5 // pred_fallthru
      _
    %p6253 = scmp.le.s32.totalorder 2, %s10
    // Predicated region
    $region41: #{cavity_gnn_forward.1} parent=5 // pred_check
      %p6254 = pneg %p6253
    $region42: #{cavity_gnn_forward.1} parent=5 // pred_check_branch
      %6256 = sbr.rel (%p6254) target = $region44
    $region43: #{cavity_gnn_forward.1} parent=5 // pred_region
      %s6257 = ssub.s32 %s10, 2
      // Predicated region
      $region45: #{cavity_gnn_forward.1} parent=43 // pred_check
        %p6258 = pneg %p133
      $region46: #{cavity_gnn_forward.1} parent=43 // pred_check_branch
        %6260 = sbr.rel (%p6258) target = $region48
      $region47: #{cavity_gnn_forward.1} parent=43 // pred_region
        %s6261 = smul.u32 4, %s16
        %p6262 = scmp.lt.s32.totalorder %s6261, 7
        %s6263 = scalar_select %p6262, %s6261, 7
        %s6264 = smul.addr %s6263, 16
        %s6265 = smul.addr %s6264, 8
        %s6266 = scalar_lea.vmem %s4, %s6265
      $region48: #{cavity_gnn_forward.1} parent=43 // pred_fallthru
        _
    $region44: #{cavity_gnn_forward.1} parent=5 // pred_fallthru
      _
  $region6: #{cavity_gnn_forward.1} parent=0 // loop_footer
    %s14 = sadd.s32 1, %s10
  $region7: #{cavity_gnn_forward.1} parent=0 // loop_footer_branch
    %9 = sbr.rel target = $region3
  $region8: #{cavity_gnn_forward.1} parent=0 // loop_exit
    _

</llo_original>
